<compile_context>
chip_gen: v5e
topology: v5e:2x2
jax: 0.10.0
libtpu: 0.0.40
codegen_flags: <defaults>
</compile_context>

<pallas_src>
import functools

import jax
import jax.numpy as jnp
from jax.experimental import pallas as pl
from jax.experimental.pallas import tpu as pltpu


# ----------------------------------------------------------------------------
# In-kernel helpers (operate on values already in vregs)
# ----------------------------------------------------------------------------

def _ln(x, g, b, eps):
    mu = jnp.mean(x, axis=-1, keepdims=True)
    var = jnp.mean(jnp.square(x - mu), axis=-1, keepdims=True)
    return (x - mu) * jax.lax.rsqrt(var + eps) * g + b


def _softmax(s):
    m = jnp.max(s, axis=-1, keepdims=True)
    e = jnp.exp(s - m)
    return e / jnp.sum(e, axis=-1, keepdims=True)


def _qkt(q, k):
    # q @ k.T without materializing the transpose.
    return jax.lax.dot_general(
        q, k, (((1,), (1,)), ((), ())), preferred_element_type=jnp.float32)


def _mm(a, b):
    return jnp.dot(a, b, preferred_element_type=jnp.float32)


_SQRT1_2 = 0.7071067811865476


def _erf(x):
    # Abramowitz–Stegun 7.1.26 rational approximation, max abs error ~1.5e-7.
    a1, a2, a3, a4, a5 = (0.254829592, -0.284496736, 1.421413741,
                          -1.453152027, 1.061405429)
    p = 0.3275911
    s = jnp.where(x >= 0.0, 1.0, -1.0)
    ax = jnp.abs(x)
    t = 1.0 / (1.0 + p * ax)
    poly = ((((a5 * t + a4) * t + a3) * t + a2) * t + a1) * t
    return s * (1.0 - poly * jnp.exp(-ax * ax))


def _gelu(x):
    # Exact-erf GELU (matches torch.nn.GELU default) via the polynomial above.
    return 0.5 * x * (1.0 + _erf(x * _SQRT1_2))


def _std_attention(h, qkv_w, qkv_b, *, num_heads, head_dim, scale):
    D = h.shape[-1]
    qkv = _mm(h, qkv_w) + qkv_b                       # (N, 3D), layout [q | k | v]
    outs = []
    for hh in range(num_heads):
        lo = hh * head_dim
        q = qkv[:, 0 * D + lo:0 * D + lo + head_dim]
        k = qkv[:, 1 * D + lo:1 * D + lo + head_dim]
        v = qkv[:, 2 * D + lo:2 * D + lo + head_dim]
        p = _softmax(_qkt(q, k) * scale)
        outs.append(_mm(p, v))                        # (N, hd)
    return jnp.concatenate(outs, axis=-1)             # (N, D), head-major (matches proj_w rows)


def _implicit_attention(h, b_w, b_b, a_bd, *, num_heads, head_dim, scale, n_iter):
    hd = head_dim
    bu = _mm(h, b_w) + b_b                            # (N, 4D); head h -> cols [4hd*h, 4hd*(h+1))
    Z = bu                                            # iteration 0 peeled: X = 0 -> Z = B_U
    xo = [None] * num_heads
    for it in range(n_iter):
        for hh in range(num_heads):
            base = hh * 4 * hd
            k = Z[:, base + 0 * hd:base + 1 * hd]
            q = Z[:, base + 1 * hd:base + 2 * hd]
            v = Z[:, base + 2 * hd:base + 3 * hd]
            px = Z[:, base + 3 * hd:base + 4 * hd]
            p = _softmax(_qkt(q, k) * scale)
            xo[hh] = px + _mm(p, v)                   # (N, hd)
        if it + 1 < n_iter:                           # last iteration needs no X @ A
            pieces = []
            for hh in range(num_heads):
                base = hh * 4 * hd
                pieces.append(Z[:, base:base + 3 * hd])   # k|q|v unchanged
                pieces.append(xo[hh])                     # new x block
            X = jnp.concatenate(pieces, axis=-1)          # (N, 4D)
            Z = _mm(X, a_bd) + bu                         # ONE lane-dense (N,4D)@(4D,4D) / iter
    return jnp.concatenate(xo, axis=-1)                   # (N, D), head-major


# ----------------------------------------------------------------------------
# Fully fused forward kernel (one grid step = one image)
# ----------------------------------------------------------------------------

def _vit_fused_kernel(*refs, block_kinds, num_heads, head_dim, scale, eps, n_iter):
    it = iter(refs)
    nxt = lambda: next(it)

    # --- patch embed + cls token + pos embed (pos_drop rate 0 -> identity) ---
    p_ref = nxt()
    patch_w = nxt()[...]
    patch_b = nxt()[...]
    cls_tok = nxt()[...]
    pos = nxt()[...]
    tok = _mm(p_ref[...], patch_w) + patch_b                 # (nP, D)
    x = jnp.concatenate([cls_tok, tok], axis=0) + pos        # (N, D)

    # --- transformer blocks ---
    for kind in block_kinds:
        g1 = nxt()[...]
        b1 = nxt()[...]
        if kind == "implicit":
            b_w = nxt()[...]
            b_b = nxt()[...]
            a_bd = nxt()[...]
        else:
            qkv_w = nxt()[...]
            qkv_b = nxt()[...]
        proj_w = nxt()[...]
        proj_b = nxt()[...]
        g2 = nxt()[...]
        b2 = nxt()[...]
        f1w = nxt()[...]
        f1b = nxt()[...]
        f2w = nxt()[...]
        f2b = nxt()[...]

        h = _ln(x, g1, b1, eps)
        if kind == "implicit":
            ao = _implicit_attention(h, b_w, b_b, a_bd, num_heads=num_heads,
                                     head_dim=head_dim, scale=scale, n_iter=n_iter)
        else:
            ao = _std_attention(h, qkv_w, qkv_b, num_heads=num_heads,
                                head_dim=head_dim, scale=scale)
        x = x + _mm(ao, proj_w) + proj_b                      # attention residual
        h2 = _ln(x, g2, b2, eps)
        x = x + _mm(_gelu(_mm(h2, f1w) + f1b), f2w) + f2b     # MLP residual (GELU in-kernel)

    # --- final LayerNorm on cls row + classification head (pre_logits = Identity) ---
    ng = nxt()[...]
    nb = nxt()[...]
    hw = nxt()[...]
    hb = nxt()[...]
    o_ref = nxt()
    cls_row = x[0:1, :]                                       # (1, D), already in vregs
    o_ref[...] = _mm(_ln(cls_row, ng, nb, eps), hw) + hb


# ----------------------------------------------------------------------------
# pallas_call wrapper
# ----------------------------------------------------------------------------

def _const_spec(shape):
    # Whole-array block, same block for every grid step (weights / biases).
    return pl.BlockSpec(shape, lambda b, _n=len(shape): (0,) * _n)


def _block_diag(a):
    # (H, m, m) -> (H*m, H*m) block-diagonal.
    H, m, _ = a.shape
    eye = jnp.eye(H, dtype=a.dtype)
    return (eye[:, None, :, None] * a[:, :, None, :]).reshape(H * m, H * m)


def vit_forward(params, x, cfg):
    # x: (B, C, H, W) NCHW float32
    B, C, Himg, Wimg = x.shape
    p = cfg["patch_size"]
    D = cfg["embed_dim"]
    H = cfg["num_heads"]
    hd = D // H
    scale = hd ** (-0.5)
    hidden = int(D * cfg["mlp_ratio"])
    hp, wp = Himg // p, Wimg // p
    nP = hp * wp
    N = nP + 1
    Cpp = C * p * p
    nc = cfg["num_classes"]

    # im2col: (B, nP, C*p*p) with patch vector ordered (c, kh, kw) like Conv2d weights.
    patches = (x.reshape(B, C, hp, p, wp, p)
                .transpose(0, 2, 4, 1, 3, 5)
                .reshape(B, nP, Cpp))

    in_specs = [
        pl.BlockSpec((None, nP, Cpp), lambda b: (b, 0, 0)),   # patches (per-batch)
        _const_spec((Cpp, D)), _const_spec((1, D)),           # patch embed w/b
        _const_spec((1, D)), _const_spec((N, D)),             # cls token, pos embed
    ]
    args = [patches, params["patch_w"], params["patch_b"],
            params["cls_token"], params["pos_embed"]]

    block_kinds = []
    for blk in params["blocks"]:
        implicit = "A" in blk
        block_kinds.append("implicit" if implicit else "standard")
        in_specs += [_const_spec((1, D)), _const_spec((1, D))]            # norm1 g/b
        args += [blk["norm1_g"], blk["norm1_b"]]
        if implicit:
            a_bd = _block_diag(blk["A"])                                  # (4D, 4D) host-side prep
            in_specs += [_const_spec((D, 4 * D)), _const_spec((1, 4 * D)),
                         _const_spec((4 * D, 4 * D))]
            args += [blk["B_w"], blk["B_b"], a_bd]
        else:
            in_specs += [_const_spec((D, 3 * D)), _const_spec((1, 3 * D))]
            args += [blk["qkv_w"], blk["qkv_b"]]
        in_specs += [_const_spec((D, D)), _const_spec((1, D)),            # proj w/b
                     _const_spec((1, D)), _const_spec((1, D)),            # norm2 g/b
                     _const_spec((D, hidden)), _const_spec((1, hidden)),  # fc1 w/b
                     _const_spec((hidden, D)), _const_spec((1, D))]       # fc2 w/b
        args += [blk["proj_w"], blk["proj_b"], blk["norm2_g"], blk["norm2_b"],
                 blk["fc1_w"], blk["fc1_b"], blk["fc2_w"], blk["fc2_b"]]

    in_specs += [_const_spec((1, D)), _const_spec((1, D)),                # final norm g/b
                 _const_spec((D, nc)), _const_spec((1, nc))]              # head w/b
    args += [params["norm_g"], params["norm_b"], params["head_w"], params["head_b"]]

    kernel = functools.partial(
        _vit_fused_kernel, block_kinds=tuple(block_kinds), num_heads=H,
        head_dim=hd, scale=scale, eps=1e-6, n_iter=cfg["fixed_point_iter"])

    out = pl.pallas_call(
        kernel,
        grid=(B,),
        in_specs=in_specs,
        out_specs=pl.BlockSpec((None, 1, nc), lambda b: (b, 0, 0)),
        out_shape=jax.ShapeDtypeStruct((B, 1, nc), jnp.float32),
        compiler_params=pltpu.CompilerParams(dimension_semantics=("parallel",)),
    )(*args)
    return out.reshape(B, nc)


# ----------------------------------------------------------------------------
# Model (parameter init)
# ----------------------------------------------------------------------------

CFG = dict(
    img_size=16,
    patch_size=4,
    in_chans=3,
    embed_dim=32,
    depth=2,
    num_heads=4,
    mlp_ratio=4.0,
    num_classes=10,
    fixed_point_iter=5,
)


def init_params(key, cfg):
    D = cfg["embed_dim"]
    p = cfg["patch_size"]
    C = cfg["in_chans"]
    H = cfg["num_heads"]
    hd = D // H
    hidden = int(D * cfg["mlp_ratio"])
    nP = (cfg["img_size"] // p) ** 2
    N = nP + 1

    ks = iter(jax.random.split(key, 64))

    def nrm(shape, std=0.02):
        return std * jax.random.normal(next(ks), shape, jnp.float32)

    params = {
        "patch_w": nrm((C * p * p, D)),     # Conv2d weight flattened as (c, kh, kw) x D
        "patch_b": nrm((1, D)),
        "cls_token": nrm((1, D)),
        "pos_embed": nrm((N, D)),
        "norm_g": jnp.ones((1, D), jnp.float32),
        "norm_b": jnp.zeros((1, D), jnp.float32),
        "head_w": nrm((D, cfg["num_classes"])),
        "head_b": jnp.zeros((1, cfg["num_classes"]), jnp.float32),
        "blocks": [],
    }
    for i in range(cfg["depth"]):
        blk = {
            "norm1_g": jnp.ones((1, D), jnp.float32),
            "norm1_b": jnp.zeros((1, D), jnp.float32),
            "norm2_g": jnp.ones((1, D), jnp.float32),
            "norm2_b": jnp.zeros((1, D), jnp.float32),
            "proj_w": nrm((D, D)),
            "proj_b": nrm((1, D)),
            "fc1_w": nrm((D, hidden)),
            "fc1_b": nrm((1, hidden)),
            "fc2_w": nrm((hidden, D)),
            "fc2_b": nrm((1, D)),
        }
        if i == 0:  # implicit attention block (layerth == 0)
            blk["A"] = nrm((H, 4 * hd, 4 * hd), std=0.1)
            blk["B_w"] = nrm((D, 4 * D))
            blk["B_b"] = nrm((1, 4 * D))
        else:       # standard qkv attention block
            blk["qkv_w"] = nrm((D, 3 * D))
            blk["qkv_b"] = nrm((1, 3 * D))
        params["blocks"].append(blk)
    return params


# ----------------------------------------------------------------------------
# Pure-JAX reference (mirrors the PyTorch module) for a correctness check
# ----------------------------------------------------------------------------

def vit_reference(params, x, cfg):
    B, C, Himg, Wimg = x.shape
    p = cfg["patch_size"]
    D = cfg["embed_dim"]
    H = cfg["num_heads"]
    hd = D // H
    scale = hd ** (-0.5)
    hp, wp = Himg // p, Wimg // p
    nP = hp * wp

    patches = (x.reshape(B, C, hp, p, wp, p)
                .transpose(0, 2, 4, 1, 3, 5)
                .reshape(B, nP, C * p * p))
    tok = patches @ params["patch_w"] + params["patch_b"]
    cls = jnp.broadcast_to(params["cls_token"][None], (B, 1, D))
    xt = jnp.concatenate([cls, tok], axis=1) + params["pos_embed"][None]
    N = xt.shape[1]

    def ln(v, g, b):
        mu = v.mean(-1, keepdims=True)
        var = ((v - mu) ** 2).mean(-1, keepdims=True)
        return (v - mu) / jnp.sqrt(var + 1e-6) * g + b

    for i, blk in enumerate(params["blocks"]):
        h = ln(xt, blk["norm1_g"], blk["norm1_b"])
        if i == 0:
            bu = (h @ blk["B_w"] + blk["B_b"]).reshape(B, N, H, 4 * hd).transpose(0, 2, 1, 3)
            X = jnp.zeros((B, H, N, 4 * hd), jnp.float32)
            xo = None
            for _ in range(cfg["fixed_point_iter"]):
                Z = jnp.einsum("bhni,hij->bhnj", X, blk["A"]) + bu
                k, q, v, px = jnp.split(Z, 4, axis=-1)
                attn = jax.nn.softmax(q @ jnp.swapaxes(k, -2, -1) * scale, axis=-1)
                xo = px + attn @ v
                X = jnp.concatenate([k, q, v, xo], axis=-1)
            ao = xo
        else:
            qkv = (h @ blk["qkv_w"] + blk["qkv_b"]).reshape(B, N, 3, H, hd).transpose(2, 0, 3, 1, 4)
            q, k, v = qkv[0], qkv[1], qkv[2]
            attn = jax.nn.softmax(q @ jnp.swapaxes(k, -2, -1) * scale, axis=-1)
            ao = attn @ v
        ao = ao.transpose(0, 2, 1, 3).reshape(B, N, D)
        xt = xt + ao @ blk["proj_w"] + blk["proj_b"]
        h2 = ln(xt, blk["norm2_g"], blk["norm2_b"])
        m = jax.nn.gelu(h2 @ blk["fc1_w"] + blk["fc1_b"], approximate=False)
        xt = xt + m @ blk["fc2_w"] + blk["fc2_b"]

    xt = ln(xt, params["norm_g"], params["norm_b"])
    return xt[:, 0] @ params["head_w"] + params["head_b"]


# ----------------------------------------------------------------------------
# Main
# ----------------------------------------------------------------------------

if __name__ == "__main__":
    key = jax.random.PRNGKey(0)
    k_param, k_x = jax.random.split(key)

    params = init_params(k_param, CFG)
    x = jax.random.normal(
        k_x, (2, CFG["in_chans"], CFG["img_size"], CFG["img_size"]), jnp.float32)

    fwd = jax.jit(functools.partial(vit_forward, cfg=CFG))
    logits = jax.block_until_ready(fwd(params, x))

    assert logits.shape == (2, CFG["num_classes"])
    assert bool(jnp.all(jnp.isfinite(logits)))

    ref = vit_reference(params, x, CFG)
    err = float(jnp.max(jnp.abs(logits - ref)))
    assert err < 2e-3, f"Pallas forward mismatch vs reference: max|diff|={err}"

    print("KERNEL_OK")
</pallas_src>

<mosaic_0001>
module attributes {stable_mosaic.version = 11 : i64} {
  func.func @_vit_fused_kernel(%arg0: i32, %arg1: memref<1x16x48xf32, #tpu.memory_space<vmem>>, %arg2: memref<48x32xf32, #tpu.memory_space<vmem>>, %arg3: memref<1x32xf32, #tpu.memory_space<vmem>>, %arg4: memref<1x32xf32, #tpu.memory_space<vmem>>, %arg5: memref<17x32xf32, #tpu.memory_space<vmem>>, %arg6: memref<1x32xf32, #tpu.memory_space<vmem>>, %arg7: memref<1x32xf32, #tpu.memory_space<vmem>>, %arg8: memref<32x128xf32, #tpu.memory_space<vmem>>, %arg9: memref<1x128xf32, #tpu.memory_space<vmem>>, %arg10: memref<128x128xf32, #tpu.memory_space<vmem>>, %arg11: memref<32x32xf32, #tpu.memory_space<vmem>>, %arg12: memref<1x32xf32, #tpu.memory_space<vmem>>, %arg13: memref<1x32xf32, #tpu.memory_space<vmem>>, %arg14: memref<1x32xf32, #tpu.memory_space<vmem>>, %arg15: memref<32x128xf32, #tpu.memory_space<vmem>>, %arg16: memref<1x128xf32, #tpu.memory_space<vmem>>, %arg17: memref<128x32xf32, #tpu.memory_space<vmem>>, %arg18: memref<1x32xf32, #tpu.memory_space<vmem>>, %arg19: memref<1x32xf32, #tpu.memory_space<vmem>>, %arg20: memref<1x32xf32, #tpu.memory_space<vmem>>, %arg21: memref<32x96xf32, #tpu.memory_space<vmem>>, %arg22: memref<1x96xf32, #tpu.memory_space<vmem>>, %arg23: memref<32x32xf32, #tpu.memory_space<vmem>>, %arg24: memref<1x32xf32, #tpu.memory_space<vmem>>, %arg25: memref<1x32xf32, #tpu.memory_space<vmem>>, %arg26: memref<1x32xf32, #tpu.memory_space<vmem>>, %arg27: memref<32x128xf32, #tpu.memory_space<vmem>>, %arg28: memref<1x128xf32, #tpu.memory_space<vmem>>, %arg29: memref<128x32xf32, #tpu.memory_space<vmem>>, %arg30: memref<1x32xf32, #tpu.memory_space<vmem>>, %arg31: memref<1x32xf32, #tpu.memory_space<vmem>>, %arg32: memref<1x32xf32, #tpu.memory_space<vmem>>, %arg33: memref<32x10xf32, #tpu.memory_space<vmem>>, %arg34: memref<1x10xf32, #tpu.memory_space<vmem>>, %arg35: memref<1x1x10xf32, #tpu.memory_space<vmem>>) attributes {dimension_semantics = [#tpu.dimension_semantics<parallel>], iteration_bounds = array<i64: 2>, scalar_prefetch = 0 : i64, scratch_operands = 0 : i64, tpu.core_type = #tpu.core_type<tc>, window_params = [{transform_indices = @transform_0, window_bounds = array<i64: 1, 16, 48>}, {pipeline_mode = #tpu.pipeline_mode<synchronous>, transform_indices = @transform_1, window_bounds = array<i64: 48, 32>}, {pipeline_mode = #tpu.pipeline_mode<synchronous>, transform_indices = @transform_2, window_bounds = array<i64: 1, 32>}, {pipeline_mode = #tpu.pipeline_mode<synchronous>, transform_indices = @transform_3, window_bounds = array<i64: 1, 32>}, {pipeline_mode = #tpu.pipeline_mode<synchronous>, transform_indices = @transform_4, window_bounds = array<i64: 17, 32>}, {pipeline_mode = #tpu.pipeline_mode<synchronous>, transform_indices = @transform_5, window_bounds = array<i64: 1, 32>}, {pipeline_mode = #tpu.pipeline_mode<synchronous>, transform_indices = @transform_6, window_bounds = array<i64: 1, 32>}, {pipeline_mode = #tpu.pipeline_mode<synchronous>, transform_indices = @transform_7, window_bounds = array<i64: 32, 128>}, {pipeline_mode = #tpu.pipeline_mode<synchronous>, transform_indices = @transform_8, window_bounds = array<i64: 1, 128>}, {pipeline_mode = #tpu.pipeline_mode<synchronous>, transform_indices = @transform_9, window_bounds = array<i64: 128, 128>}, {pipeline_mode = #tpu.pipeline_mode<synchronous>, transform_indices = @transform_10, window_bounds = array<i64: 32, 32>}, {pipeline_mode = #tpu.pipeline_mode<synchronous>, transform_indices = @transform_11, window_bounds = array<i64: 1, 32>}, {pipeline_mode = #tpu.pipeline_mode<synchronous>, transform_indices = @transform_12, window_bounds = array<i64: 1, 32>}, {pipeline_mode = #tpu.pipeline_mode<synchronous>, transform_indices = @transform_13, window_bounds = array<i64: 1, 32>}, {pipeline_mode = #tpu.pipeline_mode<synchronous>, transform_indices = @transform_14, window_bounds = array<i64: 32, 128>}, {pipeline_mode = #tpu.pipeline_mode<synchronous>, transform_indices = @transform_15, window_bounds = array<i64: 1, 128>}, {pipeline_mode = #tpu.pipeline_mode<synchronous>, transform_indices = @transform_16, window_bounds = array<i64: 128, 32>}, {pipeline_mode = #tpu.pipeline_mode<synchronous>, transform_indices = @transform_17, window_bounds = array<i64: 1, 32>}, {pipeline_mode = #tpu.pipeline_mode<synchronous>, transform_indices = @transform_18, window_bounds = array<i64: 1, 32>}, {pipeline_mode = #tpu.pipeline_mode<synchronous>, transform_indices = @transform_19, window_bounds = array<i64: 1, 32>}, {pipeline_mode = #tpu.pipeline_mode<synchronous>, transform_indices = @transform_20, window_bounds = array<i64: 32, 96>}, {pipeline_mode = #tpu.pipeline_mode<synchronous>, transform_indices = @transform_21, window_bounds = array<i64: 1, 96>}, {pipeline_mode = #tpu.pipeline_mode<synchronous>, transform_indices = @transform_22, window_bounds = array<i64: 32, 32>}, {pipeline_mode = #tpu.pipeline_mode<synchronous>, transform_indices = @transform_23, window_bounds = array<i64: 1, 32>}, {pipeline_mode = #tpu.pipeline_mode<synchronous>, transform_indices = @transform_24, window_bounds = array<i64: 1, 32>}, {pipeline_mode = #tpu.pipeline_mode<synchronous>, transform_indices = @transform_25, window_bounds = array<i64: 1, 32>}, {pipeline_mode = #tpu.pipeline_mode<synchronous>, transform_indices = @transform_26, window_bounds = array<i64: 32, 128>}, {pipeline_mode = #tpu.pipeline_mode<synchronous>, transform_indices = @transform_27, window_bounds = array<i64: 1, 128>}, {pipeline_mode = #tpu.pipeline_mode<synchronous>, transform_indices = @transform_28, window_bounds = array<i64: 128, 32>}, {pipeline_mode = #tpu.pipeline_mode<synchronous>, transform_indices = @transform_29, window_bounds = array<i64: 1, 32>}, {pipeline_mode = #tpu.pipeline_mode<synchronous>, transform_indices = @transform_30, window_bounds = array<i64: 1, 32>}, {pipeline_mode = #tpu.pipeline_mode<synchronous>, transform_indices = @transform_31, window_bounds = array<i64: 1, 32>}, {pipeline_mode = #tpu.pipeline_mode<synchronous>, transform_indices = @transform_32, window_bounds = array<i64: 32, 10>}, {pipeline_mode = #tpu.pipeline_mode<synchronous>, transform_indices = @transform_33, window_bounds = array<i64: 1, 10>}, {transform_indices = @transform_34, window_bounds = array<i64: 1, 1, 10>}]} {
    %c0 = arith.constant 0 : index
    %c0_0 = arith.constant 0 : index
    %0 = vector.load %arg2[%c0, %c0_0] : memref<48x32xf32, #tpu.memory_space<vmem>>, vector<48x32xf32>
    %c0_1 = arith.constant 0 : index
    %c0_2 = arith.constant 0 : index
    %1 = vector.load %arg3[%c0_1, %c0_2] : memref<1x32xf32, #tpu.memory_space<vmem>>, vector<1x32xf32>
    %c0_3 = arith.constant 0 : index
    %c0_4 = arith.constant 0 : index
    %2 = vector.load %arg4[%c0_3, %c0_4] : memref<1x32xf32, #tpu.memory_space<vmem>>, vector<1x32xf32>
    %c0_5 = arith.constant 0 : index
    %c0_6 = arith.constant 0 : index
    %3 = vector.load %arg5[%c0_5, %c0_6] : memref<17x32xf32, #tpu.memory_space<vmem>>, vector<17x32xf32>
    %c0_7 = arith.constant 0 : index
    %c0_8 = arith.constant 0 : index
    %c0_9 = arith.constant 0 : index
    %4 = vector.load %arg1[%c0_7, %c0_8, %c0_9] : memref<1x16x48xf32, #tpu.memory_space<vmem>>, vector<1x16x48xf32>
    %5 = vector.shape_cast %4 : vector<1x16x48xf32> to vector<16x48xf32>
    %cst = arith.constant dense<0.000000e+00> : vector<16x32xf32>
    %6 = tpu.matmul %5, %0, %cst {dimension_numbers = #tpu.dot_dimension_numbers<[1], [0], [0], [1], [0, 0, 1, 1], [], []>} : vector<16x48xf32>, vector<48x32xf32>, vector<16x32xf32> -> vector<16x32xf32>
    %7 = vector.broadcast %1 : vector<1x32xf32> to vector<16x32xf32>
    %8 = arith.addf %6, %7 : vector<16x32xf32>
    %9 = tpu.concatenate %2, %8 in 0 : vector<1x32xf32>, vector<16x32xf32> -> vector<17x32xf32>
    %10 = arith.addf %9, %3 : vector<17x32xf32>
    %c0_10 = arith.constant 0 : index
    %c0_11 = arith.constant 0 : index
    %11 = vector.load %arg6[%c0_10, %c0_11] : memref<1x32xf32, #tpu.memory_space<vmem>>, vector<1x32xf32>
    %c0_12 = arith.constant 0 : index
    %c0_13 = arith.constant 0 : index
    %12 = vector.load %arg7[%c0_12, %c0_13] : memref<1x32xf32, #tpu.memory_space<vmem>>, vector<1x32xf32>
    %c0_14 = arith.constant 0 : index
    %c0_15 = arith.constant 0 : index
    %13 = vector.load %arg8[%c0_14, %c0_15] : memref<32x128xf32, #tpu.memory_space<vmem>>, vector<32x128xf32>
    %c0_16 = arith.constant 0 : index
    %c0_17 = arith.constant 0 : index
    %14 = vector.load %arg9[%c0_16, %c0_17] : memref<1x128xf32, #tpu.memory_space<vmem>>, vector<1x128xf32>
    %c0_18 = arith.constant 0 : index
    %c0_19 = arith.constant 0 : index
    %15 = vector.load %arg10[%c0_18, %c0_19] : memref<128x128xf32, #tpu.memory_space<vmem>>, vector<128x128xf32>
    %c0_20 = arith.constant 0 : index
    %c0_21 = arith.constant 0 : index
    %16 = vector.load %arg11[%c0_20, %c0_21] : memref<32x32xf32, #tpu.memory_space<vmem>>, vector<32x32xf32>
    %c0_22 = arith.constant 0 : index
    %c0_23 = arith.constant 0 : index
    %17 = vector.load %arg12[%c0_22, %c0_23] : memref<1x32xf32, #tpu.memory_space<vmem>>, vector<1x32xf32>
    %c0_24 = arith.constant 0 : index
    %c0_25 = arith.constant 0 : index
    %18 = vector.load %arg13[%c0_24, %c0_25] : memref<1x32xf32, #tpu.memory_space<vmem>>, vector<1x32xf32>
    %c0_26 = arith.constant 0 : index
    %c0_27 = arith.constant 0 : index
    %19 = vector.load %arg14[%c0_26, %c0_27] : memref<1x32xf32, #tpu.memory_space<vmem>>, vector<1x32xf32>
    %c0_28 = arith.constant 0 : index
    %c0_29 = arith.constant 0 : index
    %20 = vector.load %arg15[%c0_28, %c0_29] : memref<32x128xf32, #tpu.memory_space<vmem>>, vector<32x128xf32>
    %c0_30 = arith.constant 0 : index
    %c0_31 = arith.constant 0 : index
    %21 = vector.load %arg16[%c0_30, %c0_31] : memref<1x128xf32, #tpu.memory_space<vmem>>, vector<1x128xf32>
    %c0_32 = arith.constant 0 : index
    %c0_33 = arith.constant 0 : index
    %22 = vector.load %arg17[%c0_32, %c0_33] : memref<128x32xf32, #tpu.memory_space<vmem>>, vector<128x32xf32>
    %c0_34 = arith.constant 0 : index
    %c0_35 = arith.constant 0 : index
    %23 = vector.load %arg18[%c0_34, %c0_35] : memref<1x32xf32, #tpu.memory_space<vmem>>, vector<1x32xf32>
    %cst_36 = arith.constant dense<0.000000e+00> : vector<17xf32>
    %24 = vector.multi_reduction <add>, %10, %cst_36 [1] : vector<17x32xf32> to vector<17xf32>
    %25 = vector.shape_cast %24 : vector<17xf32> to vector<17x1xf32>
    %cst_37 = arith.constant 3.200000e+01 : f32
    %26 = vector.broadcast %cst_37 : f32 to vector<17x1xf32>
    %27 = arith.divf %25, %26 : vector<17x1xf32>
    %28 = vector.broadcast %27 : vector<17x1xf32> to vector<17x32xf32>
    %29 = arith.subf %10, %28 : vector<17x32xf32>
    %30 = arith.mulf %29, %29 : vector<17x32xf32>
    %cst_38 = arith.constant dense<0.000000e+00> : vector<17xf32>
    %31 = vector.multi_reduction <add>, %30, %cst_38 [1] : vector<17x32xf32> to vector<17xf32>
    %32 = vector.shape_cast %31 : vector<17xf32> to vector<17x1xf32>
    %cst_39 = arith.constant 3.200000e+01 : f32
    %33 = vector.broadcast %cst_39 : f32 to vector<17x1xf32>
    %34 = arith.divf %32, %33 : vector<17x1xf32>
    %35 = vector.broadcast %27 : vector<17x1xf32> to vector<17x32xf32>
    %36 = arith.subf %10, %35 : vector<17x32xf32>
    %cst_40 = arith.constant 9.99999997E-7 : f32
    %37 = vector.broadcast %cst_40 : f32 to vector<17x1xf32>
    %38 = arith.addf %34, %37 : vector<17x1xf32>
    %39 = math.rsqrt %38 : vector<17x1xf32>
    %40 = vector.broadcast %39 : vector<17x1xf32> to vector<17x32xf32>
    %41 = arith.mulf %36, %40 : vector<17x32xf32>
    %42 = vector.broadcast %11 : vector<1x32xf32> to vector<17x32xf32>
    %43 = arith.mulf %41, %42 : vector<17x32xf32>
    %44 = vector.broadcast %12 : vector<1x32xf32> to vector<17x32xf32>
    %45 = arith.addf %43, %44 : vector<17x32xf32>
    %cst_41 = arith.constant dense<0.000000e+00> : vector<17x128xf32>
    %46 = tpu.matmul %45, %13, %cst_41 {dimension_numbers = #tpu.dot_dimension_numbers<[1], [0], [0], [1], [0, 0, 1, 1], [], []>} : vector<17x32xf32>, vector<32x128xf32>, vector<17x128xf32> -> vector<17x128xf32>
    %47 = vector.broadcast %14 : vector<1x128xf32> to vector<17x128xf32>
    %48 = arith.addf %46, %47 : vector<17x128xf32>
    %49 = vector.extract_strided_slice %48 {offsets = [0, 0], sizes = [17, 8], strides = [1, 1]} : vector<17x128xf32> to vector<17x8xf32>
    %50 = vector.extract_strided_slice %48 {offsets = [0, 8], sizes = [17, 8], strides = [1, 1]} : vector<17x128xf32> to vector<17x8xf32>
    %51 = vector.extract_strided_slice %48 {offsets = [0, 16], sizes = [17, 8], strides = [1, 1]} : vector<17x128xf32> to vector<17x8xf32>
    %52 = vector.extract_strided_slice %48 {offsets = [0, 24], sizes = [17, 8], strides = [1, 1]} : vector<17x128xf32> to vector<17x8xf32>
    %cst_42 = arith.constant dense<0.000000e+00> : vector<17x17xf32>
    %53 = tpu.matmul %50, %49, %cst_42 {dimension_numbers = #tpu.dot_dimension_numbers<[1], [1], [0], [0], [0, 0, 1, 0], [], []>} : vector<17x8xf32>, vector<17x8xf32>, vector<17x17xf32> -> vector<17x17xf32>
    %cst_43 = arith.constant 0.353553385 : f32
    %54 = vector.broadcast %cst_43 : f32 to vector<17x17xf32>
    %55 = arith.mulf %53, %54 : vector<17x17xf32>
    %cst_44 = arith.constant dense<0xFF800000> : vector<17xf32>
    %56 = vector.multi_reduction <maximumf>, %55, %cst_44 [1] : vector<17x17xf32> to vector<17xf32>
    %57 = vector.shape_cast %56 : vector<17xf32> to vector<17x1xf32>
    %58 = vector.broadcast %57 : vector<17x1xf32> to vector<17x17xf32>
    %59 = arith.subf %55, %58 : vector<17x17xf32>
    %60 = math.exp %59 : vector<17x17xf32>
    %cst_45 = arith.constant dense<0.000000e+00> : vector<17xf32>
    %61 = vector.multi_reduction <add>, %60, %cst_45 [1] : vector<17x17xf32> to vector<17xf32>
    %62 = vector.shape_cast %61 : vector<17xf32> to vector<17x1xf32>
    %63 = vector.broadcast %62 : vector<17x1xf32> to vector<17x17xf32>
    %64 = arith.divf %60, %63 : vector<17x17xf32>
    %cst_46 = arith.constant dense<0.000000e+00> : vector<17x8xf32>
    %65 = tpu.matmul %64, %51, %cst_46 {dimension_numbers = #tpu.dot_dimension_numbers<[1], [0], [0], [1], [0, 0, 1, 1], [], []>} : vector<17x17xf32>, vector<17x8xf32>, vector<17x8xf32> -> vector<17x8xf32>
    %66 = arith.addf %52, %65 : vector<17x8xf32>
    %67 = vector.extract_strided_slice %48 {offsets = [0, 32], sizes = [17, 8], strides = [1, 1]} : vector<17x128xf32> to vector<17x8xf32>
    %68 = vector.extract_strided_slice %48 {offsets = [0, 40], sizes = [17, 8], strides = [1, 1]} : vector<17x128xf32> to vector<17x8xf32>
    %69 = vector.extract_strided_slice %48 {offsets = [0, 48], sizes = [17, 8], strides = [1, 1]} : vector<17x128xf32> to vector<17x8xf32>
    %70 = vector.extract_strided_slice %48 {offsets = [0, 56], sizes = [17, 8], strides = [1, 1]} : vector<17x128xf32> to vector<17x8xf32>
    %cst_47 = arith.constant dense<0.000000e+00> : vector<17x17xf32>
    %71 = tpu.matmul %68, %67, %cst_47 {dimension_numbers = #tpu.dot_dimension_numbers<[1], [1], [0], [0], [0, 0, 1, 0], [], []>} : vector<17x8xf32>, vector<17x8xf32>, vector<17x17xf32> -> vector<17x17xf32>
    %cst_48 = arith.constant 0.353553385 : f32
    %72 = vector.broadcast %cst_48 : f32 to vector<17x17xf32>
    %73 = arith.mulf %71, %72 : vector<17x17xf32>
    %cst_49 = arith.constant dense<0xFF800000> : vector<17xf32>
    %74 = vector.multi_reduction <maximumf>, %73, %cst_49 [1] : vector<17x17xf32> to vector<17xf32>
    %75 = vector.shape_cast %74 : vector<17xf32> to vector<17x1xf32>
    %76 = vector.broadcast %75 : vector<17x1xf32> to vector<17x17xf32>
    %77 = arith.subf %73, %76 : vector<17x17xf32>
    %78 = math.exp %77 : vector<17x17xf32>
    %cst_50 = arith.constant dense<0.000000e+00> : vector<17xf32>
    %79 = vector.multi_reduction <add>, %78, %cst_50 [1] : vector<17x17xf32> to vector<17xf32>
    %80 = vector.shape_cast %79 : vector<17xf32> to vector<17x1xf32>
    %81 = vector.broadcast %80 : vector<17x1xf32> to vector<17x17xf32>
    %82 = arith.divf %78, %81 : vector<17x17xf32>
    %cst_51 = arith.constant dense<0.000000e+00> : vector<17x8xf32>
    %83 = tpu.matmul %82, %69, %cst_51 {dimension_numbers = #tpu.dot_dimension_numbers<[1], [0], [0], [1], [0, 0, 1, 1], [], []>} : vector<17x17xf32>, vector<17x8xf32>, vector<17x8xf32> -> vector<17x8xf32>
    %84 = arith.addf %70, %83 : vector<17x8xf32>
    %85 = vector.extract_strided_slice %48 {offsets = [0, 64], sizes = [17, 8], strides = [1, 1]} : vector<17x128xf32> to vector<17x8xf32>
    %86 = vector.extract_strided_slice %48 {offsets = [0, 72], sizes = [17, 8], strides = [1, 1]} : vector<17x128xf32> to vector<17x8xf32>
    %87 = vector.extract_strided_slice %48 {offsets = [0, 80], sizes = [17, 8], strides = [1, 1]} : vector<17x128xf32> to vector<17x8xf32>
    %88 = vector.extract_strided_slice %48 {offsets = [0, 88], sizes = [17, 8], strides = [1, 1]} : vector<17x128xf32> to vector<17x8xf32>
    %cst_52 = arith.constant dense<0.000000e+00> : vector<17x17xf32>
    %89 = tpu.matmul %86, %85, %cst_52 {dimension_numbers = #tpu.dot_dimension_numbers<[1], [1], [0], [0], [0, 0, 1, 0], [], []>} : vector<17x8xf32>, vector<17x8xf32>, vector<17x17xf32> -> vector<17x17xf32>
    %cst_53 = arith.constant 0.353553385 : f32
    %90 = vector.broadcast %cst_53 : f32 to vector<17x17xf32>
    %91 = arith.mulf %89, %90 : vector<17x17xf32>
    %cst_54 = arith.constant dense<0xFF800000> : vector<17xf32>
    %92 = vector.multi_reduction <maximumf>, %91, %cst_54 [1] : vector<17x17xf32> to vector<17xf32>
    %93 = vector.shape_cast %92 : vector<17xf32> to vector<17x1xf32>
    %94 = vector.broadcast %93 : vector<17x1xf32> to vector<17x17xf32>
    %95 = arith.subf %91, %94 : vector<17x17xf32>
    %96 = math.exp %95 : vector<17x17xf32>
    %cst_55 = arith.constant dense<0.000000e+00> : vector<17xf32>
    %97 = vector.multi_reduction <add>, %96, %cst_55 [1] : vector<17x17xf32> to vector<17xf32>
    %98 = vector.shape_cast %97 : vector<17xf32> to vector<17x1xf32>
    %99 = vector.broadcast %98 : vector<17x1xf32> to vector<17x17xf32>
    %100 = arith.divf %96, %99 : vector<17x17xf32>
    %cst_56 = arith.constant dense<0.000000e+00> : vector<17x8xf32>
    %101 = tpu.matmul %100, %87, %cst_56 {dimension_numbers = #tpu.dot_dimension_numbers<[1], [0], [0], [1], [0, 0, 1, 1], [], []>} : vector<17x17xf32>, vector<17x8xf32>, vector<17x8xf32> -> vector<17x8xf32>
    %102 = arith.addf %88, %101 : vector<17x8xf32>
    %103 = vector.extract_strided_slice %48 {offsets = [0, 96], sizes = [17, 8], strides = [1, 1]} : vector<17x128xf32> to vector<17x8xf32>
    %104 = vector.extract_strided_slice %48 {offsets = [0, 104], sizes = [17, 8], strides = [1, 1]} : vector<17x128xf32> to vector<17x8xf32>
    %105 = vector.extract_strided_slice %48 {offsets = [0, 112], sizes = [17, 8], strides = [1, 1]} : vector<17x128xf32> to vector<17x8xf32>
    %106 = vector.extract_strided_slice %48 {offsets = [0, 120], sizes = [17, 8], strides = [1, 1]} : vector<17x128xf32> to vector<17x8xf32>
    %cst_57 = arith.constant dense<0.000000e+00> : vector<17x17xf32>
    %107 = tpu.matmul %104, %103, %cst_57 {dimension_numbers = #tpu.dot_dimension_numbers<[1], [1], [0], [0], [0, 0, 1, 0], [], []>} : vector<17x8xf32>, vector<17x8xf32>, vector<17x17xf32> -> vector<17x17xf32>
    %cst_58 = arith.constant 0.353553385 : f32
    %108 = vector.broadcast %cst_58 : f32 to vector<17x17xf32>
    %109 = arith.mulf %107, %108 : vector<17x17xf32>
    %cst_59 = arith.constant dense<0xFF800000> : vector<17xf32>
    %110 = vector.multi_reduction <maximumf>, %109, %cst_59 [1] : vector<17x17xf32> to vector<17xf32>
    %111 = vector.shape_cast %110 : vector<17xf32> to vector<17x1xf32>
    %112 = vector.broadcast %111 : vector<17x1xf32> to vector<17x17xf32>
    %113 = arith.subf %109, %112 : vector<17x17xf32>
    %114 = math.exp %113 : vector<17x17xf32>
    %cst_60 = arith.constant dense<0.000000e+00> : vector<17xf32>
    %115 = vector.multi_reduction <add>, %114, %cst_60 [1] : vector<17x17xf32> to vector<17xf32>
    %116 = vector.shape_cast %115 : vector<17xf32> to vector<17x1xf32>
    %117 = vector.broadcast %116 : vector<17x1xf32> to vector<17x17xf32>
    %118 = arith.divf %114, %117 : vector<17x17xf32>
    %cst_61 = arith.constant dense<0.000000e+00> : vector<17x8xf32>
    %119 = tpu.matmul %118, %105, %cst_61 {dimension_numbers = #tpu.dot_dimension_numbers<[1], [0], [0], [1], [0, 0, 1, 1], [], []>} : vector<17x17xf32>, vector<17x8xf32>, vector<17x8xf32> -> vector<17x8xf32>
    %120 = arith.addf %106, %119 : vector<17x8xf32>
    %121 = vector.extract_strided_slice %48 {offsets = [0, 0], sizes = [17, 24], strides = [1, 1]} : vector<17x128xf32> to vector<17x24xf32>
    %122 = vector.extract_strided_slice %48 {offsets = [0, 32], sizes = [17, 24], strides = [1, 1]} : vector<17x128xf32> to vector<17x24xf32>
    %123 = vector.extract_strided_slice %48 {offsets = [0, 64], sizes = [17, 24], strides = [1, 1]} : vector<17x128xf32> to vector<17x24xf32>
    %124 = vector.extract_strided_slice %48 {offsets = [0, 96], sizes = [17, 24], strides = [1, 1]} : vector<17x128xf32> to vector<17x24xf32>
    %125 = tpu.concatenate %121, %66, %122, %84, %123, %102, %124, %120 in 1 : vector<17x24xf32>, vector<17x8xf32>, vector<17x24xf32>, vector<17x8xf32>, vector<17x24xf32>, vector<17x8xf32>, vector<17x24xf32>, vector<17x8xf32> -> vector<17x128xf32>
    %cst_62 = arith.constant dense<0.000000e+00> : vector<17x128xf32>
    %126 = tpu.matmul %125, %15, %cst_62 {dimension_numbers = #tpu.dot_dimension_numbers<[1], [0], [0], [1], [0, 0, 1, 1], [], []>} : vector<17x128xf32>, vector<128x128xf32>, vector<17x128xf32> -> vector<17x128xf32>
    %127 = arith.addf %126, %48 : vector<17x128xf32>
    %128 = vector.extract_strided_slice %127 {offsets = [0, 0], sizes = [17, 8], strides = [1, 1]} : vector<17x128xf32> to vector<17x8xf32>
    %129 = vector.extract_strided_slice %127 {offsets = [0, 8], sizes = [17, 8], strides = [1, 1]} : vector<17x128xf32> to vector<17x8xf32>
    %130 = vector.extract_strided_slice %127 {offsets = [0, 16], sizes = [17, 8], strides = [1, 1]} : vector<17x128xf32> to vector<17x8xf32>
    %131 = vector.extract_strided_slice %127 {offsets = [0, 24], sizes = [17, 8], strides = [1, 1]} : vector<17x128xf32> to vector<17x8xf32>
    %cst_63 = arith.constant dense<0.000000e+00> : vector<17x17xf32>
    %132 = tpu.matmul %129, %128, %cst_63 {dimension_numbers = #tpu.dot_dimension_numbers<[1], [1], [0], [0], [0, 0, 1, 0], [], []>} : vector<17x8xf32>, vector<17x8xf32>, vector<17x17xf32> -> vector<17x17xf32>
    %cst_64 = arith.constant 0.353553385 : f32
    %133 = vector.broadcast %cst_64 : f32 to vector<17x17xf32>
    %134 = arith.mulf %132, %133 : vector<17x17xf32>
    %cst_65 = arith.constant dense<0xFF800000> : vector<17xf32>
    %135 = vector.multi_reduction <maximumf>, %134, %cst_65 [1] : vector<17x17xf32> to vector<17xf32>
    %136 = vector.shape_cast %135 : vector<17xf32> to vector<17x1xf32>
    %137 = vector.broadcast %136 : vector<17x1xf32> to vector<17x17xf32>
    %138 = arith.subf %134, %137 : vector<17x17xf32>
    %139 = math.exp %138 : vector<17x17xf32>
    %cst_66 = arith.constant dense<0.000000e+00> : vector<17xf32>
    %140 = vector.multi_reduction <add>, %139, %cst_66 [1] : vector<17x17xf32> to vector<17xf32>
    %141 = vector.shape_cast %140 : vector<17xf32> to vector<17x1xf32>
    %142 = vector.broadcast %141 : vector<17x1xf32> to vector<17x17xf32>
    %143 = arith.divf %139, %142 : vector<17x17xf32>
    %cst_67 = arith.constant dense<0.000000e+00> : vector<17x8xf32>
    %144 = tpu.matmul %143, %130, %cst_67 {dimension_numbers = #tpu.dot_dimension_numbers<[1], [0], [0], [1], [0, 0, 1, 1], [], []>} : vector<17x17xf32>, vector<17x8xf32>, vector<17x8xf32> -> vector<17x8xf32>
    %145 = arith.addf %131, %144 : vector<17x8xf32>
    %146 = vector.extract_strided_slice %127 {offsets = [0, 32], sizes = [17, 8], strides = [1, 1]} : vector<17x128xf32> to vector<17x8xf32>
    %147 = vector.extract_strided_slice %127 {offsets = [0, 40], sizes = [17, 8], strides = [1, 1]} : vector<17x128xf32> to vector<17x8xf32>
    %148 = vector.extract_strided_slice %127 {offsets = [0, 48], sizes = [17, 8], strides = [1, 1]} : vector<17x128xf32> to vector<17x8xf32>
    %149 = vector.extract_strided_slice %127 {offsets = [0, 56], sizes = [17, 8], strides = [1, 1]} : vector<17x128xf32> to vector<17x8xf32>
    %cst_68 = arith.constant dense<0.000000e+00> : vector<17x17xf32>
    %150 = tpu.matmul %147, %146, %cst_68 {dimension_numbers = #tpu.dot_dimension_numbers<[1], [1], [0], [0], [0, 0, 1, 0], [], []>} : vector<17x8xf32>, vector<17x8xf32>, vector<17x17xf32> -> vector<17x17xf32>
    %cst_69 = arith.constant 0.353553385 : f32
    %151 = vector.broadcast %cst_69 : f32 to vector<17x17xf32>
    %152 = arith.mulf %150, %151 : vector<17x17xf32>
    %cst_70 = arith.constant dense<0xFF800000> : vector<17xf32>
    %153 = vector.multi_reduction <maximumf>, %152, %cst_70 [1] : vector<17x17xf32> to vector<17xf32>
    %154 = vector.shape_cast %153 : vector<17xf32> to vector<17x1xf32>
    %155 = vector.broadcast %154 : vector<17x1xf32> to vector<17x17xf32>
    %156 = arith.subf %152, %155 : vector<17x17xf32>
    %157 = math.exp %156 : vector<17x17xf32>
    %cst_71 = arith.constant dense<0.000000e+00> : vector<17xf32>
    %158 = vector.multi_reduction <add>, %157, %cst_71 [1] : vector<17x17xf32> to vector<17xf32>
    %159 = vector.shape_cast %158 : vector<17xf32> to vector<17x1xf32>
    %160 = vector.broadcast %159 : vector<17x1xf32> to vector<17x17xf32>
    %161 = arith.divf %157, %160 : vector<17x17xf32>
    %cst_72 = arith.constant dense<0.000000e+00> : vector<17x8xf32>
    %162 = tpu.matmul %161, %148, %cst_72 {dimension_numbers = #tpu.dot_dimension_numbers<[1], [0], [0], [1], [0, 0, 1, 1], [], []>} : vector<17x17xf32>, vector<17x8xf32>, vector<17x8xf32> -> vector<17x8xf32>
    %163 = arith.addf %149, %162 : vector<17x8xf32>
    %164 = vector.extract_strided_slice %127 {offsets = [0, 64], sizes = [17, 8], strides = [1, 1]} : vector<17x128xf32> to vector<17x8xf32>
    %165 = vector.extract_strided_slice %127 {offsets = [0, 72], sizes = [17, 8], strides = [1, 1]} : vector<17x128xf32> to vector<17x8xf32>
    %166 = vector.extract_strided_slice %127 {offsets = [0, 80], sizes = [17, 8], strides = [1, 1]} : vector<17x128xf32> to vector<17x8xf32>
    %167 = vector.extract_strided_slice %127 {offsets = [0, 88], sizes = [17, 8], strides = [1, 1]} : vector<17x128xf32> to vector<17x8xf32>
    %cst_73 = arith.constant dense<0.000000e+00> : vector<17x17xf32>
    %168 = tpu.matmul %165, %164, %cst_73 {dimension_numbers = #tpu.dot_dimension_numbers<[1], [1], [0], [0], [0, 0, 1, 0], [], []>} : vector<17x8xf32>, vector<17x8xf32>, vector<17x17xf32> -> vector<17x17xf32>
    %cst_74 = arith.constant 0.353553385 : f32
    %169 = vector.broadcast %cst_74 : f32 to vector<17x17xf32>
    %170 = arith.mulf %168, %169 : vector<17x17xf32>
    %cst_75 = arith.constant dense<0xFF800000> : vector<17xf32>
    %171 = vector.multi_reduction <maximumf>, %170, %cst_75 [1] : vector<17x17xf32> to vector<17xf32>
    %172 = vector.shape_cast %171 : vector<17xf32> to vector<17x1xf32>
    %173 = vector.broadcast %172 : vector<17x1xf32> to vector<17x17xf32>
    %174 = arith.subf %170, %173 : vector<17x17xf32>
    %175 = math.exp %174 : vector<17x17xf32>
    %cst_76 = arith.constant dense<0.000000e+00> : vector<17xf32>
    %176 = vector.multi_reduction <add>, %175, %cst_76 [1] : vector<17x17xf32> to vector<17xf32>
    %177 = vector.shape_cast %176 : vector<17xf32> to vector<17x1xf32>
    %178 = vector.broadcast %177 : vector<17x1xf32> to vector<17x17xf32>
    %179 = arith.divf %175, %178 : vector<17x17xf32>
    %cst_77 = arith.constant dense<0.000000e+00> : vector<17x8xf32>
    %180 = tpu.matmul %179, %166, %cst_77 {dimension_numbers = #tpu.dot_dimension_numbers<[1], [0], [0], [1], [0, 0, 1, 1], [], []>} : vector<17x17xf32>, vector<17x8xf32>, vector<17x8xf32> -> vector<17x8xf32>
    %181 = arith.addf %167, %180 : vector<17x8xf32>
    %182 = vector.extract_strided_slice %127 {offsets = [0, 96], sizes = [17, 8], strides = [1, 1]} : vector<17x128xf32> to vector<17x8xf32>
    %183 = vector.extract_strided_slice %127 {offsets = [0, 104], sizes = [17, 8], strides = [1, 1]} : vector<17x128xf32> to vector<17x8xf32>
    %184 = vector.extract_strided_slice %127 {offsets = [0, 112], sizes = [17, 8], strides = [1, 1]} : vector<17x128xf32> to vector<17x8xf32>
    %185 = vector.extract_strided_slice %127 {offsets = [0, 120], sizes = [17, 8], strides = [1, 1]} : vector<17x128xf32> to vector<17x8xf32>
    %cst_78 = arith.constant dense<0.000000e+00> : vector<17x17xf32>
    %186 = tpu.matmul %183, %182, %cst_78 {dimension_numbers = #tpu.dot_dimension_numbers<[1], [1], [0], [0], [0, 0, 1, 0], [], []>} : vector<17x8xf32>, vector<17x8xf32>, vector<17x17xf32> -> vector<17x17xf32>
    %cst_79 = arith.constant 0.353553385 : f32
    %187 = vector.broadcast %cst_79 : f32 to vector<17x17xf32>
    %188 = arith.mulf %186, %187 : vector<17x17xf32>
    %cst_80 = arith.constant dense<0xFF800000> : vector<17xf32>
    %189 = vector.multi_reduction <maximumf>, %188, %cst_80 [1] : vector<17x17xf32> to vector<17xf32>
    %190 = vector.shape_cast %189 : vector<17xf32> to vector<17x1xf32>
    %191 = vector.broadcast %190 : vector<17x1xf32> to vector<17x17xf32>
    %192 = arith.subf %188, %191 : vector<17x17xf32>
    %193 = math.exp %192 : vector<17x17xf32>
    %cst_81 = arith.constant dense<0.000000e+00> : vector<17xf32>
    %194 = vector.multi_reduction <add>, %193, %cst_81 [1] : vector<17x17xf32> to vector<17xf32>
    %195 = vector.shape_cast %194 : vector<17xf32> to vector<17x1xf32>
    %196 = vector.broadcast %195 : vector<17x1xf32> to vector<17x17xf32>
    %197 = arith.divf %193, %196 : vector<17x17xf32>
    %cst_82 = arith.constant dense<0.000000e+00> : vector<17x8xf32>
    %198 = tpu.matmul %197, %184, %cst_82 {dimension_numbers = #tpu.dot_dimension_numbers<[1], [0], [0], [1], [0, 0, 1, 1], [], []>} : vector<17x17xf32>, vector<17x8xf32>, vector<17x8xf32> -> vector<17x8xf32>
    %199 = arith.addf %185, %198 : vector<17x8xf32>
    %200 = vector.extract_strided_slice %127 {offsets = [0, 0], sizes = [17, 24], strides = [1, 1]} : vector<17x128xf32> to vector<17x24xf32>
    %201 = vector.extract_strided_slice %127 {offsets = [0, 32], sizes = [17, 24], strides = [1, 1]} : vector<17x128xf32> to vector<17x24xf32>
    %202 = vector.extract_strided_slice %127 {offsets = [0, 64], sizes = [17, 24], strides = [1, 1]} : vector<17x128xf32> to vector<17x24xf32>
    %203 = vector.extract_strided_slice %127 {offsets = [0, 96], sizes = [17, 24], strides = [1, 1]} : vector<17x128xf32> to vector<17x24xf32>
    %204 = tpu.concatenate %200, %145, %201, %163, %202, %181, %203, %199 in 1 : vector<17x24xf32>, vector<17x8xf32>, vector<17x24xf32>, vector<17x8xf32>, vector<17x24xf32>, vector<17x8xf32>, vector<17x24xf32>, vector<17x8xf32> -> vector<17x128xf32>
    %cst_83 = arith.constant dense<0.000000e+00> : vector<17x128xf32>
    %205 = tpu.matmul %204, %15, %cst_83 {dimension_numbers = #tpu.dot_dimension_numbers<[1], [0], [0], [1], [0, 0, 1, 1], [], []>} : vector<17x128xf32>, vector<128x128xf32>, vector<17x128xf32> -> vector<17x128xf32>
    %206 = arith.addf %205, %48 : vector<17x128xf32>
    %207 = vector.extract_strided_slice %206 {offsets = [0, 0], sizes = [17, 8], strides = [1, 1]} : vector<17x128xf32> to vector<17x8xf32>
    %208 = vector.extract_strided_slice %206 {offsets = [0, 8], sizes = [17, 8], strides = [1, 1]} : vector<17x128xf32> to vector<17x8xf32>
    %209 = vector.extract_strided_slice %206 {offsets = [0, 16], sizes = [17, 8], strides = [1, 1]} : vector<17x128xf32> to vector<17x8xf32>
    %210 = vector.extract_strided_slice %206 {offsets = [0, 24], sizes = [17, 8], strides = [1, 1]} : vector<17x128xf32> to vector<17x8xf32>
    %cst_84 = arith.constant dense<0.000000e+00> : vector<17x17xf32>
    %211 = tpu.matmul %208, %207, %cst_84 {dimension_numbers = #tpu.dot_dimension_numbers<[1], [1], [0], [0], [0, 0, 1, 0], [], []>} : vector<17x8xf32>, vector<17x8xf32>, vector<17x17xf32> -> vector<17x17xf32>
    %cst_85 = arith.constant 0.353553385 : f32
    %212 = vector.broadcast %cst_85 : f32 to vector<17x17xf32>
    %213 = arith.mulf %211, %212 : vector<17x17xf32>
    %cst_86 = arith.constant dense<0xFF800000> : vector<17xf32>
    %214 = vector.multi_reduction <maximumf>, %213, %cst_86 [1] : vector<17x17xf32> to vector<17xf32>
    %215 = vector.shape_cast %214 : vector<17xf32> to vector<17x1xf32>
    %216 = vector.broadcast %215 : vector<17x1xf32> to vector<17x17xf32>
    %217 = arith.subf %213, %216 : vector<17x17xf32>
    %218 = math.exp %217 : vector<17x17xf32>
    %cst_87 = arith.constant dense<0.000000e+00> : vector<17xf32>
    %219 = vector.multi_reduction <add>, %218, %cst_87 [1] : vector<17x17xf32> to vector<17xf32>
    %220 = vector.shape_cast %219 : vector<17xf32> to vector<17x1xf32>
    %221 = vector.broadcast %220 : vector<17x1xf32> to vector<17x17xf32>
    %222 = arith.divf %218, %221 : vector<17x17xf32>
    %cst_88 = arith.constant dense<0.000000e+00> : vector<17x8xf32>
    %223 = tpu.matmul %222, %209, %cst_88 {dimension_numbers = #tpu.dot_dimension_numbers<[1], [0], [0], [1], [0, 0, 1, 1], [], []>} : vector<17x17xf32>, vector<17x8xf32>, vector<17x8xf32> -> vector<17x8xf32>
    %224 = arith.addf %210, %223 : vector<17x8xf32>
    %225 = vector.extract_strided_slice %206 {offsets = [0, 32], sizes = [17, 8], strides = [1, 1]} : vector<17x128xf32> to vector<17x8xf32>
    %226 = vector.extract_strided_slice %206 {offsets = [0, 40], sizes = [17, 8], strides = [1, 1]} : vector<17x128xf32> to vector<17x8xf32>
    %227 = vector.extract_strided_slice %206 {offsets = [0, 48], sizes = [17, 8], strides = [1, 1]} : vector<17x128xf32> to vector<17x8xf32>
    %228 = vector.extract_strided_slice %206 {offsets = [0, 56], sizes = [17, 8], strides = [1, 1]} : vector<17x128xf32> to vector<17x8xf32>
    %cst_89 = arith.constant dense<0.000000e+00> : vector<17x17xf32>
    %229 = tpu.matmul %226, %225, %cst_89 {dimension_numbers = #tpu.dot_dimension_numbers<[1], [1], [0], [0], [0, 0, 1, 0], [], []>} : vector<17x8xf32>, vector<17x8xf32>, vector<17x17xf32> -> vector<17x17xf32>
    %cst_90 = arith.constant 0.353553385 : f32
    %230 = vector.broadcast %cst_90 : f32 to vector<17x17xf32>
    %231 = arith.mulf %229, %230 : vector<17x17xf32>
    %cst_91 = arith.constant dense<0xFF800000> : vector<17xf32>
    %232 = vector.multi_reduction <maximumf>, %231, %cst_91 [1] : vector<17x17xf32> to vector<17xf32>
    %233 = vector.shape_cast %232 : vector<17xf32> to vector<17x1xf32>
    %234 = vector.broadcast %233 : vector<17x1xf32> to vector<17x17xf32>
    %235 = arith.subf %231, %234 : vector<17x17xf32>
    %236 = math.exp %235 : vector<17x17xf32>
    %cst_92 = arith.constant dense<0.000000e+00> : vector<17xf32>
    %237 = vector.multi_reduction <add>, %236, %cst_92 [1] : vector<17x17xf32> to vector<17xf32>
    %238 = vector.shape_cast %237 : vector<17xf32> to vector<17x1xf32>
    %239 = vector.broadcast %238 : vector<17x1xf32> to vector<17x17xf32>
    %240 = arith.divf %236, %239 : vector<17x17xf32>
    %cst_93 = arith.constant dense<0.000000e+00> : vector<17x8xf32>
    %241 = tpu.matmul %240, %227, %cst_93 {dimension_numbers = #tpu.dot_dimension_numbers<[1], [0], [0], [1], [0, 0, 1, 1], [], []>} : vector<17x17xf32>, vector<17x8xf32>, vector<17x8xf32> -> vector<17x8xf32>
    %242 = arith.addf %228, %241 : vector<17x8xf32>
    %243 = vector.extract_strided_slice %206 {offsets = [0, 64], sizes = [17, 8], strides = [1, 1]} : vector<17x128xf32> to vector<17x8xf32>
    %244 = vector.extract_strided_slice %206 {offsets = [0, 72], sizes = [17, 8], strides = [1, 1]} : vector<17x128xf32> to vector<17x8xf32>
    %245 = vector.extract_strided_slice %206 {offsets = [0, 80], sizes = [17, 8], strides = [1, 1]} : vector<17x128xf32> to vector<17x8xf32>
    %246 = vector.extract_strided_slice %206 {offsets = [0, 88], sizes = [17, 8], strides = [1, 1]} : vector<17x128xf32> to vector<17x8xf32>
    %cst_94 = arith.constant dense<0.000000e+00> : vector<17x17xf32>
    %247 = tpu.matmul %244, %243, %cst_94 {dimension_numbers = #tpu.dot_dimension_numbers<[1], [1], [0], [0], [0, 0, 1, 0], [], []>} : vector<17x8xf32>, vector<17x8xf32>, vector<17x17xf32> -> vector<17x17xf32>
    %cst_95 = arith.constant 0.353553385 : f32
    %248 = vector.broadcast %cst_95 : f32 to vector<17x17xf32>
    %249 = arith.mulf %247, %248 : vector<17x17xf32>
    %cst_96 = arith.constant dense<0xFF800000> : vector<17xf32>
    %250 = vector.multi_reduction <maximumf>, %249, %cst_96 [1] : vector<17x17xf32> to vector<17xf32>
    %251 = vector.shape_cast %250 : vector<17xf32> to vector<17x1xf32>
    %252 = vector.broadcast %251 : vector<17x1xf32> to vector<17x17xf32>
    %253 = arith.subf %249, %252 : vector<17x17xf32>
    %254 = math.exp %253 : vector<17x17xf32>
    %cst_97 = arith.constant dense<0.000000e+00> : vector<17xf32>
    %255 = vector.multi_reduction <add>, %254, %cst_97 [1] : vector<17x17xf32> to vector<17xf32>
    %256 = vector.shape_cast %255 : vector<17xf32> to vector<17x1xf32>
    %257 = vector.broadcast %256 : vector<17x1xf32> to vector<17x17xf32>
    %258 = arith.divf %254, %257 : vector<17x17xf32>
    %cst_98 = arith.constant dense<0.000000e+00> : vector<17x8xf32>
    %259 = tpu.matmul %258, %245, %cst_98 {dimension_numbers = #tpu.dot_dimension_numbers<[1], [0], [0], [1], [0, 0, 1, 1], [], []>} : vector<17x17xf32>, vector<17x8xf32>, vector<17x8xf32> -> vector<17x8xf32>
    %260 = arith.addf %246, %259 : vector<17x8xf32>
    %261 = vector.extract_strided_slice %206 {offsets = [0, 96], sizes = [17, 8], strides = [1, 1]} : vector<17x128xf32> to vector<17x8xf32>
    %262 = vector.extract_strided_slice %206 {offsets = [0, 104], sizes = [17, 8], strides = [1, 1]} : vector<17x128xf32> to vector<17x8xf32>
    %263 = vector.extract_strided_slice %206 {offsets = [0, 112], sizes = [17, 8], strides = [1, 1]} : vector<17x128xf32> to vector<17x8xf32>
    %264 = vector.extract_strided_slice %206 {offsets = [0, 120], sizes = [17, 8], strides = [1, 1]} : vector<17x128xf32> to vector<17x8xf32>
    %cst_99 = arith.constant dense<0.000000e+00> : vector<17x17xf32>
    %265 = tpu.matmul %262, %261, %cst_99 {dimension_numbers = #tpu.dot_dimension_numbers<[1], [1], [0], [0], [0, 0, 1, 0], [], []>} : vector<17x8xf32>, vector<17x8xf32>, vector<17x17xf32> -> vector<17x17xf32>
    %cst_100 = arith.constant 0.353553385 : f32
    %266 = vector.broadcast %cst_100 : f32 to vector<17x17xf32>
    %267 = arith.mulf %265, %266 : vector<17x17xf32>
    %cst_101 = arith.constant dense<0xFF800000> : vector<17xf32>
    %268 = vector.multi_reduction <maximumf>, %267, %cst_101 [1] : vector<17x17xf32> to vector<17xf32>
    %269 = vector.shape_cast %268 : vector<17xf32> to vector<17x1xf32>
    %270 = vector.broadcast %269 : vector<17x1xf32> to vector<17x17xf32>
    %271 = arith.subf %267, %270 : vector<17x17xf32>
    %272 = math.exp %271 : vector<17x17xf32>
    %cst_102 = arith.constant dense<0.000000e+00> : vector<17xf32>
    %273 = vector.multi_reduction <add>, %272, %cst_102 [1] : vector<17x17xf32> to vector<17xf32>
    %274 = vector.shape_cast %273 : vector<17xf32> to vector<17x1xf32>
    %275 = vector.broadcast %274 : vector<17x1xf32> to vector<17x17xf32>
    %276 = arith.divf %272, %275 : vector<17x17xf32>
    %cst_103 = arith.constant dense<0.000000e+00> : vector<17x8xf32>
    %277 = tpu.matmul %276, %263, %cst_103 {dimension_numbers = #tpu.dot_dimension_numbers<[1], [0], [0], [1], [0, 0, 1, 1], [], []>} : vector<17x17xf32>, vector<17x8xf32>, vector<17x8xf32> -> vector<17x8xf32>
    %278 = arith.addf %264, %277 : vector<17x8xf32>
    %279 = vector.extract_strided_slice %206 {offsets = [0, 0], sizes = [17, 24], strides = [1, 1]} : vector<17x128xf32> to vector<17x24xf32>
    %280 = vector.extract_strided_slice %206 {offsets = [0, 32], sizes = [17, 24], strides = [1, 1]} : vector<17x128xf32> to vector<17x24xf32>
    %281 = vector.extract_strided_slice %206 {offsets = [0, 64], sizes = [17, 24], strides = [1, 1]} : vector<17x128xf32> to vector<17x24xf32>
    %282 = vector.extract_strided_slice %206 {offsets = [0, 96], sizes = [17, 24], strides = [1, 1]} : vector<17x128xf32> to vector<17x24xf32>
    %283 = tpu.concatenate %279, %224, %280, %242, %281, %260, %282, %278 in 1 : vector<17x24xf32>, vector<17x8xf32>, vector<17x24xf32>, vector<17x8xf32>, vector<17x24xf32>, vector<17x8xf32>, vector<17x24xf32>, vector<17x8xf32> -> vector<17x128xf32>
    %cst_104 = arith.constant dense<0.000000e+00> : vector<17x128xf32>
    %284 = tpu.matmul %283, %15, %cst_104 {dimension_numbers = #tpu.dot_dimension_numbers<[1], [0], [0], [1], [0, 0, 1, 1], [], []>} : vector<17x128xf32>, vector<128x128xf32>, vector<17x128xf32> -> vector<17x128xf32>
    %285 = arith.addf %284, %48 : vector<17x128xf32>
    %286 = vector.extract_strided_slice %285 {offsets = [0, 0], sizes = [17, 8], strides = [1, 1]} : vector<17x128xf32> to vector<17x8xf32>
    %287 = vector.extract_strided_slice %285 {offsets = [0, 8], sizes = [17, 8], strides = [1, 1]} : vector<17x128xf32> to vector<17x8xf32>
    %288 = vector.extract_strided_slice %285 {offsets = [0, 16], sizes = [17, 8], strides = [1, 1]} : vector<17x128xf32> to vector<17x8xf32>
    %289 = vector.extract_strided_slice %285 {offsets = [0, 24], sizes = [17, 8], strides = [1, 1]} : vector<17x128xf32> to vector<17x8xf32>
    %cst_105 = arith.constant dense<0.000000e+00> : vector<17x17xf32>
    %290 = tpu.matmul %287, %286, %cst_105 {dimension_numbers = #tpu.dot_dimension_numbers<[1], [1], [0], [0], [0, 0, 1, 0], [], []>} : vector<17x8xf32>, vector<17x8xf32>, vector<17x17xf32> -> vector<17x17xf32>
    %cst_106 = arith.constant 0.353553385 : f32
    %291 = vector.broadcast %cst_106 : f32 to vector<17x17xf32>
    %292 = arith.mulf %290, %291 : vector<17x17xf32>
    %cst_107 = arith.constant dense<0xFF800000> : vector<17xf32>
    %293 = vector.multi_reduction <maximumf>, %292, %cst_107 [1] : vector<17x17xf32> to vector<17xf32>
    %294 = vector.shape_cast %293 : vector<17xf32> to vector<17x1xf32>
    %295 = vector.broadcast %294 : vector<17x1xf32> to vector<17x17xf32>
    %296 = arith.subf %292, %295 : vector<17x17xf32>
    %297 = math.exp %296 : vector<17x17xf32>
    %cst_108 = arith.constant dense<0.000000e+00> : vector<17xf32>
    %298 = vector.multi_reduction <add>, %297, %cst_108 [1] : vector<17x17xf32> to vector<17xf32>
    %299 = vector.shape_cast %298 : vector<17xf32> to vector<17x1xf32>
    %300 = vector.broadcast %299 : vector<17x1xf32> to vector<17x17xf32>
    %301 = arith.divf %297, %300 : vector<17x17xf32>
    %cst_109 = arith.constant dense<0.000000e+00> : vector<17x8xf32>
    %302 = tpu.matmul %301, %288, %cst_109 {dimension_numbers = #tpu.dot_dimension_numbers<[1], [0], [0], [1], [0, 0, 1, 1], [], []>} : vector<17x17xf32>, vector<17x8xf32>, vector<17x8xf32> -> vector<17x8xf32>
    %303 = arith.addf %289, %302 : vector<17x8xf32>
    %304 = vector.extract_strided_slice %285 {offsets = [0, 32], sizes = [17, 8], strides = [1, 1]} : vector<17x128xf32> to vector<17x8xf32>
    %305 = vector.extract_strided_slice %285 {offsets = [0, 40], sizes = [17, 8], strides = [1, 1]} : vector<17x128xf32> to vector<17x8xf32>
    %306 = vector.extract_strided_slice %285 {offsets = [0, 48], sizes = [17, 8], strides = [1, 1]} : vector<17x128xf32> to vector<17x8xf32>
    %307 = vector.extract_strided_slice %285 {offsets = [0, 56], sizes = [17, 8], strides = [1, 1]} : vector<17x128xf32> to vector<17x8xf32>
    %cst_110 = arith.constant dense<0.000000e+00> : vector<17x17xf32>
    %308 = tpu.matmul %305, %304, %cst_110 {dimension_numbers = #tpu.dot_dimension_numbers<[1], [1], [0], [0], [0, 0, 1, 0], [], []>} : vector<17x8xf32>, vector<17x8xf32>, vector<17x17xf32> -> vector<17x17xf32>
    %cst_111 = arith.constant 0.353553385 : f32
    %309 = vector.broadcast %cst_111 : f32 to vector<17x17xf32>
    %310 = arith.mulf %308, %309 : vector<17x17xf32>
    %cst_112 = arith.constant dense<0xFF800000> : vector<17xf32>
    %311 = vector.multi_reduction <maximumf>, %310, %cst_112 [1] : vector<17x17xf32> to vector<17xf32>
    %312 = vector.shape_cast %311 : vector<17xf32> to vector<17x1xf32>
    %313 = vector.broadcast %312 : vector<17x1xf32> to vector<17x17xf32>
    %314 = arith.subf %310, %313 : vector<17x17xf32>
    %315 = math.exp %314 : vector<17x17xf32>
    %cst_113 = arith.constant dense<0.000000e+00> : vector<17xf32>
    %316 = vector.multi_reduction <add>, %315, %cst_113 [1] : vector<17x17xf32> to vector<17xf32>
    %317 = vector.shape_cast %316 : vector<17xf32> to vector<17x1xf32>
    %318 = vector.broadcast %317 : vector<17x1xf32> to vector<17x17xf32>
    %319 = arith.divf %315, %318 : vector<17x17xf32>
    %cst_114 = arith.constant dense<0.000000e+00> : vector<17x8xf32>
    %320 = tpu.matmul %319, %306, %cst_114 {dimension_numbers = #tpu.dot_dimension_numbers<[1], [0], [0], [1], [0, 0, 1, 1], [], []>} : vector<17x17xf32>, vector<17x8xf32>, vector<17x8xf32> -> vector<17x8xf32>
    %321 = arith.addf %307, %320 : vector<17x8xf32>
    %322 = vector.extract_strided_slice %285 {offsets = [0, 64], sizes = [17, 8], strides = [1, 1]} : vector<17x128xf32> to vector<17x8xf32>
    %323 = vector.extract_strided_slice %285 {offsets = [0, 72], sizes = [17, 8], strides = [1, 1]} : vector<17x128xf32> to vector<17x8xf32>
    %324 = vector.extract_strided_slice %285 {offsets = [0, 80], sizes = [17, 8], strides = [1, 1]} : vector<17x128xf32> to vector<17x8xf32>
    %325 = vector.extract_strided_slice %285 {offsets = [0, 88], sizes = [17, 8], strides = [1, 1]} : vector<17x128xf32> to vector<17x8xf32>
    %cst_115 = arith.constant dense<0.000000e+00> : vector<17x17xf32>
    %326 = tpu.matmul %323, %322, %cst_115 {dimension_numbers = #tpu.dot_dimension_numbers<[1], [1], [0], [0], [0, 0, 1, 0], [], []>} : vector<17x8xf32>, vector<17x8xf32>, vector<17x17xf32> -> vector<17x17xf32>
    %cst_116 = arith.constant 0.353553385 : f32
    %327 = vector.broadcast %cst_116 : f32 to vector<17x17xf32>
    %328 = arith.mulf %326, %327 : vector<17x17xf32>
    %cst_117 = arith.constant dense<0xFF800000> : vector<17xf32>
    %329 = vector.multi_reduction <maximumf>, %328, %cst_117 [1] : vector<17x17xf32> to vector<17xf32>
    %330 = vector.shape_cast %329 : vector<17xf32> to vector<17x1xf32>
    %331 = vector.broadcast %330 : vector<17x1xf32> to vector<17x17xf32>
    %332 = arith.subf %328, %331 : vector<17x17xf32>
    %333 = math.exp %332 : vector<17x17xf32>
    %cst_118 = arith.constant dense<0.000000e+00> : vector<17xf32>
    %334 = vector.multi_reduction <add>, %333, %cst_118 [1] : vector<17x17xf32> to vector<17xf32>
    %335 = vector.shape_cast %334 : vector<17xf32> to vector<17x1xf32>
    %336 = vector.broadcast %335 : vector<17x1xf32> to vector<17x17xf32>
    %337 = arith.divf %333, %336 : vector<17x17xf32>
    %cst_119 = arith.constant dense<0.000000e+00> : vector<17x8xf32>
    %338 = tpu.matmul %337, %324, %cst_119 {dimension_numbers = #tpu.dot_dimension_numbers<[1], [0], [0], [1], [0, 0, 1, 1], [], []>} : vector<17x17xf32>, vector<17x8xf32>, vector<17x8xf32> -> vector<17x8xf32>
    %339 = arith.addf %325, %338 : vector<17x8xf32>
    %340 = vector.extract_strided_slice %285 {offsets = [0, 96], sizes = [17, 8], strides = [1, 1]} : vector<17x128xf32> to vector<17x8xf32>
    %341 = vector.extract_strided_slice %285 {offsets = [0, 104], sizes = [17, 8], strides = [1, 1]} : vector<17x128xf32> to vector<17x8xf32>
    %342 = vector.extract_strided_slice %285 {offsets = [0, 112], sizes = [17, 8], strides = [1, 1]} : vector<17x128xf32> to vector<17x8xf32>
    %343 = vector.extract_strided_slice %285 {offsets = [0, 120], sizes = [17, 8], strides = [1, 1]} : vector<17x128xf32> to vector<17x8xf32>
    %cst_120 = arith.constant dense<0.000000e+00> : vector<17x17xf32>
    %344 = tpu.matmul %341, %340, %cst_120 {dimension_numbers = #tpu.dot_dimension_numbers<[1], [1], [0], [0], [0, 0, 1, 0], [], []>} : vector<17x8xf32>, vector<17x8xf32>, vector<17x17xf32> -> vector<17x17xf32>
    %cst_121 = arith.constant 0.353553385 : f32
    %345 = vector.broadcast %cst_121 : f32 to vector<17x17xf32>
    %346 = arith.mulf %344, %345 : vector<17x17xf32>
    %cst_122 = arith.constant dense<0xFF800000> : vector<17xf32>
    %347 = vector.multi_reduction <maximumf>, %346, %cst_122 [1] : vector<17x17xf32> to vector<17xf32>
    %348 = vector.shape_cast %347 : vector<17xf32> to vector<17x1xf32>
    %349 = vector.broadcast %348 : vector<17x1xf32> to vector<17x17xf32>
    %350 = arith.subf %346, %349 : vector<17x17xf32>
    %351 = math.exp %350 : vector<17x17xf32>
    %cst_123 = arith.constant dense<0.000000e+00> : vector<17xf32>
    %352 = vector.multi_reduction <add>, %351, %cst_123 [1] : vector<17x17xf32> to vector<17xf32>
    %353 = vector.shape_cast %352 : vector<17xf32> to vector<17x1xf32>
    %354 = vector.broadcast %353 : vector<17x1xf32> to vector<17x17xf32>
    %355 = arith.divf %351, %354 : vector<17x17xf32>
    %cst_124 = arith.constant dense<0.000000e+00> : vector<17x8xf32>
    %356 = tpu.matmul %355, %342, %cst_124 {dimension_numbers = #tpu.dot_dimension_numbers<[1], [0], [0], [1], [0, 0, 1, 1], [], []>} : vector<17x17xf32>, vector<17x8xf32>, vector<17x8xf32> -> vector<17x8xf32>
    %357 = arith.addf %343, %356 : vector<17x8xf32>
    %358 = vector.extract_strided_slice %285 {offsets = [0, 0], sizes = [17, 24], strides = [1, 1]} : vector<17x128xf32> to vector<17x24xf32>
    %359 = vector.extract_strided_slice %285 {offsets = [0, 32], sizes = [17, 24], strides = [1, 1]} : vector<17x128xf32> to vector<17x24xf32>
    %360 = vector.extract_strided_slice %285 {offsets = [0, 64], sizes = [17, 24], strides = [1, 1]} : vector<17x128xf32> to vector<17x24xf32>
    %361 = vector.extract_strided_slice %285 {offsets = [0, 96], sizes = [17, 24], strides = [1, 1]} : vector<17x128xf32> to vector<17x24xf32>
    %362 = tpu.concatenate %358, %303, %359, %321, %360, %339, %361, %357 in 1 : vector<17x24xf32>, vector<17x8xf32>, vector<17x24xf32>, vector<17x8xf32>, vector<17x24xf32>, vector<17x8xf32>, vector<17x24xf32>, vector<17x8xf32> -> vector<17x128xf32>
    %cst_125 = arith.constant dense<0.000000e+00> : vector<17x128xf32>
    %363 = tpu.matmul %362, %15, %cst_125 {dimension_numbers = #tpu.dot_dimension_numbers<[1], [0], [0], [1], [0, 0, 1, 1], [], []>} : vector<17x128xf32>, vector<128x128xf32>, vector<17x128xf32> -> vector<17x128xf32>
    %364 = arith.addf %363, %48 : vector<17x128xf32>
    %365 = vector.extract_strided_slice %364 {offsets = [0, 0], sizes = [17, 8], strides = [1, 1]} : vector<17x128xf32> to vector<17x8xf32>
    %366 = vector.extract_strided_slice %364 {offsets = [0, 8], sizes = [17, 8], strides = [1, 1]} : vector<17x128xf32> to vector<17x8xf32>
    %367 = vector.extract_strided_slice %364 {offsets = [0, 16], sizes = [17, 8], strides = [1, 1]} : vector<17x128xf32> to vector<17x8xf32>
    %368 = vector.extract_strided_slice %364 {offsets = [0, 24], sizes = [17, 8], strides = [1, 1]} : vector<17x128xf32> to vector<17x8xf32>
    %cst_126 = arith.constant dense<0.000000e+00> : vector<17x17xf32>
    %369 = tpu.matmul %366, %365, %cst_126 {dimension_numbers = #tpu.dot_dimension_numbers<[1], [1], [0], [0], [0, 0, 1, 0], [], []>} : vector<17x8xf32>, vector<17x8xf32>, vector<17x17xf32> -> vector<17x17xf32>
    %cst_127 = arith.constant 0.353553385 : f32
    %370 = vector.broadcast %cst_127 : f32 to vector<17x17xf32>
    %371 = arith.mulf %369, %370 : vector<17x17xf32>
    %cst_128 = arith.constant dense<0xFF800000> : vector<17xf32>
    %372 = vector.multi_reduction <maximumf>, %371, %cst_128 [1] : vector<17x17xf32> to vector<17xf32>
    %373 = vector.shape_cast %372 : vector<17xf32> to vector<17x1xf32>
    %374 = vector.broadcast %373 : vector<17x1xf32> to vector<17x17xf32>
    %375 = arith.subf %371, %374 : vector<17x17xf32>
    %376 = math.exp %375 : vector<17x17xf32>
    %cst_129 = arith.constant dense<0.000000e+00> : vector<17xf32>
    %377 = vector.multi_reduction <add>, %376, %cst_129 [1] : vector<17x17xf32> to vector<17xf32>
    %378 = vector.shape_cast %377 : vector<17xf32> to vector<17x1xf32>
    %379 = vector.broadcast %378 : vector<17x1xf32> to vector<17x17xf32>
    %380 = arith.divf %376, %379 : vector<17x17xf32>
    %cst_130 = arith.constant dense<0.000000e+00> : vector<17x8xf32>
    %381 = tpu.matmul %380, %367, %cst_130 {dimension_numbers = #tpu.dot_dimension_numbers<[1], [0], [0], [1], [0, 0, 1, 1], [], []>} : vector<17x17xf32>, vector<17x8xf32>, vector<17x8xf32> -> vector<17x8xf32>
    %382 = arith.addf %368, %381 : vector<17x8xf32>
    %383 = vector.extract_strided_slice %364 {offsets = [0, 32], sizes = [17, 8], strides = [1, 1]} : vector<17x128xf32> to vector<17x8xf32>
    %384 = vector.extract_strided_slice %364 {offsets = [0, 40], sizes = [17, 8], strides = [1, 1]} : vector<17x128xf32> to vector<17x8xf32>
    %385 = vector.extract_strided_slice %364 {offsets = [0, 48], sizes = [17, 8], strides = [1, 1]} : vector<17x128xf32> to vector<17x8xf32>
    %386 = vector.extract_strided_slice %364 {offsets = [0, 56], sizes = [17, 8], strides = [1, 1]} : vector<17x128xf32> to vector<17x8xf32>
    %cst_131 = arith.constant dense<0.000000e+00> : vector<17x17xf32>
    %387 = tpu.matmul %384, %383, %cst_131 {dimension_numbers = #tpu.dot_dimension_numbers<[1], [1], [0], [0], [0, 0, 1, 0], [], []>} : vector<17x8xf32>, vector<17x8xf32>, vector<17x17xf32> -> vector<17x17xf32>
    %cst_132 = arith.constant 0.353553385 : f32
    %388 = vector.broadcast %cst_132 : f32 to vector<17x17xf32>
    %389 = arith.mulf %387, %388 : vector<17x17xf32>
    %cst_133 = arith.constant dense<0xFF800000> : vector<17xf32>
    %390 = vector.multi_reduction <maximumf>, %389, %cst_133 [1] : vector<17x17xf32> to vector<17xf32>
    %391 = vector.shape_cast %390 : vector<17xf32> to vector<17x1xf32>
    %392 = vector.broadcast %391 : vector<17x1xf32> to vector<17x17xf32>
    %393 = arith.subf %389, %392 : vector<17x17xf32>
    %394 = math.exp %393 : vector<17x17xf32>
    %cst_134 = arith.constant dense<0.000000e+00> : vector<17xf32>
    %395 = vector.multi_reduction <add>, %394, %cst_134 [1] : vector<17x17xf32> to vector<17xf32>
    %396 = vector.shape_cast %395 : vector<17xf32> to vector<17x1xf32>
    %397 = vector.broadcast %396 : vector<17x1xf32> to vector<17x17xf32>
    %398 = arith.divf %394, %397 : vector<17x17xf32>
    %cst_135 = arith.constant dense<0.000000e+00> : vector<17x8xf32>
    %399 = tpu.matmul %398, %385, %cst_135 {dimension_numbers = #tpu.dot_dimension_numbers<[1], [0], [0], [1], [0, 0, 1, 1], [], []>} : vector<17x17xf32>, vector<17x8xf32>, vector<17x8xf32> -> vector<17x8xf32>
    %400 = arith.addf %386, %399 : vector<17x8xf32>
    %401 = vector.extract_strided_slice %364 {offsets = [0, 64], sizes = [17, 8], strides = [1, 1]} : vector<17x128xf32> to vector<17x8xf32>
    %402 = vector.extract_strided_slice %364 {offsets = [0, 72], sizes = [17, 8], strides = [1, 1]} : vector<17x128xf32> to vector<17x8xf32>
    %403 = vector.extract_strided_slice %364 {offsets = [0, 80], sizes = [17, 8], strides = [1, 1]} : vector<17x128xf32> to vector<17x8xf32>
    %404 = vector.extract_strided_slice %364 {offsets = [0, 88], sizes = [17, 8], strides = [1, 1]} : vector<17x128xf32> to vector<17x8xf32>
    %cst_136 = arith.constant dense<0.000000e+00> : vector<17x17xf32>
    %405 = tpu.matmul %402, %401, %cst_136 {dimension_numbers = #tpu.dot_dimension_numbers<[1], [1], [0], [0], [0, 0, 1, 0], [], []>} : vector<17x8xf32>, vector<17x8xf32>, vector<17x17xf32> -> vector<17x17xf32>
    %cst_137 = arith.constant 0.353553385 : f32
    %406 = vector.broadcast %cst_137 : f32 to vector<17x17xf32>
    %407 = arith.mulf %405, %406 : vector<17x17xf32>
    %cst_138 = arith.constant dense<0xFF800000> : vector<17xf32>
    %408 = vector.multi_reduction <maximumf>, %407, %cst_138 [1] : vector<17x17xf32> to vector<17xf32>
    %409 = vector.shape_cast %408 : vector<17xf32> to vector<17x1xf32>
    %410 = vector.broadcast %409 : vector<17x1xf32> to vector<17x17xf32>
    %411 = arith.subf %407, %410 : vector<17x17xf32>
    %412 = math.exp %411 : vector<17x17xf32>
    %cst_139 = arith.constant dense<0.000000e+00> : vector<17xf32>
    %413 = vector.multi_reduction <add>, %412, %cst_139 [1] : vector<17x17xf32> to vector<17xf32>
    %414 = vector.shape_cast %413 : vector<17xf32> to vector<17x1xf32>
    %415 = vector.broadcast %414 : vector<17x1xf32> to vector<17x17xf32>
    %416 = arith.divf %412, %415 : vector<17x17xf32>
    %cst_140 = arith.constant dense<0.000000e+00> : vector<17x8xf32>
    %417 = tpu.matmul %416, %403, %cst_140 {dimension_numbers = #tpu.dot_dimension_numbers<[1], [0], [0], [1], [0, 0, 1, 1], [], []>} : vector<17x17xf32>, vector<17x8xf32>, vector<17x8xf32> -> vector<17x8xf32>
    %418 = arith.addf %404, %417 : vector<17x8xf32>
    %419 = vector.extract_strided_slice %364 {offsets = [0, 96], sizes = [17, 8], strides = [1, 1]} : vector<17x128xf32> to vector<17x8xf32>
    %420 = vector.extract_strided_slice %364 {offsets = [0, 104], sizes = [17, 8], strides = [1, 1]} : vector<17x128xf32> to vector<17x8xf32>
    %421 = vector.extract_strided_slice %364 {offsets = [0, 112], sizes = [17, 8], strides = [1, 1]} : vector<17x128xf32> to vector<17x8xf32>
    %422 = vector.extract_strided_slice %364 {offsets = [0, 120], sizes = [17, 8], strides = [1, 1]} : vector<17x128xf32> to vector<17x8xf32>
    %cst_141 = arith.constant dense<0.000000e+00> : vector<17x17xf32>
    %423 = tpu.matmul %420, %419, %cst_141 {dimension_numbers = #tpu.dot_dimension_numbers<[1], [1], [0], [0], [0, 0, 1, 0], [], []>} : vector<17x8xf32>, vector<17x8xf32>, vector<17x17xf32> -> vector<17x17xf32>
    %cst_142 = arith.constant 0.353553385 : f32
    %424 = vector.broadcast %cst_142 : f32 to vector<17x17xf32>
    %425 = arith.mulf %423, %424 : vector<17x17xf32>
    %cst_143 = arith.constant dense<0xFF800000> : vector<17xf32>
    %426 = vector.multi_reduction <maximumf>, %425, %cst_143 [1] : vector<17x17xf32> to vector<17xf32>
    %427 = vector.shape_cast %426 : vector<17xf32> to vector<17x1xf32>
    %428 = vector.broadcast %427 : vector<17x1xf32> to vector<17x17xf32>
    %429 = arith.subf %425, %428 : vector<17x17xf32>
    %430 = math.exp %429 : vector<17x17xf32>
    %cst_144 = arith.constant dense<0.000000e+00> : vector<17xf32>
    %431 = vector.multi_reduction <add>, %430, %cst_144 [1] : vector<17x17xf32> to vector<17xf32>
    %432 = vector.shape_cast %431 : vector<17xf32> to vector<17x1xf32>
    %433 = vector.broadcast %432 : vector<17x1xf32> to vector<17x17xf32>
    %434 = arith.divf %430, %433 : vector<17x17xf32>
    %cst_145 = arith.constant dense<0.000000e+00> : vector<17x8xf32>
    %435 = tpu.matmul %434, %421, %cst_145 {dimension_numbers = #tpu.dot_dimension_numbers<[1], [0], [0], [1], [0, 0, 1, 1], [], []>} : vector<17x17xf32>, vector<17x8xf32>, vector<17x8xf32> -> vector<17x8xf32>
    %436 = arith.addf %422, %435 : vector<17x8xf32>
    %437 = tpu.concatenate %382, %400, %418, %436 in 1 : vector<17x8xf32>, vector<17x8xf32>, vector<17x8xf32>, vector<17x8xf32> -> vector<17x32xf32>
    %cst_146 = arith.constant dense<0.000000e+00> : vector<17x32xf32>
    %438 = tpu.matmul %437, %16, %cst_146 {dimension_numbers = #tpu.dot_dimension_numbers<[1], [0], [0], [1], [0, 0, 1, 1], [], []>} : vector<17x32xf32>, vector<32x32xf32>, vector<17x32xf32> -> vector<17x32xf32>
    %439 = arith.addf %10, %438 : vector<17x32xf32>
    %440 = vector.broadcast %17 : vector<1x32xf32> to vector<17x32xf32>
    %441 = arith.addf %439, %440 : vector<17x32xf32>
    %cst_147 = arith.constant dense<0.000000e+00> : vector<17xf32>
    %442 = vector.multi_reduction <add>, %441, %cst_147 [1] : vector<17x32xf32> to vector<17xf32>
    %443 = vector.shape_cast %442 : vector<17xf32> to vector<17x1xf32>
    %cst_148 = arith.constant 3.200000e+01 : f32
    %444 = vector.broadcast %cst_148 : f32 to vector<17x1xf32>
    %445 = arith.divf %443, %444 : vector<17x1xf32>
    %446 = vector.broadcast %445 : vector<17x1xf32> to vector<17x32xf32>
    %447 = arith.subf %441, %446 : vector<17x32xf32>
    %448 = arith.mulf %447, %447 : vector<17x32xf32>
    %cst_149 = arith.constant dense<0.000000e+00> : vector<17xf32>
    %449 = vector.multi_reduction <add>, %448, %cst_149 [1] : vector<17x32xf32> to vector<17xf32>
    %450 = vector.shape_cast %449 : vector<17xf32> to vector<17x1xf32>
    %cst_150 = arith.constant 3.200000e+01 : f32
    %451 = vector.broadcast %cst_150 : f32 to vector<17x1xf32>
    %452 = arith.divf %450, %451 : vector<17x1xf32>
    %453 = vector.broadcast %445 : vector<17x1xf32> to vector<17x32xf32>
    %454 = arith.subf %441, %453 : vector<17x32xf32>
    %cst_151 = arith.constant 9.99999997E-7 : f32
    %455 = vector.broadcast %cst_151 : f32 to vector<17x1xf32>
    %456 = arith.addf %452, %455 : vector<17x1xf32>
    %457 = math.rsqrt %456 : vector<17x1xf32>
    %458 = vector.broadcast %457 : vector<17x1xf32> to vector<17x32xf32>
    %459 = arith.mulf %454, %458 : vector<17x32xf32>
    %460 = vector.broadcast %18 : vector<1x32xf32> to vector<17x32xf32>
    %461 = arith.mulf %459, %460 : vector<17x32xf32>
    %462 = vector.broadcast %19 : vector<1x32xf32> to vector<17x32xf32>
    %463 = arith.addf %461, %462 : vector<17x32xf32>
    %cst_152 = arith.constant dense<0.000000e+00> : vector<17x128xf32>
    %464 = tpu.matmul %463, %20, %cst_152 {dimension_numbers = #tpu.dot_dimension_numbers<[1], [0], [0], [1], [0, 0, 1, 1], [], []>} : vector<17x32xf32>, vector<32x128xf32>, vector<17x128xf32> -> vector<17x128xf32>
    %465 = vector.broadcast %21 : vector<1x128xf32> to vector<17x128xf32>
    %466 = arith.addf %464, %465 : vector<17x128xf32>
    %cst_153 = arith.constant 5.000000e-01 : f32
    %467 = vector.broadcast %cst_153 : f32 to vector<17x128xf32>
    %468 = arith.mulf %467, %466 : vector<17x128xf32>
    %cst_154 = arith.constant 0.707106769 : f32
    %469 = vector.broadcast %cst_154 : f32 to vector<17x128xf32>
    %470 = arith.mulf %466, %469 : vector<17x128xf32>
    %cst_155 = arith.constant 0.000000e+00 : f32
    %471 = vector.broadcast %cst_155 : f32 to vector<17x128xf32>
    %472 = arith.cmpf oge, %470, %471 : vector<17x128xf32>
    %cst_156 = arith.constant 1.000000e+00 : f32
    %cst_157 = arith.constant -1.000000e+00 : f32
    %473 = vector.broadcast %cst_156 : f32 to vector<17x128xf32>
    %474 = vector.broadcast %cst_157 : f32 to vector<17x128xf32>
    %475 = arith.select %472, %473, %474 : vector<17x128xi1>, vector<17x128xf32>
    %476 = math.absf %470 : vector<17x128xf32>
    %cst_158 = arith.constant 0.327591091 : f32
    %477 = vector.broadcast %cst_158 : f32 to vector<17x128xf32>
    %478 = arith.mulf %477, %476 : vector<17x128xf32>
    %cst_159 = arith.constant 1.000000e+00 : f32
    %479 = vector.broadcast %cst_159 : f32 to vector<17x128xf32>
    %480 = arith.addf %479, %478 : vector<17x128xf32>
    %cst_160 = arith.constant 1.000000e+00 : f32
    %481 = vector.broadcast %cst_160 : f32 to vector<17x128xf32>
    %482 = arith.divf %481, %480 : vector<17x128xf32>
    %cst_161 = arith.constant 1.06140542 : f32
    %483 = vector.broadcast %cst_161 : f32 to vector<17x128xf32>
    %484 = arith.mulf %483, %482 : vector<17x128xf32>
    %cst_162 = arith.constant -1.45315206 : f32
    %485 = vector.broadcast %cst_162 : f32 to vector<17x128xf32>
    %486 = arith.addf %484, %485 : vector<17x128xf32>
    %487 = arith.mulf %486, %482 : vector<17x128xf32>
    %cst_163 = arith.constant 1.42141378 : f32
    %488 = vector.broadcast %cst_163 : f32 to vector<17x128xf32>
    %489 = arith.addf %487, %488 : vector<17x128xf32>
    %490 = arith.mulf %489, %482 : vector<17x128xf32>
    %cst_164 = arith.constant -0.284496725 : f32
    %491 = vector.broadcast %cst_164 : f32 to vector<17x128xf32>
    %492 = arith.addf %490, %491 : vector<17x128xf32>
    %493 = arith.mulf %492, %482 : vector<17x128xf32>
    %cst_165 = arith.constant 0.254829586 : f32
    %494 = vector.broadcast %cst_165 : f32 to vector<17x128xf32>
    %495 = arith.addf %493, %494 : vector<17x128xf32>
    %496 = arith.mulf %495, %482 : vector<17x128xf32>
    %cst_166 = arith.constant 0.000000e+00 : f32
    %497 = vector.broadcast %cst_166 : f32 to vector<17x128xf32>
    %498 = arith.subf %497, %476 : vector<17x128xf32>
    %499 = arith.mulf %498, %476 : vector<17x128xf32>
    %500 = math.exp %499 : vector<17x128xf32>
    %501 = arith.mulf %496, %500 : vector<17x128xf32>
    %cst_167 = arith.constant 1.000000e+00 : f32
    %502 = vector.broadcast %cst_167 : f32 to vector<17x128xf32>
    %503 = arith.subf %502, %501 : vector<17x128xf32>
    %504 = arith.mulf %475, %503 : vector<17x128xf32>
    %cst_168 = arith.constant 1.000000e+00 : f32
    %505 = vector.broadcast %cst_168 : f32 to vector<17x128xf32>
    %506 = arith.addf %505, %504 : vector<17x128xf32>
    %507 = arith.mulf %468, %506 : vector<17x128xf32>
    %cst_169 = arith.constant dense<0.000000e+00> : vector<17x32xf32>
    %508 = tpu.matmul %507, %22, %cst_169 {dimension_numbers = #tpu.dot_dimension_numbers<[1], [0], [0], [1], [0, 0, 1, 1], [], []>} : vector<17x128xf32>, vector<128x32xf32>, vector<17x32xf32> -> vector<17x32xf32>
    %509 = arith.addf %441, %508 : vector<17x32xf32>
    %510 = vector.broadcast %23 : vector<1x32xf32> to vector<17x32xf32>
    %511 = arith.addf %509, %510 : vector<17x32xf32>
    %c0_170 = arith.constant 0 : index
    %c0_171 = arith.constant 0 : index
    %512 = vector.load %arg19[%c0_170, %c0_171] : memref<1x32xf32, #tpu.memory_space<vmem>>, vector<1x32xf32>
    %c0_172 = arith.constant 0 : index
    %c0_173 = arith.constant 0 : index
    %513 = vector.load %arg20[%c0_172, %c0_173] : memref<1x32xf32, #tpu.memory_space<vmem>>, vector<1x32xf32>
    %c0_174 = arith.constant 0 : index
    %c0_175 = arith.constant 0 : index
    %514 = vector.load %arg21[%c0_174, %c0_175] : memref<32x96xf32, #tpu.memory_space<vmem>>, vector<32x96xf32>
    %c0_176 = arith.constant 0 : index
    %c0_177 = arith.constant 0 : index
    %515 = vector.load %arg22[%c0_176, %c0_177] : memref<1x96xf32, #tpu.memory_space<vmem>>, vector<1x96xf32>
    %c0_178 = arith.constant 0 : index
    %c0_179 = arith.constant 0 : index
    %516 = vector.load %arg23[%c0_178, %c0_179] : memref<32x32xf32, #tpu.memory_space<vmem>>, vector<32x32xf32>
    %c0_180 = arith.constant 0 : index
    %c0_181 = arith.constant 0 : index
    %517 = vector.load %arg24[%c0_180, %c0_181] : memref<1x32xf32, #tpu.memory_space<vmem>>, vector<1x32xf32>
    %c0_182 = arith.constant 0 : index
    %c0_183 = arith.constant 0 : index
    %518 = vector.load %arg25[%c0_182, %c0_183] : memref<1x32xf32, #tpu.memory_space<vmem>>, vector<1x32xf32>
    %c0_184 = arith.constant 0 : index
    %c0_185 = arith.constant 0 : index
    %519 = vector.load %arg26[%c0_184, %c0_185] : memref<1x32xf32, #tpu.memory_space<vmem>>, vector<1x32xf32>
    %c0_186 = arith.constant 0 : index
    %c0_187 = arith.constant 0 : index
    %520 = vector.load %arg27[%c0_186, %c0_187] : memref<32x128xf32, #tpu.memory_space<vmem>>, vector<32x128xf32>
    %c0_188 = arith.constant 0 : index
    %c0_189 = arith.constant 0 : index
    %521 = vector.load %arg28[%c0_188, %c0_189] : memref<1x128xf32, #tpu.memory_space<vmem>>, vector<1x128xf32>
    %c0_190 = arith.constant 0 : index
    %c0_191 = arith.constant 0 : index
    %522 = vector.load %arg29[%c0_190, %c0_191] : memref<128x32xf32, #tpu.memory_space<vmem>>, vector<128x32xf32>
    %c0_192 = arith.constant 0 : index
    %c0_193 = arith.constant 0 : index
    %523 = vector.load %arg30[%c0_192, %c0_193] : memref<1x32xf32, #tpu.memory_space<vmem>>, vector<1x32xf32>
    %cst_194 = arith.constant dense<0.000000e+00> : vector<17xf32>
    %524 = vector.multi_reduction <add>, %511, %cst_194 [1] : vector<17x32xf32> to vector<17xf32>
    %525 = vector.shape_cast %524 : vector<17xf32> to vector<17x1xf32>
    %cst_195 = arith.constant 3.200000e+01 : f32
    %526 = vector.broadcast %cst_195 : f32 to vector<17x1xf32>
    %527 = arith.divf %525, %526 : vector<17x1xf32>
    %528 = vector.broadcast %527 : vector<17x1xf32> to vector<17x32xf32>
    %529 = arith.subf %511, %528 : vector<17x32xf32>
    %530 = arith.mulf %529, %529 : vector<17x32xf32>
    %cst_196 = arith.constant dense<0.000000e+00> : vector<17xf32>
    %531 = vector.multi_reduction <add>, %530, %cst_196 [1] : vector<17x32xf32> to vector<17xf32>
    %532 = vector.shape_cast %531 : vector<17xf32> to vector<17x1xf32>
    %cst_197 = arith.constant 3.200000e+01 : f32
    %533 = vector.broadcast %cst_197 : f32 to vector<17x1xf32>
    %534 = arith.divf %532, %533 : vector<17x1xf32>
    %535 = vector.broadcast %527 : vector<17x1xf32> to vector<17x32xf32>
    %536 = arith.subf %511, %535 : vector<17x32xf32>
    %cst_198 = arith.constant 9.99999997E-7 : f32
    %537 = vector.broadcast %cst_198 : f32 to vector<17x1xf32>
    %538 = arith.addf %534, %537 : vector<17x1xf32>
    %539 = math.rsqrt %538 : vector<17x1xf32>
    %540 = vector.broadcast %539 : vector<17x1xf32> to vector<17x32xf32>
    %541 = arith.mulf %536, %540 : vector<17x32xf32>
    %542 = vector.broadcast %512 : vector<1x32xf32> to vector<17x32xf32>
    %543 = arith.mulf %541, %542 : vector<17x32xf32>
    %544 = vector.broadcast %513 : vector<1x32xf32> to vector<17x32xf32>
    %545 = arith.addf %543, %544 : vector<17x32xf32>
    %cst_199 = arith.constant dense<0.000000e+00> : vector<17x96xf32>
    %546 = tpu.matmul %545, %514, %cst_199 {dimension_numbers = #tpu.dot_dimension_numbers<[1], [0], [0], [1], [0, 0, 1, 1], [], []>} : vector<17x32xf32>, vector<32x96xf32>, vector<17x96xf32> -> vector<17x96xf32>
    %547 = vector.broadcast %515 : vector<1x96xf32> to vector<17x96xf32>
    %548 = arith.addf %546, %547 : vector<17x96xf32>
    %549 = vector.extract_strided_slice %548 {offsets = [0, 0], sizes = [17, 8], strides = [1, 1]} : vector<17x96xf32> to vector<17x8xf32>
    %550 = vector.extract_strided_slice %548 {offsets = [0, 32], sizes = [17, 8], strides = [1, 1]} : vector<17x96xf32> to vector<17x8xf32>
    %551 = vector.extract_strided_slice %548 {offsets = [0, 64], sizes = [17, 8], strides = [1, 1]} : vector<17x96xf32> to vector<17x8xf32>
    %cst_200 = arith.constant dense<0.000000e+00> : vector<17x17xf32>
    %552 = tpu.matmul %549, %550, %cst_200 {dimension_numbers = #tpu.dot_dimension_numbers<[1], [1], [0], [0], [0, 0, 1, 0], [], []>} : vector<17x8xf32>, vector<17x8xf32>, vector<17x17xf32> -> vector<17x17xf32>
    %cst_201 = arith.constant 0.353553385 : f32
    %553 = vector.broadcast %cst_201 : f32 to vector<17x17xf32>
    %554 = arith.mulf %552, %553 : vector<17x17xf32>
    %cst_202 = arith.constant dense<0xFF800000> : vector<17xf32>
    %555 = vector.multi_reduction <maximumf>, %554, %cst_202 [1] : vector<17x17xf32> to vector<17xf32>
    %556 = vector.shape_cast %555 : vector<17xf32> to vector<17x1xf32>
    %557 = vector.broadcast %556 : vector<17x1xf32> to vector<17x17xf32>
    %558 = arith.subf %554, %557 : vector<17x17xf32>
    %559 = math.exp %558 : vector<17x17xf32>
    %cst_203 = arith.constant dense<0.000000e+00> : vector<17xf32>
    %560 = vector.multi_reduction <add>, %559, %cst_203 [1] : vector<17x17xf32> to vector<17xf32>
    %561 = vector.shape_cast %560 : vector<17xf32> to vector<17x1xf32>
    %562 = vector.broadcast %561 : vector<17x1xf32> to vector<17x17xf32>
    %563 = arith.divf %559, %562 : vector<17x17xf32>
    %cst_204 = arith.constant dense<0.000000e+00> : vector<17x8xf32>
    %564 = tpu.matmul %563, %551, %cst_204 {dimension_numbers = #tpu.dot_dimension_numbers<[1], [0], [0], [1], [0, 0, 1, 1], [], []>} : vector<17x17xf32>, vector<17x8xf32>, vector<17x8xf32> -> vector<17x8xf32>
    %565 = vector.extract_strided_slice %548 {offsets = [0, 8], sizes = [17, 8], strides = [1, 1]} : vector<17x96xf32> to vector<17x8xf32>
    %566 = vector.extract_strided_slice %548 {offsets = [0, 40], sizes = [17, 8], strides = [1, 1]} : vector<17x96xf32> to vector<17x8xf32>
    %567 = vector.extract_strided_slice %548 {offsets = [0, 72], sizes = [17, 8], strides = [1, 1]} : vector<17x96xf32> to vector<17x8xf32>
    %cst_205 = arith.constant dense<0.000000e+00> : vector<17x17xf32>
    %568 = tpu.matmul %565, %566, %cst_205 {dimension_numbers = #tpu.dot_dimension_numbers<[1], [1], [0], [0], [0, 0, 1, 0], [], []>} : vector<17x8xf32>, vector<17x8xf32>, vector<17x17xf32> -> vector<17x17xf32>
    %cst_206 = arith.constant 0.353553385 : f32
    %569 = vector.broadcast %cst_206 : f32 to vector<17x17xf32>
    %570 = arith.mulf %568, %569 : vector<17x17xf32>
    %cst_207 = arith.constant dense<0xFF800000> : vector<17xf32>
    %571 = vector.multi_reduction <maximumf>, %570, %cst_207 [1] : vector<17x17xf32> to vector<17xf32>
    %572 = vector.shape_cast %571 : vector<17xf32> to vector<17x1xf32>
    %573 = vector.broadcast %572 : vector<17x1xf32> to vector<17x17xf32>
    %574 = arith.subf %570, %573 : vector<17x17xf32>
    %575 = math.exp %574 : vector<17x17xf32>
    %cst_208 = arith.constant dense<0.000000e+00> : vector<17xf32>
    %576 = vector.multi_reduction <add>, %575, %cst_208 [1] : vector<17x17xf32> to vector<17xf32>
    %577 = vector.shape_cast %576 : vector<17xf32> to vector<17x1xf32>
    %578 = vector.broadcast %577 : vector<17x1xf32> to vector<17x17xf32>
    %579 = arith.divf %575, %578 : vector<17x17xf32>
    %cst_209 = arith.constant dense<0.000000e+00> : vector<17x8xf32>
    %580 = tpu.matmul %579, %567, %cst_209 {dimension_numbers = #tpu.dot_dimension_numbers<[1], [0], [0], [1], [0, 0, 1, 1], [], []>} : vector<17x17xf32>, vector<17x8xf32>, vector<17x8xf32> -> vector<17x8xf32>
    %581 = vector.extract_strided_slice %548 {offsets = [0, 16], sizes = [17, 8], strides = [1, 1]} : vector<17x96xf32> to vector<17x8xf32>
    %582 = vector.extract_strided_slice %548 {offsets = [0, 48], sizes = [17, 8], strides = [1, 1]} : vector<17x96xf32> to vector<17x8xf32>
    %583 = vector.extract_strided_slice %548 {offsets = [0, 80], sizes = [17, 8], strides = [1, 1]} : vector<17x96xf32> to vector<17x8xf32>
    %cst_210 = arith.constant dense<0.000000e+00> : vector<17x17xf32>
    %584 = tpu.matmul %581, %582, %cst_210 {dimension_numbers = #tpu.dot_dimension_numbers<[1], [1], [0], [0], [0, 0, 1, 0], [], []>} : vector<17x8xf32>, vector<17x8xf32>, vector<17x17xf32> -> vector<17x17xf32>
    %cst_211 = arith.constant 0.353553385 : f32
    %585 = vector.broadcast %cst_211 : f32 to vector<17x17xf32>
    %586 = arith.mulf %584, %585 : vector<17x17xf32>
    %cst_212 = arith.constant dense<0xFF800000> : vector<17xf32>
    %587 = vector.multi_reduction <maximumf>, %586, %cst_212 [1] : vector<17x17xf32> to vector<17xf32>
    %588 = vector.shape_cast %587 : vector<17xf32> to vector<17x1xf32>
    %589 = vector.broadcast %588 : vector<17x1xf32> to vector<17x17xf32>
    %590 = arith.subf %586, %589 : vector<17x17xf32>
    %591 = math.exp %590 : vector<17x17xf32>
    %cst_213 = arith.constant dense<0.000000e+00> : vector<17xf32>
    %592 = vector.multi_reduction <add>, %591, %cst_213 [1] : vector<17x17xf32> to vector<17xf32>
    %593 = vector.shape_cast %592 : vector<17xf32> to vector<17x1xf32>
    %594 = vector.broadcast %593 : vector<17x1xf32> to vector<17x17xf32>
    %595 = arith.divf %591, %594 : vector<17x17xf32>
    %cst_214 = arith.constant dense<0.000000e+00> : vector<17x8xf32>
    %596 = tpu.matmul %595, %583, %cst_214 {dimension_numbers = #tpu.dot_dimension_numbers<[1], [0], [0], [1], [0, 0, 1, 1], [], []>} : vector<17x17xf32>, vector<17x8xf32>, vector<17x8xf32> -> vector<17x8xf32>
    %597 = vector.extract_strided_slice %548 {offsets = [0, 24], sizes = [17, 8], strides = [1, 1]} : vector<17x96xf32> to vector<17x8xf32>
    %598 = vector.extract_strided_slice %548 {offsets = [0, 56], sizes = [17, 8], strides = [1, 1]} : vector<17x96xf32> to vector<17x8xf32>
    %599 = vector.extract_strided_slice %548 {offsets = [0, 88], sizes = [17, 8], strides = [1, 1]} : vector<17x96xf32> to vector<17x8xf32>
    %cst_215 = arith.constant dense<0.000000e+00> : vector<17x17xf32>
    %600 = tpu.matmul %597, %598, %cst_215 {dimension_numbers = #tpu.dot_dimension_numbers<[1], [1], [0], [0], [0, 0, 1, 0], [], []>} : vector<17x8xf32>, vector<17x8xf32>, vector<17x17xf32> -> vector<17x17xf32>
    %cst_216 = arith.constant 0.353553385 : f32
    %601 = vector.broadcast %cst_216 : f32 to vector<17x17xf32>
    %602 = arith.mulf %600, %601 : vector<17x17xf32>
    %cst_217 = arith.constant dense<0xFF800000> : vector<17xf32>
    %603 = vector.multi_reduction <maximumf>, %602, %cst_217 [1] : vector<17x17xf32> to vector<17xf32>
    %604 = vector.shape_cast %603 : vector<17xf32> to vector<17x1xf32>
    %605 = vector.broadcast %604 : vector<17x1xf32> to vector<17x17xf32>
    %606 = arith.subf %602, %605 : vector<17x17xf32>
    %607 = math.exp %606 : vector<17x17xf32>
    %cst_218 = arith.constant dense<0.000000e+00> : vector<17xf32>
    %608 = vector.multi_reduction <add>, %607, %cst_218 [1] : vector<17x17xf32> to vector<17xf32>
    %609 = vector.shape_cast %608 : vector<17xf32> to vector<17x1xf32>
    %610 = vector.broadcast %609 : vector<17x1xf32> to vector<17x17xf32>
    %611 = arith.divf %607, %610 : vector<17x17xf32>
    %cst_219 = arith.constant dense<0.000000e+00> : vector<17x8xf32>
    %612 = tpu.matmul %611, %599, %cst_219 {dimension_numbers = #tpu.dot_dimension_numbers<[1], [0], [0], [1], [0, 0, 1, 1], [], []>} : vector<17x17xf32>, vector<17x8xf32>, vector<17x8xf32> -> vector<17x8xf32>
    %613 = tpu.concatenate %564, %580, %596, %612 in 1 : vector<17x8xf32>, vector<17x8xf32>, vector<17x8xf32>, vector<17x8xf32> -> vector<17x32xf32>
    %cst_220 = arith.constant dense<0.000000e+00> : vector<17x32xf32>
    %614 = tpu.matmul %613, %516, %cst_220 {dimension_numbers = #tpu.dot_dimension_numbers<[1], [0], [0], [1], [0, 0, 1, 1], [], []>} : vector<17x32xf32>, vector<32x32xf32>, vector<17x32xf32> -> vector<17x32xf32>
    %615 = arith.addf %511, %614 : vector<17x32xf32>
    %616 = vector.broadcast %517 : vector<1x32xf32> to vector<17x32xf32>
    %617 = arith.addf %615, %616 : vector<17x32xf32>
    %cst_221 = arith.constant dense<0.000000e+00> : vector<17xf32>
    %618 = vector.multi_reduction <add>, %617, %cst_221 [1] : vector<17x32xf32> to vector<17xf32>
    %619 = vector.shape_cast %618 : vector<17xf32> to vector<17x1xf32>
    %cst_222 = arith.constant 3.200000e+01 : f32
    %620 = vector.broadcast %cst_222 : f32 to vector<17x1xf32>
    %621 = arith.divf %619, %620 : vector<17x1xf32>
    %622 = vector.broadcast %621 : vector<17x1xf32> to vector<17x32xf32>
    %623 = arith.subf %617, %622 : vector<17x32xf32>
    %624 = arith.mulf %623, %623 : vector<17x32xf32>
    %cst_223 = arith.constant dense<0.000000e+00> : vector<17xf32>
    %625 = vector.multi_reduction <add>, %624, %cst_223 [1] : vector<17x32xf32> to vector<17xf32>
    %626 = vector.shape_cast %625 : vector<17xf32> to vector<17x1xf32>
    %cst_224 = arith.constant 3.200000e+01 : f32
    %627 = vector.broadcast %cst_224 : f32 to vector<17x1xf32>
    %628 = arith.divf %626, %627 : vector<17x1xf32>
    %629 = vector.broadcast %621 : vector<17x1xf32> to vector<17x32xf32>
    %630 = arith.subf %617, %629 : vector<17x32xf32>
    %cst_225 = arith.constant 9.99999997E-7 : f32
    %631 = vector.broadcast %cst_225 : f32 to vector<17x1xf32>
    %632 = arith.addf %628, %631 : vector<17x1xf32>
    %633 = math.rsqrt %632 : vector<17x1xf32>
    %634 = vector.broadcast %633 : vector<17x1xf32> to vector<17x32xf32>
    %635 = arith.mulf %630, %634 : vector<17x32xf32>
    %636 = vector.broadcast %518 : vector<1x32xf32> to vector<17x32xf32>
    %637 = arith.mulf %635, %636 : vector<17x32xf32>
    %638 = vector.broadcast %519 : vector<1x32xf32> to vector<17x32xf32>
    %639 = arith.addf %637, %638 : vector<17x32xf32>
    %cst_226 = arith.constant dense<0.000000e+00> : vector<17x128xf32>
    %640 = tpu.matmul %639, %520, %cst_226 {dimension_numbers = #tpu.dot_dimension_numbers<[1], [0], [0], [1], [0, 0, 1, 1], [], []>} : vector<17x32xf32>, vector<32x128xf32>, vector<17x128xf32> -> vector<17x128xf32>
    %641 = vector.broadcast %521 : vector<1x128xf32> to vector<17x128xf32>
    %642 = arith.addf %640, %641 : vector<17x128xf32>
    %cst_227 = arith.constant 5.000000e-01 : f32
    %643 = vector.broadcast %cst_227 : f32 to vector<17x128xf32>
    %644 = arith.mulf %643, %642 : vector<17x128xf32>
    %cst_228 = arith.constant 0.707106769 : f32
    %645 = vector.broadcast %cst_228 : f32 to vector<17x128xf32>
    %646 = arith.mulf %642, %645 : vector<17x128xf32>
    %cst_229 = arith.constant 0.000000e+00 : f32
    %647 = vector.broadcast %cst_229 : f32 to vector<17x128xf32>
    %648 = arith.cmpf oge, %646, %647 : vector<17x128xf32>
    %cst_230 = arith.constant 1.000000e+00 : f32
    %cst_231 = arith.constant -1.000000e+00 : f32
    %649 = vector.broadcast %cst_230 : f32 to vector<17x128xf32>
    %650 = vector.broadcast %cst_231 : f32 to vector<17x128xf32>
    %651 = arith.select %648, %649, %650 : vector<17x128xi1>, vector<17x128xf32>
    %652 = math.absf %646 : vector<17x128xf32>
    %cst_232 = arith.constant 0.327591091 : f32
    %653 = vector.broadcast %cst_232 : f32 to vector<17x128xf32>
    %654 = arith.mulf %653, %652 : vector<17x128xf32>
    %cst_233 = arith.constant 1.000000e+00 : f32
    %655 = vector.broadcast %cst_233 : f32 to vector<17x128xf32>
    %656 = arith.addf %655, %654 : vector<17x128xf32>
    %cst_234 = arith.constant 1.000000e+00 : f32
    %657 = vector.broadcast %cst_234 : f32 to vector<17x128xf32>
    %658 = arith.divf %657, %656 : vector<17x128xf32>
    %cst_235 = arith.constant 1.06140542 : f32
    %659 = vector.broadcast %cst_235 : f32 to vector<17x128xf32>
    %660 = arith.mulf %659, %658 : vector<17x128xf32>
    %cst_236 = arith.constant -1.45315206 : f32
    %661 = vector.broadcast %cst_236 : f32 to vector<17x128xf32>
    %662 = arith.addf %660, %661 : vector<17x128xf32>
    %663 = arith.mulf %662, %658 : vector<17x128xf32>
    %cst_237 = arith.constant 1.42141378 : f32
    %664 = vector.broadcast %cst_237 : f32 to vector<17x128xf32>
    %665 = arith.addf %663, %664 : vector<17x128xf32>
    %666 = arith.mulf %665, %658 : vector<17x128xf32>
    %cst_238 = arith.constant -0.284496725 : f32
    %667 = vector.broadcast %cst_238 : f32 to vector<17x128xf32>
    %668 = arith.addf %666, %667 : vector<17x128xf32>
    %669 = arith.mulf %668, %658 : vector<17x128xf32>
    %cst_239 = arith.constant 0.254829586 : f32
    %670 = vector.broadcast %cst_239 : f32 to vector<17x128xf32>
    %671 = arith.addf %669, %670 : vector<17x128xf32>
    %672 = arith.mulf %671, %658 : vector<17x128xf32>
    %cst_240 = arith.constant 0.000000e+00 : f32
    %673 = vector.broadcast %cst_240 : f32 to vector<17x128xf32>
    %674 = arith.subf %673, %652 : vector<17x128xf32>
    %675 = arith.mulf %674, %652 : vector<17x128xf32>
    %676 = math.exp %675 : vector<17x128xf32>
    %677 = arith.mulf %672, %676 : vector<17x128xf32>
    %cst_241 = arith.constant 1.000000e+00 : f32
    %678 = vector.broadcast %cst_241 : f32 to vector<17x128xf32>
    %679 = arith.subf %678, %677 : vector<17x128xf32>
    %680 = arith.mulf %651, %679 : vector<17x128xf32>
    %cst_242 = arith.constant 1.000000e+00 : f32
    %681 = vector.broadcast %cst_242 : f32 to vector<17x128xf32>
    %682 = arith.addf %681, %680 : vector<17x128xf32>
    %683 = arith.mulf %644, %682 : vector<17x128xf32>
    %cst_243 = arith.constant dense<0.000000e+00> : vector<17x32xf32>
    %684 = tpu.matmul %683, %522, %cst_243 {dimension_numbers = #tpu.dot_dimension_numbers<[1], [0], [0], [1], [0, 0, 1, 1], [], []>} : vector<17x128xf32>, vector<128x32xf32>, vector<17x32xf32> -> vector<17x32xf32>
    %685 = arith.addf %617, %684 : vector<17x32xf32>
    %686 = vector.broadcast %523 : vector<1x32xf32> to vector<17x32xf32>
    %687 = arith.addf %685, %686 : vector<17x32xf32>
    %c0_244 = arith.constant 0 : index
    %c0_245 = arith.constant 0 : index
    %688 = vector.load %arg31[%c0_244, %c0_245] : memref<1x32xf32, #tpu.memory_space<vmem>>, vector<1x32xf32>
    %c0_246 = arith.constant 0 : index
    %c0_247 = arith.constant 0 : index
    %689 = vector.load %arg32[%c0_246, %c0_247] : memref<1x32xf32, #tpu.memory_space<vmem>>, vector<1x32xf32>
    %c0_248 = arith.constant 0 : index
    %c0_249 = arith.constant 0 : index
    %690 = vector.load %arg33[%c0_248, %c0_249] : memref<32x10xf32, #tpu.memory_space<vmem>>, vector<32x10xf32>
    %c0_250 = arith.constant 0 : index
    %c0_251 = arith.constant 0 : index
    %691 = vector.load %arg34[%c0_250, %c0_251] : memref<1x10xf32, #tpu.memory_space<vmem>>, vector<1x10xf32>
    %692 = vector.extract_strided_slice %687 {offsets = [0, 0], sizes = [1, 32], strides = [1, 1]} : vector<17x32xf32> to vector<1x32xf32>
    %cst_252 = arith.constant dense<0.000000e+00> : vector<1xf32>
    %693 = vector.multi_reduction <add>, %692, %cst_252 [1] : vector<1x32xf32> to vector<1xf32>
    %694 = vector.shape_cast %693 : vector<1xf32> to vector<1x1xf32>
    %cst_253 = arith.constant 3.200000e+01 : f32
    %695 = vector.broadcast %cst_253 : f32 to vector<1x1xf32>
    %696 = arith.divf %694, %695 : vector<1x1xf32>
    %697 = vector.broadcast %696 : vector<1x1xf32> to vector<1x32xf32>
    %698 = arith.subf %692, %697 : vector<1x32xf32>
    %699 = arith.mulf %698, %698 : vector<1x32xf32>
    %cst_254 = arith.constant dense<0.000000e+00> : vector<1xf32>
    %700 = vector.multi_reduction <add>, %699, %cst_254 [1] : vector<1x32xf32> to vector<1xf32>
    %701 = vector.shape_cast %700 : vector<1xf32> to vector<1x1xf32>
    %cst_255 = arith.constant 3.200000e+01 : f32
    %702 = vector.broadcast %cst_255 : f32 to vector<1x1xf32>
    %703 = arith.divf %701, %702 : vector<1x1xf32>
    %704 = vector.broadcast %696 : vector<1x1xf32> to vector<1x32xf32>
    %705 = arith.subf %692, %704 : vector<1x32xf32>
    %cst_256 = arith.constant 9.99999997E-7 : f32
    %706 = vector.broadcast %cst_256 : f32 to vector<1x1xf32>
    %707 = arith.addf %703, %706 : vector<1x1xf32>
    %708 = math.rsqrt %707 : vector<1x1xf32>
    %709 = vector.broadcast %708 : vector<1x1xf32> to vector<1x32xf32>
    %710 = arith.mulf %705, %709 : vector<1x32xf32>
    %711 = arith.mulf %710, %688 : vector<1x32xf32>
    %712 = arith.addf %711, %689 : vector<1x32xf32>
    %cst_257 = arith.constant dense<0.000000e+00> : vector<1x10xf32>
    %713 = tpu.matmul %712, %690, %cst_257 {dimension_numbers = #tpu.dot_dimension_numbers<[1], [0], [0], [1], [0, 0, 1, 1], [], []>} : vector<1x32xf32>, vector<32x10xf32>, vector<1x10xf32> -> vector<1x10xf32>
    %714 = arith.addf %713, %691 : vector<1x10xf32>
    %c0_258 = arith.constant 0 : index
    %c0_259 = arith.constant 0 : index
    %c0_260 = arith.constant 0 : index
    %715 = vector.load %arg35[%c0_258, %c0_259, %c0_260] : memref<1x1x10xf32, #tpu.memory_space<vmem>>, vector<1x1x10xf32>
    %716 = vector.shape_cast %715 : vector<1x1x10xf32> to vector<1x10xf32>
    %717 = vector.shape_cast %714 : vector<1x10xf32> to vector<1x1x10xf32>
    tpu.vector_store %arg35[%c0_258, %c0_259, %c0_260], %717 {strides = array<i32>} : memref<1x1x10xf32, #tpu.memory_space<vmem>>, vector<1x1x10xf32>,
    return
  }
  func.func @transform_0(%arg0: i32) -> (i32, i32, i32) {
    %c0_i32 = arith.constant 0 : i32
    %c0_i32_0 = arith.constant 0 : i32
    %c0_i32_1 = arith.constant 0 : i32
    return %arg0, %c0_i32, %c0_i32_0 : i32, i32, i32
  }
  func.func @transform_1(%arg0: i32) -> (i32, i32) {
    %c0_i32 = arith.constant 0 : i32
    %c0_i32_0 = arith.constant 0 : i32
    %c0_i32_1 = arith.constant 0 : i32
    return %c0_i32, %c0_i32_0 : i32, i32
  }
  func.func @transform_2(%arg0: i32) -> (i32, i32) {
    %c0_i32 = arith.constant 0 : i32
    %c0_i32_0 = arith.constant 0 : i32
    %c0_i32_1 = arith.constant 0 : i32
    return %c0_i32, %c0_i32_0 : i32, i32
  }
  func.func @transform_3(%arg0: i32) -> (i32, i32) {
    %c0_i32 = arith.constant 0 : i32
    %c0_i32_0 = arith.constant 0 : i32
    %c0_i32_1 = arith.constant 0 : i32
    return %c0_i32, %c0_i32_0 : i32, i32
  }
  func.func @transform_4(%arg0: i32) -> (i32, i32) {
    %c0_i32 = arith.constant 0 : i32
    %c0_i32_0 = arith.constant 0 : i32
    %c0_i32_1 = arith.constant 0 : i32
    return %c0_i32, %c0_i32_0 : i32, i32
  }
  func.func @transform_5(%arg0: i32) -> (i32, i32) {
    %c0_i32 = arith.constant 0 : i32
    %c0_i32_0 = arith.constant 0 : i32
    %c0_i32_1 = arith.constant 0 : i32
    return %c0_i32, %c0_i32_0 : i32, i32
  }
  func.func @transform_6(%arg0: i32) -> (i32, i32) {
    %c0_i32 = arith.constant 0 : i32
    %c0_i32_0 = arith.constant 0 : i32
    %c0_i32_1 = arith.constant 0 : i32
    return %c0_i32, %c0_i32_0 : i32, i32
  }
  func.func @transform_7(%arg0: i32) -> (i32, i32) {
    %c0_i32 = arith.constant 0 : i32
    %c0_i32_0 = arith.constant 0 : i32
    %c0_i32_1 = arith.constant 0 : i32
    return %c0_i32, %c0_i32_0 : i32, i32
  }
  func.func @transform_8(%arg0: i32) -> (i32, i32) {
    %c0_i32 = arith.constant 0 : i32
    %c0_i32_0 = arith.constant 0 : i32
    %c0_i32_1 = arith.constant 0 : i32
    return %c0_i32, %c0_i32_0 : i32, i32
  }
  func.func @transform_9(%arg0: i32) -> (i32, i32) {
    %c0_i32 = arith.constant 0 : i32
    %c0_i32_0 = arith.constant 0 : i32
    %c0_i32_1 = arith.constant 0 : i32
    return %c0_i32, %c0_i32_0 : i32, i32
  }
  func.func @transform_10(%arg0: i32) -> (i32, i32) {
    %c0_i32 = arith.constant 0 : i32
    %c0_i32_0 = arith.constant 0 : i32
    %c0_i32_1 = arith.constant 0 : i32
    return %c0_i32, %c0_i32_0 : i32, i32
  }
  func.func @transform_11(%arg0: i32) -> (i32, i32) {
    %c0_i32 = arith.constant 0 : i32
    %c0_i32_0 = arith.constant 0 : i32
    %c0_i32_1 = arith.constant 0 : i32
    return %c0_i32, %c0_i32_0 : i32, i32
  }
  func.func @transform_12(%arg0: i32) -> (i32, i32) {
    %c0_i32 = arith.constant 0 : i32
    %c0_i32_0 = arith.constant 0 : i32
    %c0_i32_1 = arith.constant 0 : i32
    return %c0_i32, %c0_i32_0 : i32, i32
  }
  func.func @transform_13(%arg0: i32) -> (i32, i32) {
    %c0_i32 = arith.constant 0 : i32
    %c0_i32_0 = arith.constant 0 : i32
    %c0_i32_1 = arith.constant 0 : i32
    return %c0_i32, %c0_i32_0 : i32, i32
  }
  func.func @transform_14(%arg0: i32) -> (i32, i32) {
    %c0_i32 = arith.constant 0 : i32
    %c0_i32_0 = arith.constant 0 : i32
    %c0_i32_1 = arith.constant 0 : i32
    return %c0_i32, %c0_i32_0 : i32, i32
  }
  func.func @transform_15(%arg0: i32) -> (i32, i32) {
    %c0_i32 = arith.constant 0 : i32
    %c0_i32_0 = arith.constant 0 : i32
    %c0_i32_1 = arith.constant 0 : i32
    return %c0_i32, %c0_i32_0 : i32, i32
  }
  func.func @transform_16(%arg0: i32) -> (i32, i32) {
    %c0_i32 = arith.constant 0 : i32
    %c0_i32_0 = arith.constant 0 : i32
    %c0_i32_1 = arith.constant 0 : i32
    return %c0_i32, %c0_i32_0 : i32, i32
  }
  func.func @transform_17(%arg0: i32) -> (i32, i32) {
    %c0_i32 = arith.constant 0 : i32
    %c0_i32_0 = arith.constant 0 : i32
    %c0_i32_1 = arith.constant 0 : i32
    return %c0_i32, %c0_i32_0 : i32, i32
  }
  func.func @transform_18(%arg0: i32) -> (i32, i32) {
    %c0_i32 = arith.constant 0 : i32
    %c0_i32_0 = arith.constant 0 : i32
    %c0_i32_1 = arith.constant 0 : i32
    return %c0_i32, %c0_i32_0 : i32, i32
  }
  func.func @transform_19(%arg0: i32) -> (i32, i32) {
    %c0_i32 = arith.constant 0 : i32
    %c0_i32_0 = arith.constant 0 : i32
    %c0_i32_1 = arith.constant 0 : i32
    return %c0_i32, %c0_i32_0 : i32, i32
  }
  func.func @transform_20(%arg0: i32) -> (i32, i32) {
    %c0_i32 = arith.constant 0 : i32
    %c0_i32_0 = arith.constant 0 : i32
    %c0_i32_1 = arith.constant 0 : i32
    return %c0_i32, %c0_i32_0 : i32, i32
  }
  func.func @transform_21(%arg0: i32) -> (i32, i32) {
    %c0_i32 = arith.constant 0 : i32
    %c0_i32_0 = arith.constant 0 : i32
    %c0_i32_1 = arith.constant 0 : i32
    return %c0_i32, %c0_i32_0 : i32, i32
  }
  func.func @transform_22(%arg0: i32) -> (i32, i32) {
    %c0_i32 = arith.constant 0 : i32
    %c0_i32_0 = arith.constant 0 : i32
    %c0_i32_1 = arith.constant 0 : i32
    return %c0_i32, %c0_i32_0 : i32, i32
  }
  func.func @transform_23(%arg0: i32) -> (i32, i32) {
    %c0_i32 = arith.constant 0 : i32
    %c0_i32_0 = arith.constant 0 : i32
    %c0_i32_1 = arith.constant 0 : i32
    return %c0_i32, %c0_i32_0 : i32, i32
  }
  func.func @transform_24(%arg0: i32) -> (i32, i32) {
    %c0_i32 = arith.constant 0 : i32
    %c0_i32_0 = arith.constant 0 : i32
    %c0_i32_1 = arith.constant 0 : i32
    return %c0_i32, %c0_i32_0 : i32, i32
  }
  func.func @transform_25(%arg0: i32) -> (i32, i32) {
    %c0_i32 = arith.constant 0 : i32
    %c0_i32_0 = arith.constant 0 : i32
    %c0_i32_1 = arith.constant 0 : i32
    return %c0_i32, %c0_i32_0 : i32, i32
  }
  func.func @transform_26(%arg0: i32) -> (i32, i32) {
    %c0_i32 = arith.constant 0 : i32
    %c0_i32_0 = arith.constant 0 : i32
    %c0_i32_1 = arith.constant 0 : i32
    return %c0_i32, %c0_i32_0 : i32, i32
  }
  func.func @transform_27(%arg0: i32) -> (i32, i32) {
    %c0_i32 = arith.constant 0 : i32
    %c0_i32_0 = arith.constant 0 : i32
    %c0_i32_1 = arith.constant 0 : i32
    return %c0_i32, %c0_i32_0 : i32, i32
  }
  func.func @transform_28(%arg0: i32) -> (i32, i32) {
    %c0_i32 = arith.constant 0 : i32
    %c0_i32_0 = arith.constant 0 : i32
    %c0_i32_1 = arith.constant 0 : i32
    return %c0_i32, %c0_i32_0 : i32, i32
  }
  func.func @transform_29(%arg0: i32) -> (i32, i32) {
    %c0_i32 = arith.constant 0 : i32
    %c0_i32_0 = arith.constant 0 : i32
    %c0_i32_1 = arith.constant 0 : i32
    return %c0_i32, %c0_i32_0 : i32, i32
  }
  func.func @transform_30(%arg0: i32) -> (i32, i32) {
    %c0_i32 = arith.constant 0 : i32
    %c0_i32_0 = arith.constant 0 : i32
    %c0_i32_1 = arith.constant 0 : i32
    return %c0_i32, %c0_i32_0 : i32, i32
  }
  func.func @transform_31(%arg0: i32) -> (i32, i32) {
    %c0_i32 = arith.constant 0 : i32
    %c0_i32_0 = arith.constant 0 : i32
    %c0_i32_1 = arith.constant 0 : i32
    return %c0_i32, %c0_i32_0 : i32, i32
  }
  func.func @transform_32(%arg0: i32) -> (i32, i32) {
    %c0_i32 = arith.constant 0 : i32
    %c0_i32_0 = arith.constant 0 : i32
    %c0_i32_1 = arith.constant 0 : i32
    return %c0_i32, %c0_i32_0 : i32, i32
  }
  func.func @transform_33(%arg0: i32) -> (i32, i32) {
    %c0_i32 = arith.constant 0 : i32
    %c0_i32_0 = arith.constant 0 : i32
    %c0_i32_1 = arith.constant 0 : i32
    return %c0_i32, %c0_i32_0 : i32, i32
  }
  func.func @transform_34(%arg0: i32) -> (i32, i32, i32) {
    %c0_i32 = arith.constant 0 : i32
    %c0_i32_0 = arith.constant 0 : i32
    %c0_i32_1 = arith.constant 0 : i32
    return %arg0, %c0_i32, %c0_i32_0 : i32, i32, i32
  }
}

</mosaic_0001>

<llo_original>
// kernel: vit_forward.1
$region0: #{vit_forward.1}
  #allocation0 [shape = 'u32[]', space=smem, size = 0x4, offset = 0x4, fixed_abs, tag = 'smem constant byte address 0x4 - core index']
  #allocation1 [shape = 'u32[72,128]{1,0:T(1,128)}', space=vmem, size = 0x9000, scoped, tag = 'internal scratch']
  %s0 = inlined_call_operand.smem [shape: u32[35], index: -1, kind: input, shape index: {}]
  %s1 = sld [smem:[%s0]]
  %s2 = scalar_lea.smem %s0, 1
  %s3 = sld [smem:[%s2]]
  %s4 = scalar_lea.smem %s0, 2
  %s5 = sld [smem:[%s4]]
  %s6 = scalar_lea.smem %s0, 3
  %s7 = sld [smem:[%s6]]
  %s8 = scalar_lea.smem %s0, 4
  %s9 = sld [smem:[%s8]]
  %s10 = scalar_lea.smem %s0, 5
  %s11 = sld [smem:[%s10]]
  %s12 = scalar_lea.smem %s0, 6
  %s13 = sld [smem:[%s12]]
  %s14 = scalar_lea.smem %s0, 7
  %s15 = sld [smem:[%s14]]
  %s16 = scalar_lea.smem %s0, 8
  %s17 = sld [smem:[%s16]]
  %s18 = scalar_lea.smem %s0, 9
  %s19 = sld [smem:[%s18]]
  %s20 = scalar_lea.smem %s0, 10
  %s21 = sld [smem:[%s20]]
  %s22 = scalar_lea.smem %s0, 11
  %s23 = sld [smem:[%s22]]
  %s24 = scalar_lea.smem %s0, 12
  %s25 = sld [smem:[%s24]]
  %s26 = scalar_lea.smem %s0, 13
  %s27 = sld [smem:[%s26]]
  %s28 = scalar_lea.smem %s0, 14
  %s29 = sld [smem:[%s28]]
  %s30 = scalar_lea.smem %s0, 15
  %s31 = sld [smem:[%s30]]
  %s32 = scalar_lea.smem %s0, 16
  %s33 = sld [smem:[%s32]]
  %s34 = scalar_lea.smem %s0, 17
  %s35 = sld [smem:[%s34]]
  %s36 = scalar_lea.smem %s0, 18
  %s37 = sld [smem:[%s36]]
  %s38 = scalar_lea.smem %s0, 19
  %s39 = sld [smem:[%s38]]
  %s40 = scalar_lea.smem %s0, 20
  %s41 = sld [smem:[%s40]]
  %s42 = scalar_lea.smem %s0, 21
  %s43 = sld [smem:[%s42]]
  %s44 = scalar_lea.smem %s0, 22
  %s45 = sld [smem:[%s44]]
  %s46 = scalar_lea.smem %s0, 23
  %s47 = sld [smem:[%s46]]
  %s48 = scalar_lea.smem %s0, 24
  %s49 = sld [smem:[%s48]]
  %s50 = scalar_lea.smem %s0, 25
  %s51 = sld [smem:[%s50]]
  %s52 = scalar_lea.smem %s0, 26
  %s53 = sld [smem:[%s52]]
  %s54 = scalar_lea.smem %s0, 27
  %s55 = sld [smem:[%s54]]
  %s56 = scalar_lea.smem %s0, 28
  %s57 = sld [smem:[%s56]]
  %s58 = scalar_lea.smem %s0, 29
  %s59 = sld [smem:[%s58]]
  %s60 = scalar_lea.smem %s0, 30
  %s61 = sld [smem:[%s60]]
  %s62 = scalar_lea.smem %s0, 31
  %s63 = sld [smem:[%s62]]
  %s64 = scalar_lea.smem %s0, 32
  %s65 = sld [smem:[%s64]]
  %s66 = scalar_lea.smem %s0, 33
  %s67 = sld [smem:[%s66]]
  %s68 = scalar_lea.smem %s0, 34
  %s69 = sld [smem:[%s68]]
  %s70 = sld [smem:[#allocation0]]
  $region169: #{vit_forward.1} parent=0
    _
  %s72 = ssub.s32 1, %s70
  %s73 = scalar_select 0, %s72, %s70
  $region1: #{vit_forward.1} parent=0
    #allocation2 [shape = 'u8[1024]{0}', space=vmem, size = 0x400, scoped, tag = 'output window, operand 0']
    #allocation3 [shape = 's32[2]{0}', space=sflag, size = 0x8, scoped, tag = 'scoped memory for vit_forward.1']
    %74 = vsyncpa [#allocation3], 0
    %s75 = scalar_lea.sflag [#allocation3], 1
    %76 = vsyncpa %s75, 0
    loop: start=0, step=1, limit=4
    $region2: #{vit_forward.1} parent=1 // loop_pre_header
      _
    $region3: #{vit_forward.1} parent=1 // loop_header
      %s78 = sphi 0, %s82
      %p79 = scmp.ge.s32.totalorder %s78, 4
      %s88 = sphi 0, %s90
      %s91 = sphi 0, %s88
      %s92 = sphi 0, %s91
      %s108 = sphi 0, %s92
      %s112 = sphi 0, %s112
      %s114 = sphi 0, %s112
      %s115 = sphi 0, %s114
      %s129 = sphi 0, %s115
      %s133 = sphi 0, %s133
      %s135 = sphi 0, %s133
      %s136 = sphi 0, %s135
      %s150 = sphi 0, %s136
      %s154 = sphi 0, %s154
      %s156 = sphi 0, %s154
      %s157 = sphi 0, %s156
      %s171 = sphi 0, %s157
      %s175 = sphi 0, %s175
      %s177 = sphi 0, %s175
      %s178 = sphi 0, %s177
      %s192 = sphi 0, %s178
      %s196 = sphi 0, %s196
      %s198 = sphi 0, %s196
      %s199 = sphi 0, %s198
      %s213 = sphi 0, %s199
      %s217 = sphi 0, %s217
      %s219 = sphi 0, %s217
      %s220 = sphi 0, %s219
      %s234 = sphi 0, %s220
      %s238 = sphi 0, %s238
      %s240 = sphi 0, %s238
      %s241 = sphi 0, %s240
      %s255 = sphi 0, %s241
      %s259 = sphi 0, %s259
      %s261 = sphi 0, %s259
      %s262 = sphi 0, %s261
      %s276 = sphi 0, %s262
      %s280 = sphi 0, %s280
      %s282 = sphi 0, %s280
      %s283 = sphi 0, %s282
      %s297 = sphi 0, %s283
      %s301 = sphi 0, %s301
      %s303 = sphi 0, %s301
      %s304 = sphi 0, %s303
      %s318 = sphi 0, %s304
      %s322 = sphi 0, %s322
      %s324 = sphi 0, %s322
      %s325 = sphi 0, %s324
      %s339 = sphi 0, %s325
      %s343 = sphi 0, %s343
      %s345 = sphi 0, %s343
      %s346 = sphi 0, %s345
      %s360 = sphi 0, %s346
      %s364 = sphi 0, %s364
      %s366 = sphi 0, %s364
      %s367 = sphi 0, %s366
      %s381 = sphi 0, %s367
      %s385 = sphi 0, %s385
      %s387 = sphi 0, %s385
      %s388 = sphi 0, %s387
      %s402 = sphi 0, %s388
      %s406 = sphi 0, %s406
      %s408 = sphi 0, %s406
      %s409 = sphi 0, %s408
      %s423 = sphi 0, %s409
      %s427 = sphi 0, %s427
      %s429 = sphi 0, %s427
      %s430 = sphi 0, %s429
      %s444 = sphi 0, %s430
      %s448 = sphi 0, %s448
      %s450 = sphi 0, %s448
      %s451 = sphi 0, %s450
      %s465 = sphi 0, %s451
      %s469 = sphi 0, %s469
      %s471 = sphi 0, %s469
      %s472 = sphi 0, %s471
      %s486 = sphi 0, %s472
      %s490 = sphi 0, %s490
      %s492 = sphi 0, %s490
      %s493 = sphi 0, %s492
      %s507 = sphi 0, %s493
      %s511 = sphi 0, %s511
      %s513 = sphi 0, %s511
      %s514 = sphi 0, %s513
      %s528 = sphi 0, %s514
      %s532 = sphi 0, %s532
      %s534 = sphi 0, %s532
      %s535 = sphi 0, %s534
      %s549 = sphi 0, %s535
      %s553 = sphi 0, %s553
      %s555 = sphi 0, %s553
      %s556 = sphi 0, %s555
      %s570 = sphi 0, %s556
      %s574 = sphi 0, %s574
      %s576 = sphi 0, %s574
      %s577 = sphi 0, %s576
      %s591 = sphi 0, %s577
      %s595 = sphi 0, %s595
      %s597 = sphi 0, %s595
      %s598 = sphi 0, %s597
      %s612 = sphi 0, %s598
      %s616 = sphi 0, %s616
      %s618 = sphi 0, %s616
      %s619 = sphi 0, %s618
      %s633 = sphi 0, %s619
      %s637 = sphi 0, %s637
      %s639 = sphi 0, %s637
      %s640 = sphi 0, %s639
      %s654 = sphi 0, %s640
      %s658 = sphi 0, %s658
      %s660 = sphi 0, %s658
      %s661 = sphi 0, %s660
      %s675 = sphi 0, %s661
      %s679 = sphi 0, %s679
      %s681 = sphi 0, %s679
      %s682 = sphi 0, %s681
      %s696 = sphi 0, %s682
      %s700 = sphi 0, %s700
      %s702 = sphi 0, %s700
      %s703 = sphi 0, %s702
      %s717 = sphi 0, %s703
      %s721 = sphi 0, %s721
      %s723 = sphi 0, %s721
      %s724 = sphi 0, %s723
      %s738 = sphi 0, %s724
      %s742 = sphi 0, %s742
      %s744 = sphi 0, %s742
      %s745 = sphi 0, %s744
      %s759 = sphi 0, %s745
      %s763 = sphi 0, %s763
      %s765 = sphi 0, %s763
      %s766 = sphi 0, %s765
      %s780 = sphi 0, %s766
      %s784 = sphi 0, %s784
      %s786 = sphi 0, %s784
      %s787 = sphi 0, %s786
      %s801 = sphi 0, %s787
      %s807 = sphi 0, %s809
      %s810 = sphi 0, %s807
      %s811 = sphi 0, %s810
      %s827 = sphi 0, %s811
    $region4: #{vit_forward.1} parent=1 // loop_header_branch
      %81 = sbr.rel (%p79) target = $region8
    $region5: #{vit_forward.1} parent=1 // loop_body
      %s83 = ssub.s32 %s78, 1
      %s84 = ssub.s32 %s78, 2
      %s85 = sadd.s32 %s78, 1
      %s86 = ssub.s32 %s78, %s85
      %p87 = scmp.eq.s32.totalorder %s86, 0
      %s89 = sadd.s32 %s88, 1
      %s90 = scalar_select %p87, %s88, %s89
      %p93 = pneg %p87
      %p94 = scmp.eq.s32.totalorder %s78, 1
      %p95 = por %p93, %p94
      %p96 = scmp.ne.s32.totalorder %s88, %s91
      %p97 = scmp.eq.s32.totalorder %s78, 0
      %p98 = por %p96, %p97
      %p99 = scmp.ne.s32.totalorder %s88, %s91
      %p100 = scmp.eq.s32.totalorder %s83, 1
      %p101 = por %p99, %p100
      %p102 = scmp.ne.s32.totalorder %s91, %s92
      %p103 = scmp.eq.s32.totalorder %s83, 0
      %p104 = por %p102, %p103
      %p105 = scmp.ne.s32.totalorder %s91, %s92
      %p106 = scmp.eq.s32.totalorder %s84, 1
      %p107 = por %p105, %p106
      %p109 = scmp.ne.s32.totalorder %s92, %s108
      %p110 = scmp.eq.s32.totalorder %s84, 0
      %p111 = por %p109, %p110
      %s113 = sadd.s32 %s112, 1
      %p116 = scmp.eq.s32.totalorder %s78, 1
      %p117 = scmp.ne.s32.totalorder %s112, %s114
      %p118 = scmp.eq.s32.totalorder %s78, 0
      %p119 = por %p117, %p118
      %p120 = scmp.ne.s32.totalorder %s112, %s114
      %p121 = scmp.eq.s32.totalorder %s83, 1
      %p122 = por %p120, %p121
      %p123 = scmp.ne.s32.totalorder %s114, %s115
      %p124 = scmp.eq.s32.totalorder %s83, 0
      %p125 = por %p123, %p124
      %p126 = scmp.ne.s32.totalorder %s114, %s115
      %p127 = scmp.eq.s32.totalorder %s84, 1
      %p128 = por %p126, %p127
      %p130 = scmp.ne.s32.totalorder %s115, %s129
      %p131 = scmp.eq.s32.totalorder %s84, 0
      %p132 = por %p130, %p131
      %s134 = sadd.s32 %s133, 1
      %p137 = scmp.eq.s32.totalorder %s78, 1
      %p138 = scmp.ne.s32.totalorder %s133, %s135
      %p139 = scmp.eq.s32.totalorder %s78, 0
      %p140 = por %p138, %p139
      %p141 = scmp.ne.s32.totalorder %s133, %s135
      %p142 = scmp.eq.s32.totalorder %s83, 1
      %p143 = por %p141, %p142
      %p144 = scmp.ne.s32.totalorder %s135, %s136
      %p145 = scmp.eq.s32.totalorder %s83, 0
      %p146 = por %p144, %p145
      %p147 = scmp.ne.s32.totalorder %s135, %s136
      %p148 = scmp.eq.s32.totalorder %s84, 1
      %p149 = por %p147, %p148
      %p151 = scmp.ne.s32.totalorder %s136, %s150
      %p152 = scmp.eq.s32.totalorder %s84, 0
      %p153 = por %p151, %p152
      %s155 = sadd.s32 %s154, 1
      %p158 = scmp.eq.s32.totalorder %s78, 1
      %p159 = scmp.ne.s32.totalorder %s154, %s156
      %p160 = scmp.eq.s32.totalorder %s78, 0
      %p161 = por %p159, %p160
      %p162 = scmp.ne.s32.totalorder %s154, %s156
      %p163 = scmp.eq.s32.totalorder %s83, 1
      %p164 = por %p162, %p163
      %p165 = scmp.ne.s32.totalorder %s156, %s157
      %p166 = scmp.eq.s32.totalorder %s83, 0
      %p167 = por %p165, %p166
      %p168 = scmp.ne.s32.totalorder %s156, %s157
      %p169 = scmp.eq.s32.totalorder %s84, 1
      %p170 = por %p168, %p169
      %p172 = scmp.ne.s32.totalorder %s157, %s171
      %p173 = scmp.eq.s32.totalorder %s84, 0
      %p174 = por %p172, %p173
      %s176 = sadd.s32 %s175, 1
      %p179 = scmp.eq.s32.totalorder %s78, 1
      %p180 = scmp.ne.s32.totalorder %s175, %s177
      %p181 = scmp.eq.s32.totalorder %s78, 0
      %p182 = por %p180, %p181
      %p183 = scmp.ne.s32.totalorder %s175, %s177
      %p184 = scmp.eq.s32.totalorder %s83, 1
      %p185 = por %p183, %p184
      %p186 = scmp.ne.s32.totalorder %s177, %s178
      %p187 = scmp.eq.s32.totalorder %s83, 0
      %p188 = por %p186, %p187
      %p189 = scmp.ne.s32.totalorder %s177, %s178
      %p190 = scmp.eq.s32.totalorder %s84, 1
      %p191 = por %p189, %p190
      %p193 = scmp.ne.s32.totalorder %s178, %s192
      %p194 = scmp.eq.s32.totalorder %s84, 0
      %p195 = por %p193, %p194
      %s197 = sadd.s32 %s196, 1
      %p200 = scmp.eq.s32.totalorder %s78, 1
      %p201 = scmp.ne.s32.totalorder %s196, %s198
      %p202 = scmp.eq.s32.totalorder %s78, 0
      %p203 = por %p201, %p202
      %p204 = scmp.ne.s32.totalorder %s196, %s198
      %p205 = scmp.eq.s32.totalorder %s83, 1
      %p206 = por %p204, %p205
      %p207 = scmp.ne.s32.totalorder %s198, %s199
      %p208 = scmp.eq.s32.totalorder %s83, 0
      %p209 = por %p207, %p208
      %p210 = scmp.ne.s32.totalorder %s198, %s199
      %p211 = scmp.eq.s32.totalorder %s84, 1
      %p212 = por %p210, %p211
      %p214 = scmp.ne.s32.totalorder %s199, %s213
      %p215 = scmp.eq.s32.totalorder %s84, 0
      %p216 = por %p214, %p215
      %s218 = sadd.s32 %s217, 1
      %p221 = scmp.eq.s32.totalorder %s78, 1
      %p222 = scmp.ne.s32.totalorder %s217, %s219
      %p223 = scmp.eq.s32.totalorder %s78, 0
      %p224 = por %p222, %p223
      %p225 = scmp.ne.s32.totalorder %s217, %s219
      %p226 = scmp.eq.s32.totalorder %s83, 1
      %p227 = por %p225, %p226
      %p228 = scmp.ne.s32.totalorder %s219, %s220
      %p229 = scmp.eq.s32.totalorder %s83, 0
      %p230 = por %p228, %p229
      %p231 = scmp.ne.s32.totalorder %s219, %s220
      %p232 = scmp.eq.s32.totalorder %s84, 1
      %p233 = por %p231, %p232
      %p235 = scmp.ne.s32.totalorder %s220, %s234
      %p236 = scmp.eq.s32.totalorder %s84, 0
      %p237 = por %p235, %p236
      %s239 = sadd.s32 %s238, 1
      %p242 = scmp.eq.s32.totalorder %s78, 1
      %p243 = scmp.ne.s32.totalorder %s238, %s240
      %p244 = scmp.eq.s32.totalorder %s78, 0
      %p245 = por %p243, %p244
      %p246 = scmp.ne.s32.totalorder %s238, %s240
      %p247 = scmp.eq.s32.totalorder %s83, 1
      %p248 = por %p246, %p247
      %p249 = scmp.ne.s32.totalorder %s240, %s241
      %p250 = scmp.eq.s32.totalorder %s83, 0
      %p251 = por %p249, %p250
      %p252 = scmp.ne.s32.totalorder %s240, %s241
      %p253 = scmp.eq.s32.totalorder %s84, 1
      %p254 = por %p252, %p253
      %p256 = scmp.ne.s32.totalorder %s241, %s255
      %p257 = scmp.eq.s32.totalorder %s84, 0
      %p258 = por %p256, %p257
      %s260 = sadd.s32 %s259, 1
      %p263 = scmp.eq.s32.totalorder %s78, 1
      %p264 = scmp.ne.s32.totalorder %s259, %s261
      %p265 = scmp.eq.s32.totalorder %s78, 0
      %p266 = por %p264, %p265
      %p267 = scmp.ne.s32.totalorder %s259, %s261
      %p268 = scmp.eq.s32.totalorder %s83, 1
      %p269 = por %p267, %p268
      %p270 = scmp.ne.s32.totalorder %s261, %s262
      %p271 = scmp.eq.s32.totalorder %s83, 0
      %p272 = por %p270, %p271
      %p273 = scmp.ne.s32.totalorder %s261, %s262
      %p274 = scmp.eq.s32.totalorder %s84, 1
      %p275 = por %p273, %p274
      %p277 = scmp.ne.s32.totalorder %s262, %s276
      %p278 = scmp.eq.s32.totalorder %s84, 0
      %p279 = por %p277, %p278
      %s281 = sadd.s32 %s280, 1
      %p284 = scmp.eq.s32.totalorder %s78, 1
      %p285 = scmp.ne.s32.totalorder %s280, %s282
      %p286 = scmp.eq.s32.totalorder %s78, 0
      %p287 = por %p285, %p286
      %p288 = scmp.ne.s32.totalorder %s280, %s282
      %p289 = scmp.eq.s32.totalorder %s83, 1
      %p290 = por %p288, %p289
      %p291 = scmp.ne.s32.totalorder %s282, %s283
      %p292 = scmp.eq.s32.totalorder %s83, 0
      %p293 = por %p291, %p292
      %p294 = scmp.ne.s32.totalorder %s282, %s283
      %p295 = scmp.eq.s32.totalorder %s84, 1
      %p296 = por %p294, %p295
      %p298 = scmp.ne.s32.totalorder %s283, %s297
      %p299 = scmp.eq.s32.totalorder %s84, 0
      %p300 = por %p298, %p299
      %s302 = sadd.s32 %s301, 1
      %p305 = scmp.eq.s32.totalorder %s78, 1
      %p306 = scmp.ne.s32.totalorder %s301, %s303
      %p307 = scmp.eq.s32.totalorder %s78, 0
      %p308 = por %p306, %p307
      %p309 = scmp.ne.s32.totalorder %s301, %s303
      %p310 = scmp.eq.s32.totalorder %s83, 1
      %p311 = por %p309, %p310
      %p312 = scmp.ne.s32.totalorder %s303, %s304
      %p313 = scmp.eq.s32.totalorder %s83, 0
      %p314 = por %p312, %p313
      %p315 = scmp.ne.s32.totalorder %s303, %s304
      %p316 = scmp.eq.s32.totalorder %s84, 1
      %p317 = por %p315, %p316
      %p319 = scmp.ne.s32.totalorder %s304, %s318
      %p320 = scmp.eq.s32.totalorder %s84, 0
      %p321 = por %p319, %p320
      %s323 = sadd.s32 %s322, 1
      %p326 = scmp.eq.s32.totalorder %s78, 1
      %p327 = scmp.ne.s32.totalorder %s322, %s324
      %p328 = scmp.eq.s32.totalorder %s78, 0
      %p329 = por %p327, %p328
      %p330 = scmp.ne.s32.totalorder %s322, %s324
      %p331 = scmp.eq.s32.totalorder %s83, 1
      %p332 = por %p330, %p331
      %p333 = scmp.ne.s32.totalorder %s324, %s325
      %p334 = scmp.eq.s32.totalorder %s83, 0
      %p335 = por %p333, %p334
      %p336 = scmp.ne.s32.totalorder %s324, %s325
      %p337 = scmp.eq.s32.totalorder %s84, 1
      %p338 = por %p336, %p337
      %p340 = scmp.ne.s32.totalorder %s325, %s339
      %p341 = scmp.eq.s32.totalorder %s84, 0
      %p342 = por %p340, %p341
      %s344 = sadd.s32 %s343, 1
      %p347 = scmp.eq.s32.totalorder %s78, 1
      %p348 = scmp.ne.s32.totalorder %s343, %s345
      %p349 = scmp.eq.s32.totalorder %s78, 0
      %p350 = por %p348, %p349
      %p351 = scmp.ne.s32.totalorder %s343, %s345
      %p352 = scmp.eq.s32.totalorder %s83, 1
      %p353 = por %p351, %p352
      %p354 = scmp.ne.s32.totalorder %s345, %s346
      %p355 = scmp.eq.s32.totalorder %s83, 0
      %p356 = por %p354, %p355
      %p357 = scmp.ne.s32.totalorder %s345, %s346
      %p358 = scmp.eq.s32.totalorder %s84, 1
      %p359 = por %p357, %p358
      %p361 = scmp.ne.s32.totalorder %s346, %s360
      %p362 = scmp.eq.s32.totalorder %s84, 0
      %p363 = por %p361, %p362
      %s365 = sadd.s32 %s364, 1
      %p368 = scmp.eq.s32.totalorder %s78, 1
      %p369 = scmp.ne.s32.totalorder %s364, %s366
      %p370 = scmp.eq.s32.totalorder %s78, 0
      %p371 = por %p369, %p370
      %p372 = scmp.ne.s32.totalorder %s364, %s366
      %p373 = scmp.eq.s32.totalorder %s83, 1
      %p374 = por %p372, %p373
      %p375 = scmp.ne.s32.totalorder %s366, %s367
      %p376 = scmp.eq.s32.totalorder %s83, 0
      %p377 = por %p375, %p376
      %p378 = scmp.ne.s32.totalorder %s366, %s367
      %p379 = scmp.eq.s32.totalorder %s84, 1
      %p380 = por %p378, %p379
      %p382 = scmp.ne.s32.totalorder %s367, %s381
      %p383 = scmp.eq.s32.totalorder %s84, 0
      %p384 = por %p382, %p383
      %s386 = sadd.s32 %s385, 1
      %p389 = scmp.eq.s32.totalorder %s78, 1
      %p390 = scmp.ne.s32.totalorder %s385, %s387
      %p391 = scmp.eq.s32.totalorder %s78, 0
      %p392 = por %p390, %p391
      %p393 = scmp.ne.s32.totalorder %s385, %s387
      %p394 = scmp.eq.s32.totalorder %s83, 1
      %p395 = por %p393, %p394
      %p396 = scmp.ne.s32.totalorder %s387, %s388
      %p397 = scmp.eq.s32.totalorder %s83, 0
      %p398 = por %p396, %p397
      %p399 = scmp.ne.s32.totalorder %s387, %s388
      %p400 = scmp.eq.s32.totalorder %s84, 1
      %p401 = por %p399, %p400
      %p403 = scmp.ne.s32.totalorder %s388, %s402
      %p404 = scmp.eq.s32.totalorder %s84, 0
      %p405 = por %p403, %p404
      %s407 = sadd.s32 %s406, 1
      %p410 = scmp.eq.s32.totalorder %s78, 1
      %p411 = scmp.ne.s32.totalorder %s406, %s408
      %p412 = scmp.eq.s32.totalorder %s78, 0
      %p413 = por %p411, %p412
      %p414 = scmp.ne.s32.totalorder %s406, %s408
      %p415 = scmp.eq.s32.totalorder %s83, 1
      %p416 = por %p414, %p415
      %p417 = scmp.ne.s32.totalorder %s408, %s409
      %p418 = scmp.eq.s32.totalorder %s83, 0
      %p419 = por %p417, %p418
      %p420 = scmp.ne.s32.totalorder %s408, %s409
      %p421 = scmp.eq.s32.totalorder %s84, 1
      %p422 = por %p420, %p421
      %p424 = scmp.ne.s32.totalorder %s409, %s423
      %p425 = scmp.eq.s32.totalorder %s84, 0
      %p426 = por %p424, %p425
      %s428 = sadd.s32 %s427, 1
      %p431 = scmp.eq.s32.totalorder %s78, 1
      %p432 = scmp.ne.s32.totalorder %s427, %s429
      %p433 = scmp.eq.s32.totalorder %s78, 0
      %p434 = por %p432, %p433
      %p435 = scmp.ne.s32.totalorder %s427, %s429
      %p436 = scmp.eq.s32.totalorder %s83, 1
      %p437 = por %p435, %p436
      %p438 = scmp.ne.s32.totalorder %s429, %s430
      %p439 = scmp.eq.s32.totalorder %s83, 0
      %p440 = por %p438, %p439
      %p441 = scmp.ne.s32.totalorder %s429, %s430
      %p442 = scmp.eq.s32.totalorder %s84, 1
      %p443 = por %p441, %p442
      %p445 = scmp.ne.s32.totalorder %s430, %s444
      %p446 = scmp.eq.s32.totalorder %s84, 0
      %p447 = por %p445, %p446
      %s449 = sadd.s32 %s448, 1
      %p452 = scmp.eq.s32.totalorder %s78, 1
      %p453 = scmp.ne.s32.totalorder %s448, %s450
      %p454 = scmp.eq.s32.totalorder %s78, 0
      %p455 = por %p453, %p454
      %p456 = scmp.ne.s32.totalorder %s448, %s450
      %p457 = scmp.eq.s32.totalorder %s83, 1
      %p458 = por %p456, %p457
      %p459 = scmp.ne.s32.totalorder %s450, %s451
      %p460 = scmp.eq.s32.totalorder %s83, 0
      %p461 = por %p459, %p460
      %p462 = scmp.ne.s32.totalorder %s450, %s451
      %p463 = scmp.eq.s32.totalorder %s84, 1
      %p464 = por %p462, %p463
      %p466 = scmp.ne.s32.totalorder %s451, %s465
      %p467 = scmp.eq.s32.totalorder %s84, 0
      %p468 = por %p466, %p467
      %s470 = sadd.s32 %s469, 1
      %p473 = scmp.eq.s32.totalorder %s78, 1
      %p474 = scmp.ne.s32.totalorder %s469, %s471
      %p475 = scmp.eq.s32.totalorder %s78, 0
      %p476 = por %p474, %p475
      %p477 = scmp.ne.s32.totalorder %s469, %s471
      %p478 = scmp.eq.s32.totalorder %s83, 1
      %p479 = por %p477, %p478
      %p480 = scmp.ne.s32.totalorder %s471, %s472
      %p481 = scmp.eq.s32.totalorder %s83, 0
      %p482 = por %p480, %p481
      %p483 = scmp.ne.s32.totalorder %s471, %s472
      %p484 = scmp.eq.s32.totalorder %s84, 1
      %p485 = por %p483, %p484
      %p487 = scmp.ne.s32.totalorder %s472, %s486
      %p488 = scmp.eq.s32.totalorder %s84, 0
      %p489 = por %p487, %p488
      %s491 = sadd.s32 %s490, 1
      %p494 = scmp.eq.s32.totalorder %s78, 1
      %p495 = scmp.ne.s32.totalorder %s490, %s492
      %p496 = scmp.eq.s32.totalorder %s78, 0
      %p497 = por %p495, %p496
      %p498 = scmp.ne.s32.totalorder %s490, %s492
      %p499 = scmp.eq.s32.totalorder %s83, 1
      %p500 = por %p498, %p499
      %p501 = scmp.ne.s32.totalorder %s492, %s493
      %p502 = scmp.eq.s32.totalorder %s83, 0
      %p503 = por %p501, %p502
      %p504 = scmp.ne.s32.totalorder %s492, %s493
      %p505 = scmp.eq.s32.totalorder %s84, 1
      %p506 = por %p504, %p505
      %p508 = scmp.ne.s32.totalorder %s493, %s507
      %p509 = scmp.eq.s32.totalorder %s84, 0
      %p510 = por %p508, %p509
      %s512 = sadd.s32 %s511, 1
      %p515 = scmp.eq.s32.totalorder %s78, 1
      %p516 = scmp.ne.s32.totalorder %s511, %s513
      %p517 = scmp.eq.s32.totalorder %s78, 0
      %p518 = por %p516, %p517
      %p519 = scmp.ne.s32.totalorder %s511, %s513
      %p520 = scmp.eq.s32.totalorder %s83, 1
      %p521 = por %p519, %p520
      %p522 = scmp.ne.s32.totalorder %s513, %s514
      %p523 = scmp.eq.s32.totalorder %s83, 0
      %p524 = por %p522, %p523
      %p525 = scmp.ne.s32.totalorder %s513, %s514
      %p526 = scmp.eq.s32.totalorder %s84, 1
      %p527 = por %p525, %p526
      %p529 = scmp.ne.s32.totalorder %s514, %s528
      %p530 = scmp.eq.s32.totalorder %s84, 0
      %p531 = por %p529, %p530
      %s533 = sadd.s32 %s532, 1
      %p536 = scmp.eq.s32.totalorder %s78, 1
      %p537 = scmp.ne.s32.totalorder %s532, %s534
      %p538 = scmp.eq.s32.totalorder %s78, 0
      %p539 = por %p537, %p538
      %p540 = scmp.ne.s32.totalorder %s532, %s534
      %p541 = scmp.eq.s32.totalorder %s83, 1
      %p542 = por %p540, %p541
      %p543 = scmp.ne.s32.totalorder %s534, %s535
      %p544 = scmp.eq.s32.totalorder %s83, 0
      %p545 = por %p543, %p544
      %p546 = scmp.ne.s32.totalorder %s534, %s535
      %p547 = scmp.eq.s32.totalorder %s84, 1
      %p548 = por %p546, %p547
      %p550 = scmp.ne.s32.totalorder %s535, %s549
      %p551 = scmp.eq.s32.totalorder %s84, 0
      %p552 = por %p550, %p551
      %s554 = sadd.s32 %s553, 1
      %p557 = scmp.eq.s32.totalorder %s78, 1
      %p558 = scmp.ne.s32.totalorder %s553, %s555
      %p559 = scmp.eq.s32.totalorder %s78, 0
      %p560 = por %p558, %p559
      %p561 = scmp.ne.s32.totalorder %s553, %s555
      %p562 = scmp.eq.s32.totalorder %s83, 1
      %p563 = por %p561, %p562
      %p564 = scmp.ne.s32.totalorder %s555, %s556
      %p565 = scmp.eq.s32.totalorder %s83, 0
      %p566 = por %p564, %p565
      %p567 = scmp.ne.s32.totalorder %s555, %s556
      %p568 = scmp.eq.s32.totalorder %s84, 1
      %p569 = por %p567, %p568
      %p571 = scmp.ne.s32.totalorder %s556, %s570
      %p572 = scmp.eq.s32.totalorder %s84, 0
      %p573 = por %p571, %p572
      %s575 = sadd.s32 %s574, 1
      %p578 = scmp.eq.s32.totalorder %s78, 1
      %p579 = scmp.ne.s32.totalorder %s574, %s576
      %p580 = scmp.eq.s32.totalorder %s78, 0
      %p581 = por %p579, %p580
      %p582 = scmp.ne.s32.totalorder %s574, %s576
      %p583 = scmp.eq.s32.totalorder %s83, 1
      %p584 = por %p582, %p583
      %p585 = scmp.ne.s32.totalorder %s576, %s577
      %p586 = scmp.eq.s32.totalorder %s83, 0
      %p587 = por %p585, %p586
      %p588 = scmp.ne.s32.totalorder %s576, %s577
      %p589 = scmp.eq.s32.totalorder %s84, 1
      %p590 = por %p588, %p589
      %p592 = scmp.ne.s32.totalorder %s577, %s591
      %p593 = scmp.eq.s32.totalorder %s84, 0
      %p594 = por %p592, %p593
      %s596 = sadd.s32 %s595, 1
      %p599 = scmp.eq.s32.totalorder %s78, 1
      %p600 = scmp.ne.s32.totalorder %s595, %s597
      %p601 = scmp.eq.s32.totalorder %s78, 0
      %p602 = por %p600, %p601
      %p603 = scmp.ne.s32.totalorder %s595, %s597
      %p604 = scmp.eq.s32.totalorder %s83, 1
      %p605 = por %p603, %p604
      %p606 = scmp.ne.s32.totalorder %s597, %s598
      %p607 = scmp.eq.s32.totalorder %s83, 0
      %p608 = por %p606, %p607
      %p609 = scmp.ne.s32.totalorder %s597, %s598
      %p610 = scmp.eq.s32.totalorder %s84, 1
      %p611 = por %p609, %p610
      %p613 = scmp.ne.s32.totalorder %s598, %s612
      %p614 = scmp.eq.s32.totalorder %s84, 0
      %p615 = por %p613, %p614
      %s617 = sadd.s32 %s616, 1
      %p620 = scmp.eq.s32.totalorder %s78, 1
      %p621 = scmp.ne.s32.totalorder %s616, %s618
      %p622 = scmp.eq.s32.totalorder %s78, 0
      %p623 = por %p621, %p622
      %p624 = scmp.ne.s32.totalorder %s616, %s618
      %p625 = scmp.eq.s32.totalorder %s83, 1
      %p626 = por %p624, %p625
      %p627 = scmp.ne.s32.totalorder %s618, %s619
      %p628 = scmp.eq.s32.totalorder %s83, 0
      %p629 = por %p627, %p628
      %p630 = scmp.ne.s32.totalorder %s618, %s619
      %p631 = scmp.eq.s32.totalorder %s84, 1
      %p632 = por %p630, %p631
      %p634 = scmp.ne.s32.totalorder %s619, %s633
      %p635 = scmp.eq.s32.totalorder %s84, 0
      %p636 = por %p634, %p635
      %s638 = sadd.s32 %s637, 1
      %p641 = scmp.eq.s32.totalorder %s78, 1
      %p642 = scmp.ne.s32.totalorder %s637, %s639
      %p643 = scmp.eq.s32.totalorder %s78, 0
      %p644 = por %p642, %p643
      %p645 = scmp.ne.s32.totalorder %s637, %s639
      %p646 = scmp.eq.s32.totalorder %s83, 1
      %p647 = por %p645, %p646
      %p648 = scmp.ne.s32.totalorder %s639, %s640
      %p649 = scmp.eq.s32.totalorder %s83, 0
      %p650 = por %p648, %p649
      %p651 = scmp.ne.s32.totalorder %s639, %s640
      %p652 = scmp.eq.s32.totalorder %s84, 1
      %p653 = por %p651, %p652
      %p655 = scmp.ne.s32.totalorder %s640, %s654
      %p656 = scmp.eq.s32.totalorder %s84, 0
      %p657 = por %p655, %p656
      %s659 = sadd.s32 %s658, 1
      %p662 = scmp.eq.s32.totalorder %s78, 1
      %p663 = scmp.ne.s32.totalorder %s658, %s660
      %p664 = scmp.eq.s32.totalorder %s78, 0
      %p665 = por %p663, %p664
      %p666 = scmp.ne.s32.totalorder %s658, %s660
      %p667 = scmp.eq.s32.totalorder %s83, 1
      %p668 = por %p666, %p667
      %p669 = scmp.ne.s32.totalorder %s660, %s661
      %p670 = scmp.eq.s32.totalorder %s83, 0
      %p671 = por %p669, %p670
      %p672 = scmp.ne.s32.totalorder %s660, %s661
      %p673 = scmp.eq.s32.totalorder %s84, 1
      %p674 = por %p672, %p673
      %p676 = scmp.ne.s32.totalorder %s661, %s675
      %p677 = scmp.eq.s32.totalorder %s84, 0
      %p678 = por %p676, %p677
      %s680 = sadd.s32 %s679, 1
      %p683 = scmp.eq.s32.totalorder %s78, 1
      %p684 = scmp.ne.s32.totalorder %s679, %s681
      %p685 = scmp.eq.s32.totalorder %s78, 0
      %p686 = por %p684, %p685
      %p687 = scmp.ne.s32.totalorder %s679, %s681
      %p688 = scmp.eq.s32.totalorder %s83, 1
      %p689 = por %p687, %p688
      %p690 = scmp.ne.s32.totalorder %s681, %s682
      %p691 = scmp.eq.s32.totalorder %s83, 0
      %p692 = por %p690, %p691
      %p693 = scmp.ne.s32.totalorder %s681, %s682
      %p694 = scmp.eq.s32.totalorder %s84, 1
      %p695 = por %p693, %p694
      %p697 = scmp.ne.s32.totalorder %s682, %s696
      %p698 = scmp.eq.s32.totalorder %s84, 0
      %p699 = por %p697, %p698
      %s701 = sadd.s32 %s700, 1
      %p704 = scmp.eq.s32.totalorder %s78, 1
      %p705 = scmp.ne.s32.totalorder %s700, %s702
      %p706 = scmp.eq.s32.totalorder %s78, 0
      %p707 = por %p705, %p706
      %p708 = scmp.ne.s32.totalorder %s700, %s702
      %p709 = scmp.eq.s32.totalorder %s83, 1
      %p710 = por %p708, %p709
      %p711 = scmp.ne.s32.totalorder %s702, %s703
      %p712 = scmp.eq.s32.totalorder %s83, 0
      %p713 = por %p711, %p712
      %p714 = scmp.ne.s32.totalorder %s702, %s703
      %p715 = scmp.eq.s32.totalorder %s84, 1
      %p716 = por %p714, %p715
      %p718 = scmp.ne.s32.totalorder %s703, %s717
      %p719 = scmp.eq.s32.totalorder %s84, 0
      %p720 = por %p718, %p719
      %s722 = sadd.s32 %s721, 1
      %p725 = scmp.eq.s32.totalorder %s78, 1
      %p726 = scmp.ne.s32.totalorder %s721, %s723
      %p727 = scmp.eq.s32.totalorder %s78, 0
      %p728 = por %p726, %p727
      %p729 = scmp.ne.s32.totalorder %s721, %s723
      %p730 = scmp.eq.s32.totalorder %s83, 1
      %p731 = por %p729, %p730
      %p732 = scmp.ne.s32.totalorder %s723, %s724
      %p733 = scmp.eq.s32.totalorder %s83, 0
      %p734 = por %p732, %p733
      %p735 = scmp.ne.s32.totalorder %s723, %s724
      %p736 = scmp.eq.s32.totalorder %s84, 1
      %p737 = por %p735, %p736
      %p739 = scmp.ne.s32.totalorder %s724, %s738
      %p740 = scmp.eq.s32.totalorder %s84, 0
      %p741 = por %p739, %p740
      %s743 = sadd.s32 %s742, 1
      %p746 = scmp.eq.s32.totalorder %s78, 1
      %p747 = scmp.ne.s32.totalorder %s742, %s744
      %p748 = scmp.eq.s32.totalorder %s78, 0
      %p749 = por %p747, %p748
      %p750 = scmp.ne.s32.totalorder %s742, %s744
      %p751 = scmp.eq.s32.totalorder %s83, 1
      %p752 = por %p750, %p751
      %p753 = scmp.ne.s32.totalorder %s744, %s745
      %p754 = scmp.eq.s32.totalorder %s83, 0
      %p755 = por %p753, %p754
      %p756 = scmp.ne.s32.totalorder %s744, %s745
      %p757 = scmp.eq.s32.totalorder %s84, 1
      %p758 = por %p756, %p757
      %p760 = scmp.ne.s32.totalorder %s745, %s759
      %p761 = scmp.eq.s32.totalorder %s84, 0
      %p762 = por %p760, %p761
      %s764 = sadd.s32 %s763, 1
      %p767 = scmp.eq.s32.totalorder %s78, 1
      %p768 = scmp.ne.s32.totalorder %s763, %s765
      %p769 = scmp.eq.s32.totalorder %s78, 0
      %p770 = por %p768, %p769
      %p771 = scmp.ne.s32.totalorder %s763, %s765
      %p772 = scmp.eq.s32.totalorder %s83, 1
      %p773 = por %p771, %p772
      %p774 = scmp.ne.s32.totalorder %s765, %s766
      %p775 = scmp.eq.s32.totalorder %s83, 0
      %p776 = por %p774, %p775
      %p777 = scmp.ne.s32.totalorder %s765, %s766
      %p778 = scmp.eq.s32.totalorder %s84, 1
      %p779 = por %p777, %p778
      %p781 = scmp.ne.s32.totalorder %s766, %s780
      %p782 = scmp.eq.s32.totalorder %s84, 0
      %p783 = por %p781, %p782
      %s785 = sadd.s32 %s784, 1
      %p788 = scmp.eq.s32.totalorder %s78, 1
      %p789 = scmp.ne.s32.totalorder %s784, %s786
      %p790 = scmp.eq.s32.totalorder %s78, 0
      %p791 = por %p789, %p790
      %p792 = scmp.ne.s32.totalorder %s784, %s786
      %p793 = scmp.eq.s32.totalorder %s83, 1
      %p794 = por %p792, %p793
      %p795 = scmp.ne.s32.totalorder %s786, %s787
      %p796 = scmp.eq.s32.totalorder %s83, 0
      %p797 = por %p795, %p796
      %p798 = scmp.ne.s32.totalorder %s786, %s787
      %p799 = scmp.eq.s32.totalorder %s84, 1
      %p800 = por %p798, %p799
      %p802 = scmp.ne.s32.totalorder %s787, %s801
      %p803 = scmp.eq.s32.totalorder %s84, 0
      %p804 = por %p802, %p803
      %s805 = ssub.s32 %s78, %s85
      %p806 = scmp.eq.s32.totalorder %s805, 0
      %s808 = sadd.s32 %s807, 1
      %s809 = scalar_select %p806, %s807, %s808
      %p812 = pneg %p806
      %p813 = scmp.eq.s32.totalorder %s78, 1
      %p814 = por %p812, %p813
      %p815 = scmp.ne.s32.totalorder %s807, %s810
      %p816 = scmp.eq.s32.totalorder %s78, 0
      %p817 = por %p815, %p816
      %p818 = scmp.ne.s32.totalorder %s807, %s810
      %p819 = scmp.eq.s32.totalorder %s83, 1
      %p820 = por %p818, %p819
      %p821 = scmp.ne.s32.totalorder %s810, %s811
      %p822 = scmp.eq.s32.totalorder %s83, 0
      %p823 = por %p821, %p822
      %p824 = scmp.ne.s32.totalorder %s810, %s811
      %p825 = scmp.eq.s32.totalorder %s84, 1
      %p826 = por %p824, %p825
      %p828 = scmp.ne.s32.totalorder %s811, %s827
      %p829 = scmp.eq.s32.totalorder %s84, 0
      %p830 = por %p828, %p829
      %p831 = scmp.le.s32.totalorder 1, %s78
      %p832 = scmp.lt.s32.totalorder %s78, 3
      %p833 = pnand %p831, %p832
      %p834 = pneg %p833
      // Predicated region
      $region9: #{vit_forward.1} parent=5 // pred_check
        _
      $region10: #{vit_forward.1} parent=5 // pred_check_branch
        %836 = sbr.rel (%p833) target = $region12
      $region11: #{vit_forward.1} parent=5 // pred_region
        %s837 = ssub.s32 %s78, 1
        // Predicated region
        $region13: #{vit_forward.1} parent=11 // pred_check
          %p838 = pneg %p125
        $region14: #{vit_forward.1} parent=11 // pred_check_branch
          %840 = sbr.rel (%p838) target = $region16
        $region15: #{vit_forward.1} parent=11 // pred_region
          _
        $region16: #{vit_forward.1} parent=11 // pred_fallthru
          _
        // Predicated region
        $region17: #{vit_forward.1} parent=11 // pred_check
          %p841 = pneg %p146
        $region18: #{vit_forward.1} parent=11 // pred_check_branch
          %843 = sbr.rel (%p841) target = $region20
        $region19: #{vit_forward.1} parent=11 // pred_region
          _
        $region20: #{vit_forward.1} parent=11 // pred_fallthru
          _
        // Predicated region
        $region21: #{vit_forward.1} parent=11 // pred_check
          %p844 = pneg %p167
        $region22: #{vit_forward.1} parent=11 // pred_check_branch
          %846 = sbr.rel (%p844) target = $region24
        $region23: #{vit_forward.1} parent=11 // pred_region
          _
        $region24: #{vit_forward.1} parent=11 // pred_fallthru
          _
        // Predicated region
        $region25: #{vit_forward.1} parent=11 // pred_check
          %p847 = pneg %p188
        $region26: #{vit_forward.1} parent=11 // pred_check_branch
          %849 = sbr.rel (%p847) target = $region28
        $region27: #{vit_forward.1} parent=11 // pred_region
          _
        $region28: #{vit_forward.1} parent=11 // pred_fallthru
          _
        // Predicated region
        $region29: #{vit_forward.1} parent=11 // pred_check
          %p850 = pneg %p209
        $region30: #{vit_forward.1} parent=11 // pred_check_branch
          %852 = sbr.rel (%p850) target = $region32
        $region31: #{vit_forward.1} parent=11 // pred_region
          _
        $region32: #{vit_forward.1} parent=11 // pred_fallthru
          _
        // Predicated region
        $region33: #{vit_forward.1} parent=11 // pred_check
          %p853 = pneg %p230
        $region34: #{vit_forward.1} parent=11 // pred_check_branch
          %855 = sbr.rel (%p853) target = $region36
        $region35: #{vit_forward.1} parent=11 // pred_region
          _
        $region36: #{vit_forward.1} parent=11 // pred_fallthru
          _
        // Predicated region
        $region37: #{vit_forward.1} parent=11 // pred_check
          %p856 = pneg %p251
        $region38: #{vit_forward.1} parent=11 // pred_check_branch
          %858 = sbr.rel (%p856) target = $region40
        $region39: #{vit_forward.1} parent=11 // pred_region
          _
        $region40: #{vit_forward.1} parent=11 // pred_fallthru
          _
        // Predicated region
        $region41: #{vit_forward.1} parent=11 // pred_check
          %p859 = pneg %p272
        $region42: #{vit_forward.1} parent=11 // pred_check_branch
          %861 = sbr.rel (%p859) target = $region44
        $region43: #{vit_forward.1} parent=11 // pred_region
          _
        $region44: #{vit_forward.1} parent=11 // pred_fallthru
          _
        // Predicated region
        $region45: #{vit_forward.1} parent=11 // pred_check
          %p862 = pneg %p293
        $region46: #{vit_forward.1} parent=11 // pred_check_branch
          %864 = sbr.rel (%p862) target = $region48
        $region47: #{vit_forward.1} parent=11 // pred_region
          _
        $region48: #{vit_forward.1} parent=11 // pred_fallthru
          _
        // Predicated region
        $region49: #{vit_forward.1} parent=11 // pred_check
          %p865 = pneg %p314
        $region50: #{vit_forward.1} parent=11 // pred_check_branch
          %867 = sbr.rel (%p865) target = $region52
        $region51: #{vit_forward.1} parent=11 // pred_region
          _
        $region52: #{vit_forward.1} parent=11 // pred_fallthru
          _
        // Predicated region
        $region53: #{vit_forward.1} parent=11 // pred_check
          %p868 = pneg %p335
        $region54: #{vit_forward.1} parent=11 // pred_check_branch
          %870 = sbr.rel (%p868) target = $region56
        $region55: #{vit_forward.1} parent=11 // pred_region
          _
        $region56: #{vit_forward.1} parent=11 // pred_fallthru
          _
        // Predicated region
        $region57: #{vit_forward.1} parent=11 // pred_check
          %p871 = pneg %p356
        $region58: #{vit_forward.1} parent=11 // pred_check_branch
          %873 = sbr.rel (%p871) target = $region60
        $region59: #{vit_forward.1} parent=11 // pred_region
          _
        $region60: #{vit_forward.1} parent=11 // pred_fallthru
          _
        // Predicated region
        $region61: #{vit_forward.1} parent=11 // pred_check
          %p874 = pneg %p377
        $region62: #{vit_forward.1} parent=11 // pred_check_branch
          %876 = sbr.rel (%p874) target = $region64
        $region63: #{vit_forward.1} parent=11 // pred_region
          _
        $region64: #{vit_forward.1} parent=11 // pred_fallthru
          _
        // Predicated region
        $region65: #{vit_forward.1} parent=11 // pred_check
          %p877 = pneg %p398
        $region66: #{vit_forward.1} parent=11 // pred_check_branch
          %879 = sbr.rel (%p877) target = $region68
        $region67: #{vit_forward.1} parent=11 // pred_region
          _
        $region68: #{vit_forward.1} parent=11 // pred_fallthru
          _
        // Predicated region
        $region69: #{vit_forward.1} parent=11 // pred_check
          %p880 = pneg %p419
        $region70: #{vit_forward.1} parent=11 // pred_check_branch
          %882 = sbr.rel (%p880) target = $region72
        $region71: #{vit_forward.1} parent=11 // pred_region
          _
        $region72: #{vit_forward.1} parent=11 // pred_fallthru
          _
        // Predicated region
        $region73: #{vit_forward.1} parent=11 // pred_check
          %p883 = pneg %p440
        $region74: #{vit_forward.1} parent=11 // pred_check_branch
          %885 = sbr.rel (%p883) target = $region76
        $region75: #{vit_forward.1} parent=11 // pred_region
          _
        $region76: #{vit_forward.1} parent=11 // pred_fallthru
          _
        // Predicated region
        $region77: #{vit_forward.1} parent=11 // pred_check
          %p886 = pneg %p461
        $region78: #{vit_forward.1} parent=11 // pred_check_branch
          %888 = sbr.rel (%p886) target = $region80
        $region79: #{vit_forward.1} parent=11 // pred_region
          _
        $region80: #{vit_forward.1} parent=11 // pred_fallthru
          _
        // Predicated region
        $region81: #{vit_forward.1} parent=11 // pred_check
          %p889 = pneg %p482
        $region82: #{vit_forward.1} parent=11 // pred_check_branch
          %891 = sbr.rel (%p889) target = $region84
        $region83: #{vit_forward.1} parent=11 // pred_region
          _
        $region84: #{vit_forward.1} parent=11 // pred_fallthru
          _
        // Predicated region
        $region85: #{vit_forward.1} parent=11 // pred_check
          %p892 = pneg %p503
        $region86: #{vit_forward.1} parent=11 // pred_check_branch
          %894 = sbr.rel (%p892) target = $region88
        $region87: #{vit_forward.1} parent=11 // pred_region
          _
        $region88: #{vit_forward.1} parent=11 // pred_fallthru
          _
        // Predicated region
        $region89: #{vit_forward.1} parent=11 // pred_check
          %p895 = pneg %p524
        $region90: #{vit_forward.1} parent=11 // pred_check_branch
          %897 = sbr.rel (%p895) target = $region92
        $region91: #{vit_forward.1} parent=11 // pred_region
          _
        $region92: #{vit_forward.1} parent=11 // pred_fallthru
          _
        // Predicated region
        $region93: #{vit_forward.1} parent=11 // pred_check
          %p898 = pneg %p545
        $region94: #{vit_forward.1} parent=11 // pred_check_branch
          %900 = sbr.rel (%p898) target = $region96
        $region95: #{vit_forward.1} parent=11 // pred_region
          _
        $region96: #{vit_forward.1} parent=11 // pred_fallthru
          _
        // Predicated region
        $region97: #{vit_forward.1} parent=11 // pred_check
          %p901 = pneg %p566
        $region98: #{vit_forward.1} parent=11 // pred_check_branch
          %903 = sbr.rel (%p901) target = $region100
        $region99: #{vit_forward.1} parent=11 // pred_region
          _
        $region100: #{vit_forward.1} parent=11 // pred_fallthru
          _
        // Predicated region
        $region101: #{vit_forward.1} parent=11 // pred_check
          %p904 = pneg %p587
        $region102: #{vit_forward.1} parent=11 // pred_check_branch
          %906 = sbr.rel (%p904) target = $region104
        $region103: #{vit_forward.1} parent=11 // pred_region
          _
        $region104: #{vit_forward.1} parent=11 // pred_fallthru
          _
        // Predicated region
        $region105: #{vit_forward.1} parent=11 // pred_check
          %p907 = pneg %p608
        $region106: #{vit_forward.1} parent=11 // pred_check_branch
          %909 = sbr.rel (%p907) target = $region108
        $region107: #{vit_forward.1} parent=11 // pred_region
          _
        $region108: #{vit_forward.1} parent=11 // pred_fallthru
          _
        // Predicated region
        $region109: #{vit_forward.1} parent=11 // pred_check
          %p910 = pneg %p629
        $region110: #{vit_forward.1} parent=11 // pred_check_branch
          %912 = sbr.rel (%p910) target = $region112
        $region111: #{vit_forward.1} parent=11 // pred_region
          _
        $region112: #{vit_forward.1} parent=11 // pred_fallthru
          _
        // Predicated region
        $region113: #{vit_forward.1} parent=11 // pred_check
          %p913 = pneg %p650
        $region114: #{vit_forward.1} parent=11 // pred_check_branch
          %915 = sbr.rel (%p913) target = $region116
        $region115: #{vit_forward.1} parent=11 // pred_region
          _
        $region116: #{vit_forward.1} parent=11 // pred_fallthru
          _
        // Predicated region
        $region117: #{vit_forward.1} parent=11 // pred_check
          %p916 = pneg %p671
        $region118: #{vit_forward.1} parent=11 // pred_check_branch
          %918 = sbr.rel (%p916) target = $region120
        $region119: #{vit_forward.1} parent=11 // pred_region
          _
        $region120: #{vit_forward.1} parent=11 // pred_fallthru
          _
        // Predicated region
        $region121: #{vit_forward.1} parent=11 // pred_check
          %p919 = pneg %p692
        $region122: #{vit_forward.1} parent=11 // pred_check_branch
          %921 = sbr.rel (%p919) target = $region124
        $region123: #{vit_forward.1} parent=11 // pred_region
          _
        $region124: #{vit_forward.1} parent=11 // pred_fallthru
          _
        // Predicated region
        $region125: #{vit_forward.1} parent=11 // pred_check
          %p922 = pneg %p713
        $region126: #{vit_forward.1} parent=11 // pred_check_branch
          %924 = sbr.rel (%p922) target = $region128
        $region127: #{vit_forward.1} parent=11 // pred_region
          _
        $region128: #{vit_forward.1} parent=11 // pred_fallthru
          _
        // Predicated region
        $region129: #{vit_forward.1} parent=11 // pred_check
          %p925 = pneg %p734
        $region130: #{vit_forward.1} parent=11 // pred_check_branch
          %927 = sbr.rel (%p925) target = $region132
        $region131: #{vit_forward.1} parent=11 // pred_region
          _
        $region132: #{vit_forward.1} parent=11 // pred_fallthru
          _
        // Predicated region
        $region133: #{vit_forward.1} parent=11 // pred_check
          %p928 = pneg %p755
        $region134: #{vit_forward.1} parent=11 // pred_check_branch
          %930 = sbr.rel (%p928) target = $region136
        $region135: #{vit_forward.1} parent=11 // pred_region
          _
        $region136: #{vit_forward.1} parent=11 // pred_fallthru
          _
        // Predicated region
        $region137: #{vit_forward.1} parent=11 // pred_check
          %p931 = pneg %p776
        $region138: #{vit_forward.1} parent=11 // pred_check_branch
          %933 = sbr.rel (%p931) target = $region140
        $region139: #{vit_forward.1} parent=11 // pred_region
          _
        $region140: #{vit_forward.1} parent=11 // pred_fallthru
          _
        // Predicated region
        $region141: #{vit_forward.1} parent=11 // pred_check
          %p934 = pneg %p797
        $region142: #{vit_forward.1} parent=11 // pred_check_branch
          %936 = sbr.rel (%p934) target = $region144
        $region143: #{vit_forward.1} parent=11 // pred_region
          _
        $region144: #{vit_forward.1} parent=11 // pred_fallthru
          _
      $region12: #{vit_forward.1} parent=5 // pred_fallthru
        _
      %p937 = scmp.lt.s32.totalorder %s78, 2
      // Predicated region
      $region145: #{vit_forward.1} parent=5 // pred_check
        %p938 = pneg %p937
      $region146: #{vit_forward.1} parent=5 // pred_check_branch
        %940 = sbr.rel (%p938) target = $region148
      $region147: #{vit_forward.1} parent=5 // pred_region
        // Predicated region
        $region149: #{vit_forward.1} parent=147 // pred_check
          %p941 = pneg %p98
        $region150: #{vit_forward.1} parent=147 // pred_check_branch
          %943 = sbr.rel (%p941) target = $region152
        $region151: #{vit_forward.1} parent=147 // pred_region
          %p944 = scmp.lt.s32.totalorder %s78, 1
          %s945 = scalar_select %p944, %s78, 1
          %s946 = smul.addr %s945, 2
          %s947 = smul.addr %s946, 8
          %s948 = scalar_lea.vmem %s1, %s947
        $region152: #{vit_forward.1} parent=147 // pred_fallthru
          _
      $region148: #{vit_forward.1} parent=5 // pred_fallthru
        _
      %p949 = scmp.le.s32.totalorder 1, %s78
      %p950 = scmp.lt.s32.totalorder %s78, 3
      %p951 = pnand %p949, %p950
      %p952 = pneg %p951
      // Predicated region
      $region153: #{vit_forward.1} parent=5 // pred_check
        _
      $region154: #{vit_forward.1} parent=5 // pred_check_branch
        %954 = sbr.rel (%p951) target = $region156
      $region155: #{vit_forward.1} parent=5 // pred_region
        %s955 = ssub.s32 %s78, 1
        %p956 = scmp.lt.s32.totalorder %s83, 1
        %s957 = scalar_select %p956, %s83, 1
        %s958 = smul.addr %s957, 2
        %s959 = smul.addr %s958, 8
        %s960 = scalar_lea.vmem %s1, %s959
        %p961 = pneg %p104
        %p962 = pneg %p101
        %p963 = pneg %p125
        %p964 = pneg %p122
        %p965 = pneg %p146
        %p966 = pneg %p143
        %p967 = pneg %p167
        %p968 = pneg %p164
        %p969 = pneg %p188
        %p970 = pneg %p185
        %p971 = pneg %p209
        %p972 = pneg %p206
        %p973 = pneg %p230
        %p974 = pneg %p227
        %p975 = pneg %p251
        %p976 = pneg %p248
        %p977 = pneg %p272
        %p978 = pneg %p269
        %p979 = pneg %p293
        %p980 = pneg %p290
        %p981 = pneg %p314
        %p982 = pneg %p311
        %p983 = pneg %p335
        %p984 = pneg %p332
        %p985 = pneg %p356
        %p986 = pneg %p353
        %p987 = pneg %p377
        %p988 = pneg %p374
        %p989 = pneg %p398
        %p990 = pneg %p395
        %p991 = pneg %p419
        %p992 = pneg %p416
        %p993 = pneg %p440
        %p994 = pneg %p437
        %p995 = pneg %p461
        %p996 = pneg %p458
        %p997 = pneg %p482
        %p998 = pneg %p479
        %p999 = pneg %p503
        %p1000 = pneg %p500
        %p1001 = pneg %p524
        %p1002 = pneg %p521
        %p1003 = pneg %p545
        %p1004 = pneg %p542
        %p1005 = pneg %p566
        %p1006 = pneg %p563
        %p1007 = pneg %p587
        %p1008 = pneg %p584
        %p1009 = pneg %p608
        %p1010 = pneg %p605
        %p1011 = pneg %p629
        %p1012 = pneg %p626
        %p1013 = pneg %p650
        %p1014 = pneg %p647
        %p1015 = pneg %p671
        %p1016 = pneg %p668
        %p1017 = pneg %p692
        %p1018 = pneg %p689
        %p1019 = pneg %p713
        %p1020 = pneg %p710
        %p1021 = pneg %p734
        %p1022 = pneg %p731
        %p1023 = pneg %p755
        %p1024 = pneg %p752
        %p1025 = pneg %p776
        %p1026 = pneg %p773
        %p1027 = pneg %p797
        %p1028 = pneg %p794
        %p1029 = pneg %p823
        %p1030 = pneg %p820
        %s1031 = sand.u32 %s810, 1
        %s1032 = scalar_lea.sflag [#allocation3], %s1031
        %s1033 = sand.u32 %s810, 1
        %s1034 = scalar_lea.vmem [#allocation2], %s1033
        %p1035 = scmp.lt.s32.totalorder %s83, 1
        %s1036 = scalar_select %p1035, %s83, 1
        %s1037 = smul.addr %s1036, 2
        %s1038 = smul.addr %s1037, 8
        %s1039 = scalar_lea.vmem %s1, %s1038
        %v1040 = vld [vmem:[%s3] sm:$0xff]
        %v1041 = vld [vmem:[%s3 + $0x8] sm:$0xff]
        %v1042 = vld [vmem:[%s3 + $0x10] sm:$0xff]
        %v1043 = vld [vmem:[%s3 + $0x18] sm:$0xff]
        %v1044 = vld [vmem:[%s3 + $0x20] sm:$0xff]
        %v1045 = vld [vmem:[%s3 + $0x28] sm:$0xff]
        %v1046 = vld [vmem:[%s5] sm:$0x1]
        %v1047 = vld [vmem:[%s7] sm:$0x1]
        %v1048 = vld [vmem:[%s9] sm:$0xff]
        %v1049 = vld [vmem:[%s9 + $0x8] sm:$0xff]
        %v1050 = vld [vmem:[%s9 + $0x10] sm:$0x1]
        %v1051 = vld [vmem:[%s1039] sm:$0xff]
        %v1052 = vld [vmem:[%s1039 + $0x8] sm:$0xff]
        %v1054 = vperm.slane %v1046, 0
        %vm1056 = vcmask 392192
        %v1058 = vsel %vm1056, %v1051, 0
        %v1061 = vsel %vm1056, %v1052, 0
        %1063 = vmatpush.msra.mxu0 0.0
        %1064 = vmatpush.msra.mxu0 0.0
        %1065 = vmatpush.msra.mxu0 0.0
        %1066 = vmatpush.msra.mxu0 0.0
        %1067 = vmatpush.msra.mxu0 0.0
        %1068 = vmatpush.msra.mxu0 0.0
        %1069 = vmatpush.msra.mxu0 0.0
        %1070 = vmatpush.msra.mxu0 0.0
        %1071 = vmatpush.msra.mxu0 0.0
        %1072 = vmatpush.msra.mxu0 0.0
        %1073 = vmatpush.msra.mxu0 %v1045
        %1074 = vmatpush.msra.mxu0 %v1044
        %1075 = vmatpush.msra.mxu0 %v1043
        %1076 = vmatpush.msra.mxu0 %v1042
        %1077 = vmatpush.msra.mxu0 %v1041
        %1078 = vmatpush.msra.mxu0 %v1040
        %1079 = vmatmul.f32.gmra.mxu0 %v1058
        %v1080 = vpop.f32.mrf.mxu0
        %v1081 = vadd.f32 %v1054, %v1080
        %1082 = vmatmul.f32.gmra.mxu0 %v1061
        %v1083 = vpop.f32.mrf.mxu0
        %v1084 = vadd.f32 %v1054, %v1083
        %1085 = vdwg.mxu0
        %vm1088 = vcmask 1040384
        %v1089 = vrot.slane %v1081, 7
        %v1090 = vrot.slane %v1084, 7
        %v1091 = vsel %vm1088, %v1089, %v1090
        %v1095 = vsel %vm1088, %v1047, %v1089
        %v1096 = vadd.f32 %v1095, %v1048
        %v1097 = vadd.f32 %v1091, %v1049
        %v1098 = vadd.f32 %v1090, %v1050
        %v1099 = vld [vmem:[%s11] sm:$0x1]
        %v1100 = vld [vmem:[%s13] sm:$0x1]
        %v1101 = vld [vmem:[%s15] sm:$0xff]
        %v1102 = vld [vmem:[%s15 + $0x8] sm:$0xff]
        %v1103 = vld [vmem:[%s15 + $0x10] sm:$0xff]
        %v1104 = vld [vmem:[%s15 + $0x18] sm:$0xff]
        %v1105 = vld [vmem:[%s17] sm:$0x1]
        %v1106 = vld [vmem:[%s19] sm:$0xff]
        %v1107 = vld [vmem:[%s19 + $0x8] sm:$0xff]
        %v1108 = vld [vmem:[%s19 + $0x10] sm:$0xff]
        %v1109 = vld [vmem:[%s19 + $0x18] sm:$0xff]
        %v1110 = vld [vmem:[%s19 + $0x20] sm:$0xff]
        %v1111 = vld [vmem:[%s19 + $0x28] sm:$0xff]
        %v1112 = vld [vmem:[%s19 + $0x30] sm:$0xff]
        %v1113 = vld [vmem:[%s19 + $0x38] sm:$0xff]
        %v1114 = vld [vmem:[%s19 + $0x40] sm:$0xff]
        %v1115 = vld [vmem:[%s19 + $0x48] sm:$0xff]
        %v1116 = vld [vmem:[%s19 + $0x50] sm:$0xff]
        %v1117 = vld [vmem:[%s19 + $0x58] sm:$0xff]
        %v1118 = vld [vmem:[%s19 + $0x60] sm:$0xff]
        %v1119 = vld [vmem:[%s19 + $0x68] sm:$0xff]
        %v1120 = vld [vmem:[%s19 + $0x70] sm:$0xff]
        %v1121 = vld [vmem:[%s19 + $0x78] sm:$0xff]
        %v1122 = vld [vmem:[%s21] sm:$0xff]
        %v1123 = vld [vmem:[%s21 + $0x8] sm:$0xff]
        %v1124 = vld [vmem:[%s21 + $0x10] sm:$0xff]
        %v1125 = vld [vmem:[%s21 + $0x18] sm:$0xff]
        %v1126 = vld [vmem:[%s23] sm:$0x1]
        %v1127 = vld [vmem:[%s25] sm:$0x1]
        %v1128 = vld [vmem:[%s27] sm:$0x1]
        %v1129 = vld [vmem:[%s29] sm:$0xff]
        %v1130 = vld [vmem:[%s29 + $0x8] sm:$0xff]
        %v1131 = vld [vmem:[%s29 + $0x10] sm:$0xff]
        %v1132 = vld [vmem:[%s29 + $0x18] sm:$0xff]
        %v1133 = vld [vmem:[%s31] sm:$0x1]
        %v1134 = vld [vmem:[%s33] sm:$0xff]
        %v1135 = vld [vmem:[%s33 + $0x8] sm:$0xff]
        %v1136 = vld [vmem:[%s33 + $0x10] sm:$0xff]
        %v1137 = vld [vmem:[%s33 + $0x18] sm:$0xff]
        %v1138 = vld [vmem:[%s33 + $0x20] sm:$0xff]
        %v1139 = vld [vmem:[%s33 + $0x28] sm:$0xff]
        %v1140 = vld [vmem:[%s33 + $0x30] sm:$0xff]
        %v1141 = vld [vmem:[%s33 + $0x38] sm:$0xff]
        %v1142 = vld [vmem:[%s33 + $0x40] sm:$0xff]
        %v1143 = vld [vmem:[%s33 + $0x48] sm:$0xff]
        %v1144 = vld [vmem:[%s33 + $0x50] sm:$0xff]
        %v1145 = vld [vmem:[%s33 + $0x58] sm:$0xff]
        %v1146 = vld [vmem:[%s33 + $0x60] sm:$0xff]
        %v1147 = vld [vmem:[%s33 + $0x68] sm:$0xff]
        %v1148 = vld [vmem:[%s33 + $0x70] sm:$0xff]
        %v1149 = vld [vmem:[%s33 + $0x78] sm:$0xff]
        %v1150 = vld [vmem:[%s35] sm:$0x1]
        %vm1151 = vcmask 261120
        %v1152 = vsel %vm1151, %v1096, 0.0
        %1153 = vadd.xlane.f32.xlu0 %v1152
        %v1154 = vpop.xlane.xlu0 %1153
        %v1155 = vsel %vm1151, %v1097, 0.0
        %1156 = vadd.xlane.f32.xlu0 %v1155
        %v1157 = vpop.xlane.xlu0 %1156
        %vm1158 = vcmask 253952
        %v1159 = vsel %vm1158, %v1098, 0.0
        %1160 = vadd.xlane.f32.xlu0 %v1159
        %v1161 = vpop.xlane.xlu0 %1160
        %v1162 = vrcp.pop 32.0
        %v1163 = vmul.f32 32.0, %v1162
        %v1164 = vsub.f32 1.0, %v1163
        %v1165 = vmul.f32 %v1162, %v1164
        %v1166 = vadd.f32 %v1162, %v1165
        %vm1167 = vweird.f32 %v1162
        %v1168 = vsel %vm1167, %v1162, %v1166
        %v1169 = vmul.f32 %v1154, %v1168
        %v1170 = vmul.f32 %v1157, %v1168
        %v1171 = vmul.f32 %v1161, %v1168
        %v1172 = vsub.f32 %v1096, %v1169
        %v1173 = vsub.f32 %v1097, %v1170
        %v1174 = vsub.f32 %v1098, %v1171
        %v1175 = vmul.f32 %v1172, %v1172
        %v1176 = vmul.f32 %v1173, %v1173
        %v1177 = vmul.f32 %v1174, %v1174
        %v1178 = vsel %vm1151, %v1175, 0.0
        %1179 = vadd.xlane.f32.xlu0 %v1178
        %v1180 = vpop.xlane.xlu0 %1179
        %v1181 = vsel %vm1151, %v1176, 0.0
        %1182 = vadd.xlane.f32.xlu0 %v1181
        %v1183 = vpop.xlane.xlu0 %1182
        %v1184 = vsel %vm1158, %v1177, 0.0
        %1185 = vadd.xlane.f32.xlu0 %v1184
        %v1186 = vpop.xlane.xlu0 %1185
        %v1187 = vmul.f32 %v1180, %v1168
        %v1188 = vmul.f32 %v1183, %v1168
        %v1189 = vmul.f32 %v1186, %v1168
        %v1190 = vadd.f32 %v1187, 1e-06
        %v1191 = vadd.f32 %v1188, 1e-06
        %v1192 = vadd.f32 %v1189, 1e-06
        %v1193 = vrsqrt.pop %v1190
        %v1194 = vmul.f32 %v1193, %v1190
        %v1195 = vmul.f32 %v1194, %v1193
        %v1196 = vmul.f32 0.5, %v1195
        %v1197 = vsub.f32 1.5, %v1196
        %v1198 = vmul.f32 %v1193, %v1197
        %vm1199 = vweird.f32 %v1190
        %vm1200 = vweird.f32 %v1193
        %vm1201 = vmor %vm1199, %vm1200
        %v1202 = vsel %vm1201, %v1193, %v1198
        %v1203 = vrsqrt.pop %v1191
        %v1204 = vmul.f32 %v1203, %v1191
        %v1205 = vmul.f32 %v1204, %v1203
        %v1206 = vmul.f32 0.5, %v1205
        %v1207 = vsub.f32 1.5, %v1206
        %v1208 = vmul.f32 %v1203, %v1207
        %vm1209 = vweird.f32 %v1191
        %vm1210 = vweird.f32 %v1203
        %vm1211 = vmor %vm1209, %vm1210
        %v1212 = vsel %vm1211, %v1203, %v1208
        %v1213 = vrsqrt.pop %v1192
        %v1214 = vmul.f32 %v1213, %v1192
        %v1215 = vmul.f32 %v1214, %v1213
        %v1216 = vmul.f32 0.5, %v1215
        %v1217 = vsub.f32 1.5, %v1216
        %v1218 = vmul.f32 %v1213, %v1217
        %vm1219 = vweird.f32 %v1192
        %vm1220 = vweird.f32 %v1213
        %vm1221 = vmor %vm1219, %vm1220
        %v1222 = vsel %vm1221, %v1213, %v1218
        %v1223 = vmul.f32 %v1172, %v1202
        %v1224 = vmul.f32 %v1173, %v1212
        %v1225 = vmul.f32 %v1174, %v1222
        %v1227 = vperm.slane %v1099, 0
        %v1229 = vmul.f32 %v1223, %v1227
        %v1230 = vmul.f32 %v1224, %v1227
        %v1231 = vmul.f32 %v1225, %v1227
        %v1233 = vperm.slane %v1100, 0
        %v1235 = vadd.f32 %v1229, %v1233
        %v1236 = vadd.f32 %v1230, %v1233
        %v1237 = vadd.f32 %v1231, %v1233
        %v1239 = vperm.slane %v1105, 0
        %v1242 = vsel %vm1151, %v1235, 0
        %v1245 = vsel %vm1151, %v1236, 0
        %v1248 = vsel %vm1151, %v1237, 0
        %1250 = vmatpush.msra.mxu0 0.0
        %1251 = vmatpush.msra.mxu0 0.0
        %1252 = vmatpush.msra.mxu0 0.0
        %1253 = vmatpush.msra.mxu0 0.0
        %1254 = vmatpush.msra.mxu0 0.0
        %1255 = vmatpush.msra.mxu0 0.0
        %1256 = vmatpush.msra.mxu0 0.0
        %1257 = vmatpush.msra.mxu0 0.0
        %1258 = vmatpush.msra.mxu0 0.0
        %1259 = vmatpush.msra.mxu0 0.0
        %1260 = vmatpush.msra.mxu0 0.0
        %1261 = vmatpush.msra.mxu0 0.0
        %1262 = vmatpush.msra.mxu0 %v1104
        %1263 = vmatpush.msra.mxu0 %v1103
        %1264 = vmatpush.msra.mxu0 %v1102
        %1265 = vmatpush.msra.mxu0 %v1101
        %1266 = vmatmul.f32.gmra.mxu0 %v1242
        %v1267 = vpop.f32.mrf.mxu0
        %v1268 = vadd.f32 %v1239, %v1267
        %1269 = vmatmul.f32.gmra.mxu0 %v1245
        %v1270 = vpop.f32.mrf.mxu0
        %v1271 = vadd.f32 %v1239, %v1270
        %1272 = vmatmul.f32.gmra.mxu0 %v1248
        %v1273 = vpop.f32.mrf.mxu0
        %v1274 = vadd.f32 %v1239, %v1273
        %1275 = vdwg.mxu0
        %1279 = vrot.lane.b32.xlu0 %v1268, 120
        %v1280 = vpop.permute.xlu0 %1279
        %1281 = vrot.lane.b32.xlu0 %v1271, 120
        %v1282 = vpop.permute.xlu0 %1281
        %1283 = vrot.lane.b32.xlu0 %v1274, 120
        %v1284 = vpop.permute.xlu0 %1283
        %vm1285 = vcmask 64512
        %v1286 = vsel %vm1285, %v1280, 0
        %v1288 = vsel %vm1285, %v1282, 0
        %v1290 = vsel %vm1285, %v1284, 0
        %v1292 = vsel %vm1285, %v1268, 0
        %v1294 = vsel %vm1285, %v1271, 0
        %v1296 = vsel %vm1285, %v1274, 0
        %1298 = vmatpush.xpose.msra.mxu0 0.0
        %1299 = vmatpush.xpose.msra.mxu0 0.0
        %1300 = vmatpush.xpose.msra.mxu0 0.0
        %1301 = vmatpush.xpose.msra.mxu0 0.0
        %1302 = vmatpush.xpose.msra.mxu0 0.0
        %1303 = vmatpush.xpose.msra.mxu0 0.0
        %1304 = vmatpush.xpose.msra.mxu0 0.0
        %1305 = vmatpush.xpose.msra.mxu0 0.0
        %1306 = vmatpush.xpose.msra.mxu0 0.0
        %1307 = vmatpush.xpose.msra.mxu0 0.0
        %1308 = vmatpush.xpose.msra.mxu0 0.0
        %1309 = vmatpush.xpose.msra.mxu0 0.0
        %1310 = vmatpush.xpose.msra.mxu0 0.0
        %1311 = vmatpush.xpose.msra.mxu0 %v1296
        %1312 = vmatpush.xpose.msra.mxu0 %v1294
        %1313 = vmatpush.xpose.msra.mxu0 %v1292
        %1314 = vmatmul.f32.gmra.mxu0 %v1286
        %v1315 = vpop.f32.mrf.mxu0
        %v1316 = vadd.f32 0.0, %v1315
        %1317 = vmatmul.f32.gmra.mxu0 %v1288
        %v1318 = vpop.f32.mrf.mxu0
        %v1319 = vadd.f32 0.0, %v1318
        %1320 = vmatmul.f32.gmra.mxu0 %v1290
        %v1321 = vpop.f32.mrf.mxu0
        %v1322 = vadd.f32 0.0, %v1321
        %1323 = vdwg.mxu0
        %v1324 = vmul.f32 %v1316, 0.35355338
        %v1325 = vmul.f32 %v1319, 0.35355338
        %v1326 = vmul.f32 %v1322, 0.35355338
        %vm1327 = vcmask 138240
        %v1328 = vsel %vm1327, %v1324, -inf
        %1329 = vmax.xlane.f32.xlu0 %v1328
        %v1330 = vpop.xlane.xlu0 %1329
        %v1331 = vsel %vm1327, %v1325, -inf
        %1332 = vmax.xlane.f32.xlu0 %v1331
        %v1333 = vpop.xlane.xlu0 %1332
        %vm1334 = vcmask 131072
        %v1335 = vsel %vm1334, %v1326, -inf
        %1336 = vmax.xlane.f32.xlu0 %v1335
        %v1337 = vpop.xlane.xlu0 %1336
        %v1338 = vsub.f32 %v1324, %v1330
        %v1339 = vsub.f32 %v1325, %v1333
        %v1340 = vsub.f32 %v1326, %v1337
        %v1341 = vmul.f32 %v1338, 1.442695
        %v1342 = vpow.pop %v1341
        %v1343 = vmul.f32 %v1339, 1.442695
        %v1344 = vpow.pop %v1343
        %v1345 = vmul.f32 %v1340, 1.442695
        %v1346 = vpow.pop %v1345
        %v1347 = vsel %vm1327, %v1342, 0.0
        %1348 = vadd.xlane.f32.xlu0 %v1347
        %v1349 = vpop.xlane.xlu0 %1348
        %v1350 = vsel %vm1327, %v1344, 0.0
        %1351 = vadd.xlane.f32.xlu0 %v1350
        %v1352 = vpop.xlane.xlu0 %1351
        %v1353 = vsel %vm1334, %v1346, 0.0
        %1354 = vadd.xlane.f32.xlu0 %v1353
        %v1355 = vpop.xlane.xlu0 %1354
        %v1356 = vrcp.pop %v1349
        %v1357 = vmul.f32 %v1349, %v1356
        %v1358 = vsub.f32 1.0, %v1357
        %v1359 = vmul.f32 %v1356, %v1358
        %v1360 = vadd.f32 %v1356, %v1359
        %vm1361 = vweird.f32 %v1349
        %vm1362 = vweird.f32 %v1356
        %vm1363 = vmor %vm1361, %vm1362
        %v1364 = vsel %vm1363, %v1356, %v1360
        %v1365 = vand.u32 2147483647, %v1349
        %vm1366 = vcmp.eq.f32.partialorder %v1365, 8.507059e+37
        %v1367 = vand.u32 %v1349, 2147483648
        %v1368 = vor.u32 1.1754944e-38, %v1367
        %v1369 = vsel %vm1366, %v1368, %v1364
        %v1370 = vmul.f32 %v1342, %v1369
        %v1371 = vrcp.pop %v1352
        %v1372 = vmul.f32 %v1352, %v1371
        %v1373 = vsub.f32 1.0, %v1372
        %v1374 = vmul.f32 %v1371, %v1373
        %v1375 = vadd.f32 %v1371, %v1374
        %vm1376 = vweird.f32 %v1352
        %vm1377 = vweird.f32 %v1371
        %vm1378 = vmor %vm1376, %vm1377
        %v1379 = vsel %vm1378, %v1371, %v1375
        %v1380 = vand.u32 2147483647, %v1352
        %vm1381 = vcmp.eq.f32.partialorder %v1380, 8.507059e+37
        %v1382 = vand.u32 %v1352, 2147483648
        %v1383 = vor.u32 1.1754944e-38, %v1382
        %v1384 = vsel %vm1381, %v1383, %v1379
        %v1385 = vmul.f32 %v1344, %v1384
        %v1386 = vrcp.pop %v1355
        %v1387 = vmul.f32 %v1355, %v1386
        %v1388 = vsub.f32 1.0, %v1387
        %v1389 = vmul.f32 %v1386, %v1388
        %v1390 = vadd.f32 %v1386, %v1389
        %vm1391 = vweird.f32 %v1355
        %vm1392 = vweird.f32 %v1386
        %vm1393 = vmor %vm1391, %vm1392
        %v1394 = vsel %vm1393, %v1386, %v1390
        %v1395 = vand.u32 2147483647, %v1355
        %vm1396 = vcmp.eq.f32.partialorder %v1395, 8.507059e+37
        %v1397 = vand.u32 %v1355, 2147483648
        %v1398 = vor.u32 1.1754944e-38, %v1397
        %v1399 = vsel %vm1396, %v1398, %v1394
        %v1400 = vmul.f32 %v1346, %v1399
        %1401 = vrot.lane.b32.xlu0 %v1268, 112
        %v1402 = vpop.permute.xlu0 %1401
        %1403 = vrot.lane.b32.xlu0 %v1271, 112
        %v1404 = vpop.permute.xlu0 %1403
        %1405 = vrot.lane.b32.xlu0 %v1274, 112
        %v1406 = vpop.permute.xlu0 %1405
        %v1410 = vsel %vm1327, %v1370, 0
        %v1413 = vsel %vm1327, %v1385, 0
        %v1416 = vsel %vm1327, %v1400, 0
        %v1418 = vsel %vm1088, %v1406, 0
        %1420 = vmatpush.msra.mxu0 0.0
        %1421 = vmatpush.msra.mxu0 0.0
        %1422 = vmatpush.msra.mxu0 0.0
        %1423 = vmatpush.msra.mxu0 0.0
        %1424 = vmatpush.msra.mxu0 0.0
        %1425 = vmatpush.msra.mxu0 0.0
        %1426 = vmatpush.msra.mxu0 0.0
        %1427 = vmatpush.msra.mxu0 0.0
        %1428 = vmatpush.msra.mxu0 0.0
        %1429 = vmatpush.msra.mxu0 0.0
        %1430 = vmatpush.msra.mxu0 0.0
        %1431 = vmatpush.msra.mxu0 0.0
        %1432 = vmatpush.msra.mxu0 0.0
        %1433 = vmatpush.msra.mxu0 %v1418
        %1434 = vmatpush.msra.mxu0 %v1404
        %1435 = vmatpush.msra.mxu0 %v1402
        %1436 = vmatmul.f32.gmra.mxu0 %v1410
        %v1437 = vpop.f32.mrf.mxu0
        %v1438 = vadd.f32 0.0, %v1437
        %1439 = vmatmul.f32.gmra.mxu0 %v1413
        %v1440 = vpop.f32.mrf.mxu0
        %v1441 = vadd.f32 0.0, %v1440
        %1442 = vmatmul.f32.gmra.mxu0 %v1416
        %v1443 = vpop.f32.mrf.mxu0
        %v1444 = vadd.f32 0.0, %v1443
        %1445 = vdwg.mxu0
        %1449 = vrot.lane.b32.xlu0 %v1438, 24
        %v1450 = vpop.permute.xlu0 %1449
        %1451 = vrot.lane.b32.xlu0 %v1441, 24
        %v1452 = vpop.permute.xlu0 %1451
        %1453 = vrot.lane.b32.xlu0 %v1444, 24
        %v1454 = vpop.permute.xlu0 %1453
        %v1458 = vadd.f32 %v1268, %v1450
        %v1459 = vadd.f32 %v1271, %v1452
        %v1460 = vadd.f32 %v1274, %v1454
        %1461 = vrot.lane.b32.xlu0 %v1268, 88
        %v1462 = vpop.permute.xlu0 %1461
        %1463 = vrot.lane.b32.xlu0 %v1271, 88
        %v1464 = vpop.permute.xlu0 %1463
        %1465 = vrot.lane.b32.xlu0 %v1274, 88
        %v1466 = vpop.permute.xlu0 %1465
        %1467 = vrot.lane.b32.xlu0 %v1268, 96
        %v1468 = vpop.permute.xlu0 %1467
        %1469 = vrot.lane.b32.xlu0 %v1271, 96
        %v1470 = vpop.permute.xlu0 %1469
        %1471 = vrot.lane.b32.xlu0 %v1274, 96
        %v1472 = vpop.permute.xlu0 %1471
        %v1473 = vsel %vm1285, %v1462, 0
        %v1475 = vsel %vm1285, %v1464, 0
        %v1477 = vsel %vm1285, %v1466, 0
        %v1479 = vsel %vm1285, %v1468, 0
        %v1481 = vsel %vm1285, %v1470, 0
        %v1483 = vsel %vm1285, %v1472, 0
        %1485 = vmatpush.xpose.msra.mxu0 0.0
        %1486 = vmatpush.xpose.msra.mxu0 0.0
        %1487 = vmatpush.xpose.msra.mxu0 0.0
        %1488 = vmatpush.xpose.msra.mxu0 0.0
        %1489 = vmatpush.xpose.msra.mxu0 0.0
        %1490 = vmatpush.xpose.msra.mxu0 0.0
        %1491 = vmatpush.xpose.msra.mxu0 0.0
        %1492 = vmatpush.xpose.msra.mxu0 0.0
        %1493 = vmatpush.xpose.msra.mxu0 0.0
        %1494 = vmatpush.xpose.msra.mxu0 0.0
        %1495 = vmatpush.xpose.msra.mxu0 0.0
        %1496 = vmatpush.xpose.msra.mxu0 0.0
        %1497 = vmatpush.xpose.msra.mxu0 0.0
        %1498 = vmatpush.xpose.msra.mxu0 %v1483
        %1499 = vmatpush.xpose.msra.mxu0 %v1481
        %1500 = vmatpush.xpose.msra.mxu0 %v1479
        %1501 = vmatmul.f32.gmra.mxu0 %v1473
        %v1502 = vpop.f32.mrf.mxu0
        %v1503 = vadd.f32 0.0, %v1502
        %1504 = vmatmul.f32.gmra.mxu0 %v1475
        %v1505 = vpop.f32.mrf.mxu0
        %v1506 = vadd.f32 0.0, %v1505
        %1507 = vmatmul.f32.gmra.mxu0 %v1477
        %v1508 = vpop.f32.mrf.mxu0
        %v1509 = vadd.f32 0.0, %v1508
        %1510 = vdwg.mxu0
        %v1511 = vmul.f32 %v1503, 0.35355338
        %v1512 = vmul.f32 %v1506, 0.35355338
        %v1513 = vmul.f32 %v1509, 0.35355338
        %v1514 = vsel %vm1327, %v1511, -inf
        %1515 = vmax.xlane.f32.xlu0 %v1514
        %v1516 = vpop.xlane.xlu0 %1515
        %v1517 = vsel %vm1327, %v1512, -inf
        %1518 = vmax.xlane.f32.xlu0 %v1517
        %v1519 = vpop.xlane.xlu0 %1518
        %v1520 = vsel %vm1334, %v1513, -inf
        %1521 = vmax.xlane.f32.xlu0 %v1520
        %v1522 = vpop.xlane.xlu0 %1521
        %v1523 = vsub.f32 %v1511, %v1516
        %v1524 = vsub.f32 %v1512, %v1519
        %v1525 = vsub.f32 %v1513, %v1522
        %v1526 = vmul.f32 %v1523, 1.442695
        %v1527 = vpow.pop %v1526
        %v1528 = vmul.f32 %v1524, 1.442695
        %v1529 = vpow.pop %v1528
        %v1530 = vmul.f32 %v1525, 1.442695
        %v1531 = vpow.pop %v1530
        %v1532 = vsel %vm1327, %v1527, 0.0
        %1533 = vadd.xlane.f32.xlu0 %v1532
        %v1534 = vpop.xlane.xlu0 %1533
        %v1535 = vsel %vm1327, %v1529, 0.0
        %1536 = vadd.xlane.f32.xlu0 %v1535
        %v1537 = vpop.xlane.xlu0 %1536
        %v1538 = vsel %vm1334, %v1531, 0.0
        %1539 = vadd.xlane.f32.xlu0 %v1538
        %v1540 = vpop.xlane.xlu0 %1539
        %v1541 = vrcp.pop %v1534
        %v1542 = vmul.f32 %v1534, %v1541
        %v1543 = vsub.f32 1.0, %v1542
        %v1544 = vmul.f32 %v1541, %v1543
        %v1545 = vadd.f32 %v1541, %v1544
        %vm1546 = vweird.f32 %v1534
        %vm1547 = vweird.f32 %v1541
        %vm1548 = vmor %vm1546, %vm1547
        %v1549 = vsel %vm1548, %v1541, %v1545
        %v1550 = vand.u32 2147483647, %v1534
        %vm1551 = vcmp.eq.f32.partialorder %v1550, 8.507059e+37
        %v1552 = vand.u32 %v1534, 2147483648
        %v1553 = vor.u32 1.1754944e-38, %v1552
        %v1554 = vsel %vm1551, %v1553, %v1549
        %v1555 = vmul.f32 %v1527, %v1554
        %v1556 = vrcp.pop %v1537
        %v1557 = vmul.f32 %v1537, %v1556
        %v1558 = vsub.f32 1.0, %v1557
        %v1559 = vmul.f32 %v1556, %v1558
        %v1560 = vadd.f32 %v1556, %v1559
        %vm1561 = vweird.f32 %v1537
        %vm1562 = vweird.f32 %v1556
        %vm1563 = vmor %vm1561, %vm1562
        %v1564 = vsel %vm1563, %v1556, %v1560
        %v1565 = vand.u32 2147483647, %v1537
        %vm1566 = vcmp.eq.f32.partialorder %v1565, 8.507059e+37
        %v1567 = vand.u32 %v1537, 2147483648
        %v1568 = vor.u32 1.1754944e-38, %v1567
        %v1569 = vsel %vm1566, %v1568, %v1564
        %v1570 = vmul.f32 %v1529, %v1569
        %v1571 = vrcp.pop %v1540
        %v1572 = vmul.f32 %v1540, %v1571
        %v1573 = vsub.f32 1.0, %v1572
        %v1574 = vmul.f32 %v1571, %v1573
        %v1575 = vadd.f32 %v1571, %v1574
        %vm1576 = vweird.f32 %v1540
        %vm1577 = vweird.f32 %v1571
        %vm1578 = vmor %vm1576, %vm1577
        %v1579 = vsel %vm1578, %v1571, %v1575
        %v1580 = vand.u32 2147483647, %v1540
        %vm1581 = vcmp.eq.f32.partialorder %v1580, 8.507059e+37
        %v1582 = vand.u32 %v1540, 2147483648
        %v1583 = vor.u32 1.1754944e-38, %v1582
        %v1584 = vsel %vm1581, %v1583, %v1579
        %v1585 = vmul.f32 %v1531, %v1584
        %1586 = vrot.lane.b32.xlu0 %v1268, 80
        %v1587 = vpop.permute.xlu0 %1586
        %1588 = vrot.lane.b32.xlu0 %v1271, 80
        %v1589 = vpop.permute.xlu0 %1588
        %1590 = vrot.lane.b32.xlu0 %v1274, 80
        %v1591 = vpop.permute.xlu0 %1590
        %v1595 = vsel %vm1327, %v1555, 0
        %v1598 = vsel %vm1327, %v1570, 0
        %v1601 = vsel %vm1327, %v1585, 0
        %v1603 = vsel %vm1088, %v1591, 0
        %1605 = vmatpush.msra.mxu0 0.0
        %1606 = vmatpush.msra.mxu0 0.0
        %1607 = vmatpush.msra.mxu0 0.0
        %1608 = vmatpush.msra.mxu0 0.0
        %1609 = vmatpush.msra.mxu0 0.0
        %1610 = vmatpush.msra.mxu0 0.0
        %1611 = vmatpush.msra.mxu0 0.0
        %1612 = vmatpush.msra.mxu0 0.0
        %1613 = vmatpush.msra.mxu0 0.0
        %1614 = vmatpush.msra.mxu0 0.0
        %1615 = vmatpush.msra.mxu0 0.0
        %1616 = vmatpush.msra.mxu0 0.0
        %1617 = vmatpush.msra.mxu0 0.0
        %1618 = vmatpush.msra.mxu0 %v1603
        %1619 = vmatpush.msra.mxu0 %v1589
        %1620 = vmatpush.msra.mxu0 %v1587
        %1621 = vmatmul.f32.gmra.mxu0 %v1595
        %v1622 = vpop.f32.mrf.mxu0
        %v1623 = vadd.f32 0.0, %v1622
        %1624 = vmatmul.f32.gmra.mxu0 %v1598
        %v1625 = vpop.f32.mrf.mxu0
        %v1626 = vadd.f32 0.0, %v1625
        %1627 = vmatmul.f32.gmra.mxu0 %v1601
        %v1628 = vpop.f32.mrf.mxu0
        %v1629 = vadd.f32 0.0, %v1628
        %1630 = vdwg.mxu0
        %1634 = vrot.lane.b32.xlu0 %v1623, 56
        %v1635 = vpop.permute.xlu0 %1634
        %1636 = vrot.lane.b32.xlu0 %v1626, 56
        %v1637 = vpop.permute.xlu0 %1636
        %1638 = vrot.lane.b32.xlu0 %v1629, 56
        %v1639 = vpop.permute.xlu0 %1638
        %v1643 = vadd.f32 %v1268, %v1635
        %v1644 = vadd.f32 %v1271, %v1637
        %v1645 = vadd.f32 %v1274, %v1639
        %1646 = vrot.lane.b32.xlu0 %v1268, 56
        %v1647 = vpop.permute.xlu0 %1646
        %1648 = vrot.lane.b32.xlu0 %v1271, 56
        %v1649 = vpop.permute.xlu0 %1648
        %1650 = vrot.lane.b32.xlu0 %v1274, 56
        %v1651 = vpop.permute.xlu0 %1650
        %1652 = vrot.lane.b32.xlu0 %v1268, 64
        %v1653 = vpop.permute.xlu0 %1652
        %1654 = vrot.lane.b32.xlu0 %v1271, 64
        %v1655 = vpop.permute.xlu0 %1654
        %1656 = vrot.lane.b32.xlu0 %v1274, 64
        %v1657 = vpop.permute.xlu0 %1656
        %v1658 = vsel %vm1285, %v1647, 0
        %v1660 = vsel %vm1285, %v1649, 0
        %v1662 = vsel %vm1285, %v1651, 0
        %v1664 = vsel %vm1285, %v1653, 0
        %v1666 = vsel %vm1285, %v1655, 0
        %v1668 = vsel %vm1285, %v1657, 0
        %1670 = vmatpush.xpose.msra.mxu0 0.0
        %1671 = vmatpush.xpose.msra.mxu0 0.0
        %1672 = vmatpush.xpose.msra.mxu0 0.0
        %1673 = vmatpush.xpose.msra.mxu0 0.0
        %1674 = vmatpush.xpose.msra.mxu0 0.0
        %1675 = vmatpush.xpose.msra.mxu0 0.0
        %1676 = vmatpush.xpose.msra.mxu0 0.0
        %1677 = vmatpush.xpose.msra.mxu0 0.0
        %1678 = vmatpush.xpose.msra.mxu0 0.0
        %1679 = vmatpush.xpose.msra.mxu0 0.0
        %1680 = vmatpush.xpose.msra.mxu0 0.0
        %1681 = vmatpush.xpose.msra.mxu0 0.0
        %1682 = vmatpush.xpose.msra.mxu0 0.0
        %1683 = vmatpush.xpose.msra.mxu0 %v1668
        %1684 = vmatpush.xpose.msra.mxu0 %v1666
        %1685 = vmatpush.xpose.msra.mxu0 %v1664
        %1686 = vmatmul.f32.gmra.mxu0 %v1658
        %v1687 = vpop.f32.mrf.mxu0
        %v1688 = vadd.f32 0.0, %v1687
        %1689 = vmatmul.f32.gmra.mxu0 %v1660
        %v1690 = vpop.f32.mrf.mxu0
        %v1691 = vadd.f32 0.0, %v1690
        %1692 = vmatmul.f32.gmra.mxu0 %v1662
        %v1693 = vpop.f32.mrf.mxu0
        %v1694 = vadd.f32 0.0, %v1693
        %1695 = vdwg.mxu0
        %v1696 = vmul.f32 %v1688, 0.35355338
        %v1697 = vmul.f32 %v1691, 0.35355338
        %v1698 = vmul.f32 %v1694, 0.35355338
        %v1699 = vsel %vm1327, %v1696, -inf
        %1700 = vmax.xlane.f32.xlu0 %v1699
        %v1701 = vpop.xlane.xlu0 %1700
        %v1702 = vsel %vm1327, %v1697, -inf
        %1703 = vmax.xlane.f32.xlu0 %v1702
        %v1704 = vpop.xlane.xlu0 %1703
        %v1705 = vsel %vm1334, %v1698, -inf
        %1706 = vmax.xlane.f32.xlu0 %v1705
        %v1707 = vpop.xlane.xlu0 %1706
        %v1708 = vsub.f32 %v1696, %v1701
        %v1709 = vsub.f32 %v1697, %v1704
        %v1710 = vsub.f32 %v1698, %v1707
        %v1711 = vmul.f32 %v1708, 1.442695
        %v1712 = vpow.pop %v1711
        %v1713 = vmul.f32 %v1709, 1.442695
        %v1714 = vpow.pop %v1713
        %v1715 = vmul.f32 %v1710, 1.442695
        %v1716 = vpow.pop %v1715
        %v1717 = vsel %vm1327, %v1712, 0.0
        %1718 = vadd.xlane.f32.xlu0 %v1717
        %v1719 = vpop.xlane.xlu0 %1718
        %v1720 = vsel %vm1327, %v1714, 0.0
        %1721 = vadd.xlane.f32.xlu0 %v1720
        %v1722 = vpop.xlane.xlu0 %1721
        %v1723 = vsel %vm1334, %v1716, 0.0
        %1724 = vadd.xlane.f32.xlu0 %v1723
        %v1725 = vpop.xlane.xlu0 %1724
        %v1726 = vrcp.pop %v1719
        %v1727 = vmul.f32 %v1719, %v1726
        %v1728 = vsub.f32 1.0, %v1727
        %v1729 = vmul.f32 %v1726, %v1728
        %v1730 = vadd.f32 %v1726, %v1729
        %vm1731 = vweird.f32 %v1719
        %vm1732 = vweird.f32 %v1726
        %vm1733 = vmor %vm1731, %vm1732
        %v1734 = vsel %vm1733, %v1726, %v1730
        %v1735 = vand.u32 2147483647, %v1719
        %vm1736 = vcmp.eq.f32.partialorder %v1735, 8.507059e+37
        %v1737 = vand.u32 %v1719, 2147483648
        %v1738 = vor.u32 1.1754944e-38, %v1737
        %v1739 = vsel %vm1736, %v1738, %v1734
        %v1740 = vmul.f32 %v1712, %v1739
        %v1741 = vrcp.pop %v1722
        %v1742 = vmul.f32 %v1722, %v1741
        %v1743 = vsub.f32 1.0, %v1742
        %v1744 = vmul.f32 %v1741, %v1743
        %v1745 = vadd.f32 %v1741, %v1744
        %vm1746 = vweird.f32 %v1722
        %vm1747 = vweird.f32 %v1741
        %vm1748 = vmor %vm1746, %vm1747
        %v1749 = vsel %vm1748, %v1741, %v1745
        %v1750 = vand.u32 2147483647, %v1722
        %vm1751 = vcmp.eq.f32.partialorder %v1750, 8.507059e+37
        %v1752 = vand.u32 %v1722, 2147483648
        %v1753 = vor.u32 1.1754944e-38, %v1752
        %v1754 = vsel %vm1751, %v1753, %v1749
        %v1755 = vmul.f32 %v1714, %v1754
        %v1756 = vrcp.pop %v1725
        %v1757 = vmul.f32 %v1725, %v1756
        %v1758 = vsub.f32 1.0, %v1757
        %v1759 = vmul.f32 %v1756, %v1758
        %v1760 = vadd.f32 %v1756, %v1759
        %vm1761 = vweird.f32 %v1725
        %vm1762 = vweird.f32 %v1756
        %vm1763 = vmor %vm1761, %vm1762
        %v1764 = vsel %vm1763, %v1756, %v1760
        %v1765 = vand.u32 2147483647, %v1725
        %vm1766 = vcmp.eq.f32.partialorder %v1765, 8.507059e+37
        %v1767 = vand.u32 %v1725, 2147483648
        %v1768 = vor.u32 1.1754944e-38, %v1767
        %v1769 = vsel %vm1766, %v1768, %v1764
        %v1770 = vmul.f32 %v1716, %v1769
        %1771 = vrot.lane.b32.xlu0 %v1268, 48
        %v1772 = vpop.permute.xlu0 %1771
        %1773 = vrot.lane.b32.xlu0 %v1271, 48
        %v1774 = vpop.permute.xlu0 %1773
        %1775 = vrot.lane.b32.xlu0 %v1274, 48
        %v1776 = vpop.permute.xlu0 %1775
        %v1780 = vsel %vm1327, %v1740, 0
        %v1783 = vsel %vm1327, %v1755, 0
        %v1786 = vsel %vm1327, %v1770, 0
        %v1788 = vsel %vm1088, %v1776, 0
        %1790 = vmatpush.msra.mxu0 0.0
        %1791 = vmatpush.msra.mxu0 0.0
        %1792 = vmatpush.msra.mxu0 0.0
        %1793 = vmatpush.msra.mxu0 0.0
        %1794 = vmatpush.msra.mxu0 0.0
        %1795 = vmatpush.msra.mxu0 0.0
        %1796 = vmatpush.msra.mxu0 0.0
        %1797 = vmatpush.msra.mxu0 0.0
        %1798 = vmatpush.msra.mxu0 0.0
        %1799 = vmatpush.msra.mxu0 0.0
        %1800 = vmatpush.msra.mxu0 0.0
        %1801 = vmatpush.msra.mxu0 0.0
        %1802 = vmatpush.msra.mxu0 0.0
        %1803 = vmatpush.msra.mxu0 %v1788
        %1804 = vmatpush.msra.mxu0 %v1774
        %1805 = vmatpush.msra.mxu0 %v1772
        %1806 = vmatmul.f32.gmra.mxu0 %v1780
        %v1807 = vpop.f32.mrf.mxu0
        %v1808 = vadd.f32 0.0, %v1807
        %1809 = vmatmul.f32.gmra.mxu0 %v1783
        %v1810 = vpop.f32.mrf.mxu0
        %v1811 = vadd.f32 0.0, %v1810
        %1812 = vmatmul.f32.gmra.mxu0 %v1786
        %v1813 = vpop.f32.mrf.mxu0
        %v1814 = vadd.f32 0.0, %v1813
        %1815 = vdwg.mxu0
        %1819 = vrot.lane.b32.xlu0 %v1808, 88
        %v1820 = vpop.permute.xlu0 %1819
        %1821 = vrot.lane.b32.xlu0 %v1811, 88
        %v1822 = vpop.permute.xlu0 %1821
        %1823 = vrot.lane.b32.xlu0 %v1814, 88
        %v1824 = vpop.permute.xlu0 %1823
        %v1828 = vadd.f32 %v1268, %v1820
        %v1829 = vadd.f32 %v1271, %v1822
        %v1830 = vadd.f32 %v1274, %v1824
        %1831 = vrot.lane.b32.xlu0 %v1268, 24
        %v1832 = vpop.permute.xlu0 %1831
        %1833 = vrot.lane.b32.xlu0 %v1271, 24
        %v1834 = vpop.permute.xlu0 %1833
        %1835 = vrot.lane.b32.xlu0 %v1274, 24
        %v1836 = vpop.permute.xlu0 %1835
        %1837 = vrot.lane.b32.xlu0 %v1268, 32
        %v1838 = vpop.permute.xlu0 %1837
        %1839 = vrot.lane.b32.xlu0 %v1271, 32
        %v1840 = vpop.permute.xlu0 %1839
        %1841 = vrot.lane.b32.xlu0 %v1274, 32
        %v1842 = vpop.permute.xlu0 %1841
        %v1843 = vsel %vm1285, %v1832, 0
        %v1845 = vsel %vm1285, %v1834, 0
        %v1847 = vsel %vm1285, %v1836, 0
        %v1849 = vsel %vm1285, %v1838, 0
        %v1851 = vsel %vm1285, %v1840, 0
        %v1853 = vsel %vm1285, %v1842, 0
        %1855 = vmatpush.xpose.msra.mxu0 0.0
        %1856 = vmatpush.xpose.msra.mxu0 0.0
        %1857 = vmatpush.xpose.msra.mxu0 0.0
        %1858 = vmatpush.xpose.msra.mxu0 0.0
        %1859 = vmatpush.xpose.msra.mxu0 0.0
        %1860 = vmatpush.xpose.msra.mxu0 0.0
        %1861 = vmatpush.xpose.msra.mxu0 0.0
        %1862 = vmatpush.xpose.msra.mxu0 0.0
        %1863 = vmatpush.xpose.msra.mxu0 0.0
        %1864 = vmatpush.xpose.msra.mxu0 0.0
        %1865 = vmatpush.xpose.msra.mxu0 0.0
        %1866 = vmatpush.xpose.msra.mxu0 0.0
        %1867 = vmatpush.xpose.msra.mxu0 0.0
        %1868 = vmatpush.xpose.msra.mxu0 %v1853
        %1869 = vmatpush.xpose.msra.mxu0 %v1851
        %1870 = vmatpush.xpose.msra.mxu0 %v1849
        %1871 = vmatmul.f32.gmra.mxu0 %v1843
        %v1872 = vpop.f32.mrf.mxu0
        %v1873 = vadd.f32 0.0, %v1872
        %1874 = vmatmul.f32.gmra.mxu0 %v1845
        %v1875 = vpop.f32.mrf.mxu0
        %v1876 = vadd.f32 0.0, %v1875
        %1877 = vmatmul.f32.gmra.mxu0 %v1847
        %v1878 = vpop.f32.mrf.mxu0
        %v1879 = vadd.f32 0.0, %v1878
        %1880 = vdwg.mxu0
        %v1881 = vmul.f32 %v1873, 0.35355338
        %v1882 = vmul.f32 %v1876, 0.35355338
        %v1883 = vmul.f32 %v1879, 0.35355338
        %v1884 = vsel %vm1327, %v1881, -inf
        %1885 = vmax.xlane.f32.xlu0 %v1884
        %v1886 = vpop.xlane.xlu0 %1885
        %v1887 = vsel %vm1327, %v1882, -inf
        %1888 = vmax.xlane.f32.xlu0 %v1887
        %v1889 = vpop.xlane.xlu0 %1888
        %v1890 = vsel %vm1334, %v1883, -inf
        %1891 = vmax.xlane.f32.xlu0 %v1890
        %v1892 = vpop.xlane.xlu0 %1891
        %v1893 = vsub.f32 %v1881, %v1886
        %v1894 = vsub.f32 %v1882, %v1889
        %v1895 = vsub.f32 %v1883, %v1892
        %v1896 = vmul.f32 %v1893, 1.442695
        %v1897 = vpow.pop %v1896
        %v1898 = vmul.f32 %v1894, 1.442695
        %v1899 = vpow.pop %v1898
        %v1900 = vmul.f32 %v1895, 1.442695
        %v1901 = vpow.pop %v1900
        %v1902 = vsel %vm1327, %v1897, 0.0
        %1903 = vadd.xlane.f32.xlu0 %v1902
        %v1904 = vpop.xlane.xlu0 %1903
        %v1905 = vsel %vm1327, %v1899, 0.0
        %1906 = vadd.xlane.f32.xlu0 %v1905
        %v1907 = vpop.xlane.xlu0 %1906
        %v1908 = vsel %vm1334, %v1901, 0.0
        %1909 = vadd.xlane.f32.xlu0 %v1908
        %v1910 = vpop.xlane.xlu0 %1909
        %v1911 = vrcp.pop %v1904
        %v1912 = vmul.f32 %v1904, %v1911
        %v1913 = vsub.f32 1.0, %v1912
        %v1914 = vmul.f32 %v1911, %v1913
        %v1915 = vadd.f32 %v1911, %v1914
        %vm1916 = vweird.f32 %v1904
        %vm1917 = vweird.f32 %v1911
        %vm1918 = vmor %vm1916, %vm1917
        %v1919 = vsel %vm1918, %v1911, %v1915
        %v1920 = vand.u32 2147483647, %v1904
        %vm1921 = vcmp.eq.f32.partialorder %v1920, 8.507059e+37
        %v1922 = vand.u32 %v1904, 2147483648
        %v1923 = vor.u32 1.1754944e-38, %v1922
        %v1924 = vsel %vm1921, %v1923, %v1919
        %v1925 = vmul.f32 %v1897, %v1924
        %v1926 = vrcp.pop %v1907
        %v1927 = vmul.f32 %v1907, %v1926
        %v1928 = vsub.f32 1.0, %v1927
        %v1929 = vmul.f32 %v1926, %v1928
        %v1930 = vadd.f32 %v1926, %v1929
        %vm1931 = vweird.f32 %v1907
        %vm1932 = vweird.f32 %v1926
        %vm1933 = vmor %vm1931, %vm1932
        %v1934 = vsel %vm1933, %v1926, %v1930
        %v1935 = vand.u32 2147483647, %v1907
        %vm1936 = vcmp.eq.f32.partialorder %v1935, 8.507059e+37
        %v1937 = vand.u32 %v1907, 2147483648
        %v1938 = vor.u32 1.1754944e-38, %v1937
        %v1939 = vsel %vm1936, %v1938, %v1934
        %v1940 = vmul.f32 %v1899, %v1939
        %v1941 = vrcp.pop %v1910
        %v1942 = vmul.f32 %v1910, %v1941
        %v1943 = vsub.f32 1.0, %v1942
        %v1944 = vmul.f32 %v1941, %v1943
        %v1945 = vadd.f32 %v1941, %v1944
        %vm1946 = vweird.f32 %v1910
        %vm1947 = vweird.f32 %v1941
        %vm1948 = vmor %vm1946, %vm1947
        %v1949 = vsel %vm1948, %v1941, %v1945
        %v1950 = vand.u32 2147483647, %v1910
        %vm1951 = vcmp.eq.f32.partialorder %v1950, 8.507059e+37
        %v1952 = vand.u32 %v1910, 2147483648
        %v1953 = vor.u32 1.1754944e-38, %v1952
        %v1954 = vsel %vm1951, %v1953, %v1949
        %v1955 = vmul.f32 %v1901, %v1954
        %1956 = vrot.lane.b32.xlu0 %v1268, 16
        %v1957 = vpop.permute.xlu0 %1956
        %1958 = vrot.lane.b32.xlu0 %v1271, 16
        %v1959 = vpop.permute.xlu0 %1958
        %1960 = vrot.lane.b32.xlu0 %v1274, 16
        %v1961 = vpop.permute.xlu0 %1960
        %v1965 = vsel %vm1327, %v1925, 0
        %v1968 = vsel %vm1327, %v1940, 0
        %v1971 = vsel %vm1327, %v1955, 0
        %v1973 = vsel %vm1088, %v1961, 0
        %1975 = vmatpush.msra.mxu0 0.0
        %1976 = vmatpush.msra.mxu0 0.0
        %1977 = vmatpush.msra.mxu0 0.0
        %1978 = vmatpush.msra.mxu0 0.0
        %1979 = vmatpush.msra.mxu0 0.0
        %1980 = vmatpush.msra.mxu0 0.0
        %1981 = vmatpush.msra.mxu0 0.0
        %1982 = vmatpush.msra.mxu0 0.0
        %1983 = vmatpush.msra.mxu0 0.0
        %1984 = vmatpush.msra.mxu0 0.0
        %1985 = vmatpush.msra.mxu0 0.0
        %1986 = vmatpush.msra.mxu0 0.0
        %1987 = vmatpush.msra.mxu0 0.0
        %1988 = vmatpush.msra.mxu0 %v1973
        %1989 = vmatpush.msra.mxu0 %v1959
        %1990 = vmatpush.msra.mxu0 %v1957
        %1991 = vmatmul.f32.gmra.mxu0 %v1965
        %v1992 = vpop.f32.mrf.mxu0
        %v1993 = vadd.f32 0.0, %v1992
        %1994 = vmatmul.f32.gmra.mxu0 %v1968
        %v1995 = vpop.f32.mrf.mxu0
        %v1996 = vadd.f32 0.0, %v1995
        %1997 = vmatmul.f32.gmra.mxu0 %v1971
        %v1998 = vpop.f32.mrf.mxu0
        %v1999 = vadd.f32 0.0, %v1998
        %2000 = vdwg.mxu0
        %2004 = vrot.lane.b32.xlu0 %v1993, 120
        %v2005 = vpop.permute.xlu0 %2004
        %2006 = vrot.lane.b32.xlu0 %v1996, 120
        %v2007 = vpop.permute.xlu0 %2006
        %2008 = vrot.lane.b32.xlu0 %v1999, 120
        %v2009 = vpop.permute.xlu0 %2008
        %v2013 = vadd.f32 %v1268, %v2005
        %v2014 = vadd.f32 %v1271, %v2007
        %v2015 = vadd.f32 %v1274, %v2009
        %vm2016 = vcmask 195584
        %v2017 = vsel %vm2016, %v1268, %v1458
        %v2018 = vsel %vm2016, %v1271, %v1459
        %v2019 = vsel %vm2016, %v1274, %v1460
        %v2020 = vsel %vm1151, %v2017, %v1268
        %v2021 = vsel %vm1151, %v2018, %v1271
        %v2022 = vsel %vm1151, %v2019, %v1274
        %vm2023 = vcmask 457728
        %v2024 = vsel %vm2023, %v2020, %v1643
        %v2025 = vsel %vm2023, %v2021, %v1644
        %v2026 = vsel %vm2023, %v2022, %v1645
        %vm2027 = vcmask 523264
        %v2028 = vsel %vm2027, %v2024, %v1268
        %v2029 = vsel %vm2027, %v2025, %v1271
        %v2030 = vsel %vm2027, %v2026, %v1274
        %vm2031 = vcmask 719872
        %v2032 = vsel %vm2031, %v2028, %v1828
        %v2033 = vsel %vm2031, %v2029, %v1829
        %v2034 = vsel %vm2031, %v2030, %v1830
        %vm2035 = vcmask 785408
        %v2036 = vsel %vm2035, %v2032, %v1268
        %v2037 = vsel %vm2035, %v2033, %v1271
        %v2038 = vsel %vm2035, %v2034, %v1274
        %vm2039 = vcmask 982016
        %v2040 = vsel %vm2039, %v2036, %v2013
        %v2041 = vsel %vm2039, %v2037, %v2014
        %v2042 = vsel %vm2039, %v2038, %v2015
        %2043 = vmatpush.msra.mxu0 %v1121
        %2044 = vmatpush.msra.mxu0 %v1120
        %2045 = vmatpush.msra.mxu0 %v1119
        %2046 = vmatpush.msra.mxu0 %v1118
        %2047 = vmatpush.msra.mxu0 %v1117
        %2048 = vmatpush.msra.mxu0 %v1116
        %2049 = vmatpush.msra.mxu0 %v1115
        %2050 = vmatpush.msra.mxu0 %v1114
        %2051 = vmatpush.msra.mxu0 %v1113
        %2052 = vmatpush.msra.mxu0 %v1112
        %2053 = vmatpush.msra.mxu0 %v1111
        %2054 = vmatpush.msra.mxu0 %v1110
        %2055 = vmatpush.msra.mxu0 %v1109
        %2056 = vmatpush.msra.mxu0 %v1108
        %2057 = vmatpush.msra.mxu0 %v1107
        %2058 = vmatpush.msra.mxu0 %v1106
        %2059 = vmatmul.f32.gmra.mxu0 %v2040
        %v2060 = vpop.f32.mrf.mxu0
        %v2061 = vadd.f32 %v1268, %v2060
        %2062 = vmatmul.f32.gmra.mxu0 %v2041
        %v2063 = vpop.f32.mrf.mxu0
        %v2064 = vadd.f32 %v1271, %v2063
        %2065 = vmatmul.f32.gmra.mxu0 %v2042
        %v2066 = vpop.f32.mrf.mxu0
        %v2067 = vadd.f32 %v1274, %v2066
        %2068 = vdwg.mxu0
        %2072 = vrot.lane.b32.xlu0 %v2061, 120
        %v2073 = vpop.permute.xlu0 %2072
        %2074 = vrot.lane.b32.xlu0 %v2064, 120
        %v2075 = vpop.permute.xlu0 %2074
        %2076 = vrot.lane.b32.xlu0 %v2067, 120
        %v2077 = vpop.permute.xlu0 %2076
        %v2078 = vsel %vm1285, %v2073, 0
        %v2080 = vsel %vm1285, %v2075, 0
        %v2082 = vsel %vm1285, %v2077, 0
        %v2084 = vsel %vm1285, %v2061, 0
        %v2086 = vsel %vm1285, %v2064, 0
        %v2088 = vsel %vm1285, %v2067, 0
        %2090 = vmatpush.xpose.msra.mxu0 0.0
        %2091 = vmatpush.xpose.msra.mxu0 0.0
        %2092 = vmatpush.xpose.msra.mxu0 0.0
        %2093 = vmatpush.xpose.msra.mxu0 0.0
        %2094 = vmatpush.xpose.msra.mxu0 0.0
        %2095 = vmatpush.xpose.msra.mxu0 0.0
        %2096 = vmatpush.xpose.msra.mxu0 0.0
        %2097 = vmatpush.xpose.msra.mxu0 0.0
        %2098 = vmatpush.xpose.msra.mxu0 0.0
        %2099 = vmatpush.xpose.msra.mxu0 0.0
        %2100 = vmatpush.xpose.msra.mxu0 0.0
        %2101 = vmatpush.xpose.msra.mxu0 0.0
        %2102 = vmatpush.xpose.msra.mxu0 0.0
        %2103 = vmatpush.xpose.msra.mxu0 %v2088
        %2104 = vmatpush.xpose.msra.mxu0 %v2086
        %2105 = vmatpush.xpose.msra.mxu0 %v2084
        %2106 = vmatmul.f32.gmra.mxu0 %v2078
        %v2107 = vpop.f32.mrf.mxu0
        %v2108 = vadd.f32 0.0, %v2107
        %2109 = vmatmul.f32.gmra.mxu0 %v2080
        %v2110 = vpop.f32.mrf.mxu0
        %v2111 = vadd.f32 0.0, %v2110
        %2112 = vmatmul.f32.gmra.mxu0 %v2082
        %v2113 = vpop.f32.mrf.mxu0
        %v2114 = vadd.f32 0.0, %v2113
        %2115 = vdwg.mxu0
        %v2116 = vmul.f32 %v2108, 0.35355338
        %v2117 = vmul.f32 %v2111, 0.35355338
        %v2118 = vmul.f32 %v2114, 0.35355338
        %v2119 = vsel %vm1327, %v2116, -inf
        %2120 = vmax.xlane.f32.xlu0 %v2119
        %v2121 = vpop.xlane.xlu0 %2120
        %v2122 = vsel %vm1327, %v2117, -inf
        %2123 = vmax.xlane.f32.xlu0 %v2122
        %v2124 = vpop.xlane.xlu0 %2123
        %v2125 = vsel %vm1334, %v2118, -inf
        %2126 = vmax.xlane.f32.xlu0 %v2125
        %v2127 = vpop.xlane.xlu0 %2126
        %v2128 = vsub.f32 %v2116, %v2121
        %v2129 = vsub.f32 %v2117, %v2124
        %v2130 = vsub.f32 %v2118, %v2127
        %v2131 = vmul.f32 %v2128, 1.442695
        %v2132 = vpow.pop %v2131
        %v2133 = vmul.f32 %v2129, 1.442695
        %v2134 = vpow.pop %v2133
        %v2135 = vmul.f32 %v2130, 1.442695
        %v2136 = vpow.pop %v2135
        %v2137 = vsel %vm1327, %v2132, 0.0
        %2138 = vadd.xlane.f32.xlu0 %v2137
        %v2139 = vpop.xlane.xlu0 %2138
        %v2140 = vsel %vm1327, %v2134, 0.0
        %2141 = vadd.xlane.f32.xlu0 %v2140
        %v2142 = vpop.xlane.xlu0 %2141
        %v2143 = vsel %vm1334, %v2136, 0.0
        %2144 = vadd.xlane.f32.xlu0 %v2143
        %v2145 = vpop.xlane.xlu0 %2144
        %v2146 = vrcp.pop %v2139
        %v2147 = vmul.f32 %v2139, %v2146
        %v2148 = vsub.f32 1.0, %v2147
        %v2149 = vmul.f32 %v2146, %v2148
        %v2150 = vadd.f32 %v2146, %v2149
        %vm2151 = vweird.f32 %v2139
        %vm2152 = vweird.f32 %v2146
        %vm2153 = vmor %vm2151, %vm2152
        %v2154 = vsel %vm2153, %v2146, %v2150
        %v2155 = vand.u32 2147483647, %v2139
        %vm2156 = vcmp.eq.f32.partialorder %v2155, 8.507059e+37
        %v2157 = vand.u32 %v2139, 2147483648
        %v2158 = vor.u32 1.1754944e-38, %v2157
        %v2159 = vsel %vm2156, %v2158, %v2154
        %v2160 = vmul.f32 %v2132, %v2159
        %v2161 = vrcp.pop %v2142
        %v2162 = vmul.f32 %v2142, %v2161
        %v2163 = vsub.f32 1.0, %v2162
        %v2164 = vmul.f32 %v2161, %v2163
        %v2165 = vadd.f32 %v2161, %v2164
        %vm2166 = vweird.f32 %v2142
        %vm2167 = vweird.f32 %v2161
        %vm2168 = vmor %vm2166, %vm2167
        %v2169 = vsel %vm2168, %v2161, %v2165
        %v2170 = vand.u32 2147483647, %v2142
        %vm2171 = vcmp.eq.f32.partialorder %v2170, 8.507059e+37
        %v2172 = vand.u32 %v2142, 2147483648
        %v2173 = vor.u32 1.1754944e-38, %v2172
        %v2174 = vsel %vm2171, %v2173, %v2169
        %v2175 = vmul.f32 %v2134, %v2174
        %v2176 = vrcp.pop %v2145
        %v2177 = vmul.f32 %v2145, %v2176
        %v2178 = vsub.f32 1.0, %v2177
        %v2179 = vmul.f32 %v2176, %v2178
        %v2180 = vadd.f32 %v2176, %v2179
        %vm2181 = vweird.f32 %v2145
        %vm2182 = vweird.f32 %v2176
        %vm2183 = vmor %vm2181, %vm2182
        %v2184 = vsel %vm2183, %v2176, %v2180
        %v2185 = vand.u32 2147483647, %v2145
        %vm2186 = vcmp.eq.f32.partialorder %v2185, 8.507059e+37
        %v2187 = vand.u32 %v2145, 2147483648
        %v2188 = vor.u32 1.1754944e-38, %v2187
        %v2189 = vsel %vm2186, %v2188, %v2184
        %v2190 = vmul.f32 %v2136, %v2189
        %2191 = vrot.lane.b32.xlu0 %v2061, 112
        %v2192 = vpop.permute.xlu0 %2191
        %2193 = vrot.lane.b32.xlu0 %v2064, 112
        %v2194 = vpop.permute.xlu0 %2193
        %2195 = vrot.lane.b32.xlu0 %v2067, 112
        %v2196 = vpop.permute.xlu0 %2195
        %v2200 = vsel %vm1327, %v2160, 0
        %v2203 = vsel %vm1327, %v2175, 0
        %v2206 = vsel %vm1327, %v2190, 0
        %v2208 = vsel %vm1088, %v2196, 0
        %2210 = vmatpush.msra.mxu0 0.0
        %2211 = vmatpush.msra.mxu0 0.0
        %2212 = vmatpush.msra.mxu0 0.0
        %2213 = vmatpush.msra.mxu0 0.0
        %2214 = vmatpush.msra.mxu0 0.0
        %2215 = vmatpush.msra.mxu0 0.0
        %2216 = vmatpush.msra.mxu0 0.0
        %2217 = vmatpush.msra.mxu0 0.0
        %2218 = vmatpush.msra.mxu0 0.0
        %2219 = vmatpush.msra.mxu0 0.0
        %2220 = vmatpush.msra.mxu0 0.0
        %2221 = vmatpush.msra.mxu0 0.0
        %2222 = vmatpush.msra.mxu0 0.0
        %2223 = vmatpush.msra.mxu0 %v2208
        %2224 = vmatpush.msra.mxu0 %v2194
        %2225 = vmatpush.msra.mxu0 %v2192
        %2226 = vmatmul.f32.gmra.mxu0 %v2200
        %v2227 = vpop.f32.mrf.mxu0
        %v2228 = vadd.f32 0.0, %v2227
        %2229 = vmatmul.f32.gmra.mxu0 %v2203
        %v2230 = vpop.f32.mrf.mxu0
        %v2231 = vadd.f32 0.0, %v2230
        %2232 = vmatmul.f32.gmra.mxu0 %v2206
        %v2233 = vpop.f32.mrf.mxu0
        %v2234 = vadd.f32 0.0, %v2233
        %2235 = vdwg.mxu0
        %2239 = vrot.lane.b32.xlu0 %v2228, 24
        %v2240 = vpop.permute.xlu0 %2239
        %2241 = vrot.lane.b32.xlu0 %v2231, 24
        %v2242 = vpop.permute.xlu0 %2241
        %2243 = vrot.lane.b32.xlu0 %v2234, 24
        %v2244 = vpop.permute.xlu0 %2243
        %v2248 = vadd.f32 %v2061, %v2240
        %v2249 = vadd.f32 %v2064, %v2242
        %v2250 = vadd.f32 %v2067, %v2244
        %2251 = vrot.lane.b32.xlu0 %v2061, 88
        %v2252 = vpop.permute.xlu0 %2251
        %2253 = vrot.lane.b32.xlu0 %v2064, 88
        %v2254 = vpop.permute.xlu0 %2253
        %2255 = vrot.lane.b32.xlu0 %v2067, 88
        %v2256 = vpop.permute.xlu0 %2255
        %2257 = vrot.lane.b32.xlu0 %v2061, 96
        %v2258 = vpop.permute.xlu0 %2257
        %2259 = vrot.lane.b32.xlu0 %v2064, 96
        %v2260 = vpop.permute.xlu0 %2259
        %2261 = vrot.lane.b32.xlu0 %v2067, 96
        %v2262 = vpop.permute.xlu0 %2261
        %v2263 = vsel %vm1285, %v2252, 0
        %v2265 = vsel %vm1285, %v2254, 0
        %v2267 = vsel %vm1285, %v2256, 0
        %v2269 = vsel %vm1285, %v2258, 0
        %v2271 = vsel %vm1285, %v2260, 0
        %v2273 = vsel %vm1285, %v2262, 0
        %2275 = vmatpush.xpose.msra.mxu0 0.0
        %2276 = vmatpush.xpose.msra.mxu0 0.0
        %2277 = vmatpush.xpose.msra.mxu0 0.0
        %2278 = vmatpush.xpose.msra.mxu0 0.0
        %2279 = vmatpush.xpose.msra.mxu0 0.0
        %2280 = vmatpush.xpose.msra.mxu0 0.0
        %2281 = vmatpush.xpose.msra.mxu0 0.0
        %2282 = vmatpush.xpose.msra.mxu0 0.0
        %2283 = vmatpush.xpose.msra.mxu0 0.0
        %2284 = vmatpush.xpose.msra.mxu0 0.0
        %2285 = vmatpush.xpose.msra.mxu0 0.0
        %2286 = vmatpush.xpose.msra.mxu0 0.0
        %2287 = vmatpush.xpose.msra.mxu0 0.0
        %2288 = vmatpush.xpose.msra.mxu0 %v2273
        %2289 = vmatpush.xpose.msra.mxu0 %v2271
        %2290 = vmatpush.xpose.msra.mxu0 %v2269
        %2291 = vmatmul.f32.gmra.mxu0 %v2263
        %v2292 = vpop.f32.mrf.mxu0
        %v2293 = vadd.f32 0.0, %v2292
        %2294 = vmatmul.f32.gmra.mxu0 %v2265
        %v2295 = vpop.f32.mrf.mxu0
        %v2296 = vadd.f32 0.0, %v2295
        %2297 = vmatmul.f32.gmra.mxu0 %v2267
        %v2298 = vpop.f32.mrf.mxu0
        %v2299 = vadd.f32 0.0, %v2298
        %2300 = vdwg.mxu0
        %v2301 = vmul.f32 %v2293, 0.35355338
        %v2302 = vmul.f32 %v2296, 0.35355338
        %v2303 = vmul.f32 %v2299, 0.35355338
        %v2304 = vsel %vm1327, %v2301, -inf
        %2305 = vmax.xlane.f32.xlu0 %v2304
        %v2306 = vpop.xlane.xlu0 %2305
        %v2307 = vsel %vm1327, %v2302, -inf
        %2308 = vmax.xlane.f32.xlu0 %v2307
        %v2309 = vpop.xlane.xlu0 %2308
        %v2310 = vsel %vm1334, %v2303, -inf
        %2311 = vmax.xlane.f32.xlu0 %v2310
        %v2312 = vpop.xlane.xlu0 %2311
        %v2313 = vsub.f32 %v2301, %v2306
        %v2314 = vsub.f32 %v2302, %v2309
        %v2315 = vsub.f32 %v2303, %v2312
        %v2316 = vmul.f32 %v2313, 1.442695
        %v2317 = vpow.pop %v2316
        %v2318 = vmul.f32 %v2314, 1.442695
        %v2319 = vpow.pop %v2318
        %v2320 = vmul.f32 %v2315, 1.442695
        %v2321 = vpow.pop %v2320
        %v2322 = vsel %vm1327, %v2317, 0.0
        %2323 = vadd.xlane.f32.xlu0 %v2322
        %v2324 = vpop.xlane.xlu0 %2323
        %v2325 = vsel %vm1327, %v2319, 0.0
        %2326 = vadd.xlane.f32.xlu0 %v2325
        %v2327 = vpop.xlane.xlu0 %2326
        %v2328 = vsel %vm1334, %v2321, 0.0
        %2329 = vadd.xlane.f32.xlu0 %v2328
        %v2330 = vpop.xlane.xlu0 %2329
        %v2331 = vrcp.pop %v2324
        %v2332 = vmul.f32 %v2324, %v2331
        %v2333 = vsub.f32 1.0, %v2332
        %v2334 = vmul.f32 %v2331, %v2333
        %v2335 = vadd.f32 %v2331, %v2334
        %vm2336 = vweird.f32 %v2324
        %vm2337 = vweird.f32 %v2331
        %vm2338 = vmor %vm2336, %vm2337
        %v2339 = vsel %vm2338, %v2331, %v2335
        %v2340 = vand.u32 2147483647, %v2324
        %vm2341 = vcmp.eq.f32.partialorder %v2340, 8.507059e+37
        %v2342 = vand.u32 %v2324, 2147483648
        %v2343 = vor.u32 1.1754944e-38, %v2342
        %v2344 = vsel %vm2341, %v2343, %v2339
        %v2345 = vmul.f32 %v2317, %v2344
        %v2346 = vrcp.pop %v2327
        %v2347 = vmul.f32 %v2327, %v2346
        %v2348 = vsub.f32 1.0, %v2347
        %v2349 = vmul.f32 %v2346, %v2348
        %v2350 = vadd.f32 %v2346, %v2349
        %vm2351 = vweird.f32 %v2327
        %vm2352 = vweird.f32 %v2346
        %vm2353 = vmor %vm2351, %vm2352
        %v2354 = vsel %vm2353, %v2346, %v2350
        %v2355 = vand.u32 2147483647, %v2327
        %vm2356 = vcmp.eq.f32.partialorder %v2355, 8.507059e+37
        %v2357 = vand.u32 %v2327, 2147483648
        %v2358 = vor.u32 1.1754944e-38, %v2357
        %v2359 = vsel %vm2356, %v2358, %v2354
        %v2360 = vmul.f32 %v2319, %v2359
        %v2361 = vrcp.pop %v2330
        %v2362 = vmul.f32 %v2330, %v2361
        %v2363 = vsub.f32 1.0, %v2362
        %v2364 = vmul.f32 %v2361, %v2363
        %v2365 = vadd.f32 %v2361, %v2364
        %vm2366 = vweird.f32 %v2330
        %vm2367 = vweird.f32 %v2361
        %vm2368 = vmor %vm2366, %vm2367
        %v2369 = vsel %vm2368, %v2361, %v2365
        %v2370 = vand.u32 2147483647, %v2330
        %vm2371 = vcmp.eq.f32.partialorder %v2370, 8.507059e+37
        %v2372 = vand.u32 %v2330, 2147483648
        %v2373 = vor.u32 1.1754944e-38, %v2372
        %v2374 = vsel %vm2371, %v2373, %v2369
        %v2375 = vmul.f32 %v2321, %v2374
        %2376 = vrot.lane.b32.xlu0 %v2061, 80
        %v2377 = vpop.permute.xlu0 %2376
        %2378 = vrot.lane.b32.xlu0 %v2064, 80
        %v2379 = vpop.permute.xlu0 %2378
        %2380 = vrot.lane.b32.xlu0 %v2067, 80
        %v2381 = vpop.permute.xlu0 %2380
        %v2385 = vsel %vm1327, %v2345, 0
        %v2388 = vsel %vm1327, %v2360, 0
        %v2391 = vsel %vm1327, %v2375, 0
        %v2393 = vsel %vm1088, %v2381, 0
        %2395 = vmatpush.msra.mxu0 0.0
        %2396 = vmatpush.msra.mxu0 0.0
        %2397 = vmatpush.msra.mxu0 0.0
        %2398 = vmatpush.msra.mxu0 0.0
        %2399 = vmatpush.msra.mxu0 0.0
        %2400 = vmatpush.msra.mxu0 0.0
        %2401 = vmatpush.msra.mxu0 0.0
        %2402 = vmatpush.msra.mxu0 0.0
        %2403 = vmatpush.msra.mxu0 0.0
        %2404 = vmatpush.msra.mxu0 0.0
        %2405 = vmatpush.msra.mxu0 0.0
        %2406 = vmatpush.msra.mxu0 0.0
        %2407 = vmatpush.msra.mxu0 0.0
        %2408 = vmatpush.msra.mxu0 %v2393
        %2409 = vmatpush.msra.mxu0 %v2379
        %2410 = vmatpush.msra.mxu0 %v2377
        %2411 = vmatmul.f32.gmra.mxu0 %v2385
        %v2412 = vpop.f32.mrf.mxu0
        %v2413 = vadd.f32 0.0, %v2412
        %2414 = vmatmul.f32.gmra.mxu0 %v2388
        %v2415 = vpop.f32.mrf.mxu0
        %v2416 = vadd.f32 0.0, %v2415
        %2417 = vmatmul.f32.gmra.mxu0 %v2391
        %v2418 = vpop.f32.mrf.mxu0
        %v2419 = vadd.f32 0.0, %v2418
        %2420 = vdwg.mxu0
        %2424 = vrot.lane.b32.xlu0 %v2413, 56
        %v2425 = vpop.permute.xlu0 %2424
        %2426 = vrot.lane.b32.xlu0 %v2416, 56
        %v2427 = vpop.permute.xlu0 %2426
        %2428 = vrot.lane.b32.xlu0 %v2419, 56
        %v2429 = vpop.permute.xlu0 %2428
        %v2433 = vadd.f32 %v2061, %v2425
        %v2434 = vadd.f32 %v2064, %v2427
        %v2435 = vadd.f32 %v2067, %v2429
        %2436 = vrot.lane.b32.xlu0 %v2061, 56
        %v2437 = vpop.permute.xlu0 %2436
        %2438 = vrot.lane.b32.xlu0 %v2064, 56
        %v2439 = vpop.permute.xlu0 %2438
        %2440 = vrot.lane.b32.xlu0 %v2067, 56
        %v2441 = vpop.permute.xlu0 %2440
        %2442 = vrot.lane.b32.xlu0 %v2061, 64
        %v2443 = vpop.permute.xlu0 %2442
        %2444 = vrot.lane.b32.xlu0 %v2064, 64
        %v2445 = vpop.permute.xlu0 %2444
        %2446 = vrot.lane.b32.xlu0 %v2067, 64
        %v2447 = vpop.permute.xlu0 %2446
        %v2448 = vsel %vm1285, %v2437, 0
        %v2450 = vsel %vm1285, %v2439, 0
        %v2452 = vsel %vm1285, %v2441, 0
        %v2454 = vsel %vm1285, %v2443, 0
        %v2456 = vsel %vm1285, %v2445, 0
        %v2458 = vsel %vm1285, %v2447, 0
        %2460 = vmatpush.xpose.msra.mxu0 0.0
        %2461 = vmatpush.xpose.msra.mxu0 0.0
        %2462 = vmatpush.xpose.msra.mxu0 0.0
        %2463 = vmatpush.xpose.msra.mxu0 0.0
        %2464 = vmatpush.xpose.msra.mxu0 0.0
        %2465 = vmatpush.xpose.msra.mxu0 0.0
        %2466 = vmatpush.xpose.msra.mxu0 0.0
        %2467 = vmatpush.xpose.msra.mxu0 0.0
        %2468 = vmatpush.xpose.msra.mxu0 0.0
        %2469 = vmatpush.xpose.msra.mxu0 0.0
        %2470 = vmatpush.xpose.msra.mxu0 0.0
        %2471 = vmatpush.xpose.msra.mxu0 0.0
        %2472 = vmatpush.xpose.msra.mxu0 0.0
        %2473 = vmatpush.xpose.msra.mxu0 %v2458
        %2474 = vmatpush.xpose.msra.mxu0 %v2456
        %2475 = vmatpush.xpose.msra.mxu0 %v2454
        %2476 = vmatmul.f32.gmra.mxu0 %v2448
        %v2477 = vpop.f32.mrf.mxu0
        %v2478 = vadd.f32 0.0, %v2477
        %2479 = vmatmul.f32.gmra.mxu0 %v2450
        %v2480 = vpop.f32.mrf.mxu0
        %v2481 = vadd.f32 0.0, %v2480
        %2482 = vmatmul.f32.gmra.mxu0 %v2452
        %v2483 = vpop.f32.mrf.mxu0
        %v2484 = vadd.f32 0.0, %v2483
        %2485 = vdwg.mxu0
        %v2486 = vmul.f32 %v2478, 0.35355338
        %v2487 = vmul.f32 %v2481, 0.35355338
        %v2488 = vmul.f32 %v2484, 0.35355338
        %v2489 = vsel %vm1327, %v2486, -inf
        %2490 = vmax.xlane.f32.xlu0 %v2489
        %v2491 = vpop.xlane.xlu0 %2490
        %v2492 = vsel %vm1327, %v2487, -inf
        %2493 = vmax.xlane.f32.xlu0 %v2492
        %v2494 = vpop.xlane.xlu0 %2493
        %v2495 = vsel %vm1334, %v2488, -inf
        %2496 = vmax.xlane.f32.xlu0 %v2495
        %v2497 = vpop.xlane.xlu0 %2496
        %v2498 = vsub.f32 %v2486, %v2491
        %v2499 = vsub.f32 %v2487, %v2494
        %v2500 = vsub.f32 %v2488, %v2497
        %v2501 = vmul.f32 %v2498, 1.442695
        %v2502 = vpow.pop %v2501
        %v2503 = vmul.f32 %v2499, 1.442695
        %v2504 = vpow.pop %v2503
        %v2505 = vmul.f32 %v2500, 1.442695
        %v2506 = vpow.pop %v2505
        %v2507 = vsel %vm1327, %v2502, 0.0
        %2508 = vadd.xlane.f32.xlu0 %v2507
        %v2509 = vpop.xlane.xlu0 %2508
        %v2510 = vsel %vm1327, %v2504, 0.0
        %2511 = vadd.xlane.f32.xlu0 %v2510
        %v2512 = vpop.xlane.xlu0 %2511
        %v2513 = vsel %vm1334, %v2506, 0.0
        %2514 = vadd.xlane.f32.xlu0 %v2513
        %v2515 = vpop.xlane.xlu0 %2514
        %v2516 = vrcp.pop %v2509
        %v2517 = vmul.f32 %v2509, %v2516
        %v2518 = vsub.f32 1.0, %v2517
        %v2519 = vmul.f32 %v2516, %v2518
        %v2520 = vadd.f32 %v2516, %v2519
        %vm2521 = vweird.f32 %v2509
        %vm2522 = vweird.f32 %v2516
        %vm2523 = vmor %vm2521, %vm2522
        %v2524 = vsel %vm2523, %v2516, %v2520
        %v2525 = vand.u32 2147483647, %v2509
        %vm2526 = vcmp.eq.f32.partialorder %v2525, 8.507059e+37
        %v2527 = vand.u32 %v2509, 2147483648
        %v2528 = vor.u32 1.1754944e-38, %v2527
        %v2529 = vsel %vm2526, %v2528, %v2524
        %v2530 = vmul.f32 %v2502, %v2529
        %v2531 = vrcp.pop %v2512
        %v2532 = vmul.f32 %v2512, %v2531
        %v2533 = vsub.f32 1.0, %v2532
        %v2534 = vmul.f32 %v2531, %v2533
        %v2535 = vadd.f32 %v2531, %v2534
        %vm2536 = vweird.f32 %v2512
        %vm2537 = vweird.f32 %v2531
        %vm2538 = vmor %vm2536, %vm2537
        %v2539 = vsel %vm2538, %v2531, %v2535
        %v2540 = vand.u32 2147483647, %v2512
        %vm2541 = vcmp.eq.f32.partialorder %v2540, 8.507059e+37
        %v2542 = vand.u32 %v2512, 2147483648
        %v2543 = vor.u32 1.1754944e-38, %v2542
        %v2544 = vsel %vm2541, %v2543, %v2539
        %v2545 = vmul.f32 %v2504, %v2544
        %v2546 = vrcp.pop %v2515
        %v2547 = vmul.f32 %v2515, %v2546
        %v2548 = vsub.f32 1.0, %v2547
        %v2549 = vmul.f32 %v2546, %v2548
        %v2550 = vadd.f32 %v2546, %v2549
        %vm2551 = vweird.f32 %v2515
        %vm2552 = vweird.f32 %v2546
        %vm2553 = vmor %vm2551, %vm2552
        %v2554 = vsel %vm2553, %v2546, %v2550
        %v2555 = vand.u32 2147483647, %v2515
        %vm2556 = vcmp.eq.f32.partialorder %v2555, 8.507059e+37
        %v2557 = vand.u32 %v2515, 2147483648
        %v2558 = vor.u32 1.1754944e-38, %v2557
        %v2559 = vsel %vm2556, %v2558, %v2554
        %v2560 = vmul.f32 %v2506, %v2559
        %2561 = vrot.lane.b32.xlu0 %v2061, 48
        %v2562 = vpop.permute.xlu0 %2561
        %2563 = vrot.lane.b32.xlu0 %v2064, 48
        %v2564 = vpop.permute.xlu0 %2563
        %2565 = vrot.lane.b32.xlu0 %v2067, 48
        %v2566 = vpop.permute.xlu0 %2565
        %v2570 = vsel %vm1327, %v2530, 0
        %v2573 = vsel %vm1327, %v2545, 0
        %v2576 = vsel %vm1327, %v2560, 0
        %v2578 = vsel %vm1088, %v2566, 0
        %2580 = vmatpush.msra.mxu0 0.0
        %2581 = vmatpush.msra.mxu0 0.0
        %2582 = vmatpush.msra.mxu0 0.0
        %2583 = vmatpush.msra.mxu0 0.0
        %2584 = vmatpush.msra.mxu0 0.0
        %2585 = vmatpush.msra.mxu0 0.0
        %2586 = vmatpush.msra.mxu0 0.0
        %2587 = vmatpush.msra.mxu0 0.0
        %2588 = vmatpush.msra.mxu0 0.0
        %2589 = vmatpush.msra.mxu0 0.0
        %2590 = vmatpush.msra.mxu0 0.0
        %2591 = vmatpush.msra.mxu0 0.0
        %2592 = vmatpush.msra.mxu0 0.0
        %2593 = vmatpush.msra.mxu0 %v2578
        %2594 = vmatpush.msra.mxu0 %v2564
        %2595 = vmatpush.msra.mxu0 %v2562
        %2596 = vmatmul.f32.gmra.mxu0 %v2570
        %v2597 = vpop.f32.mrf.mxu0
        %v2598 = vadd.f32 0.0, %v2597
        %2599 = vmatmul.f32.gmra.mxu0 %v2573
        %v2600 = vpop.f32.mrf.mxu0
        %v2601 = vadd.f32 0.0, %v2600
        %2602 = vmatmul.f32.gmra.mxu0 %v2576
        %v2603 = vpop.f32.mrf.mxu0
        %v2604 = vadd.f32 0.0, %v2603
        %2605 = vdwg.mxu0
        %2609 = vrot.lane.b32.xlu0 %v2598, 88
        %v2610 = vpop.permute.xlu0 %2609
        %2611 = vrot.lane.b32.xlu0 %v2601, 88
        %v2612 = vpop.permute.xlu0 %2611
        %2613 = vrot.lane.b32.xlu0 %v2604, 88
        %v2614 = vpop.permute.xlu0 %2613
        %v2618 = vadd.f32 %v2061, %v2610
        %v2619 = vadd.f32 %v2064, %v2612
        %v2620 = vadd.f32 %v2067, %v2614
        %2621 = vrot.lane.b32.xlu0 %v2061, 24
        %v2622 = vpop.permute.xlu0 %2621
        %2623 = vrot.lane.b32.xlu0 %v2064, 24
        %v2624 = vpop.permute.xlu0 %2623
        %2625 = vrot.lane.b32.xlu0 %v2067, 24
        %v2626 = vpop.permute.xlu0 %2625
        %2627 = vrot.lane.b32.xlu0 %v2061, 32
        %v2628 = vpop.permute.xlu0 %2627
        %2629 = vrot.lane.b32.xlu0 %v2064, 32
        %v2630 = vpop.permute.xlu0 %2629
        %2631 = vrot.lane.b32.xlu0 %v2067, 32
        %v2632 = vpop.permute.xlu0 %2631
        %v2633 = vsel %vm1285, %v2622, 0
        %v2635 = vsel %vm1285, %v2624, 0
        %v2637 = vsel %vm1285, %v2626, 0
        %v2639 = vsel %vm1285, %v2628, 0
        %v2641 = vsel %vm1285, %v2630, 0
        %v2643 = vsel %vm1285, %v2632, 0
        %2645 = vmatpush.xpose.msra.mxu0 0.0
        %2646 = vmatpush.xpose.msra.mxu0 0.0
        %2647 = vmatpush.xpose.msra.mxu0 0.0
        %2648 = vmatpush.xpose.msra.mxu0 0.0
        %2649 = vmatpush.xpose.msra.mxu0 0.0
        %2650 = vmatpush.xpose.msra.mxu0 0.0
        %2651 = vmatpush.xpose.msra.mxu0 0.0
        %2652 = vmatpush.xpose.msra.mxu0 0.0
        %2653 = vmatpush.xpose.msra.mxu0 0.0
        %2654 = vmatpush.xpose.msra.mxu0 0.0
        %2655 = vmatpush.xpose.msra.mxu0 0.0
        %2656 = vmatpush.xpose.msra.mxu0 0.0
        %2657 = vmatpush.xpose.msra.mxu0 0.0
        %2658 = vmatpush.xpose.msra.mxu0 %v2643
        %2659 = vmatpush.xpose.msra.mxu0 %v2641
        %2660 = vmatpush.xpose.msra.mxu0 %v2639
        %2661 = vmatmul.f32.gmra.mxu0 %v2633
        %v2662 = vpop.f32.mrf.mxu0
        %v2663 = vadd.f32 0.0, %v2662
        %2664 = vmatmul.f32.gmra.mxu0 %v2635
        %v2665 = vpop.f32.mrf.mxu0
        %v2666 = vadd.f32 0.0, %v2665
        %2667 = vmatmul.f32.gmra.mxu0 %v2637
        %v2668 = vpop.f32.mrf.mxu0
        %v2669 = vadd.f32 0.0, %v2668
        %2670 = vdwg.mxu0
        %v2671 = vmul.f32 %v2663, 0.35355338
        %v2672 = vmul.f32 %v2666, 0.35355338
        %v2673 = vmul.f32 %v2669, 0.35355338
        %v2674 = vsel %vm1327, %v2671, -inf
        %2675 = vmax.xlane.f32.xlu0 %v2674
        %v2676 = vpop.xlane.xlu0 %2675
        %v2677 = vsel %vm1327, %v2672, -inf
        %2678 = vmax.xlane.f32.xlu0 %v2677
        %v2679 = vpop.xlane.xlu0 %2678
        %v2680 = vsel %vm1334, %v2673, -inf
        %2681 = vmax.xlane.f32.xlu0 %v2680
        %v2682 = vpop.xlane.xlu0 %2681
        %v2683 = vsub.f32 %v2671, %v2676
        %v2684 = vsub.f32 %v2672, %v2679
        %v2685 = vsub.f32 %v2673, %v2682
        %v2686 = vmul.f32 %v2683, 1.442695
        %v2687 = vpow.pop %v2686
        %v2688 = vmul.f32 %v2684, 1.442695
        %v2689 = vpow.pop %v2688
        %v2690 = vmul.f32 %v2685, 1.442695
        %v2691 = vpow.pop %v2690
        %v2692 = vsel %vm1327, %v2687, 0.0
        %2693 = vadd.xlane.f32.xlu0 %v2692
        %v2694 = vpop.xlane.xlu0 %2693
        %v2695 = vsel %vm1327, %v2689, 0.0
        %2696 = vadd.xlane.f32.xlu0 %v2695
        %v2697 = vpop.xlane.xlu0 %2696
        %v2698 = vsel %vm1334, %v2691, 0.0
        %2699 = vadd.xlane.f32.xlu0 %v2698
        %v2700 = vpop.xlane.xlu0 %2699
        %v2701 = vrcp.pop %v2694
        %v2702 = vmul.f32 %v2694, %v2701
        %v2703 = vsub.f32 1.0, %v2702
        %v2704 = vmul.f32 %v2701, %v2703
        %v2705 = vadd.f32 %v2701, %v2704
        %vm2706 = vweird.f32 %v2694
        %vm2707 = vweird.f32 %v2701
        %vm2708 = vmor %vm2706, %vm2707
        %v2709 = vsel %vm2708, %v2701, %v2705
        %v2710 = vand.u32 2147483647, %v2694
        %vm2711 = vcmp.eq.f32.partialorder %v2710, 8.507059e+37
        %v2712 = vand.u32 %v2694, 2147483648
        %v2713 = vor.u32 1.1754944e-38, %v2712
        %v2714 = vsel %vm2711, %v2713, %v2709
        %v2715 = vmul.f32 %v2687, %v2714
        %v2716 = vrcp.pop %v2697
        %v2717 = vmul.f32 %v2697, %v2716
        %v2718 = vsub.f32 1.0, %v2717
        %v2719 = vmul.f32 %v2716, %v2718
        %v2720 = vadd.f32 %v2716, %v2719
        %vm2721 = vweird.f32 %v2697
        %vm2722 = vweird.f32 %v2716
        %vm2723 = vmor %vm2721, %vm2722
        %v2724 = vsel %vm2723, %v2716, %v2720
        %v2725 = vand.u32 2147483647, %v2697
        %vm2726 = vcmp.eq.f32.partialorder %v2725, 8.507059e+37
        %v2727 = vand.u32 %v2697, 2147483648
        %v2728 = vor.u32 1.1754944e-38, %v2727
        %v2729 = vsel %vm2726, %v2728, %v2724
        %v2730 = vmul.f32 %v2689, %v2729
        %v2731 = vrcp.pop %v2700
        %v2732 = vmul.f32 %v2700, %v2731
        %v2733 = vsub.f32 1.0, %v2732
        %v2734 = vmul.f32 %v2731, %v2733
        %v2735 = vadd.f32 %v2731, %v2734
        %vm2736 = vweird.f32 %v2700
        %vm2737 = vweird.f32 %v2731
        %vm2738 = vmor %vm2736, %vm2737
        %v2739 = vsel %vm2738, %v2731, %v2735
        %v2740 = vand.u32 2147483647, %v2700
        %vm2741 = vcmp.eq.f32.partialorder %v2740, 8.507059e+37
        %v2742 = vand.u32 %v2700, 2147483648
        %v2743 = vor.u32 1.1754944e-38, %v2742
        %v2744 = vsel %vm2741, %v2743, %v2739
        %v2745 = vmul.f32 %v2691, %v2744
        %2746 = vrot.lane.b32.xlu0 %v2061, 16
        %v2747 = vpop.permute.xlu0 %2746
        %2748 = vrot.lane.b32.xlu0 %v2064, 16
        %v2749 = vpop.permute.xlu0 %2748
        %2750 = vrot.lane.b32.xlu0 %v2067, 16
        %v2751 = vpop.permute.xlu0 %2750
        %v2755 = vsel %vm1327, %v2715, 0
        %v2758 = vsel %vm1327, %v2730, 0
        %v2761 = vsel %vm1327, %v2745, 0
        %v2763 = vsel %vm1088, %v2751, 0
        %2765 = vmatpush.msra.mxu0 0.0
        %2766 = vmatpush.msra.mxu0 0.0
        %2767 = vmatpush.msra.mxu0 0.0
        %2768 = vmatpush.msra.mxu0 0.0
        %2769 = vmatpush.msra.mxu0 0.0
        %2770 = vmatpush.msra.mxu0 0.0
        %2771 = vmatpush.msra.mxu0 0.0
        %2772 = vmatpush.msra.mxu0 0.0
        %2773 = vmatpush.msra.mxu0 0.0
        %2774 = vmatpush.msra.mxu0 0.0
        %2775 = vmatpush.msra.mxu0 0.0
        %2776 = vmatpush.msra.mxu0 0.0
        %2777 = vmatpush.msra.mxu0 0.0
        %2778 = vmatpush.msra.mxu0 %v2763
        %2779 = vmatpush.msra.mxu0 %v2749
        %2780 = vmatpush.msra.mxu0 %v2747
        %2781 = vmatmul.f32.gmra.mxu0 %v2755
        %v2782 = vpop.f32.mrf.mxu0
        %v2783 = vadd.f32 0.0, %v2782
        %2784 = vmatmul.f32.gmra.mxu0 %v2758
        %v2785 = vpop.f32.mrf.mxu0
        %v2786 = vadd.f32 0.0, %v2785
        %2787 = vmatmul.f32.gmra.mxu0 %v2761
        %v2788 = vpop.f32.mrf.mxu0
        %v2789 = vadd.f32 0.0, %v2788
        %2790 = vdwg.mxu0
        %2794 = vrot.lane.b32.xlu0 %v2783, 120
        %v2795 = vpop.permute.xlu0 %2794
        %2796 = vrot.lane.b32.xlu0 %v2786, 120
        %v2797 = vpop.permute.xlu0 %2796
        %2798 = vrot.lane.b32.xlu0 %v2789, 120
        %v2799 = vpop.permute.xlu0 %2798
        %v2803 = vadd.f32 %v2061, %v2795
        %v2804 = vadd.f32 %v2064, %v2797
        %v2805 = vadd.f32 %v2067, %v2799
        %v2806 = vsel %vm2016, %v2061, %v2248
        %v2807 = vsel %vm2016, %v2064, %v2249
        %v2808 = vsel %vm2016, %v2067, %v2250
        %v2809 = vsel %vm1151, %v2806, %v2061
        %v2810 = vsel %vm1151, %v2807, %v2064
        %v2811 = vsel %vm1151, %v2808, %v2067
        %v2812 = vsel %vm2023, %v2809, %v2433
        %v2813 = vsel %vm2023, %v2810, %v2434
        %v2814 = vsel %vm2023, %v2811, %v2435
        %v2815 = vsel %vm2027, %v2812, %v2061
        %v2816 = vsel %vm2027, %v2813, %v2064
        %v2817 = vsel %vm2027, %v2814, %v2067
        %v2818 = vsel %vm2031, %v2815, %v2618
        %v2819 = vsel %vm2031, %v2816, %v2619
        %v2820 = vsel %vm2031, %v2817, %v2620
        %v2821 = vsel %vm2035, %v2818, %v2061
        %v2822 = vsel %vm2035, %v2819, %v2064
        %v2823 = vsel %vm2035, %v2820, %v2067
        %v2824 = vsel %vm2039, %v2821, %v2803
        %v2825 = vsel %vm2039, %v2822, %v2804
        %v2826 = vsel %vm2039, %v2823, %v2805
        %2827 = vmatpush.msra.mxu0 %v1121
        %2828 = vmatpush.msra.mxu0 %v1120
        %2829 = vmatpush.msra.mxu0 %v1119
        %2830 = vmatpush.msra.mxu0 %v1118
        %2831 = vmatpush.msra.mxu0 %v1117
        %2832 = vmatpush.msra.mxu0 %v1116
        %2833 = vmatpush.msra.mxu0 %v1115
        %2834 = vmatpush.msra.mxu0 %v1114
        %2835 = vmatpush.msra.mxu0 %v1113
        %2836 = vmatpush.msra.mxu0 %v1112
        %2837 = vmatpush.msra.mxu0 %v1111
        %2838 = vmatpush.msra.mxu0 %v1110
        %2839 = vmatpush.msra.mxu0 %v1109
        %2840 = vmatpush.msra.mxu0 %v1108
        %2841 = vmatpush.msra.mxu0 %v1107
        %2842 = vmatpush.msra.mxu0 %v1106
        %2843 = vmatmul.f32.gmra.mxu0 %v2824
        %v2844 = vpop.f32.mrf.mxu0
        %v2845 = vadd.f32 %v1268, %v2844
        %2846 = vmatmul.f32.gmra.mxu0 %v2825
        %v2847 = vpop.f32.mrf.mxu0
        %v2848 = vadd.f32 %v1271, %v2847
        %2849 = vmatmul.f32.gmra.mxu0 %v2826
        %v2850 = vpop.f32.mrf.mxu0
        %v2851 = vadd.f32 %v1274, %v2850
        %2852 = vdwg.mxu0
        %2856 = vrot.lane.b32.xlu0 %v2845, 120
        %v2857 = vpop.permute.xlu0 %2856
        %2858 = vrot.lane.b32.xlu0 %v2848, 120
        %v2859 = vpop.permute.xlu0 %2858
        %2860 = vrot.lane.b32.xlu0 %v2851, 120
        %v2861 = vpop.permute.xlu0 %2860
        %v2862 = vsel %vm1285, %v2857, 0
        %v2864 = vsel %vm1285, %v2859, 0
        %v2866 = vsel %vm1285, %v2861, 0
        %v2868 = vsel %vm1285, %v2845, 0
        %v2870 = vsel %vm1285, %v2848, 0
        %v2872 = vsel %vm1285, %v2851, 0
        %2874 = vmatpush.xpose.msra.mxu0 0.0
        %2875 = vmatpush.xpose.msra.mxu0 0.0
        %2876 = vmatpush.xpose.msra.mxu0 0.0
        %2877 = vmatpush.xpose.msra.mxu0 0.0
        %2878 = vmatpush.xpose.msra.mxu0 0.0
        %2879 = vmatpush.xpose.msra.mxu0 0.0
        %2880 = vmatpush.xpose.msra.mxu0 0.0
        %2881 = vmatpush.xpose.msra.mxu0 0.0
        %2882 = vmatpush.xpose.msra.mxu0 0.0
        %2883 = vmatpush.xpose.msra.mxu0 0.0
        %2884 = vmatpush.xpose.msra.mxu0 0.0
        %2885 = vmatpush.xpose.msra.mxu0 0.0
        %2886 = vmatpush.xpose.msra.mxu0 0.0
        %2887 = vmatpush.xpose.msra.mxu0 %v2872
        %2888 = vmatpush.xpose.msra.mxu0 %v2870
        %2889 = vmatpush.xpose.msra.mxu0 %v2868
        %2890 = vmatmul.f32.gmra.mxu0 %v2862
        %v2891 = vpop.f32.mrf.mxu0
        %v2892 = vadd.f32 0.0, %v2891
        %2893 = vmatmul.f32.gmra.mxu0 %v2864
        %v2894 = vpop.f32.mrf.mxu0
        %v2895 = vadd.f32 0.0, %v2894
        %2896 = vmatmul.f32.gmra.mxu0 %v2866
        %v2897 = vpop.f32.mrf.mxu0
        %v2898 = vadd.f32 0.0, %v2897
        %2899 = vdwg.mxu0
        %v2900 = vmul.f32 %v2892, 0.35355338
        %v2901 = vmul.f32 %v2895, 0.35355338
        %v2902 = vmul.f32 %v2898, 0.35355338
        %v2903 = vsel %vm1327, %v2900, -inf
        %2904 = vmax.xlane.f32.xlu0 %v2903
        %v2905 = vpop.xlane.xlu0 %2904
        %v2906 = vsel %vm1327, %v2901, -inf
        %2907 = vmax.xlane.f32.xlu0 %v2906
        %v2908 = vpop.xlane.xlu0 %2907
        %v2909 = vsel %vm1334, %v2902, -inf
        %2910 = vmax.xlane.f32.xlu0 %v2909
        %v2911 = vpop.xlane.xlu0 %2910
        %v2912 = vsub.f32 %v2900, %v2905
        %v2913 = vsub.f32 %v2901, %v2908
        %v2914 = vsub.f32 %v2902, %v2911
        %v2915 = vmul.f32 %v2912, 1.442695
        %v2916 = vpow.pop %v2915
        %v2917 = vmul.f32 %v2913, 1.442695
        %v2918 = vpow.pop %v2917
        %v2919 = vmul.f32 %v2914, 1.442695
        %v2920 = vpow.pop %v2919
        %v2921 = vsel %vm1327, %v2916, 0.0
        %2922 = vadd.xlane.f32.xlu0 %v2921
        %v2923 = vpop.xlane.xlu0 %2922
        %v2924 = vsel %vm1327, %v2918, 0.0
        %2925 = vadd.xlane.f32.xlu0 %v2924
        %v2926 = vpop.xlane.xlu0 %2925
        %v2927 = vsel %vm1334, %v2920, 0.0
        %2928 = vadd.xlane.f32.xlu0 %v2927
        %v2929 = vpop.xlane.xlu0 %2928
        %v2930 = vrcp.pop %v2923
        %v2931 = vmul.f32 %v2923, %v2930
        %v2932 = vsub.f32 1.0, %v2931
        %v2933 = vmul.f32 %v2930, %v2932
        %v2934 = vadd.f32 %v2930, %v2933
        %vm2935 = vweird.f32 %v2923
        %vm2936 = vweird.f32 %v2930
        %vm2937 = vmor %vm2935, %vm2936
        %v2938 = vsel %vm2937, %v2930, %v2934
        %v2939 = vand.u32 2147483647, %v2923
        %vm2940 = vcmp.eq.f32.partialorder %v2939, 8.507059e+37
        %v2941 = vand.u32 %v2923, 2147483648
        %v2942 = vor.u32 1.1754944e-38, %v2941
        %v2943 = vsel %vm2940, %v2942, %v2938
        %v2944 = vmul.f32 %v2916, %v2943
        %v2945 = vrcp.pop %v2926
        %v2946 = vmul.f32 %v2926, %v2945
        %v2947 = vsub.f32 1.0, %v2946
        %v2948 = vmul.f32 %v2945, %v2947
        %v2949 = vadd.f32 %v2945, %v2948
        %vm2950 = vweird.f32 %v2926
        %vm2951 = vweird.f32 %v2945
        %vm2952 = vmor %vm2950, %vm2951
        %v2953 = vsel %vm2952, %v2945, %v2949
        %v2954 = vand.u32 2147483647, %v2926
        %vm2955 = vcmp.eq.f32.partialorder %v2954, 8.507059e+37
        %v2956 = vand.u32 %v2926, 2147483648
        %v2957 = vor.u32 1.1754944e-38, %v2956
        %v2958 = vsel %vm2955, %v2957, %v2953
        %v2959 = vmul.f32 %v2918, %v2958
        %v2960 = vrcp.pop %v2929
        %v2961 = vmul.f32 %v2929, %v2960
        %v2962 = vsub.f32 1.0, %v2961
        %v2963 = vmul.f32 %v2960, %v2962
        %v2964 = vadd.f32 %v2960, %v2963
        %vm2965 = vweird.f32 %v2929
        %vm2966 = vweird.f32 %v2960
        %vm2967 = vmor %vm2965, %vm2966
        %v2968 = vsel %vm2967, %v2960, %v2964
        %v2969 = vand.u32 2147483647, %v2929
        %vm2970 = vcmp.eq.f32.partialorder %v2969, 8.507059e+37
        %v2971 = vand.u32 %v2929, 2147483648
        %v2972 = vor.u32 1.1754944e-38, %v2971
        %v2973 = vsel %vm2970, %v2972, %v2968
        %v2974 = vmul.f32 %v2920, %v2973
        %2975 = vrot.lane.b32.xlu0 %v2845, 112
        %v2976 = vpop.permute.xlu0 %2975
        %2977 = vrot.lane.b32.xlu0 %v2848, 112
        %v2978 = vpop.permute.xlu0 %2977
        %2979 = vrot.lane.b32.xlu0 %v2851, 112
        %v2980 = vpop.permute.xlu0 %2979
        %v2984 = vsel %vm1327, %v2944, 0
        %v2987 = vsel %vm1327, %v2959, 0
        %v2990 = vsel %vm1327, %v2974, 0
        %v2992 = vsel %vm1088, %v2980, 0
        %2994 = vmatpush.msra.mxu0 0.0
        %2995 = vmatpush.msra.mxu0 0.0
        %2996 = vmatpush.msra.mxu0 0.0
        %2997 = vmatpush.msra.mxu0 0.0
        %2998 = vmatpush.msra.mxu0 0.0
        %2999 = vmatpush.msra.mxu0 0.0
        %3000 = vmatpush.msra.mxu0 0.0
        %3001 = vmatpush.msra.mxu0 0.0
        %3002 = vmatpush.msra.mxu0 0.0
        %3003 = vmatpush.msra.mxu0 0.0
        %3004 = vmatpush.msra.mxu0 0.0
        %3005 = vmatpush.msra.mxu0 0.0
        %3006 = vmatpush.msra.mxu0 0.0
        %3007 = vmatpush.msra.mxu0 %v2992
        %3008 = vmatpush.msra.mxu0 %v2978
        %3009 = vmatpush.msra.mxu0 %v2976
        %3010 = vmatmul.f32.gmra.mxu0 %v2984
        %v3011 = vpop.f32.mrf.mxu0
        %v3012 = vadd.f32 0.0, %v3011
        %3013 = vmatmul.f32.gmra.mxu0 %v2987
        %v3014 = vpop.f32.mrf.mxu0
        %v3015 = vadd.f32 0.0, %v3014
        %3016 = vmatmul.f32.gmra.mxu0 %v2990
        %v3017 = vpop.f32.mrf.mxu0
        %v3018 = vadd.f32 0.0, %v3017
        %3019 = vdwg.mxu0
        %3023 = vrot.lane.b32.xlu0 %v3012, 24
        %v3024 = vpop.permute.xlu0 %3023
        %3025 = vrot.lane.b32.xlu0 %v3015, 24
        %v3026 = vpop.permute.xlu0 %3025
        %3027 = vrot.lane.b32.xlu0 %v3018, 24
        %v3028 = vpop.permute.xlu0 %3027
        %v3032 = vadd.f32 %v2845, %v3024
        %v3033 = vadd.f32 %v2848, %v3026
        %v3034 = vadd.f32 %v2851, %v3028
        %3035 = vrot.lane.b32.xlu0 %v2845, 88
        %v3036 = vpop.permute.xlu0 %3035
        %3037 = vrot.lane.b32.xlu0 %v2848, 88
        %v3038 = vpop.permute.xlu0 %3037
        %3039 = vrot.lane.b32.xlu0 %v2851, 88
        %v3040 = vpop.permute.xlu0 %3039
        %3041 = vrot.lane.b32.xlu0 %v2845, 96
        %v3042 = vpop.permute.xlu0 %3041
        %3043 = vrot.lane.b32.xlu0 %v2848, 96
        %v3044 = vpop.permute.xlu0 %3043
        %3045 = vrot.lane.b32.xlu0 %v2851, 96
        %v3046 = vpop.permute.xlu0 %3045
        %v3047 = vsel %vm1285, %v3036, 0
        %v3049 = vsel %vm1285, %v3038, 0
        %v3051 = vsel %vm1285, %v3040, 0
        %v3053 = vsel %vm1285, %v3042, 0
        %v3055 = vsel %vm1285, %v3044, 0
        %v3057 = vsel %vm1285, %v3046, 0
        %3059 = vmatpush.xpose.msra.mxu0 0.0
        %3060 = vmatpush.xpose.msra.mxu0 0.0
        %3061 = vmatpush.xpose.msra.mxu0 0.0
        %3062 = vmatpush.xpose.msra.mxu0 0.0
        %3063 = vmatpush.xpose.msra.mxu0 0.0
        %3064 = vmatpush.xpose.msra.mxu0 0.0
        %3065 = vmatpush.xpose.msra.mxu0 0.0
        %3066 = vmatpush.xpose.msra.mxu0 0.0
        %3067 = vmatpush.xpose.msra.mxu0 0.0
        %3068 = vmatpush.xpose.msra.mxu0 0.0
        %3069 = vmatpush.xpose.msra.mxu0 0.0
        %3070 = vmatpush.xpose.msra.mxu0 0.0
        %3071 = vmatpush.xpose.msra.mxu0 0.0
        %3072 = vmatpush.xpose.msra.mxu0 %v3057
        %3073 = vmatpush.xpose.msra.mxu0 %v3055
        %3074 = vmatpush.xpose.msra.mxu0 %v3053
        %3075 = vmatmul.f32.gmra.mxu0 %v3047
        %v3076 = vpop.f32.mrf.mxu0
        %v3077 = vadd.f32 0.0, %v3076
        %3078 = vmatmul.f32.gmra.mxu0 %v3049
        %v3079 = vpop.f32.mrf.mxu0
        %v3080 = vadd.f32 0.0, %v3079
        %3081 = vmatmul.f32.gmra.mxu0 %v3051
        %v3082 = vpop.f32.mrf.mxu0
        %v3083 = vadd.f32 0.0, %v3082
        %3084 = vdwg.mxu0
        %v3085 = vmul.f32 %v3077, 0.35355338
        %v3086 = vmul.f32 %v3080, 0.35355338
        %v3087 = vmul.f32 %v3083, 0.35355338
        %v3088 = vsel %vm1327, %v3085, -inf
        %3089 = vmax.xlane.f32.xlu0 %v3088
        %v3090 = vpop.xlane.xlu0 %3089
        %v3091 = vsel %vm1327, %v3086, -inf
        %3092 = vmax.xlane.f32.xlu0 %v3091
        %v3093 = vpop.xlane.xlu0 %3092
        %v3094 = vsel %vm1334, %v3087, -inf
        %3095 = vmax.xlane.f32.xlu0 %v3094
        %v3096 = vpop.xlane.xlu0 %3095
        %v3097 = vsub.f32 %v3085, %v3090
        %v3098 = vsub.f32 %v3086, %v3093
        %v3099 = vsub.f32 %v3087, %v3096
        %v3100 = vmul.f32 %v3097, 1.442695
        %v3101 = vpow.pop %v3100
        %v3102 = vmul.f32 %v3098, 1.442695
        %v3103 = vpow.pop %v3102
        %v3104 = vmul.f32 %v3099, 1.442695
        %v3105 = vpow.pop %v3104
        %v3106 = vsel %vm1327, %v3101, 0.0
        %3107 = vadd.xlane.f32.xlu0 %v3106
        %v3108 = vpop.xlane.xlu0 %3107
        %v3109 = vsel %vm1327, %v3103, 0.0
        %3110 = vadd.xlane.f32.xlu0 %v3109
        %v3111 = vpop.xlane.xlu0 %3110
        %v3112 = vsel %vm1334, %v3105, 0.0
        %3113 = vadd.xlane.f32.xlu0 %v3112
        %v3114 = vpop.xlane.xlu0 %3113
        %v3115 = vrcp.pop %v3108
        %v3116 = vmul.f32 %v3108, %v3115
        %v3117 = vsub.f32 1.0, %v3116
        %v3118 = vmul.f32 %v3115, %v3117
        %v3119 = vadd.f32 %v3115, %v3118
        %vm3120 = vweird.f32 %v3108
        %vm3121 = vweird.f32 %v3115
        %vm3122 = vmor %vm3120, %vm3121
        %v3123 = vsel %vm3122, %v3115, %v3119
        %v3124 = vand.u32 2147483647, %v3108
        %vm3125 = vcmp.eq.f32.partialorder %v3124, 8.507059e+37
        %v3126 = vand.u32 %v3108, 2147483648
        %v3127 = vor.u32 1.1754944e-38, %v3126
        %v3128 = vsel %vm3125, %v3127, %v3123
        %v3129 = vmul.f32 %v3101, %v3128
        %v3130 = vrcp.pop %v3111
        %v3131 = vmul.f32 %v3111, %v3130
        %v3132 = vsub.f32 1.0, %v3131
        %v3133 = vmul.f32 %v3130, %v3132
        %v3134 = vadd.f32 %v3130, %v3133
        %vm3135 = vweird.f32 %v3111
        %vm3136 = vweird.f32 %v3130
        %vm3137 = vmor %vm3135, %vm3136
        %v3138 = vsel %vm3137, %v3130, %v3134
        %v3139 = vand.u32 2147483647, %v3111
        %vm3140 = vcmp.eq.f32.partialorder %v3139, 8.507059e+37
        %v3141 = vand.u32 %v3111, 2147483648
        %v3142 = vor.u32 1.1754944e-38, %v3141
        %v3143 = vsel %vm3140, %v3142, %v3138
        %v3144 = vmul.f32 %v3103, %v3143
        %v3145 = vrcp.pop %v3114
        %v3146 = vmul.f32 %v3114, %v3145
        %v3147 = vsub.f32 1.0, %v3146
        %v3148 = vmul.f32 %v3145, %v3147
        %v3149 = vadd.f32 %v3145, %v3148
        %vm3150 = vweird.f32 %v3114
        %vm3151 = vweird.f32 %v3145
        %vm3152 = vmor %vm3150, %vm3151
        %v3153 = vsel %vm3152, %v3145, %v3149
        %v3154 = vand.u32 2147483647, %v3114
        %vm3155 = vcmp.eq.f32.partialorder %v3154, 8.507059e+37
        %v3156 = vand.u32 %v3114, 2147483648
        %v3157 = vor.u32 1.1754944e-38, %v3156
        %v3158 = vsel %vm3155, %v3157, %v3153
        %v3159 = vmul.f32 %v3105, %v3158
        %3160 = vrot.lane.b32.xlu0 %v2845, 80
        %v3161 = vpop.permute.xlu0 %3160
        %3162 = vrot.lane.b32.xlu0 %v2848, 80
        %v3163 = vpop.permute.xlu0 %3162
        %3164 = vrot.lane.b32.xlu0 %v2851, 80
        %v3165 = vpop.permute.xlu0 %3164
        %v3169 = vsel %vm1327, %v3129, 0
        %v3172 = vsel %vm1327, %v3144, 0
        %v3175 = vsel %vm1327, %v3159, 0
        %v3177 = vsel %vm1088, %v3165, 0
        %3179 = vmatpush.msra.mxu0 0.0
        %3180 = vmatpush.msra.mxu0 0.0
        %3181 = vmatpush.msra.mxu0 0.0
        %3182 = vmatpush.msra.mxu0 0.0
        %3183 = vmatpush.msra.mxu0 0.0
        %3184 = vmatpush.msra.mxu0 0.0
        %3185 = vmatpush.msra.mxu0 0.0
        %3186 = vmatpush.msra.mxu0 0.0
        %3187 = vmatpush.msra.mxu0 0.0
        %3188 = vmatpush.msra.mxu0 0.0
        %3189 = vmatpush.msra.mxu0 0.0
        %3190 = vmatpush.msra.mxu0 0.0
        %3191 = vmatpush.msra.mxu0 0.0
        %3192 = vmatpush.msra.mxu0 %v3177
        %3193 = vmatpush.msra.mxu0 %v3163
        %3194 = vmatpush.msra.mxu0 %v3161
        %3195 = vmatmul.f32.gmra.mxu0 %v3169
        %v3196 = vpop.f32.mrf.mxu0
        %v3197 = vadd.f32 0.0, %v3196
        %3198 = vmatmul.f32.gmra.mxu0 %v3172
        %v3199 = vpop.f32.mrf.mxu0
        %v3200 = vadd.f32 0.0, %v3199
        %3201 = vmatmul.f32.gmra.mxu0 %v3175
        %v3202 = vpop.f32.mrf.mxu0
        %v3203 = vadd.f32 0.0, %v3202
        %3204 = vdwg.mxu0
        %3208 = vrot.lane.b32.xlu0 %v3197, 56
        %v3209 = vpop.permute.xlu0 %3208
        %3210 = vrot.lane.b32.xlu0 %v3200, 56
        %v3211 = vpop.permute.xlu0 %3210
        %3212 = vrot.lane.b32.xlu0 %v3203, 56
        %v3213 = vpop.permute.xlu0 %3212
        %v3217 = vadd.f32 %v2845, %v3209
        %v3218 = vadd.f32 %v2848, %v3211
        %v3219 = vadd.f32 %v2851, %v3213
        %3220 = vrot.lane.b32.xlu0 %v2845, 56
        %v3221 = vpop.permute.xlu0 %3220
        %3222 = vrot.lane.b32.xlu0 %v2848, 56
        %v3223 = vpop.permute.xlu0 %3222
        %3224 = vrot.lane.b32.xlu0 %v2851, 56
        %v3225 = vpop.permute.xlu0 %3224
        %3226 = vrot.lane.b32.xlu0 %v2845, 64
        %v3227 = vpop.permute.xlu0 %3226
        %3228 = vrot.lane.b32.xlu0 %v2848, 64
        %v3229 = vpop.permute.xlu0 %3228
        %3230 = vrot.lane.b32.xlu0 %v2851, 64
        %v3231 = vpop.permute.xlu0 %3230
        %v3232 = vsel %vm1285, %v3221, 0
        %v3234 = vsel %vm1285, %v3223, 0
        %v3236 = vsel %vm1285, %v3225, 0
        %v3238 = vsel %vm1285, %v3227, 0
        %v3240 = vsel %vm1285, %v3229, 0
        %v3242 = vsel %vm1285, %v3231, 0
        %3244 = vmatpush.xpose.msra.mxu0 0.0
        %3245 = vmatpush.xpose.msra.mxu0 0.0
        %3246 = vmatpush.xpose.msra.mxu0 0.0
        %3247 = vmatpush.xpose.msra.mxu0 0.0
        %3248 = vmatpush.xpose.msra.mxu0 0.0
        %3249 = vmatpush.xpose.msra.mxu0 0.0
        %3250 = vmatpush.xpose.msra.mxu0 0.0
        %3251 = vmatpush.xpose.msra.mxu0 0.0
        %3252 = vmatpush.xpose.msra.mxu0 0.0
        %3253 = vmatpush.xpose.msra.mxu0 0.0
        %3254 = vmatpush.xpose.msra.mxu0 0.0
        %3255 = vmatpush.xpose.msra.mxu0 0.0
        %3256 = vmatpush.xpose.msra.mxu0 0.0
        %3257 = vmatpush.xpose.msra.mxu0 %v3242
        %3258 = vmatpush.xpose.msra.mxu0 %v3240
        %3259 = vmatpush.xpose.msra.mxu0 %v3238
        %3260 = vmatmul.f32.gmra.mxu0 %v3232
        %v3261 = vpop.f32.mrf.mxu0
        %v3262 = vadd.f32 0.0, %v3261
        %3263 = vmatmul.f32.gmra.mxu0 %v3234
        %v3264 = vpop.f32.mrf.mxu0
        %v3265 = vadd.f32 0.0, %v3264
        %3266 = vmatmul.f32.gmra.mxu0 %v3236
        %v3267 = vpop.f32.mrf.mxu0
        %v3268 = vadd.f32 0.0, %v3267
        %3269 = vdwg.mxu0
        %v3270 = vmul.f32 %v3262, 0.35355338
        %v3271 = vmul.f32 %v3265, 0.35355338
        %v3272 = vmul.f32 %v3268, 0.35355338
        %v3273 = vsel %vm1327, %v3270, -inf
        %3274 = vmax.xlane.f32.xlu0 %v3273
        %v3275 = vpop.xlane.xlu0 %3274
        %v3276 = vsel %vm1327, %v3271, -inf
        %3277 = vmax.xlane.f32.xlu0 %v3276
        %v3278 = vpop.xlane.xlu0 %3277
        %v3279 = vsel %vm1334, %v3272, -inf
        %3280 = vmax.xlane.f32.xlu0 %v3279
        %v3281 = vpop.xlane.xlu0 %3280
        %v3282 = vsub.f32 %v3270, %v3275
        %v3283 = vsub.f32 %v3271, %v3278
        %v3284 = vsub.f32 %v3272, %v3281
        %v3285 = vmul.f32 %v3282, 1.442695
        %v3286 = vpow.pop %v3285
        %v3287 = vmul.f32 %v3283, 1.442695
        %v3288 = vpow.pop %v3287
        %v3289 = vmul.f32 %v3284, 1.442695
        %v3290 = vpow.pop %v3289
        %v3291 = vsel %vm1327, %v3286, 0.0
        %3292 = vadd.xlane.f32.xlu0 %v3291
        %v3293 = vpop.xlane.xlu0 %3292
        %v3294 = vsel %vm1327, %v3288, 0.0
        %3295 = vadd.xlane.f32.xlu0 %v3294
        %v3296 = vpop.xlane.xlu0 %3295
        %v3297 = vsel %vm1334, %v3290, 0.0
        %3298 = vadd.xlane.f32.xlu0 %v3297
        %v3299 = vpop.xlane.xlu0 %3298
        %v3300 = vrcp.pop %v3293
        %v3301 = vmul.f32 %v3293, %v3300
        %v3302 = vsub.f32 1.0, %v3301
        %v3303 = vmul.f32 %v3300, %v3302
        %v3304 = vadd.f32 %v3300, %v3303
        %vm3305 = vweird.f32 %v3293
        %vm3306 = vweird.f32 %v3300
        %vm3307 = vmor %vm3305, %vm3306
        %v3308 = vsel %vm3307, %v3300, %v3304
        %v3309 = vand.u32 2147483647, %v3293
        %vm3310 = vcmp.eq.f32.partialorder %v3309, 8.507059e+37
        %v3311 = vand.u32 %v3293, 2147483648
        %v3312 = vor.u32 1.1754944e-38, %v3311
        %v3313 = vsel %vm3310, %v3312, %v3308
        %v3314 = vmul.f32 %v3286, %v3313
        %v3315 = vrcp.pop %v3296
        %v3316 = vmul.f32 %v3296, %v3315
        %v3317 = vsub.f32 1.0, %v3316
        %v3318 = vmul.f32 %v3315, %v3317
        %v3319 = vadd.f32 %v3315, %v3318
        %vm3320 = vweird.f32 %v3296
        %vm3321 = vweird.f32 %v3315
        %vm3322 = vmor %vm3320, %vm3321
        %v3323 = vsel %vm3322, %v3315, %v3319
        %v3324 = vand.u32 2147483647, %v3296
        %vm3325 = vcmp.eq.f32.partialorder %v3324, 8.507059e+37
        %v3326 = vand.u32 %v3296, 2147483648
        %v3327 = vor.u32 1.1754944e-38, %v3326
        %v3328 = vsel %vm3325, %v3327, %v3323
        %v3329 = vmul.f32 %v3288, %v3328
        %v3330 = vrcp.pop %v3299
        %v3331 = vmul.f32 %v3299, %v3330
        %v3332 = vsub.f32 1.0, %v3331
        %v3333 = vmul.f32 %v3330, %v3332
        %v3334 = vadd.f32 %v3330, %v3333
        %vm3335 = vweird.f32 %v3299
        %vm3336 = vweird.f32 %v3330
        %vm3337 = vmor %vm3335, %vm3336
        %v3338 = vsel %vm3337, %v3330, %v3334
        %v3339 = vand.u32 2147483647, %v3299
        %vm3340 = vcmp.eq.f32.partialorder %v3339, 8.507059e+37
        %v3341 = vand.u32 %v3299, 2147483648
        %v3342 = vor.u32 1.1754944e-38, %v3341
        %v3343 = vsel %vm3340, %v3342, %v3338
        %v3344 = vmul.f32 %v3290, %v3343
        %3345 = vrot.lane.b32.xlu0 %v2845, 48
        %v3346 = vpop.permute.xlu0 %3345
        %3347 = vrot.lane.b32.xlu0 %v2848, 48
        %v3348 = vpop.permute.xlu0 %3347
        %3349 = vrot.lane.b32.xlu0 %v2851, 48
        %v3350 = vpop.permute.xlu0 %3349
        %v3354 = vsel %vm1327, %v3314, 0
        %v3357 = vsel %vm1327, %v3329, 0
        %v3360 = vsel %vm1327, %v3344, 0
        %v3362 = vsel %vm1088, %v3350, 0
        %3364 = vmatpush.msra.mxu0 0.0
        %3365 = vmatpush.msra.mxu0 0.0
        %3366 = vmatpush.msra.mxu0 0.0
        %3367 = vmatpush.msra.mxu0 0.0
        %3368 = vmatpush.msra.mxu0 0.0
        %3369 = vmatpush.msra.mxu0 0.0
        %3370 = vmatpush.msra.mxu0 0.0
        %3371 = vmatpush.msra.mxu0 0.0
        %3372 = vmatpush.msra.mxu0 0.0
        %3373 = vmatpush.msra.mxu0 0.0
        %3374 = vmatpush.msra.mxu0 0.0
        %3375 = vmatpush.msra.mxu0 0.0
        %3376 = vmatpush.msra.mxu0 0.0
        %3377 = vmatpush.msra.mxu0 %v3362
        %3378 = vmatpush.msra.mxu0 %v3348
        %3379 = vmatpush.msra.mxu0 %v3346
        %3380 = vmatmul.f32.gmra.mxu0 %v3354
        %v3381 = vpop.f32.mrf.mxu0
        %v3382 = vadd.f32 0.0, %v3381
        %3383 = vmatmul.f32.gmra.mxu0 %v3357
        %v3384 = vpop.f32.mrf.mxu0
        %v3385 = vadd.f32 0.0, %v3384
        %3386 = vmatmul.f32.gmra.mxu0 %v3360
        %v3387 = vpop.f32.mrf.mxu0
        %v3388 = vadd.f32 0.0, %v3387
        %3389 = vdwg.mxu0
        %3393 = vrot.lane.b32.xlu0 %v3382, 88
        %v3394 = vpop.permute.xlu0 %3393
        %3395 = vrot.lane.b32.xlu0 %v3385, 88
        %v3396 = vpop.permute.xlu0 %3395
        %3397 = vrot.lane.b32.xlu0 %v3388, 88
        %v3398 = vpop.permute.xlu0 %3397
        %v3402 = vadd.f32 %v2845, %v3394
        %v3403 = vadd.f32 %v2848, %v3396
        %v3404 = vadd.f32 %v2851, %v3398
        %3405 = vrot.lane.b32.xlu0 %v2845, 24
        %v3406 = vpop.permute.xlu0 %3405
        %3407 = vrot.lane.b32.xlu0 %v2848, 24
        %v3408 = vpop.permute.xlu0 %3407
        %3409 = vrot.lane.b32.xlu0 %v2851, 24
        %v3410 = vpop.permute.xlu0 %3409
        %3411 = vrot.lane.b32.xlu0 %v2845, 32
        %v3412 = vpop.permute.xlu0 %3411
        %3413 = vrot.lane.b32.xlu0 %v2848, 32
        %v3414 = vpop.permute.xlu0 %3413
        %3415 = vrot.lane.b32.xlu0 %v2851, 32
        %v3416 = vpop.permute.xlu0 %3415
        %v3417 = vsel %vm1285, %v3406, 0
        %v3419 = vsel %vm1285, %v3408, 0
        %v3421 = vsel %vm1285, %v3410, 0
        %v3423 = vsel %vm1285, %v3412, 0
        %v3425 = vsel %vm1285, %v3414, 0
        %v3427 = vsel %vm1285, %v3416, 0
        %3429 = vmatpush.xpose.msra.mxu0 0.0
        %3430 = vmatpush.xpose.msra.mxu0 0.0
        %3431 = vmatpush.xpose.msra.mxu0 0.0
        %3432 = vmatpush.xpose.msra.mxu0 0.0
        %3433 = vmatpush.xpose.msra.mxu0 0.0
        %3434 = vmatpush.xpose.msra.mxu0 0.0
        %3435 = vmatpush.xpose.msra.mxu0 0.0
        %3436 = vmatpush.xpose.msra.mxu0 0.0
        %3437 = vmatpush.xpose.msra.mxu0 0.0
        %3438 = vmatpush.xpose.msra.mxu0 0.0
        %3439 = vmatpush.xpose.msra.mxu0 0.0
        %3440 = vmatpush.xpose.msra.mxu0 0.0
        %3441 = vmatpush.xpose.msra.mxu0 0.0
        %3442 = vmatpush.xpose.msra.mxu0 %v3427
        %3443 = vmatpush.xpose.msra.mxu0 %v3425
        %3444 = vmatpush.xpose.msra.mxu0 %v3423
        %3445 = vmatmul.f32.gmra.mxu0 %v3417
        %v3446 = vpop.f32.mrf.mxu0
        %v3447 = vadd.f32 0.0, %v3446
        %3448 = vmatmul.f32.gmra.mxu0 %v3419
        %v3449 = vpop.f32.mrf.mxu0
        %v3450 = vadd.f32 0.0, %v3449
        %3451 = vmatmul.f32.gmra.mxu0 %v3421
        %v3452 = vpop.f32.mrf.mxu0
        %v3453 = vadd.f32 0.0, %v3452
        %3454 = vdwg.mxu0
        %v3455 = vmul.f32 %v3447, 0.35355338
        %v3456 = vmul.f32 %v3450, 0.35355338
        %v3457 = vmul.f32 %v3453, 0.35355338
        %v3458 = vsel %vm1327, %v3455, -inf
        %3459 = vmax.xlane.f32.xlu0 %v3458
        %v3460 = vpop.xlane.xlu0 %3459
        %v3461 = vsel %vm1327, %v3456, -inf
        %3462 = vmax.xlane.f32.xlu0 %v3461
        %v3463 = vpop.xlane.xlu0 %3462
        %v3464 = vsel %vm1334, %v3457, -inf
        %3465 = vmax.xlane.f32.xlu0 %v3464
        %v3466 = vpop.xlane.xlu0 %3465
        %v3467 = vsub.f32 %v3455, %v3460
        %v3468 = vsub.f32 %v3456, %v3463
        %v3469 = vsub.f32 %v3457, %v3466
        %v3470 = vmul.f32 %v3467, 1.442695
        %v3471 = vpow.pop %v3470
        %v3472 = vmul.f32 %v3468, 1.442695
        %v3473 = vpow.pop %v3472
        %v3474 = vmul.f32 %v3469, 1.442695
        %v3475 = vpow.pop %v3474
        %v3476 = vsel %vm1327, %v3471, 0.0
        %3477 = vadd.xlane.f32.xlu0 %v3476
        %v3478 = vpop.xlane.xlu0 %3477
        %v3479 = vsel %vm1327, %v3473, 0.0
        %3480 = vadd.xlane.f32.xlu0 %v3479
        %v3481 = vpop.xlane.xlu0 %3480
        %v3482 = vsel %vm1334, %v3475, 0.0
        %3483 = vadd.xlane.f32.xlu0 %v3482
        %v3484 = vpop.xlane.xlu0 %3483
        %v3485 = vrcp.pop %v3478
        %v3486 = vmul.f32 %v3478, %v3485
        %v3487 = vsub.f32 1.0, %v3486
        %v3488 = vmul.f32 %v3485, %v3487
        %v3489 = vadd.f32 %v3485, %v3488
        %vm3490 = vweird.f32 %v3478
        %vm3491 = vweird.f32 %v3485
        %vm3492 = vmor %vm3490, %vm3491
        %v3493 = vsel %vm3492, %v3485, %v3489
        %v3494 = vand.u32 2147483647, %v3478
        %vm3495 = vcmp.eq.f32.partialorder %v3494, 8.507059e+37
        %v3496 = vand.u32 %v3478, 2147483648
        %v3497 = vor.u32 1.1754944e-38, %v3496
        %v3498 = vsel %vm3495, %v3497, %v3493
        %v3499 = vmul.f32 %v3471, %v3498
        %v3500 = vrcp.pop %v3481
        %v3501 = vmul.f32 %v3481, %v3500
        %v3502 = vsub.f32 1.0, %v3501
        %v3503 = vmul.f32 %v3500, %v3502
        %v3504 = vadd.f32 %v3500, %v3503
        %vm3505 = vweird.f32 %v3481
        %vm3506 = vweird.f32 %v3500
        %vm3507 = vmor %vm3505, %vm3506
        %v3508 = vsel %vm3507, %v3500, %v3504
        %v3509 = vand.u32 2147483647, %v3481
        %vm3510 = vcmp.eq.f32.partialorder %v3509, 8.507059e+37
        %v3511 = vand.u32 %v3481, 2147483648
        %v3512 = vor.u32 1.1754944e-38, %v3511
        %v3513 = vsel %vm3510, %v3512, %v3508
        %v3514 = vmul.f32 %v3473, %v3513
        %v3515 = vrcp.pop %v3484
        %v3516 = vmul.f32 %v3484, %v3515
        %v3517 = vsub.f32 1.0, %v3516
        %v3518 = vmul.f32 %v3515, %v3517
        %v3519 = vadd.f32 %v3515, %v3518
        %vm3520 = vweird.f32 %v3484
        %vm3521 = vweird.f32 %v3515
        %vm3522 = vmor %vm3520, %vm3521
        %v3523 = vsel %vm3522, %v3515, %v3519
        %v3524 = vand.u32 2147483647, %v3484
        %vm3525 = vcmp.eq.f32.partialorder %v3524, 8.507059e+37
        %v3526 = vand.u32 %v3484, 2147483648
        %v3527 = vor.u32 1.1754944e-38, %v3526
        %v3528 = vsel %vm3525, %v3527, %v3523
        %v3529 = vmul.f32 %v3475, %v3528
        %3530 = vrot.lane.b32.xlu0 %v2845, 16
        %v3531 = vpop.permute.xlu0 %3530
        %3532 = vrot.lane.b32.xlu0 %v2848, 16
        %v3533 = vpop.permute.xlu0 %3532
        %3534 = vrot.lane.b32.xlu0 %v2851, 16
        %v3535 = vpop.permute.xlu0 %3534
        %v3539 = vsel %vm1327, %v3499, 0
        %v3542 = vsel %vm1327, %v3514, 0
        %v3545 = vsel %vm1327, %v3529, 0
        %v3547 = vsel %vm1088, %v3535, 0
        %3549 = vmatpush.msra.mxu0 0.0
        %3550 = vmatpush.msra.mxu0 0.0
        %3551 = vmatpush.msra.mxu0 0.0
        %3552 = vmatpush.msra.mxu0 0.0
        %3553 = vmatpush.msra.mxu0 0.0
        %3554 = vmatpush.msra.mxu0 0.0
        %3555 = vmatpush.msra.mxu0 0.0
        %3556 = vmatpush.msra.mxu0 0.0
        %3557 = vmatpush.msra.mxu0 0.0
        %3558 = vmatpush.msra.mxu0 0.0
        %3559 = vmatpush.msra.mxu0 0.0
        %3560 = vmatpush.msra.mxu0 0.0
        %3561 = vmatpush.msra.mxu0 0.0
        %3562 = vmatpush.msra.mxu0 %v3547
        %3563 = vmatpush.msra.mxu0 %v3533
        %3564 = vmatpush.msra.mxu0 %v3531
        %3565 = vmatmul.f32.gmra.mxu0 %v3539
        %v3566 = vpop.f32.mrf.mxu0
        %v3567 = vadd.f32 0.0, %v3566
        %3568 = vmatmul.f32.gmra.mxu0 %v3542
        %v3569 = vpop.f32.mrf.mxu0
        %v3570 = vadd.f32 0.0, %v3569
        %3571 = vmatmul.f32.gmra.mxu0 %v3545
        %v3572 = vpop.f32.mrf.mxu0
        %v3573 = vadd.f32 0.0, %v3572
        %3574 = vdwg.mxu0
        %3578 = vrot.lane.b32.xlu0 %v3567, 120
        %v3579 = vpop.permute.xlu0 %3578
        %3580 = vrot.lane.b32.xlu0 %v3570, 120
        %v3581 = vpop.permute.xlu0 %3580
        %3582 = vrot.lane.b32.xlu0 %v3573, 120
        %v3583 = vpop.permute.xlu0 %3582
        %v3587 = vadd.f32 %v2845, %v3579
        %v3588 = vadd.f32 %v2848, %v3581
        %v3589 = vadd.f32 %v2851, %v3583
        %v3590 = vsel %vm2016, %v2845, %v3032
        %v3591 = vsel %vm2016, %v2848, %v3033
        %v3592 = vsel %vm2016, %v2851, %v3034
        %v3593 = vsel %vm1151, %v3590, %v2845
        %v3594 = vsel %vm1151, %v3591, %v2848
        %v3595 = vsel %vm1151, %v3592, %v2851
        %v3596 = vsel %vm2023, %v3593, %v3217
        %v3597 = vsel %vm2023, %v3594, %v3218
        %v3598 = vsel %vm2023, %v3595, %v3219
        %v3599 = vsel %vm2027, %v3596, %v2845
        %v3600 = vsel %vm2027, %v3597, %v2848
        %v3601 = vsel %vm2027, %v3598, %v2851
        %v3602 = vsel %vm2031, %v3599, %v3402
        %v3603 = vsel %vm2031, %v3600, %v3403
        %v3604 = vsel %vm2031, %v3601, %v3404
        %v3605 = vsel %vm2035, %v3602, %v2845
        %v3606 = vsel %vm2035, %v3603, %v2848
        %v3607 = vsel %vm2035, %v3604, %v2851
        %v3608 = vsel %vm2039, %v3605, %v3587
        %v3609 = vsel %vm2039, %v3606, %v3588
        %v3610 = vsel %vm2039, %v3607, %v3589
        %3611 = vmatpush.msra.mxu0 %v1121
        %3612 = vmatpush.msra.mxu0 %v1120
        %3613 = vmatpush.msra.mxu0 %v1119
        %3614 = vmatpush.msra.mxu0 %v1118
        %3615 = vmatpush.msra.mxu0 %v1117
        %3616 = vmatpush.msra.mxu0 %v1116
        %3617 = vmatpush.msra.mxu0 %v1115
        %3618 = vmatpush.msra.mxu0 %v1114
        %3619 = vmatpush.msra.mxu0 %v1113
        %3620 = vmatpush.msra.mxu0 %v1112
        %3621 = vmatpush.msra.mxu0 %v1111
        %3622 = vmatpush.msra.mxu0 %v1110
        %3623 = vmatpush.msra.mxu0 %v1109
        %3624 = vmatpush.msra.mxu0 %v1108
        %3625 = vmatpush.msra.mxu0 %v1107
        %3626 = vmatpush.msra.mxu0 %v1106
        %3627 = vmatmul.f32.gmra.mxu0 %v3608
        %v3628 = vpop.f32.mrf.mxu0
        %v3629 = vadd.f32 %v1268, %v3628
        %3630 = vmatmul.f32.gmra.mxu0 %v3609
        %v3631 = vpop.f32.mrf.mxu0
        %v3632 = vadd.f32 %v1271, %v3631
        %3633 = vmatmul.f32.gmra.mxu0 %v3610
        %v3634 = vpop.f32.mrf.mxu0
        %v3635 = vadd.f32 %v1274, %v3634
        %3636 = vdwg.mxu0
        %3640 = vrot.lane.b32.xlu0 %v3629, 120
        %v3641 = vpop.permute.xlu0 %3640
        %3642 = vrot.lane.b32.xlu0 %v3632, 120
        %v3643 = vpop.permute.xlu0 %3642
        %3644 = vrot.lane.b32.xlu0 %v3635, 120
        %v3645 = vpop.permute.xlu0 %3644
        %v3646 = vsel %vm1285, %v3641, 0
        %v3648 = vsel %vm1285, %v3643, 0
        %v3650 = vsel %vm1285, %v3645, 0
        %v3652 = vsel %vm1285, %v3629, 0
        %v3654 = vsel %vm1285, %v3632, 0
        %v3656 = vsel %vm1285, %v3635, 0
        %3658 = vmatpush.xpose.msra.mxu0 0.0
        %3659 = vmatpush.xpose.msra.mxu0 0.0
        %3660 = vmatpush.xpose.msra.mxu0 0.0
        %3661 = vmatpush.xpose.msra.mxu0 0.0
        %3662 = vmatpush.xpose.msra.mxu0 0.0
        %3663 = vmatpush.xpose.msra.mxu0 0.0
        %3664 = vmatpush.xpose.msra.mxu0 0.0
        %3665 = vmatpush.xpose.msra.mxu0 0.0
        %3666 = vmatpush.xpose.msra.mxu0 0.0
        %3667 = vmatpush.xpose.msra.mxu0 0.0
        %3668 = vmatpush.xpose.msra.mxu0 0.0
        %3669 = vmatpush.xpose.msra.mxu0 0.0
        %3670 = vmatpush.xpose.msra.mxu0 0.0
        %3671 = vmatpush.xpose.msra.mxu0 %v3656
        %3672 = vmatpush.xpose.msra.mxu0 %v3654
        %3673 = vmatpush.xpose.msra.mxu0 %v3652
        %3674 = vmatmul.f32.gmra.mxu0 %v3646
        %v3675 = vpop.f32.mrf.mxu0
        %v3676 = vadd.f32 0.0, %v3675
        %3677 = vmatmul.f32.gmra.mxu0 %v3648
        %v3678 = vpop.f32.mrf.mxu0
        %v3679 = vadd.f32 0.0, %v3678
        %3680 = vmatmul.f32.gmra.mxu0 %v3650
        %v3681 = vpop.f32.mrf.mxu0
        %v3682 = vadd.f32 0.0, %v3681
        %3683 = vdwg.mxu0
        %v3684 = vmul.f32 %v3676, 0.35355338
        %v3685 = vmul.f32 %v3679, 0.35355338
        %v3686 = vmul.f32 %v3682, 0.35355338
        %v3687 = vsel %vm1327, %v3684, -inf
        %3688 = vmax.xlane.f32.xlu0 %v3687
        %v3689 = vpop.xlane.xlu0 %3688
        %v3690 = vsel %vm1327, %v3685, -inf
        %3691 = vmax.xlane.f32.xlu0 %v3690
        %v3692 = vpop.xlane.xlu0 %3691
        %v3693 = vsel %vm1334, %v3686, -inf
        %3694 = vmax.xlane.f32.xlu0 %v3693
        %v3695 = vpop.xlane.xlu0 %3694
        %v3696 = vsub.f32 %v3684, %v3689
        %v3697 = vsub.f32 %v3685, %v3692
        %v3698 = vsub.f32 %v3686, %v3695
        %v3699 = vmul.f32 %v3696, 1.442695
        %v3700 = vpow.pop %v3699
        %v3701 = vmul.f32 %v3697, 1.442695
        %v3702 = vpow.pop %v3701
        %v3703 = vmul.f32 %v3698, 1.442695
        %v3704 = vpow.pop %v3703
        %v3705 = vsel %vm1327, %v3700, 0.0
        %3706 = vadd.xlane.f32.xlu0 %v3705
        %v3707 = vpop.xlane.xlu0 %3706
        %v3708 = vsel %vm1327, %v3702, 0.0
        %3709 = vadd.xlane.f32.xlu0 %v3708
        %v3710 = vpop.xlane.xlu0 %3709
        %v3711 = vsel %vm1334, %v3704, 0.0
        %3712 = vadd.xlane.f32.xlu0 %v3711
        %v3713 = vpop.xlane.xlu0 %3712
        %v3714 = vrcp.pop %v3707
        %v3715 = vmul.f32 %v3707, %v3714
        %v3716 = vsub.f32 1.0, %v3715
        %v3717 = vmul.f32 %v3714, %v3716
        %v3718 = vadd.f32 %v3714, %v3717
        %vm3719 = vweird.f32 %v3707
        %vm3720 = vweird.f32 %v3714
        %vm3721 = vmor %vm3719, %vm3720
        %v3722 = vsel %vm3721, %v3714, %v3718
        %v3723 = vand.u32 2147483647, %v3707
        %vm3724 = vcmp.eq.f32.partialorder %v3723, 8.507059e+37
        %v3725 = vand.u32 %v3707, 2147483648
        %v3726 = vor.u32 1.1754944e-38, %v3725
        %v3727 = vsel %vm3724, %v3726, %v3722
        %v3728 = vmul.f32 %v3700, %v3727
        %v3729 = vrcp.pop %v3710
        %v3730 = vmul.f32 %v3710, %v3729
        %v3731 = vsub.f32 1.0, %v3730
        %v3732 = vmul.f32 %v3729, %v3731
        %v3733 = vadd.f32 %v3729, %v3732
        %vm3734 = vweird.f32 %v3710
        %vm3735 = vweird.f32 %v3729
        %vm3736 = vmor %vm3734, %vm3735
        %v3737 = vsel %vm3736, %v3729, %v3733
        %v3738 = vand.u32 2147483647, %v3710
        %vm3739 = vcmp.eq.f32.partialorder %v3738, 8.507059e+37
        %v3740 = vand.u32 %v3710, 2147483648
        %v3741 = vor.u32 1.1754944e-38, %v3740
        %v3742 = vsel %vm3739, %v3741, %v3737
        %v3743 = vmul.f32 %v3702, %v3742
        %v3744 = vrcp.pop %v3713
        %v3745 = vmul.f32 %v3713, %v3744
        %v3746 = vsub.f32 1.0, %v3745
        %v3747 = vmul.f32 %v3744, %v3746
        %v3748 = vadd.f32 %v3744, %v3747
        %vm3749 = vweird.f32 %v3713
        %vm3750 = vweird.f32 %v3744
        %vm3751 = vmor %vm3749, %vm3750
        %v3752 = vsel %vm3751, %v3744, %v3748
        %v3753 = vand.u32 2147483647, %v3713
        %vm3754 = vcmp.eq.f32.partialorder %v3753, 8.507059e+37
        %v3755 = vand.u32 %v3713, 2147483648
        %v3756 = vor.u32 1.1754944e-38, %v3755
        %v3757 = vsel %vm3754, %v3756, %v3752
        %v3758 = vmul.f32 %v3704, %v3757
        %3759 = vrot.lane.b32.xlu0 %v3629, 112
        %v3760 = vpop.permute.xlu0 %3759
        %3761 = vrot.lane.b32.xlu0 %v3632, 112
        %v3762 = vpop.permute.xlu0 %3761
        %3763 = vrot.lane.b32.xlu0 %v3635, 112
        %v3764 = vpop.permute.xlu0 %3763
        %v3768 = vsel %vm1327, %v3728, 0
        %v3771 = vsel %vm1327, %v3743, 0
        %v3774 = vsel %vm1327, %v3758, 0
        %v3776 = vsel %vm1088, %v3764, 0
        %3778 = vmatpush.msra.mxu0 0.0
        %3779 = vmatpush.msra.mxu0 0.0
        %3780 = vmatpush.msra.mxu0 0.0
        %3781 = vmatpush.msra.mxu0 0.0
        %3782 = vmatpush.msra.mxu0 0.0
        %3783 = vmatpush.msra.mxu0 0.0
        %3784 = vmatpush.msra.mxu0 0.0
        %3785 = vmatpush.msra.mxu0 0.0
        %3786 = vmatpush.msra.mxu0 0.0
        %3787 = vmatpush.msra.mxu0 0.0
        %3788 = vmatpush.msra.mxu0 0.0
        %3789 = vmatpush.msra.mxu0 0.0
        %3790 = vmatpush.msra.mxu0 0.0
        %3791 = vmatpush.msra.mxu0 %v3776
        %3792 = vmatpush.msra.mxu0 %v3762
        %3793 = vmatpush.msra.mxu0 %v3760
        %3794 = vmatmul.f32.gmra.mxu0 %v3768
        %v3795 = vpop.f32.mrf.mxu0
        %v3796 = vadd.f32 0.0, %v3795
        %3797 = vmatmul.f32.gmra.mxu0 %v3771
        %v3798 = vpop.f32.mrf.mxu0
        %v3799 = vadd.f32 0.0, %v3798
        %3800 = vmatmul.f32.gmra.mxu0 %v3774
        %v3801 = vpop.f32.mrf.mxu0
        %v3802 = vadd.f32 0.0, %v3801
        %3803 = vdwg.mxu0
        %3807 = vrot.lane.b32.xlu0 %v3796, 24
        %v3808 = vpop.permute.xlu0 %3807
        %3809 = vrot.lane.b32.xlu0 %v3799, 24
        %v3810 = vpop.permute.xlu0 %3809
        %3811 = vrot.lane.b32.xlu0 %v3802, 24
        %v3812 = vpop.permute.xlu0 %3811
        %v3816 = vadd.f32 %v3629, %v3808
        %v3817 = vadd.f32 %v3632, %v3810
        %v3818 = vadd.f32 %v3635, %v3812
        %3819 = vrot.lane.b32.xlu0 %v3629, 88
        %v3820 = vpop.permute.xlu0 %3819
        %3821 = vrot.lane.b32.xlu0 %v3632, 88
        %v3822 = vpop.permute.xlu0 %3821
        %3823 = vrot.lane.b32.xlu0 %v3635, 88
        %v3824 = vpop.permute.xlu0 %3823
        %3825 = vrot.lane.b32.xlu0 %v3629, 96
        %v3826 = vpop.permute.xlu0 %3825
        %3827 = vrot.lane.b32.xlu0 %v3632, 96
        %v3828 = vpop.permute.xlu0 %3827
        %3829 = vrot.lane.b32.xlu0 %v3635, 96
        %v3830 = vpop.permute.xlu0 %3829
        %v3831 = vsel %vm1285, %v3820, 0
        %v3833 = vsel %vm1285, %v3822, 0
        %v3835 = vsel %vm1285, %v3824, 0
        %v3837 = vsel %vm1285, %v3826, 0
        %v3839 = vsel %vm1285, %v3828, 0
        %v3841 = vsel %vm1285, %v3830, 0
        %3843 = vmatpush.xpose.msra.mxu0 0.0
        %3844 = vmatpush.xpose.msra.mxu0 0.0
        %3845 = vmatpush.xpose.msra.mxu0 0.0
        %3846 = vmatpush.xpose.msra.mxu0 0.0
        %3847 = vmatpush.xpose.msra.mxu0 0.0
        %3848 = vmatpush.xpose.msra.mxu0 0.0
        %3849 = vmatpush.xpose.msra.mxu0 0.0
        %3850 = vmatpush.xpose.msra.mxu0 0.0
        %3851 = vmatpush.xpose.msra.mxu0 0.0
        %3852 = vmatpush.xpose.msra.mxu0 0.0
        %3853 = vmatpush.xpose.msra.mxu0 0.0
        %3854 = vmatpush.xpose.msra.mxu0 0.0
        %3855 = vmatpush.xpose.msra.mxu0 0.0
        %3856 = vmatpush.xpose.msra.mxu0 %v3841
        %3857 = vmatpush.xpose.msra.mxu0 %v3839
        %3858 = vmatpush.xpose.msra.mxu0 %v3837
        %3859 = vmatmul.f32.gmra.mxu0 %v3831
        %v3860 = vpop.f32.mrf.mxu0
        %v3861 = vadd.f32 0.0, %v3860
        %3862 = vmatmul.f32.gmra.mxu0 %v3833
        %v3863 = vpop.f32.mrf.mxu0
        %v3864 = vadd.f32 0.0, %v3863
        %3865 = vmatmul.f32.gmra.mxu0 %v3835
        %v3866 = vpop.f32.mrf.mxu0
        %v3867 = vadd.f32 0.0, %v3866
        %3868 = vdwg.mxu0
        %v3869 = vmul.f32 %v3861, 0.35355338
        %v3870 = vmul.f32 %v3864, 0.35355338
        %v3871 = vmul.f32 %v3867, 0.35355338
        %v3872 = vsel %vm1327, %v3869, -inf
        %3873 = vmax.xlane.f32.xlu0 %v3872
        %v3874 = vpop.xlane.xlu0 %3873
        %v3875 = vsel %vm1327, %v3870, -inf
        %3876 = vmax.xlane.f32.xlu0 %v3875
        %v3877 = vpop.xlane.xlu0 %3876
        %v3878 = vsel %vm1334, %v3871, -inf
        %3879 = vmax.xlane.f32.xlu0 %v3878
        %v3880 = vpop.xlane.xlu0 %3879
        %v3881 = vsub.f32 %v3869, %v3874
        %v3882 = vsub.f32 %v3870, %v3877
        %v3883 = vsub.f32 %v3871, %v3880
        %v3884 = vmul.f32 %v3881, 1.442695
        %v3885 = vpow.pop %v3884
        %v3886 = vmul.f32 %v3882, 1.442695
        %v3887 = vpow.pop %v3886
        %v3888 = vmul.f32 %v3883, 1.442695
        %v3889 = vpow.pop %v3888
        %v3890 = vsel %vm1327, %v3885, 0.0
        %3891 = vadd.xlane.f32.xlu0 %v3890
        %v3892 = vpop.xlane.xlu0 %3891
        %v3893 = vsel %vm1327, %v3887, 0.0
        %3894 = vadd.xlane.f32.xlu0 %v3893
        %v3895 = vpop.xlane.xlu0 %3894
        %v3896 = vsel %vm1334, %v3889, 0.0
        %3897 = vadd.xlane.f32.xlu0 %v3896
        %v3898 = vpop.xlane.xlu0 %3897
        %v3899 = vrcp.pop %v3892
        %v3900 = vmul.f32 %v3892, %v3899
        %v3901 = vsub.f32 1.0, %v3900
        %v3902 = vmul.f32 %v3899, %v3901
        %v3903 = vadd.f32 %v3899, %v3902
        %vm3904 = vweird.f32 %v3892
        %vm3905 = vweird.f32 %v3899
        %vm3906 = vmor %vm3904, %vm3905
        %v3907 = vsel %vm3906, %v3899, %v3903
        %v3908 = vand.u32 2147483647, %v3892
        %vm3909 = vcmp.eq.f32.partialorder %v3908, 8.507059e+37
        %v3910 = vand.u32 %v3892, 2147483648
        %v3911 = vor.u32 1.1754944e-38, %v3910
        %v3912 = vsel %vm3909, %v3911, %v3907
        %v3913 = vmul.f32 %v3885, %v3912
        %v3914 = vrcp.pop %v3895
        %v3915 = vmul.f32 %v3895, %v3914
        %v3916 = vsub.f32 1.0, %v3915
        %v3917 = vmul.f32 %v3914, %v3916
        %v3918 = vadd.f32 %v3914, %v3917
        %vm3919 = vweird.f32 %v3895
        %vm3920 = vweird.f32 %v3914
        %vm3921 = vmor %vm3919, %vm3920
        %v3922 = vsel %vm3921, %v3914, %v3918
        %v3923 = vand.u32 2147483647, %v3895
        %vm3924 = vcmp.eq.f32.partialorder %v3923, 8.507059e+37
        %v3925 = vand.u32 %v3895, 2147483648
        %v3926 = vor.u32 1.1754944e-38, %v3925
        %v3927 = vsel %vm3924, %v3926, %v3922
        %v3928 = vmul.f32 %v3887, %v3927
        %v3929 = vrcp.pop %v3898
        %v3930 = vmul.f32 %v3898, %v3929
        %v3931 = vsub.f32 1.0, %v3930
        %v3932 = vmul.f32 %v3929, %v3931
        %v3933 = vadd.f32 %v3929, %v3932
        %vm3934 = vweird.f32 %v3898
        %vm3935 = vweird.f32 %v3929
        %vm3936 = vmor %vm3934, %vm3935
        %v3937 = vsel %vm3936, %v3929, %v3933
        %v3938 = vand.u32 2147483647, %v3898
        %vm3939 = vcmp.eq.f32.partialorder %v3938, 8.507059e+37
        %v3940 = vand.u32 %v3898, 2147483648
        %v3941 = vor.u32 1.1754944e-38, %v3940
        %v3942 = vsel %vm3939, %v3941, %v3937
        %v3943 = vmul.f32 %v3889, %v3942
        %3944 = vrot.lane.b32.xlu0 %v3629, 80
        %v3945 = vpop.permute.xlu0 %3944
        %3946 = vrot.lane.b32.xlu0 %v3632, 80
        %v3947 = vpop.permute.xlu0 %3946
        %3948 = vrot.lane.b32.xlu0 %v3635, 80
        %v3949 = vpop.permute.xlu0 %3948
        %v3953 = vsel %vm1327, %v3913, 0
        %v3956 = vsel %vm1327, %v3928, 0
        %v3959 = vsel %vm1327, %v3943, 0
        %v3961 = vsel %vm1088, %v3949, 0
        %3963 = vmatpush.msra.mxu0 0.0
        %3964 = vmatpush.msra.mxu0 0.0
        %3965 = vmatpush.msra.mxu0 0.0
        %3966 = vmatpush.msra.mxu0 0.0
        %3967 = vmatpush.msra.mxu0 0.0
        %3968 = vmatpush.msra.mxu0 0.0
        %3969 = vmatpush.msra.mxu0 0.0
        %3970 = vmatpush.msra.mxu0 0.0
        %3971 = vmatpush.msra.mxu0 0.0
        %3972 = vmatpush.msra.mxu0 0.0
        %3973 = vmatpush.msra.mxu0 0.0
        %3974 = vmatpush.msra.mxu0 0.0
        %3975 = vmatpush.msra.mxu0 0.0
        %3976 = vmatpush.msra.mxu0 %v3961
        %3977 = vmatpush.msra.mxu0 %v3947
        %3978 = vmatpush.msra.mxu0 %v3945
        %3979 = vmatmul.f32.gmra.mxu0 %v3953
        %v3980 = vpop.f32.mrf.mxu0
        %v3981 = vadd.f32 0.0, %v3980
        %3982 = vmatmul.f32.gmra.mxu0 %v3956
        %v3983 = vpop.f32.mrf.mxu0
        %v3984 = vadd.f32 0.0, %v3983
        %3985 = vmatmul.f32.gmra.mxu0 %v3959
        %v3986 = vpop.f32.mrf.mxu0
        %v3987 = vadd.f32 0.0, %v3986
        %3988 = vdwg.mxu0
        %3992 = vrot.lane.b32.xlu0 %v3981, 56
        %v3993 = vpop.permute.xlu0 %3992
        %3994 = vrot.lane.b32.xlu0 %v3984, 56
        %v3995 = vpop.permute.xlu0 %3994
        %3996 = vrot.lane.b32.xlu0 %v3987, 56
        %v3997 = vpop.permute.xlu0 %3996
        %v4001 = vadd.f32 %v3629, %v3993
        %v4002 = vadd.f32 %v3632, %v3995
        %v4003 = vadd.f32 %v3635, %v3997
        %4004 = vrot.lane.b32.xlu0 %v3629, 56
        %v4005 = vpop.permute.xlu0 %4004
        %4006 = vrot.lane.b32.xlu0 %v3632, 56
        %v4007 = vpop.permute.xlu0 %4006
        %4008 = vrot.lane.b32.xlu0 %v3635, 56
        %v4009 = vpop.permute.xlu0 %4008
        %4010 = vrot.lane.b32.xlu0 %v3629, 64
        %v4011 = vpop.permute.xlu0 %4010
        %4012 = vrot.lane.b32.xlu0 %v3632, 64
        %v4013 = vpop.permute.xlu0 %4012
        %4014 = vrot.lane.b32.xlu0 %v3635, 64
        %v4015 = vpop.permute.xlu0 %4014
        %v4016 = vsel %vm1285, %v4005, 0
        %v4018 = vsel %vm1285, %v4007, 0
        %v4020 = vsel %vm1285, %v4009, 0
        %v4022 = vsel %vm1285, %v4011, 0
        %v4024 = vsel %vm1285, %v4013, 0
        %v4026 = vsel %vm1285, %v4015, 0
        %4028 = vmatpush.xpose.msra.mxu0 0.0
        %4029 = vmatpush.xpose.msra.mxu0 0.0
        %4030 = vmatpush.xpose.msra.mxu0 0.0
        %4031 = vmatpush.xpose.msra.mxu0 0.0
        %4032 = vmatpush.xpose.msra.mxu0 0.0
        %4033 = vmatpush.xpose.msra.mxu0 0.0
        %4034 = vmatpush.xpose.msra.mxu0 0.0
        %4035 = vmatpush.xpose.msra.mxu0 0.0
        %4036 = vmatpush.xpose.msra.mxu0 0.0
        %4037 = vmatpush.xpose.msra.mxu0 0.0
        %4038 = vmatpush.xpose.msra.mxu0 0.0
        %4039 = vmatpush.xpose.msra.mxu0 0.0
        %4040 = vmatpush.xpose.msra.mxu0 0.0
        %4041 = vmatpush.xpose.msra.mxu0 %v4026
        %4042 = vmatpush.xpose.msra.mxu0 %v4024
        %4043 = vmatpush.xpose.msra.mxu0 %v4022
        %4044 = vmatmul.f32.gmra.mxu0 %v4016
        %v4045 = vpop.f32.mrf.mxu0
        %v4046 = vadd.f32 0.0, %v4045
        %4047 = vmatmul.f32.gmra.mxu0 %v4018
        %v4048 = vpop.f32.mrf.mxu0
        %v4049 = vadd.f32 0.0, %v4048
        %4050 = vmatmul.f32.gmra.mxu0 %v4020
        %v4051 = vpop.f32.mrf.mxu0
        %v4052 = vadd.f32 0.0, %v4051
        %4053 = vdwg.mxu0
        %v4054 = vmul.f32 %v4046, 0.35355338
        %v4055 = vmul.f32 %v4049, 0.35355338
        %v4056 = vmul.f32 %v4052, 0.35355338
        %v4057 = vsel %vm1327, %v4054, -inf
        %4058 = vmax.xlane.f32.xlu0 %v4057
        %v4059 = vpop.xlane.xlu0 %4058
        %v4060 = vsel %vm1327, %v4055, -inf
        %4061 = vmax.xlane.f32.xlu0 %v4060
        %v4062 = vpop.xlane.xlu0 %4061
        %v4063 = vsel %vm1334, %v4056, -inf
        %4064 = vmax.xlane.f32.xlu0 %v4063
        %v4065 = vpop.xlane.xlu0 %4064
        %v4066 = vsub.f32 %v4054, %v4059
        %v4067 = vsub.f32 %v4055, %v4062
        %v4068 = vsub.f32 %v4056, %v4065
        %v4069 = vmul.f32 %v4066, 1.442695
        %v4070 = vpow.pop %v4069
        %v4071 = vmul.f32 %v4067, 1.442695
        %v4072 = vpow.pop %v4071
        %v4073 = vmul.f32 %v4068, 1.442695
        %v4074 = vpow.pop %v4073
        %v4075 = vsel %vm1327, %v4070, 0.0
        %4076 = vadd.xlane.f32.xlu0 %v4075
        %v4077 = vpop.xlane.xlu0 %4076
        %v4078 = vsel %vm1327, %v4072, 0.0
        %4079 = vadd.xlane.f32.xlu0 %v4078
        %v4080 = vpop.xlane.xlu0 %4079
        %v4081 = vsel %vm1334, %v4074, 0.0
        %4082 = vadd.xlane.f32.xlu0 %v4081
        %v4083 = vpop.xlane.xlu0 %4082
        %v4084 = vrcp.pop %v4077
        %v4085 = vmul.f32 %v4077, %v4084
        %v4086 = vsub.f32 1.0, %v4085
        %v4087 = vmul.f32 %v4084, %v4086
        %v4088 = vadd.f32 %v4084, %v4087
        %vm4089 = vweird.f32 %v4077
        %vm4090 = vweird.f32 %v4084
        %vm4091 = vmor %vm4089, %vm4090
        %v4092 = vsel %vm4091, %v4084, %v4088
        %v4093 = vand.u32 2147483647, %v4077
        %vm4094 = vcmp.eq.f32.partialorder %v4093, 8.507059e+37
        %v4095 = vand.u32 %v4077, 2147483648
        %v4096 = vor.u32 1.1754944e-38, %v4095
        %v4097 = vsel %vm4094, %v4096, %v4092
        %v4098 = vmul.f32 %v4070, %v4097
        %v4099 = vrcp.pop %v4080
        %v4100 = vmul.f32 %v4080, %v4099
        %v4101 = vsub.f32 1.0, %v4100
        %v4102 = vmul.f32 %v4099, %v4101
        %v4103 = vadd.f32 %v4099, %v4102
        %vm4104 = vweird.f32 %v4080
        %vm4105 = vweird.f32 %v4099
        %vm4106 = vmor %vm4104, %vm4105
        %v4107 = vsel %vm4106, %v4099, %v4103
        %v4108 = vand.u32 2147483647, %v4080
        %vm4109 = vcmp.eq.f32.partialorder %v4108, 8.507059e+37
        %v4110 = vand.u32 %v4080, 2147483648
        %v4111 = vor.u32 1.1754944e-38, %v4110
        %v4112 = vsel %vm4109, %v4111, %v4107
        %v4113 = vmul.f32 %v4072, %v4112
        %v4114 = vrcp.pop %v4083
        %v4115 = vmul.f32 %v4083, %v4114
        %v4116 = vsub.f32 1.0, %v4115
        %v4117 = vmul.f32 %v4114, %v4116
        %v4118 = vadd.f32 %v4114, %v4117
        %vm4119 = vweird.f32 %v4083
        %vm4120 = vweird.f32 %v4114
        %vm4121 = vmor %vm4119, %vm4120
        %v4122 = vsel %vm4121, %v4114, %v4118
        %v4123 = vand.u32 2147483647, %v4083
        %vm4124 = vcmp.eq.f32.partialorder %v4123, 8.507059e+37
        %v4125 = vand.u32 %v4083, 2147483648
        %v4126 = vor.u32 1.1754944e-38, %v4125
        %v4127 = vsel %vm4124, %v4126, %v4122
        %v4128 = vmul.f32 %v4074, %v4127
        %4129 = vrot.lane.b32.xlu0 %v3629, 48
        %v4130 = vpop.permute.xlu0 %4129
        %4131 = vrot.lane.b32.xlu0 %v3632, 48
        %v4132 = vpop.permute.xlu0 %4131
        %4133 = vrot.lane.b32.xlu0 %v3635, 48
        %v4134 = vpop.permute.xlu0 %4133
        %v4138 = vsel %vm1327, %v4098, 0
        %v4141 = vsel %vm1327, %v4113, 0
        %v4144 = vsel %vm1327, %v4128, 0
        %v4146 = vsel %vm1088, %v4134, 0
        %4148 = vmatpush.msra.mxu0 0.0
        %4149 = vmatpush.msra.mxu0 0.0
        %4150 = vmatpush.msra.mxu0 0.0
        %4151 = vmatpush.msra.mxu0 0.0
        %4152 = vmatpush.msra.mxu0 0.0
        %4153 = vmatpush.msra.mxu0 0.0
        %4154 = vmatpush.msra.mxu0 0.0
        %4155 = vmatpush.msra.mxu0 0.0
        %4156 = vmatpush.msra.mxu0 0.0
        %4157 = vmatpush.msra.mxu0 0.0
        %4158 = vmatpush.msra.mxu0 0.0
        %4159 = vmatpush.msra.mxu0 0.0
        %4160 = vmatpush.msra.mxu0 0.0
        %4161 = vmatpush.msra.mxu0 %v4146
        %4162 = vmatpush.msra.mxu0 %v4132
        %4163 = vmatpush.msra.mxu0 %v4130
        %4164 = vmatmul.f32.gmra.mxu0 %v4138
        %v4165 = vpop.f32.mrf.mxu0
        %v4166 = vadd.f32 0.0, %v4165
        %4167 = vmatmul.f32.gmra.mxu0 %v4141
        %v4168 = vpop.f32.mrf.mxu0
        %v4169 = vadd.f32 0.0, %v4168
        %4170 = vmatmul.f32.gmra.mxu0 %v4144
        %v4171 = vpop.f32.mrf.mxu0
        %v4172 = vadd.f32 0.0, %v4171
        %4173 = vdwg.mxu0
        %4177 = vrot.lane.b32.xlu0 %v4166, 88
        %v4178 = vpop.permute.xlu0 %4177
        %4179 = vrot.lane.b32.xlu0 %v4169, 88
        %v4180 = vpop.permute.xlu0 %4179
        %4181 = vrot.lane.b32.xlu0 %v4172, 88
        %v4182 = vpop.permute.xlu0 %4181
        %v4186 = vadd.f32 %v3629, %v4178
        %v4187 = vadd.f32 %v3632, %v4180
        %v4188 = vadd.f32 %v3635, %v4182
        %4189 = vrot.lane.b32.xlu0 %v3629, 24
        %v4190 = vpop.permute.xlu0 %4189
        %4191 = vrot.lane.b32.xlu0 %v3632, 24
        %v4192 = vpop.permute.xlu0 %4191
        %4193 = vrot.lane.b32.xlu0 %v3635, 24
        %v4194 = vpop.permute.xlu0 %4193
        %4195 = vrot.lane.b32.xlu0 %v3629, 32
        %v4196 = vpop.permute.xlu0 %4195
        %4197 = vrot.lane.b32.xlu0 %v3632, 32
        %v4198 = vpop.permute.xlu0 %4197
        %4199 = vrot.lane.b32.xlu0 %v3635, 32
        %v4200 = vpop.permute.xlu0 %4199
        %v4201 = vsel %vm1285, %v4190, 0
        %v4203 = vsel %vm1285, %v4192, 0
        %v4205 = vsel %vm1285, %v4194, 0
        %v4207 = vsel %vm1285, %v4196, 0
        %v4209 = vsel %vm1285, %v4198, 0
        %v4211 = vsel %vm1285, %v4200, 0
        %4213 = vmatpush.xpose.msra.mxu0 0.0
        %4214 = vmatpush.xpose.msra.mxu0 0.0
        %4215 = vmatpush.xpose.msra.mxu0 0.0
        %4216 = vmatpush.xpose.msra.mxu0 0.0
        %4217 = vmatpush.xpose.msra.mxu0 0.0
        %4218 = vmatpush.xpose.msra.mxu0 0.0
        %4219 = vmatpush.xpose.msra.mxu0 0.0
        %4220 = vmatpush.xpose.msra.mxu0 0.0
        %4221 = vmatpush.xpose.msra.mxu0 0.0
        %4222 = vmatpush.xpose.msra.mxu0 0.0
        %4223 = vmatpush.xpose.msra.mxu0 0.0
        %4224 = vmatpush.xpose.msra.mxu0 0.0
        %4225 = vmatpush.xpose.msra.mxu0 0.0
        %4226 = vmatpush.xpose.msra.mxu0 %v4211
        %4227 = vmatpush.xpose.msra.mxu0 %v4209
        %4228 = vmatpush.xpose.msra.mxu0 %v4207
        %4229 = vmatmul.f32.gmra.mxu0 %v4201
        %v4230 = vpop.f32.mrf.mxu0
        %v4231 = vadd.f32 0.0, %v4230
        %4232 = vmatmul.f32.gmra.mxu0 %v4203
        %v4233 = vpop.f32.mrf.mxu0
        %v4234 = vadd.f32 0.0, %v4233
        %4235 = vmatmul.f32.gmra.mxu0 %v4205
        %v4236 = vpop.f32.mrf.mxu0
        %v4237 = vadd.f32 0.0, %v4236
        %4238 = vdwg.mxu0
        %v4239 = vmul.f32 %v4231, 0.35355338
        %v4240 = vmul.f32 %v4234, 0.35355338
        %v4241 = vmul.f32 %v4237, 0.35355338
        %v4242 = vsel %vm1327, %v4239, -inf
        %4243 = vmax.xlane.f32.xlu0 %v4242
        %v4244 = vpop.xlane.xlu0 %4243
        %v4245 = vsel %vm1327, %v4240, -inf
        %4246 = vmax.xlane.f32.xlu0 %v4245
        %v4247 = vpop.xlane.xlu0 %4246
        %v4248 = vsel %vm1334, %v4241, -inf
        %4249 = vmax.xlane.f32.xlu0 %v4248
        %v4250 = vpop.xlane.xlu0 %4249
        %v4251 = vsub.f32 %v4239, %v4244
        %v4252 = vsub.f32 %v4240, %v4247
        %v4253 = vsub.f32 %v4241, %v4250
        %v4254 = vmul.f32 %v4251, 1.442695
        %v4255 = vpow.pop %v4254
        %v4256 = vmul.f32 %v4252, 1.442695
        %v4257 = vpow.pop %v4256
        %v4258 = vmul.f32 %v4253, 1.442695
        %v4259 = vpow.pop %v4258
        %v4260 = vsel %vm1327, %v4255, 0.0
        %4261 = vadd.xlane.f32.xlu0 %v4260
        %v4262 = vpop.xlane.xlu0 %4261
        %v4263 = vsel %vm1327, %v4257, 0.0
        %4264 = vadd.xlane.f32.xlu0 %v4263
        %v4265 = vpop.xlane.xlu0 %4264
        %v4266 = vsel %vm1334, %v4259, 0.0
        %4267 = vadd.xlane.f32.xlu0 %v4266
        %v4268 = vpop.xlane.xlu0 %4267
        %v4269 = vrcp.pop %v4262
        %v4270 = vmul.f32 %v4262, %v4269
        %v4271 = vsub.f32 1.0, %v4270
        %v4272 = vmul.f32 %v4269, %v4271
        %v4273 = vadd.f32 %v4269, %v4272
        %vm4274 = vweird.f32 %v4262
        %vm4275 = vweird.f32 %v4269
        %vm4276 = vmor %vm4274, %vm4275
        %v4277 = vsel %vm4276, %v4269, %v4273
        %v4278 = vand.u32 2147483647, %v4262
        %vm4279 = vcmp.eq.f32.partialorder %v4278, 8.507059e+37
        %v4280 = vand.u32 %v4262, 2147483648
        %v4281 = vor.u32 1.1754944e-38, %v4280
        %v4282 = vsel %vm4279, %v4281, %v4277
        %v4283 = vmul.f32 %v4255, %v4282
        %v4284 = vrcp.pop %v4265
        %v4285 = vmul.f32 %v4265, %v4284
        %v4286 = vsub.f32 1.0, %v4285
        %v4287 = vmul.f32 %v4284, %v4286
        %v4288 = vadd.f32 %v4284, %v4287
        %vm4289 = vweird.f32 %v4265
        %vm4290 = vweird.f32 %v4284
        %vm4291 = vmor %vm4289, %vm4290
        %v4292 = vsel %vm4291, %v4284, %v4288
        %v4293 = vand.u32 2147483647, %v4265
        %vm4294 = vcmp.eq.f32.partialorder %v4293, 8.507059e+37
        %v4295 = vand.u32 %v4265, 2147483648
        %v4296 = vor.u32 1.1754944e-38, %v4295
        %v4297 = vsel %vm4294, %v4296, %v4292
        %v4298 = vmul.f32 %v4257, %v4297
        %v4299 = vrcp.pop %v4268
        %v4300 = vmul.f32 %v4268, %v4299
        %v4301 = vsub.f32 1.0, %v4300
        %v4302 = vmul.f32 %v4299, %v4301
        %v4303 = vadd.f32 %v4299, %v4302
        %vm4304 = vweird.f32 %v4268
        %vm4305 = vweird.f32 %v4299
        %vm4306 = vmor %vm4304, %vm4305
        %v4307 = vsel %vm4306, %v4299, %v4303
        %v4308 = vand.u32 2147483647, %v4268
        %vm4309 = vcmp.eq.f32.partialorder %v4308, 8.507059e+37
        %v4310 = vand.u32 %v4268, 2147483648
        %v4311 = vor.u32 1.1754944e-38, %v4310
        %v4312 = vsel %vm4309, %v4311, %v4307
        %v4313 = vmul.f32 %v4259, %v4312
        %4314 = vrot.lane.b32.xlu0 %v3629, 16
        %v4315 = vpop.permute.xlu0 %4314
        %4316 = vrot.lane.b32.xlu0 %v3632, 16
        %v4317 = vpop.permute.xlu0 %4316
        %4318 = vrot.lane.b32.xlu0 %v3635, 16
        %v4319 = vpop.permute.xlu0 %4318
        %v4323 = vsel %vm1327, %v4283, 0
        %v4326 = vsel %vm1327, %v4298, 0
        %v4329 = vsel %vm1327, %v4313, 0
        %v4331 = vsel %vm1088, %v4319, 0
        %4333 = vmatpush.msra.mxu0 0.0
        %4334 = vmatpush.msra.mxu0 0.0
        %4335 = vmatpush.msra.mxu0 0.0
        %4336 = vmatpush.msra.mxu0 0.0
        %4337 = vmatpush.msra.mxu0 0.0
        %4338 = vmatpush.msra.mxu0 0.0
        %4339 = vmatpush.msra.mxu0 0.0
        %4340 = vmatpush.msra.mxu0 0.0
        %4341 = vmatpush.msra.mxu0 0.0
        %4342 = vmatpush.msra.mxu0 0.0
        %4343 = vmatpush.msra.mxu0 0.0
        %4344 = vmatpush.msra.mxu0 0.0
        %4345 = vmatpush.msra.mxu0 0.0
        %4346 = vmatpush.msra.mxu0 %v4331
        %4347 = vmatpush.msra.mxu0 %v4317
        %4348 = vmatpush.msra.mxu0 %v4315
        %4349 = vmatmul.f32.gmra.mxu0 %v4323
        %v4350 = vpop.f32.mrf.mxu0
        %v4351 = vadd.f32 0.0, %v4350
        %4352 = vmatmul.f32.gmra.mxu0 %v4326
        %v4353 = vpop.f32.mrf.mxu0
        %v4354 = vadd.f32 0.0, %v4353
        %4355 = vmatmul.f32.gmra.mxu0 %v4329
        %v4356 = vpop.f32.mrf.mxu0
        %v4357 = vadd.f32 0.0, %v4356
        %4358 = vdwg.mxu0
        %4362 = vrot.lane.b32.xlu0 %v4351, 120
        %v4363 = vpop.permute.xlu0 %4362
        %4364 = vrot.lane.b32.xlu0 %v4354, 120
        %v4365 = vpop.permute.xlu0 %4364
        %4366 = vrot.lane.b32.xlu0 %v4357, 120
        %v4367 = vpop.permute.xlu0 %4366
        %v4371 = vadd.f32 %v3629, %v4363
        %v4372 = vadd.f32 %v3632, %v4365
        %v4373 = vadd.f32 %v3635, %v4367
        %v4374 = vsel %vm2016, %v3629, %v3816
        %v4375 = vsel %vm2016, %v3632, %v3817
        %v4376 = vsel %vm2016, %v3635, %v3818
        %v4377 = vsel %vm1151, %v4374, %v3629
        %v4378 = vsel %vm1151, %v4375, %v3632
        %v4379 = vsel %vm1151, %v4376, %v3635
        %v4380 = vsel %vm2023, %v4377, %v4001
        %v4381 = vsel %vm2023, %v4378, %v4002
        %v4382 = vsel %vm2023, %v4379, %v4003
        %v4383 = vsel %vm2027, %v4380, %v3629
        %v4384 = vsel %vm2027, %v4381, %v3632
        %v4385 = vsel %vm2027, %v4382, %v3635
        %v4386 = vsel %vm2031, %v4383, %v4186
        %v4387 = vsel %vm2031, %v4384, %v4187
        %v4388 = vsel %vm2031, %v4385, %v4188
        %v4389 = vsel %vm2035, %v4386, %v3629
        %v4390 = vsel %vm2035, %v4387, %v3632
        %v4391 = vsel %vm2035, %v4388, %v3635
        %v4392 = vsel %vm2039, %v4389, %v4371
        %v4393 = vsel %vm2039, %v4390, %v4372
        %v4394 = vsel %vm2039, %v4391, %v4373
        %4395 = vmatpush.msra.mxu0 %v1121
        %4396 = vmatpush.msra.mxu0 %v1120
        %4397 = vmatpush.msra.mxu0 %v1119
        %4398 = vmatpush.msra.mxu0 %v1118
        %4399 = vmatpush.msra.mxu0 %v1117
        %4400 = vmatpush.msra.mxu0 %v1116
        %4401 = vmatpush.msra.mxu0 %v1115
        %4402 = vmatpush.msra.mxu0 %v1114
        %4403 = vmatpush.msra.mxu0 %v1113
        %4404 = vmatpush.msra.mxu0 %v1112
        %4405 = vmatpush.msra.mxu0 %v1111
        %4406 = vmatpush.msra.mxu0 %v1110
        %4407 = vmatpush.msra.mxu0 %v1109
        %4408 = vmatpush.msra.mxu0 %v1108
        %4409 = vmatpush.msra.mxu0 %v1107
        %4410 = vmatpush.msra.mxu0 %v1106
        %4411 = vmatmul.f32.gmra.mxu0 %v4392
        %v4412 = vpop.f32.mrf.mxu0
        %v4413 = vadd.f32 %v1268, %v4412
        %4414 = vmatmul.f32.gmra.mxu0 %v4393
        %v4415 = vpop.f32.mrf.mxu0
        %v4416 = vadd.f32 %v1271, %v4415
        %4417 = vmatmul.f32.gmra.mxu0 %v4394
        %v4418 = vpop.f32.mrf.mxu0
        %v4419 = vadd.f32 %v1274, %v4418
        %4420 = vdwg.mxu0
        %4424 = vrot.lane.b32.xlu0 %v4413, 120
        %v4425 = vpop.permute.xlu0 %4424
        %4426 = vrot.lane.b32.xlu0 %v4416, 120
        %v4427 = vpop.permute.xlu0 %4426
        %4428 = vrot.lane.b32.xlu0 %v4419, 120
        %v4429 = vpop.permute.xlu0 %4428
        %v4430 = vsel %vm1285, %v4425, 0
        %v4432 = vsel %vm1285, %v4427, 0
        %v4434 = vsel %vm1285, %v4429, 0
        %v4436 = vsel %vm1285, %v4413, 0
        %v4438 = vsel %vm1285, %v4416, 0
        %v4440 = vsel %vm1285, %v4419, 0
        %4442 = vmatpush.xpose.msra.mxu0 0.0
        %4443 = vmatpush.xpose.msra.mxu0 0.0
        %4444 = vmatpush.xpose.msra.mxu0 0.0
        %4445 = vmatpush.xpose.msra.mxu0 0.0
        %4446 = vmatpush.xpose.msra.mxu0 0.0
        %4447 = vmatpush.xpose.msra.mxu0 0.0
        %4448 = vmatpush.xpose.msra.mxu0 0.0
        %4449 = vmatpush.xpose.msra.mxu0 0.0
        %4450 = vmatpush.xpose.msra.mxu0 0.0
        %4451 = vmatpush.xpose.msra.mxu0 0.0
        %4452 = vmatpush.xpose.msra.mxu0 0.0
        %4453 = vmatpush.xpose.msra.mxu0 0.0
        %4454 = vmatpush.xpose.msra.mxu0 0.0
        %4455 = vmatpush.xpose.msra.mxu0 %v4440
        %4456 = vmatpush.xpose.msra.mxu0 %v4438
        %4457 = vmatpush.xpose.msra.mxu0 %v4436
        %4458 = vmatmul.f32.gmra.mxu0 %v4430
        %v4459 = vpop.f32.mrf.mxu0
        %v4460 = vadd.f32 0.0, %v4459
        %4461 = vmatmul.f32.gmra.mxu0 %v4432
        %v4462 = vpop.f32.mrf.mxu0
        %v4463 = vadd.f32 0.0, %v4462
        %4464 = vmatmul.f32.gmra.mxu0 %v4434
        %v4465 = vpop.f32.mrf.mxu0
        %v4466 = vadd.f32 0.0, %v4465
        %4467 = vdwg.mxu0
        %v4468 = vmul.f32 %v4460, 0.35355338
        %v4469 = vmul.f32 %v4463, 0.35355338
        %v4470 = vmul.f32 %v4466, 0.35355338
        %v4471 = vsel %vm1327, %v4468, -inf
        %4472 = vmax.xlane.f32.xlu0 %v4471
        %v4473 = vpop.xlane.xlu0 %4472
        %v4474 = vsel %vm1327, %v4469, -inf
        %4475 = vmax.xlane.f32.xlu0 %v4474
        %v4476 = vpop.xlane.xlu0 %4475
        %v4477 = vsel %vm1334, %v4470, -inf
        %4478 = vmax.xlane.f32.xlu0 %v4477
        %v4479 = vpop.xlane.xlu0 %4478
        %v4480 = vsub.f32 %v4468, %v4473
        %v4481 = vsub.f32 %v4469, %v4476
        %v4482 = vsub.f32 %v4470, %v4479
        %v4483 = vmul.f32 %v4480, 1.442695
        %v4484 = vpow.pop %v4483
        %v4485 = vmul.f32 %v4481, 1.442695
        %v4486 = vpow.pop %v4485
        %v4487 = vmul.f32 %v4482, 1.442695
        %v4488 = vpow.pop %v4487
        %v4489 = vsel %vm1327, %v4484, 0.0
        %4490 = vadd.xlane.f32.xlu0 %v4489
        %v4491 = vpop.xlane.xlu0 %4490
        %v4492 = vsel %vm1327, %v4486, 0.0
        %4493 = vadd.xlane.f32.xlu0 %v4492
        %v4494 = vpop.xlane.xlu0 %4493
        %v4495 = vsel %vm1334, %v4488, 0.0
        %4496 = vadd.xlane.f32.xlu0 %v4495
        %v4497 = vpop.xlane.xlu0 %4496
        %v4498 = vrcp.pop %v4491
        %v4499 = vmul.f32 %v4491, %v4498
        %v4500 = vsub.f32 1.0, %v4499
        %v4501 = vmul.f32 %v4498, %v4500
        %v4502 = vadd.f32 %v4498, %v4501
        %vm4503 = vweird.f32 %v4491
        %vm4504 = vweird.f32 %v4498
        %vm4505 = vmor %vm4503, %vm4504
        %v4506 = vsel %vm4505, %v4498, %v4502
        %v4507 = vand.u32 2147483647, %v4491
        %vm4508 = vcmp.eq.f32.partialorder %v4507, 8.507059e+37
        %v4509 = vand.u32 %v4491, 2147483648
        %v4510 = vor.u32 1.1754944e-38, %v4509
        %v4511 = vsel %vm4508, %v4510, %v4506
        %v4512 = vmul.f32 %v4484, %v4511
        %v4513 = vrcp.pop %v4494
        %v4514 = vmul.f32 %v4494, %v4513
        %v4515 = vsub.f32 1.0, %v4514
        %v4516 = vmul.f32 %v4513, %v4515
        %v4517 = vadd.f32 %v4513, %v4516
        %vm4518 = vweird.f32 %v4494
        %vm4519 = vweird.f32 %v4513
        %vm4520 = vmor %vm4518, %vm4519
        %v4521 = vsel %vm4520, %v4513, %v4517
        %v4522 = vand.u32 2147483647, %v4494
        %vm4523 = vcmp.eq.f32.partialorder %v4522, 8.507059e+37
        %v4524 = vand.u32 %v4494, 2147483648
        %v4525 = vor.u32 1.1754944e-38, %v4524
        %v4526 = vsel %vm4523, %v4525, %v4521
        %v4527 = vmul.f32 %v4486, %v4526
        %v4528 = vrcp.pop %v4497
        %v4529 = vmul.f32 %v4497, %v4528
        %v4530 = vsub.f32 1.0, %v4529
        %v4531 = vmul.f32 %v4528, %v4530
        %v4532 = vadd.f32 %v4528, %v4531
        %vm4533 = vweird.f32 %v4497
        %vm4534 = vweird.f32 %v4528
        %vm4535 = vmor %vm4533, %vm4534
        %v4536 = vsel %vm4535, %v4528, %v4532
        %v4537 = vand.u32 2147483647, %v4497
        %vm4538 = vcmp.eq.f32.partialorder %v4537, 8.507059e+37
        %v4539 = vand.u32 %v4497, 2147483648
        %v4540 = vor.u32 1.1754944e-38, %v4539
        %v4541 = vsel %vm4538, %v4540, %v4536
        %v4542 = vmul.f32 %v4488, %v4541
        %4543 = vrot.lane.b32.xlu0 %v4413, 112
        %v4544 = vpop.permute.xlu0 %4543
        %4545 = vrot.lane.b32.xlu0 %v4416, 112
        %v4546 = vpop.permute.xlu0 %4545
        %4547 = vrot.lane.b32.xlu0 %v4419, 112
        %v4548 = vpop.permute.xlu0 %4547
        %v4552 = vsel %vm1327, %v4512, 0
        %v4555 = vsel %vm1327, %v4527, 0
        %v4558 = vsel %vm1327, %v4542, 0
        %v4560 = vsel %vm1088, %v4548, 0
        %4562 = vmatpush.msra.mxu0 0.0
        %4563 = vmatpush.msra.mxu0 0.0
        %4564 = vmatpush.msra.mxu0 0.0
        %4565 = vmatpush.msra.mxu0 0.0
        %4566 = vmatpush.msra.mxu0 0.0
        %4567 = vmatpush.msra.mxu0 0.0
        %4568 = vmatpush.msra.mxu0 0.0
        %4569 = vmatpush.msra.mxu0 0.0
        %4570 = vmatpush.msra.mxu0 0.0
        %4571 = vmatpush.msra.mxu0 0.0
        %4572 = vmatpush.msra.mxu0 0.0
        %4573 = vmatpush.msra.mxu0 0.0
        %4574 = vmatpush.msra.mxu0 0.0
        %4575 = vmatpush.msra.mxu0 %v4560
        %4576 = vmatpush.msra.mxu0 %v4546
        %4577 = vmatpush.msra.mxu0 %v4544
        %4578 = vmatmul.f32.gmra.mxu0 %v4552
        %v4579 = vpop.f32.mrf.mxu0
        %v4580 = vadd.f32 0.0, %v4579
        %4581 = vmatmul.f32.gmra.mxu0 %v4555
        %v4582 = vpop.f32.mrf.mxu0
        %v4583 = vadd.f32 0.0, %v4582
        %4584 = vmatmul.f32.gmra.mxu0 %v4558
        %v4585 = vpop.f32.mrf.mxu0
        %v4586 = vadd.f32 0.0, %v4585
        %4587 = vdwg.mxu0
        %4591 = vrot.lane.b32.xlu0 %v4580, 24
        %v4592 = vpop.permute.xlu0 %4591
        %4593 = vrot.lane.b32.xlu0 %v4583, 24
        %v4594 = vpop.permute.xlu0 %4593
        %4595 = vrot.lane.b32.xlu0 %v4586, 24
        %v4596 = vpop.permute.xlu0 %4595
        %v4600 = vadd.f32 %v4413, %v4592
        %v4601 = vadd.f32 %v4416, %v4594
        %v4602 = vadd.f32 %v4419, %v4596
        %4603 = vrot.lane.b32.xlu0 %v4413, 88
        %v4604 = vpop.permute.xlu0 %4603
        %4605 = vrot.lane.b32.xlu0 %v4416, 88
        %v4606 = vpop.permute.xlu0 %4605
        %4607 = vrot.lane.b32.xlu0 %v4419, 88
        %v4608 = vpop.permute.xlu0 %4607
        %4609 = vrot.lane.b32.xlu0 %v4413, 96
        %v4610 = vpop.permute.xlu0 %4609
        %4611 = vrot.lane.b32.xlu0 %v4416, 96
        %v4612 = vpop.permute.xlu0 %4611
        %4613 = vrot.lane.b32.xlu0 %v4419, 96
        %v4614 = vpop.permute.xlu0 %4613
        %v4615 = vsel %vm1285, %v4604, 0
        %v4617 = vsel %vm1285, %v4606, 0
        %v4619 = vsel %vm1285, %v4608, 0
        %v4621 = vsel %vm1285, %v4610, 0
        %v4623 = vsel %vm1285, %v4612, 0
        %v4625 = vsel %vm1285, %v4614, 0
        %4627 = vmatpush.xpose.msra.mxu0 0.0
        %4628 = vmatpush.xpose.msra.mxu0 0.0
        %4629 = vmatpush.xpose.msra.mxu0 0.0
        %4630 = vmatpush.xpose.msra.mxu0 0.0
        %4631 = vmatpush.xpose.msra.mxu0 0.0
        %4632 = vmatpush.xpose.msra.mxu0 0.0
        %4633 = vmatpush.xpose.msra.mxu0 0.0
        %4634 = vmatpush.xpose.msra.mxu0 0.0
        %4635 = vmatpush.xpose.msra.mxu0 0.0
        %4636 = vmatpush.xpose.msra.mxu0 0.0
        %4637 = vmatpush.xpose.msra.mxu0 0.0
        %4638 = vmatpush.xpose.msra.mxu0 0.0
        %4639 = vmatpush.xpose.msra.mxu0 0.0
        %4640 = vmatpush.xpose.msra.mxu0 %v4625
        %4641 = vmatpush.xpose.msra.mxu0 %v4623
        %4642 = vmatpush.xpose.msra.mxu0 %v4621
        %4643 = vmatmul.f32.gmra.mxu0 %v4615
        %v4644 = vpop.f32.mrf.mxu0
        %v4645 = vadd.f32 0.0, %v4644
        %4646 = vmatmul.f32.gmra.mxu0 %v4617
        %v4647 = vpop.f32.mrf.mxu0
        %v4648 = vadd.f32 0.0, %v4647
        %4649 = vmatmul.f32.gmra.mxu0 %v4619
        %v4650 = vpop.f32.mrf.mxu0
        %v4651 = vadd.f32 0.0, %v4650
        %4652 = vdwg.mxu0
        %v4653 = vmul.f32 %v4645, 0.35355338
        %v4654 = vmul.f32 %v4648, 0.35355338
        %v4655 = vmul.f32 %v4651, 0.35355338
        %v4656 = vsel %vm1327, %v4653, -inf
        %4657 = vmax.xlane.f32.xlu0 %v4656
        %v4658 = vpop.xlane.xlu0 %4657
        %v4659 = vsel %vm1327, %v4654, -inf
        %4660 = vmax.xlane.f32.xlu0 %v4659
        %v4661 = vpop.xlane.xlu0 %4660
        %v4662 = vsel %vm1334, %v4655, -inf
        %4663 = vmax.xlane.f32.xlu0 %v4662
        %v4664 = vpop.xlane.xlu0 %4663
        %v4665 = vsub.f32 %v4653, %v4658
        %v4666 = vsub.f32 %v4654, %v4661
        %v4667 = vsub.f32 %v4655, %v4664
        %v4668 = vmul.f32 %v4665, 1.442695
        %v4669 = vpow.pop %v4668
        %v4670 = vmul.f32 %v4666, 1.442695
        %v4671 = vpow.pop %v4670
        %v4672 = vmul.f32 %v4667, 1.442695
        %v4673 = vpow.pop %v4672
        %v4674 = vsel %vm1327, %v4669, 0.0
        %4675 = vadd.xlane.f32.xlu0 %v4674
        %v4676 = vpop.xlane.xlu0 %4675
        %v4677 = vsel %vm1327, %v4671, 0.0
        %4678 = vadd.xlane.f32.xlu0 %v4677
        %v4679 = vpop.xlane.xlu0 %4678
        %v4680 = vsel %vm1334, %v4673, 0.0
        %4681 = vadd.xlane.f32.xlu0 %v4680
        %v4682 = vpop.xlane.xlu0 %4681
        %v4683 = vrcp.pop %v4676
        %v4684 = vmul.f32 %v4676, %v4683
        %v4685 = vsub.f32 1.0, %v4684
        %v4686 = vmul.f32 %v4683, %v4685
        %v4687 = vadd.f32 %v4683, %v4686
        %vm4688 = vweird.f32 %v4676
        %vm4689 = vweird.f32 %v4683
        %vm4690 = vmor %vm4688, %vm4689
        %v4691 = vsel %vm4690, %v4683, %v4687
        %v4692 = vand.u32 2147483647, %v4676
        %vm4693 = vcmp.eq.f32.partialorder %v4692, 8.507059e+37
        %v4694 = vand.u32 %v4676, 2147483648
        %v4695 = vor.u32 1.1754944e-38, %v4694
        %v4696 = vsel %vm4693, %v4695, %v4691
        %v4697 = vmul.f32 %v4669, %v4696
        %v4698 = vrcp.pop %v4679
        %v4699 = vmul.f32 %v4679, %v4698
        %v4700 = vsub.f32 1.0, %v4699
        %v4701 = vmul.f32 %v4698, %v4700
        %v4702 = vadd.f32 %v4698, %v4701
        %vm4703 = vweird.f32 %v4679
        %vm4704 = vweird.f32 %v4698
        %vm4705 = vmor %vm4703, %vm4704
        %v4706 = vsel %vm4705, %v4698, %v4702
        %v4707 = vand.u32 2147483647, %v4679
        %vm4708 = vcmp.eq.f32.partialorder %v4707, 8.507059e+37
        %v4709 = vand.u32 %v4679, 2147483648
        %v4710 = vor.u32 1.1754944e-38, %v4709
        %v4711 = vsel %vm4708, %v4710, %v4706
        %v4712 = vmul.f32 %v4671, %v4711
        %v4713 = vrcp.pop %v4682
        %v4714 = vmul.f32 %v4682, %v4713
        %v4715 = vsub.f32 1.0, %v4714
        %v4716 = vmul.f32 %v4713, %v4715
        %v4717 = vadd.f32 %v4713, %v4716
        %vm4718 = vweird.f32 %v4682
        %vm4719 = vweird.f32 %v4713
        %vm4720 = vmor %vm4718, %vm4719
        %v4721 = vsel %vm4720, %v4713, %v4717
        %v4722 = vand.u32 2147483647, %v4682
        %vm4723 = vcmp.eq.f32.partialorder %v4722, 8.507059e+37
        %v4724 = vand.u32 %v4682, 2147483648
        %v4725 = vor.u32 1.1754944e-38, %v4724
        %v4726 = vsel %vm4723, %v4725, %v4721
        %v4727 = vmul.f32 %v4673, %v4726
        %4728 = vrot.lane.b32.xlu0 %v4413, 80
        %v4729 = vpop.permute.xlu0 %4728
        %4730 = vrot.lane.b32.xlu0 %v4416, 80
        %v4731 = vpop.permute.xlu0 %4730
        %4732 = vrot.lane.b32.xlu0 %v4419, 80
        %v4733 = vpop.permute.xlu0 %4732
        %v4737 = vsel %vm1327, %v4697, 0
        %v4740 = vsel %vm1327, %v4712, 0
        %v4743 = vsel %vm1327, %v4727, 0
        %v4745 = vsel %vm1088, %v4733, 0
        %4747 = vmatpush.msra.mxu0 0.0
        %4748 = vmatpush.msra.mxu0 0.0
        %4749 = vmatpush.msra.mxu0 0.0
        %4750 = vmatpush.msra.mxu0 0.0
        %4751 = vmatpush.msra.mxu0 0.0
        %4752 = vmatpush.msra.mxu0 0.0
        %4753 = vmatpush.msra.mxu0 0.0
        %4754 = vmatpush.msra.mxu0 0.0
        %4755 = vmatpush.msra.mxu0 0.0
        %4756 = vmatpush.msra.mxu0 0.0
        %4757 = vmatpush.msra.mxu0 0.0
        %4758 = vmatpush.msra.mxu0 0.0
        %4759 = vmatpush.msra.mxu0 0.0
        %4760 = vmatpush.msra.mxu0 %v4745
        %4761 = vmatpush.msra.mxu0 %v4731
        %4762 = vmatpush.msra.mxu0 %v4729
        %4763 = vmatmul.f32.gmra.mxu0 %v4737
        %v4764 = vpop.f32.mrf.mxu0
        %v4765 = vadd.f32 0.0, %v4764
        %4766 = vmatmul.f32.gmra.mxu0 %v4740
        %v4767 = vpop.f32.mrf.mxu0
        %v4768 = vadd.f32 0.0, %v4767
        %4769 = vmatmul.f32.gmra.mxu0 %v4743
        %v4770 = vpop.f32.mrf.mxu0
        %v4771 = vadd.f32 0.0, %v4770
        %4772 = vdwg.mxu0
        %4776 = vrot.lane.b32.xlu0 %v4765, 56
        %v4777 = vpop.permute.xlu0 %4776
        %4778 = vrot.lane.b32.xlu0 %v4768, 56
        %v4779 = vpop.permute.xlu0 %4778
        %4780 = vrot.lane.b32.xlu0 %v4771, 56
        %v4781 = vpop.permute.xlu0 %4780
        %v4785 = vadd.f32 %v4413, %v4777
        %v4786 = vadd.f32 %v4416, %v4779
        %v4787 = vadd.f32 %v4419, %v4781
        %4788 = vrot.lane.b32.xlu0 %v4413, 56
        %v4789 = vpop.permute.xlu0 %4788
        %4790 = vrot.lane.b32.xlu0 %v4416, 56
        %v4791 = vpop.permute.xlu0 %4790
        %4792 = vrot.lane.b32.xlu0 %v4419, 56
        %v4793 = vpop.permute.xlu0 %4792
        %4794 = vrot.lane.b32.xlu0 %v4413, 64
        %v4795 = vpop.permute.xlu0 %4794
        %4796 = vrot.lane.b32.xlu0 %v4416, 64
        %v4797 = vpop.permute.xlu0 %4796
        %4798 = vrot.lane.b32.xlu0 %v4419, 64
        %v4799 = vpop.permute.xlu0 %4798
        %v4800 = vsel %vm1285, %v4789, 0
        %v4802 = vsel %vm1285, %v4791, 0
        %v4804 = vsel %vm1285, %v4793, 0
        %v4806 = vsel %vm1285, %v4795, 0
        %v4808 = vsel %vm1285, %v4797, 0
        %v4810 = vsel %vm1285, %v4799, 0
        %4812 = vmatpush.xpose.msra.mxu0 0.0
        %4813 = vmatpush.xpose.msra.mxu0 0.0
        %4814 = vmatpush.xpose.msra.mxu0 0.0
        %4815 = vmatpush.xpose.msra.mxu0 0.0
        %4816 = vmatpush.xpose.msra.mxu0 0.0
        %4817 = vmatpush.xpose.msra.mxu0 0.0
        %4818 = vmatpush.xpose.msra.mxu0 0.0
        %4819 = vmatpush.xpose.msra.mxu0 0.0
        %4820 = vmatpush.xpose.msra.mxu0 0.0
        %4821 = vmatpush.xpose.msra.mxu0 0.0
        %4822 = vmatpush.xpose.msra.mxu0 0.0
        %4823 = vmatpush.xpose.msra.mxu0 0.0
        %4824 = vmatpush.xpose.msra.mxu0 0.0
        %4825 = vmatpush.xpose.msra.mxu0 %v4810
        %4826 = vmatpush.xpose.msra.mxu0 %v4808
        %4827 = vmatpush.xpose.msra.mxu0 %v4806
        %4828 = vmatmul.f32.gmra.mxu0 %v4800
        %v4829 = vpop.f32.mrf.mxu0
        %v4830 = vadd.f32 0.0, %v4829
        %4831 = vmatmul.f32.gmra.mxu0 %v4802
        %v4832 = vpop.f32.mrf.mxu0
        %v4833 = vadd.f32 0.0, %v4832
        %4834 = vmatmul.f32.gmra.mxu0 %v4804
        %v4835 = vpop.f32.mrf.mxu0
        %v4836 = vadd.f32 0.0, %v4835
        %4837 = vdwg.mxu0
        %v4838 = vmul.f32 %v4830, 0.35355338
        %v4839 = vmul.f32 %v4833, 0.35355338
        %v4840 = vmul.f32 %v4836, 0.35355338
        %v4841 = vsel %vm1327, %v4838, -inf
        %4842 = vmax.xlane.f32.xlu0 %v4841
        %v4843 = vpop.xlane.xlu0 %4842
        %v4844 = vsel %vm1327, %v4839, -inf
        %4845 = vmax.xlane.f32.xlu0 %v4844
        %v4846 = vpop.xlane.xlu0 %4845
        %v4847 = vsel %vm1334, %v4840, -inf
        %4848 = vmax.xlane.f32.xlu0 %v4847
        %v4849 = vpop.xlane.xlu0 %4848
        %v4850 = vsub.f32 %v4838, %v4843
        %v4851 = vsub.f32 %v4839, %v4846
        %v4852 = vsub.f32 %v4840, %v4849
        %v4853 = vmul.f32 %v4850, 1.442695
        %v4854 = vpow.pop %v4853
        %v4855 = vmul.f32 %v4851, 1.442695
        %v4856 = vpow.pop %v4855
        %v4857 = vmul.f32 %v4852, 1.442695
        %v4858 = vpow.pop %v4857
        %v4859 = vsel %vm1327, %v4854, 0.0
        %4860 = vadd.xlane.f32.xlu0 %v4859
        %v4861 = vpop.xlane.xlu0 %4860
        %v4862 = vsel %vm1327, %v4856, 0.0
        %4863 = vadd.xlane.f32.xlu0 %v4862
        %v4864 = vpop.xlane.xlu0 %4863
        %v4865 = vsel %vm1334, %v4858, 0.0
        %4866 = vadd.xlane.f32.xlu0 %v4865
        %v4867 = vpop.xlane.xlu0 %4866
        %v4868 = vrcp.pop %v4861
        %v4869 = vmul.f32 %v4861, %v4868
        %v4870 = vsub.f32 1.0, %v4869
        %v4871 = vmul.f32 %v4868, %v4870
        %v4872 = vadd.f32 %v4868, %v4871
        %vm4873 = vweird.f32 %v4861
        %vm4874 = vweird.f32 %v4868
        %vm4875 = vmor %vm4873, %vm4874
        %v4876 = vsel %vm4875, %v4868, %v4872
        %v4877 = vand.u32 2147483647, %v4861
        %vm4878 = vcmp.eq.f32.partialorder %v4877, 8.507059e+37
        %v4879 = vand.u32 %v4861, 2147483648
        %v4880 = vor.u32 1.1754944e-38, %v4879
        %v4881 = vsel %vm4878, %v4880, %v4876
        %v4882 = vmul.f32 %v4854, %v4881
        %v4883 = vrcp.pop %v4864
        %v4884 = vmul.f32 %v4864, %v4883
        %v4885 = vsub.f32 1.0, %v4884
        %v4886 = vmul.f32 %v4883, %v4885
        %v4887 = vadd.f32 %v4883, %v4886
        %vm4888 = vweird.f32 %v4864
        %vm4889 = vweird.f32 %v4883
        %vm4890 = vmor %vm4888, %vm4889
        %v4891 = vsel %vm4890, %v4883, %v4887
        %v4892 = vand.u32 2147483647, %v4864
        %vm4893 = vcmp.eq.f32.partialorder %v4892, 8.507059e+37
        %v4894 = vand.u32 %v4864, 2147483648
        %v4895 = vor.u32 1.1754944e-38, %v4894
        %v4896 = vsel %vm4893, %v4895, %v4891
        %v4897 = vmul.f32 %v4856, %v4896
        %v4898 = vrcp.pop %v4867
        %v4899 = vmul.f32 %v4867, %v4898
        %v4900 = vsub.f32 1.0, %v4899
        %v4901 = vmul.f32 %v4898, %v4900
        %v4902 = vadd.f32 %v4898, %v4901
        %vm4903 = vweird.f32 %v4867
        %vm4904 = vweird.f32 %v4898
        %vm4905 = vmor %vm4903, %vm4904
        %v4906 = vsel %vm4905, %v4898, %v4902
        %v4907 = vand.u32 2147483647, %v4867
        %vm4908 = vcmp.eq.f32.partialorder %v4907, 8.507059e+37
        %v4909 = vand.u32 %v4867, 2147483648
        %v4910 = vor.u32 1.1754944e-38, %v4909
        %v4911 = vsel %vm4908, %v4910, %v4906
        %v4912 = vmul.f32 %v4858, %v4911
        %4913 = vrot.lane.b32.xlu0 %v4413, 48
        %v4914 = vpop.permute.xlu0 %4913
        %4915 = vrot.lane.b32.xlu0 %v4416, 48
        %v4916 = vpop.permute.xlu0 %4915
        %4917 = vrot.lane.b32.xlu0 %v4419, 48
        %v4918 = vpop.permute.xlu0 %4917
        %v4922 = vsel %vm1327, %v4882, 0
        %v4925 = vsel %vm1327, %v4897, 0
        %v4928 = vsel %vm1327, %v4912, 0
        %v4930 = vsel %vm1088, %v4918, 0
        %4932 = vmatpush.msra.mxu0 0.0
        %4933 = vmatpush.msra.mxu0 0.0
        %4934 = vmatpush.msra.mxu0 0.0
        %4935 = vmatpush.msra.mxu0 0.0
        %4936 = vmatpush.msra.mxu0 0.0
        %4937 = vmatpush.msra.mxu0 0.0
        %4938 = vmatpush.msra.mxu0 0.0
        %4939 = vmatpush.msra.mxu0 0.0
        %4940 = vmatpush.msra.mxu0 0.0
        %4941 = vmatpush.msra.mxu0 0.0
        %4942 = vmatpush.msra.mxu0 0.0
        %4943 = vmatpush.msra.mxu0 0.0
        %4944 = vmatpush.msra.mxu0 0.0
        %4945 = vmatpush.msra.mxu0 %v4930
        %4946 = vmatpush.msra.mxu0 %v4916
        %4947 = vmatpush.msra.mxu0 %v4914
        %4948 = vmatmul.f32.gmra.mxu0 %v4922
        %v4949 = vpop.f32.mrf.mxu0
        %v4950 = vadd.f32 0.0, %v4949
        %4951 = vmatmul.f32.gmra.mxu0 %v4925
        %v4952 = vpop.f32.mrf.mxu0
        %v4953 = vadd.f32 0.0, %v4952
        %4954 = vmatmul.f32.gmra.mxu0 %v4928
        %v4955 = vpop.f32.mrf.mxu0
        %v4956 = vadd.f32 0.0, %v4955
        %4957 = vdwg.mxu0
        %4961 = vrot.lane.b32.xlu0 %v4950, 88
        %v4962 = vpop.permute.xlu0 %4961
        %4963 = vrot.lane.b32.xlu0 %v4953, 88
        %v4964 = vpop.permute.xlu0 %4963
        %4965 = vrot.lane.b32.xlu0 %v4956, 88
        %v4966 = vpop.permute.xlu0 %4965
        %v4970 = vadd.f32 %v4413, %v4962
        %v4971 = vadd.f32 %v4416, %v4964
        %v4972 = vadd.f32 %v4419, %v4966
        %4973 = vrot.lane.b32.xlu0 %v4413, 24
        %v4974 = vpop.permute.xlu0 %4973
        %4975 = vrot.lane.b32.xlu0 %v4416, 24
        %v4976 = vpop.permute.xlu0 %4975
        %4977 = vrot.lane.b32.xlu0 %v4419, 24
        %v4978 = vpop.permute.xlu0 %4977
        %4979 = vrot.lane.b32.xlu0 %v4413, 32
        %v4980 = vpop.permute.xlu0 %4979
        %4981 = vrot.lane.b32.xlu0 %v4416, 32
        %v4982 = vpop.permute.xlu0 %4981
        %4983 = vrot.lane.b32.xlu0 %v4419, 32
        %v4984 = vpop.permute.xlu0 %4983
        %v4985 = vsel %vm1285, %v4974, 0
        %v4987 = vsel %vm1285, %v4976, 0
        %v4989 = vsel %vm1285, %v4978, 0
        %v4991 = vsel %vm1285, %v4980, 0
        %v4993 = vsel %vm1285, %v4982, 0
        %v4995 = vsel %vm1285, %v4984, 0
        %4997 = vmatpush.xpose.msra.mxu0 0.0
        %4998 = vmatpush.xpose.msra.mxu0 0.0
        %4999 = vmatpush.xpose.msra.mxu0 0.0
        %5000 = vmatpush.xpose.msra.mxu0 0.0
        %5001 = vmatpush.xpose.msra.mxu0 0.0
        %5002 = vmatpush.xpose.msra.mxu0 0.0
        %5003 = vmatpush.xpose.msra.mxu0 0.0
        %5004 = vmatpush.xpose.msra.mxu0 0.0
        %5005 = vmatpush.xpose.msra.mxu0 0.0
        %5006 = vmatpush.xpose.msra.mxu0 0.0
        %5007 = vmatpush.xpose.msra.mxu0 0.0
        %5008 = vmatpush.xpose.msra.mxu0 0.0
        %5009 = vmatpush.xpose.msra.mxu0 0.0
        %5010 = vmatpush.xpose.msra.mxu0 %v4995
        %5011 = vmatpush.xpose.msra.mxu0 %v4993
        %5012 = vmatpush.xpose.msra.mxu0 %v4991
        %5013 = vmatmul.f32.gmra.mxu0 %v4985
        %v5014 = vpop.f32.mrf.mxu0
        %v5015 = vadd.f32 0.0, %v5014
        %5016 = vmatmul.f32.gmra.mxu0 %v4987
        %v5017 = vpop.f32.mrf.mxu0
        %v5018 = vadd.f32 0.0, %v5017
        %5019 = vmatmul.f32.gmra.mxu0 %v4989
        %v5020 = vpop.f32.mrf.mxu0
        %v5021 = vadd.f32 0.0, %v5020
        %5022 = vdwg.mxu0
        %v5023 = vmul.f32 %v5015, 0.35355338
        %v5024 = vmul.f32 %v5018, 0.35355338
        %v5025 = vmul.f32 %v5021, 0.35355338
        %v5026 = vsel %vm1327, %v5023, -inf
        %5027 = vmax.xlane.f32.xlu0 %v5026
        %v5028 = vpop.xlane.xlu0 %5027
        %v5029 = vsel %vm1327, %v5024, -inf
        %5030 = vmax.xlane.f32.xlu0 %v5029
        %v5031 = vpop.xlane.xlu0 %5030
        %v5032 = vsel %vm1334, %v5025, -inf
        %5033 = vmax.xlane.f32.xlu0 %v5032
        %v5034 = vpop.xlane.xlu0 %5033
        %v5035 = vsub.f32 %v5023, %v5028
        %v5036 = vsub.f32 %v5024, %v5031
        %v5037 = vsub.f32 %v5025, %v5034
        %v5038 = vmul.f32 %v5035, 1.442695
        %v5039 = vpow.pop %v5038
        %v5040 = vmul.f32 %v5036, 1.442695
        %v5041 = vpow.pop %v5040
        %v5042 = vmul.f32 %v5037, 1.442695
        %v5043 = vpow.pop %v5042
        %v5044 = vsel %vm1327, %v5039, 0.0
        %5045 = vadd.xlane.f32.xlu0 %v5044
        %v5046 = vpop.xlane.xlu0 %5045
        %v5047 = vsel %vm1327, %v5041, 0.0
        %5048 = vadd.xlane.f32.xlu0 %v5047
        %v5049 = vpop.xlane.xlu0 %5048
        %v5050 = vsel %vm1334, %v5043, 0.0
        %5051 = vadd.xlane.f32.xlu0 %v5050
        %v5052 = vpop.xlane.xlu0 %5051
        %v5053 = vrcp.pop %v5046
        %v5054 = vmul.f32 %v5046, %v5053
        %v5055 = vsub.f32 1.0, %v5054
        %v5056 = vmul.f32 %v5053, %v5055
        %v5057 = vadd.f32 %v5053, %v5056
        %vm5058 = vweird.f32 %v5046
        %vm5059 = vweird.f32 %v5053
        %vm5060 = vmor %vm5058, %vm5059
        %v5061 = vsel %vm5060, %v5053, %v5057
        %v5062 = vand.u32 2147483647, %v5046
        %vm5063 = vcmp.eq.f32.partialorder %v5062, 8.507059e+37
        %v5064 = vand.u32 %v5046, 2147483648
        %v5065 = vor.u32 1.1754944e-38, %v5064
        %v5066 = vsel %vm5063, %v5065, %v5061
        %v5067 = vmul.f32 %v5039, %v5066
        %v5068 = vrcp.pop %v5049
        %v5069 = vmul.f32 %v5049, %v5068
        %v5070 = vsub.f32 1.0, %v5069
        %v5071 = vmul.f32 %v5068, %v5070
        %v5072 = vadd.f32 %v5068, %v5071
        %vm5073 = vweird.f32 %v5049
        %vm5074 = vweird.f32 %v5068
        %vm5075 = vmor %vm5073, %vm5074
        %v5076 = vsel %vm5075, %v5068, %v5072
        %v5077 = vand.u32 2147483647, %v5049
        %vm5078 = vcmp.eq.f32.partialorder %v5077, 8.507059e+37
        %v5079 = vand.u32 %v5049, 2147483648
        %v5080 = vor.u32 1.1754944e-38, %v5079
        %v5081 = vsel %vm5078, %v5080, %v5076
        %v5082 = vmul.f32 %v5041, %v5081
        %v5083 = vrcp.pop %v5052
        %v5084 = vmul.f32 %v5052, %v5083
        %v5085 = vsub.f32 1.0, %v5084
        %v5086 = vmul.f32 %v5083, %v5085
        %v5087 = vadd.f32 %v5083, %v5086
        %vm5088 = vweird.f32 %v5052
        %vm5089 = vweird.f32 %v5083
        %vm5090 = vmor %vm5088, %vm5089
        %v5091 = vsel %vm5090, %v5083, %v5087
        %v5092 = vand.u32 2147483647, %v5052
        %vm5093 = vcmp.eq.f32.partialorder %v5092, 8.507059e+37
        %v5094 = vand.u32 %v5052, 2147483648
        %v5095 = vor.u32 1.1754944e-38, %v5094
        %v5096 = vsel %vm5093, %v5095, %v5091
        %v5097 = vmul.f32 %v5043, %v5096
        %5098 = vrot.lane.b32.xlu0 %v4413, 16
        %v5099 = vpop.permute.xlu0 %5098
        %5100 = vrot.lane.b32.xlu0 %v4416, 16
        %v5101 = vpop.permute.xlu0 %5100
        %5102 = vrot.lane.b32.xlu0 %v4419, 16
        %v5103 = vpop.permute.xlu0 %5102
        %v5107 = vsel %vm1327, %v5067, 0
        %v5110 = vsel %vm1327, %v5082, 0
        %v5113 = vsel %vm1327, %v5097, 0
        %v5115 = vsel %vm1088, %v5103, 0
        %5117 = vmatpush.msra.mxu0 0.0
        %5118 = vmatpush.msra.mxu0 0.0
        %5119 = vmatpush.msra.mxu0 0.0
        %5120 = vmatpush.msra.mxu0 0.0
        %5121 = vmatpush.msra.mxu0 0.0
        %5122 = vmatpush.msra.mxu0 0.0
        %5123 = vmatpush.msra.mxu0 0.0
        %5124 = vmatpush.msra.mxu0 0.0
        %5125 = vmatpush.msra.mxu0 0.0
        %5126 = vmatpush.msra.mxu0 0.0
        %5127 = vmatpush.msra.mxu0 0.0
        %5128 = vmatpush.msra.mxu0 0.0
        %5129 = vmatpush.msra.mxu0 0.0
        %5130 = vmatpush.msra.mxu0 %v5115
        %5131 = vmatpush.msra.mxu0 %v5101
        %5132 = vmatpush.msra.mxu0 %v5099
        %5133 = vmatmul.f32.gmra.mxu0 %v5107
        %v5134 = vpop.f32.mrf.mxu0
        %v5135 = vadd.f32 0.0, %v5134
        %5136 = vmatmul.f32.gmra.mxu0 %v5110
        %v5137 = vpop.f32.mrf.mxu0
        %v5138 = vadd.f32 0.0, %v5137
        %5139 = vmatmul.f32.gmra.mxu0 %v5113
        %v5140 = vpop.f32.mrf.mxu0
        %v5141 = vadd.f32 0.0, %v5140
        %5142 = vdwg.mxu0
        %5146 = vrot.lane.b32.xlu0 %v5135, 120
        %v5147 = vpop.permute.xlu0 %5146
        %5148 = vrot.lane.b32.xlu0 %v5138, 120
        %v5149 = vpop.permute.xlu0 %5148
        %5150 = vrot.lane.b32.xlu0 %v5141, 120
        %v5151 = vpop.permute.xlu0 %5150
        %v5155 = vadd.f32 %v4413, %v5147
        %v5156 = vadd.f32 %v4416, %v5149
        %v5157 = vadd.f32 %v4419, %v5151
        %5161 = vrot.lane.b32.xlu0 %v4600, 104
        %v5162 = vpop.permute.xlu0 %5161
        %5163 = vrot.lane.b32.xlu0 %v4601, 104
        %v5164 = vpop.permute.xlu0 %5163
        %5165 = vrot.lane.b32.xlu0 %v4602, 104
        %v5166 = vpop.permute.xlu0 %5165
        %5173 = vrot.lane.b32.xlu0 %v4785, 80
        %v5174 = vpop.permute.xlu0 %5173
        %5175 = vrot.lane.b32.xlu0 %v4786, 80
        %v5176 = vpop.permute.xlu0 %5175
        %5177 = vrot.lane.b32.xlu0 %v4787, 80
        %v5178 = vpop.permute.xlu0 %5177
        %5185 = vrot.lane.b32.xlu0 %v4970, 56
        %v5186 = vpop.permute.xlu0 %5185
        %5187 = vrot.lane.b32.xlu0 %v4971, 56
        %v5188 = vpop.permute.xlu0 %5187
        %5189 = vrot.lane.b32.xlu0 %v4972, 56
        %v5190 = vpop.permute.xlu0 %5189
        %5197 = vrot.lane.b32.xlu0 %v5155, 32
        %v5198 = vpop.permute.xlu0 %5197
        %5199 = vrot.lane.b32.xlu0 %v5156, 32
        %v5200 = vpop.permute.xlu0 %5199
        %5201 = vrot.lane.b32.xlu0 %v5157, 32
        %v5202 = vpop.permute.xlu0 %5201
        %v5206 = vsel %vm1285, %v5162, %v5174
        %v5207 = vsel %vm1285, %v5164, %v5176
        %v5208 = vsel %vm1285, %v5166, %v5178
        %vm5209 = vcmask 130048
        %v5210 = vsel %vm5209, %v5206, %v5186
        %v5211 = vsel %vm5209, %v5207, %v5188
        %v5212 = vsel %vm5209, %v5208, %v5190
        %v5213 = vsel %vm2016, %v5210, %v5198
        %v5214 = vsel %vm2016, %v5211, %v5200
        %v5215 = vsel %vm2016, %v5212, %v5202
        %v5217 = vsel %vm1151, %v5213, 0
        %v5220 = vsel %vm1151, %v5214, 0
        %v5223 = vsel %vm1151, %v5215, 0
        %5225 = vmatpush.msra.mxu0 0.0
        %5226 = vmatpush.msra.mxu0 0.0
        %5227 = vmatpush.msra.mxu0 0.0
        %5228 = vmatpush.msra.mxu0 0.0
        %5229 = vmatpush.msra.mxu0 0.0
        %5230 = vmatpush.msra.mxu0 0.0
        %5231 = vmatpush.msra.mxu0 0.0
        %5232 = vmatpush.msra.mxu0 0.0
        %5233 = vmatpush.msra.mxu0 0.0
        %5234 = vmatpush.msra.mxu0 0.0
        %5235 = vmatpush.msra.mxu0 0.0
        %5236 = vmatpush.msra.mxu0 0.0
        %5237 = vmatpush.msra.mxu0 %v1125
        %5238 = vmatpush.msra.mxu0 %v1124
        %5239 = vmatpush.msra.mxu0 %v1123
        %5240 = vmatpush.msra.mxu0 %v1122
        %5241 = vmatmul.f32.gmra.mxu0 %v5217
        %v5242 = vpop.f32.mrf.mxu0
        %v5243 = vadd.f32 0.0, %v5242
        %5244 = vmatmul.f32.gmra.mxu0 %v5220
        %v5245 = vpop.f32.mrf.mxu0
        %v5246 = vadd.f32 0.0, %v5245
        %5247 = vmatmul.f32.gmra.mxu0 %v5223
        %v5248 = vpop.f32.mrf.mxu0
        %v5249 = vadd.f32 0.0, %v5248
        %5250 = vdwg.mxu0
        %v5251 = vadd.f32 %v1096, %v5243
        %v5252 = vadd.f32 %v1097, %v5246
        %v5253 = vadd.f32 %v1098, %v5249
        %v5255 = vperm.slane %v1126, 0
        %v5257 = vadd.f32 %v5251, %v5255
        %v5258 = vadd.f32 %v5252, %v5255
        %v5259 = vadd.f32 %v5253, %v5255
        %v5260 = vsel %vm1151, %v5257, 0.0
        %5261 = vadd.xlane.f32.xlu0 %v5260
        %v5262 = vpop.xlane.xlu0 %5261
        %v5263 = vsel %vm1151, %v5258, 0.0
        %5264 = vadd.xlane.f32.xlu0 %v5263
        %v5265 = vpop.xlane.xlu0 %5264
        %v5266 = vsel %vm1158, %v5259, 0.0
        %5267 = vadd.xlane.f32.xlu0 %v5266
        %v5268 = vpop.xlane.xlu0 %5267
        %v5269 = vmul.f32 %v5262, %v1168
        %v5270 = vmul.f32 %v5265, %v1168
        %v5271 = vmul.f32 %v5268, %v1168
        %v5272 = vsub.f32 %v5257, %v5269
        %v5273 = vsub.f32 %v5258, %v5270
        %v5274 = vsub.f32 %v5259, %v5271
        %v5275 = vmul.f32 %v5272, %v5272
        %v5276 = vmul.f32 %v5273, %v5273
        %v5277 = vmul.f32 %v5274, %v5274
        %v5278 = vsel %vm1151, %v5275, 0.0
        %5279 = vadd.xlane.f32.xlu0 %v5278
        %v5280 = vpop.xlane.xlu0 %5279
        %v5281 = vsel %vm1151, %v5276, 0.0
        %5282 = vadd.xlane.f32.xlu0 %v5281
        %v5283 = vpop.xlane.xlu0 %5282
        %v5284 = vsel %vm1158, %v5277, 0.0
        %5285 = vadd.xlane.f32.xlu0 %v5284
        %v5286 = vpop.xlane.xlu0 %5285
        %v5287 = vmul.f32 %v5280, %v1168
        %v5288 = vmul.f32 %v5283, %v1168
        %v5289 = vmul.f32 %v5286, %v1168
        %v5290 = vadd.f32 %v5287, 1e-06
        %v5291 = vadd.f32 %v5288, 1e-06
        %v5292 = vadd.f32 %v5289, 1e-06
        %v5293 = vrsqrt.pop %v5290
        %v5294 = vmul.f32 %v5293, %v5290
        %v5295 = vmul.f32 %v5294, %v5293
        %v5296 = vmul.f32 0.5, %v5295
        %v5297 = vsub.f32 1.5, %v5296
        %v5298 = vmul.f32 %v5293, %v5297
        %vm5299 = vweird.f32 %v5290
        %vm5300 = vweird.f32 %v5293
        %vm5301 = vmor %vm5299, %vm5300
        %v5302 = vsel %vm5301, %v5293, %v5298
        %v5303 = vrsqrt.pop %v5291
        %v5304 = vmul.f32 %v5303, %v5291
        %v5305 = vmul.f32 %v5304, %v5303
        %v5306 = vmul.f32 0.5, %v5305
        %v5307 = vsub.f32 1.5, %v5306
        %v5308 = vmul.f32 %v5303, %v5307
        %vm5309 = vweird.f32 %v5291
        %vm5310 = vweird.f32 %v5303
        %vm5311 = vmor %vm5309, %vm5310
        %v5312 = vsel %vm5311, %v5303, %v5308
        %v5313 = vrsqrt.pop %v5292
        %v5314 = vmul.f32 %v5313, %v5292
        %v5315 = vmul.f32 %v5314, %v5313
        %v5316 = vmul.f32 0.5, %v5315
        %v5317 = vsub.f32 1.5, %v5316
        %v5318 = vmul.f32 %v5313, %v5317
        %vm5319 = vweird.f32 %v5292
        %vm5320 = vweird.f32 %v5313
        %vm5321 = vmor %vm5319, %vm5320
        %v5322 = vsel %vm5321, %v5313, %v5318
        %v5323 = vmul.f32 %v5272, %v5302
        %v5324 = vmul.f32 %v5273, %v5312
        %v5325 = vmul.f32 %v5274, %v5322
        %v5327 = vperm.slane %v1127, 0
        %v5329 = vmul.f32 %v5323, %v5327
        %v5330 = vmul.f32 %v5324, %v5327
        %v5331 = vmul.f32 %v5325, %v5327
        %v5333 = vperm.slane %v1128, 0
        %v5335 = vadd.f32 %v5329, %v5333
        %v5336 = vadd.f32 %v5330, %v5333
        %v5337 = vadd.f32 %v5331, %v5333
        %v5339 = vperm.slane %v1133, 0
        %v5342 = vsel %vm1151, %v5335, 0
        %v5345 = vsel %vm1151, %v5336, 0
        %v5348 = vsel %vm1151, %v5337, 0
        %5350 = vmatpush.msra.mxu0 0.0
        %5351 = vmatpush.msra.mxu0 0.0
        %5352 = vmatpush.msra.mxu0 0.0
        %5353 = vmatpush.msra.mxu0 0.0
        %5354 = vmatpush.msra.mxu0 0.0
        %5355 = vmatpush.msra.mxu0 0.0
        %5356 = vmatpush.msra.mxu0 0.0
        %5357 = vmatpush.msra.mxu0 0.0
        %5358 = vmatpush.msra.mxu0 0.0
        %5359 = vmatpush.msra.mxu0 0.0
        %5360 = vmatpush.msra.mxu0 0.0
        %5361 = vmatpush.msra.mxu0 0.0
        %5362 = vmatpush.msra.mxu0 %v1132
        %5363 = vmatpush.msra.mxu0 %v1131
        %5364 = vmatpush.msra.mxu0 %v1130
        %5365 = vmatpush.msra.mxu0 %v1129
        %5366 = vmatmul.f32.gmra.mxu0 %v5342
        %v5367 = vpop.f32.mrf.mxu0
        %v5368 = vadd.f32 %v5339, %v5367
        %5369 = vmatmul.f32.gmra.mxu0 %v5345
        %v5370 = vpop.f32.mrf.mxu0
        %v5371 = vadd.f32 %v5339, %v5370
        %5372 = vmatmul.f32.gmra.mxu0 %v5348
        %v5373 = vpop.f32.mrf.mxu0
        %v5374 = vadd.f32 %v5339, %v5373
        %5375 = vdwg.mxu0
        %v5376 = vmul.f32 %v5368, 0.5
        %v5377 = vmul.f32 %v5371, 0.5
        %v5378 = vmul.f32 %v5374, 0.5
        %v5379 = vmul.f32 %v5368, 0.70710677
        %v5380 = vmul.f32 %v5371, 0.70710677
        %v5381 = vmul.f32 %v5374, 0.70710677
        %vm5382 = vcmp.ge.f32.partialorder %v5379, 0.0
        %vm5383 = vcmp.ge.f32.partialorder %v5380, 0.0
        %vm5384 = vcmp.ge.f32.partialorder %v5381, 0.0
        %v5385 = vsel %vm5382, 1.0, -1.0
        %v5386 = vsel %vm5383, 1.0, -1.0
        %v5387 = vsel %vm5384, 1.0, -1.0
        %v5388 = vand.u32 2147483647, %v5379
        %v5389 = vand.u32 2147483647, %v5380
        %v5390 = vand.u32 2147483647, %v5381
        %v5391 = vmul.f32 %v5388, 0.3275911
        %v5392 = vmul.f32 %v5389, 0.3275911
        %v5393 = vmul.f32 %v5390, 0.3275911
        %v5394 = vadd.f32 %v5391, 1.0
        %v5395 = vadd.f32 %v5392, 1.0
        %v5396 = vadd.f32 %v5393, 1.0
        %v5397 = vrcp.pop %v5394
        %v5398 = vmul.f32 %v5394, %v5397
        %v5399 = vsub.f32 1.0, %v5398
        %v5400 = vmul.f32 %v5397, %v5399
        %v5401 = vadd.f32 %v5397, %v5400
        %vm5402 = vweird.f32 %v5394
        %vm5403 = vweird.f32 %v5397
        %vm5404 = vmor %vm5402, %vm5403
        %v5405 = vsel %vm5404, %v5397, %v5401
        %v5406 = vand.u32 2147483647, %v5394
        %vm5407 = vcmp.eq.f32.partialorder %v5406, 8.507059e+37
        %v5408 = vand.u32 %v5394, 2147483648
        %v5409 = vor.u32 1.1754944e-38, %v5408
        %v5410 = vsel %vm5407, %v5409, %v5405
        %v5411 = vmul.f32 1.0, %v5410
        %v5412 = vrcp.pop %v5395
        %v5413 = vmul.f32 %v5395, %v5412
        %v5414 = vsub.f32 1.0, %v5413
        %v5415 = vmul.f32 %v5412, %v5414
        %v5416 = vadd.f32 %v5412, %v5415
        %vm5417 = vweird.f32 %v5395
        %vm5418 = vweird.f32 %v5412
        %vm5419 = vmor %vm5417, %vm5418
        %v5420 = vsel %vm5419, %v5412, %v5416
        %v5421 = vand.u32 2147483647, %v5395
        %vm5422 = vcmp.eq.f32.partialorder %v5421, 8.507059e+37
        %v5423 = vand.u32 %v5395, 2147483648
        %v5424 = vor.u32 1.1754944e-38, %v5423
        %v5425 = vsel %vm5422, %v5424, %v5420
        %v5426 = vmul.f32 1.0, %v5425
        %v5427 = vrcp.pop %v5396
        %v5428 = vmul.f32 %v5396, %v5427
        %v5429 = vsub.f32 1.0, %v5428
        %v5430 = vmul.f32 %v5427, %v5429
        %v5431 = vadd.f32 %v5427, %v5430
        %vm5432 = vweird.f32 %v5396
        %vm5433 = vweird.f32 %v5427
        %vm5434 = vmor %vm5432, %vm5433
        %v5435 = vsel %vm5434, %v5427, %v5431
        %v5436 = vand.u32 2147483647, %v5396
        %vm5437 = vcmp.eq.f32.partialorder %v5436, 8.507059e+37
        %v5438 = vand.u32 %v5396, 2147483648
        %v5439 = vor.u32 1.1754944e-38, %v5438
        %v5440 = vsel %vm5437, %v5439, %v5435
        %v5441 = vmul.f32 1.0, %v5440
        %v5442 = vmul.f32 %v5411, 1.0614054
        %v5443 = vmul.f32 %v5426, 1.0614054
        %v5444 = vmul.f32 %v5441, 1.0614054
        %v5445 = vadd.f32 %v5442, -1.4531521
        %v5446 = vadd.f32 %v5443, -1.4531521
        %v5447 = vadd.f32 %v5444, -1.4531521
        %v5448 = vmul.f32 %v5445, %v5411
        %v5449 = vmul.f32 %v5446, %v5426
        %v5450 = vmul.f32 %v5447, %v5441
        %v5451 = vadd.f32 %v5448, 1.4214138
        %v5452 = vadd.f32 %v5449, 1.4214138
        %v5453 = vadd.f32 %v5450, 1.4214138
        %v5454 = vmul.f32 %v5451, %v5411
        %v5455 = vmul.f32 %v5452, %v5426
        %v5456 = vmul.f32 %v5453, %v5441
        %v5457 = vadd.f32 %v5454, -0.28449672
        %v5458 = vadd.f32 %v5455, -0.28449672
        %v5459 = vadd.f32 %v5456, -0.28449672
        %v5460 = vmul.f32 %v5457, %v5411
        %v5461 = vmul.f32 %v5458, %v5426
        %v5462 = vmul.f32 %v5459, %v5441
        %v5463 = vadd.f32 %v5460, 0.2548296
        %v5464 = vadd.f32 %v5461, 0.2548296
        %v5465 = vadd.f32 %v5462, 0.2548296
        %v5466 = vmul.f32 %v5463, %v5411
        %v5467 = vmul.f32 %v5464, %v5426
        %v5468 = vmul.f32 %v5465, %v5441
        %v5469 = vsub.f32 0.0, %v5388
        %v5470 = vsub.f32 0.0, %v5389
        %v5471 = vsub.f32 0.0, %v5390
        %v5472 = vmul.f32 %v5469, %v5388
        %v5473 = vmul.f32 %v5470, %v5389
        %v5474 = vmul.f32 %v5471, %v5390
        %v5475 = vmul.f32 %v5472, 1.442695
        %v5476 = vpow.pop %v5475
        %v5477 = vmul.f32 %v5473, 1.442695
        %v5478 = vpow.pop %v5477
        %v5479 = vmul.f32 %v5474, 1.442695
        %v5480 = vpow.pop %v5479
        %v5481 = vmul.f32 %v5466, %v5476
        %v5482 = vmul.f32 %v5467, %v5478
        %v5483 = vmul.f32 %v5468, %v5480
        %v5484 = vsub.f32 1.0, %v5481
        %v5485 = vsub.f32 1.0, %v5482
        %v5486 = vsub.f32 1.0, %v5483
        %v5487 = vmul.f32 %v5385, %v5484
        %v5488 = vmul.f32 %v5386, %v5485
        %v5489 = vmul.f32 %v5387, %v5486
        %v5490 = vadd.f32 %v5487, 1.0
        %v5491 = vadd.f32 %v5488, 1.0
        %v5492 = vadd.f32 %v5489, 1.0
        %v5493 = vmul.f32 %v5376, %v5490
        %v5494 = vmul.f32 %v5377, %v5491
        %v5495 = vmul.f32 %v5378, %v5492
        %5496 = vmatpush.msra.mxu0 %v1149
        %5497 = vmatpush.msra.mxu0 %v1148
        %5498 = vmatpush.msra.mxu0 %v1147
        %5499 = vmatpush.msra.mxu0 %v1146
        %5500 = vmatpush.msra.mxu0 %v1145
        %5501 = vmatpush.msra.mxu0 %v1144
        %5502 = vmatpush.msra.mxu0 %v1143
        %5503 = vmatpush.msra.mxu0 %v1142
        %5504 = vmatpush.msra.mxu0 %v1141
        %5505 = vmatpush.msra.mxu0 %v1140
        %5506 = vmatpush.msra.mxu0 %v1139
        %5507 = vmatpush.msra.mxu0 %v1138
        %5508 = vmatpush.msra.mxu0 %v1137
        %5509 = vmatpush.msra.mxu0 %v1136
        %5510 = vmatpush.msra.mxu0 %v1135
        %5511 = vmatpush.msra.mxu0 %v1134
        %5512 = vmatmul.f32.gmra.mxu0 %v5493
        %v5513 = vpop.f32.mrf.mxu0
        %v5514 = vadd.f32 0.0, %v5513
        %5515 = vmatmul.f32.gmra.mxu0 %v5494
        %v5516 = vpop.f32.mrf.mxu0
        %v5517 = vadd.f32 0.0, %v5516
        %5518 = vmatmul.f32.gmra.mxu0 %v5495
        %v5519 = vpop.f32.mrf.mxu0
        %v5520 = vadd.f32 0.0, %v5519
        %5521 = vdwg.mxu0
        %v5522 = vadd.f32 %v5257, %v5514
        %v5523 = vadd.f32 %v5258, %v5517
        %v5524 = vadd.f32 %v5259, %v5520
        %v5526 = vperm.slane %v1150, 0
        %v5528 = vadd.f32 %v5522, %v5526
        %v5529 = vadd.f32 %v5523, %v5526
        %v5530 = vadd.f32 %v5524, %v5526
        %v5531 = vld [vmem:[%s37] sm:$0x1]
        %v5532 = vld [vmem:[%s39] sm:$0x1]
        %v5533 = vld [vmem:[%s41] sm:$0xff]
        %v5534 = vld [vmem:[%s41 + $0x8] sm:$0xff]
        %v5535 = vld [vmem:[%s41 + $0x10] sm:$0xff]
        %v5536 = vld [vmem:[%s41 + $0x18] sm:$0xff]
        %v5537 = vld [vmem:[%s43] sm:$0x1]
        %v5538 = vld [vmem:[%s45] sm:$0xff]
        %v5539 = vld [vmem:[%s45 + $0x8] sm:$0xff]
        %v5540 = vld [vmem:[%s45 + $0x10] sm:$0xff]
        %v5541 = vld [vmem:[%s45 + $0x18] sm:$0xff]
        %v5542 = vld [vmem:[%s47] sm:$0x1]
        %v5543 = vld [vmem:[%s49] sm:$0x1]
        %v5544 = vld [vmem:[%s51] sm:$0x1]
        %v5545 = vld [vmem:[%s53] sm:$0xff]
        %v5546 = vld [vmem:[%s53 + $0x8] sm:$0xff]
        %v5547 = vld [vmem:[%s53 + $0x10] sm:$0xff]
        %v5548 = vld [vmem:[%s53 + $0x18] sm:$0xff]
        %v5549 = vld [vmem:[%s55] sm:$0x1]
        %v5550 = vld [vmem:[%s57] sm:$0xff]
        %v5551 = vld [vmem:[%s57 + $0x8] sm:$0xff]
        %v5552 = vld [vmem:[%s57 + $0x10] sm:$0xff]
        %v5553 = vld [vmem:[%s57 + $0x18] sm:$0xff]
        %v5554 = vld [vmem:[%s57 + $0x20] sm:$0xff]
        %v5555 = vld [vmem:[%s57 + $0x28] sm:$0xff]
        %v5556 = vld [vmem:[%s57 + $0x30] sm:$0xff]
        %v5557 = vld [vmem:[%s57 + $0x38] sm:$0xff]
        %v5558 = vld [vmem:[%s57 + $0x40] sm:$0xff]
        %v5559 = vld [vmem:[%s57 + $0x48] sm:$0xff]
        %v5560 = vld [vmem:[%s57 + $0x50] sm:$0xff]
        %v5561 = vld [vmem:[%s57 + $0x58] sm:$0xff]
        %v5562 = vld [vmem:[%s57 + $0x60] sm:$0xff]
        %v5563 = vld [vmem:[%s57 + $0x68] sm:$0xff]
        %v5564 = vld [vmem:[%s57 + $0x70] sm:$0xff]
        %v5565 = vld [vmem:[%s57 + $0x78] sm:$0xff]
        %v5566 = vld [vmem:[%s59] sm:$0x1]
        %v5567 = vsel %vm1151, %v5528, 0.0
        %5568 = vadd.xlane.f32.xlu0 %v5567
        %v5569 = vpop.xlane.xlu0 %5568
        %v5570 = vsel %vm1151, %v5529, 0.0
        %5571 = vadd.xlane.f32.xlu0 %v5570
        %v5572 = vpop.xlane.xlu0 %5571
        %v5573 = vsel %vm1158, %v5530, 0.0
        %5574 = vadd.xlane.f32.xlu0 %v5573
        %v5575 = vpop.xlane.xlu0 %5574
        %v5576 = vmul.f32 %v5569, %v1168
        %v5577 = vmul.f32 %v5572, %v1168
        %v5578 = vmul.f32 %v5575, %v1168
        %v5579 = vsub.f32 %v5528, %v5576
        %v5580 = vsub.f32 %v5529, %v5577
        %v5581 = vsub.f32 %v5530, %v5578
        %v5582 = vmul.f32 %v5579, %v5579
        %v5583 = vmul.f32 %v5580, %v5580
        %v5584 = vmul.f32 %v5581, %v5581
        %v5585 = vsel %vm1151, %v5582, 0.0
        %5586 = vadd.xlane.f32.xlu0 %v5585
        %v5587 = vpop.xlane.xlu0 %5586
        %v5588 = vsel %vm1151, %v5583, 0.0
        %5589 = vadd.xlane.f32.xlu0 %v5588
        %v5590 = vpop.xlane.xlu0 %5589
        %v5591 = vsel %vm1158, %v5584, 0.0
        %5592 = vadd.xlane.f32.xlu0 %v5591
        %v5593 = vpop.xlane.xlu0 %5592
        %v5594 = vmul.f32 %v5587, %v1168
        %v5595 = vmul.f32 %v5590, %v1168
        %v5596 = vmul.f32 %v5593, %v1168
        %v5597 = vadd.f32 %v5594, 1e-06
        %v5598 = vadd.f32 %v5595, 1e-06
        %v5599 = vadd.f32 %v5596, 1e-06
        %v5600 = vrsqrt.pop %v5597
        %v5601 = vmul.f32 %v5600, %v5597
        %v5602 = vmul.f32 %v5601, %v5600
        %v5603 = vmul.f32 0.5, %v5602
        %v5604 = vsub.f32 1.5, %v5603
        %v5605 = vmul.f32 %v5600, %v5604
        %vm5606 = vweird.f32 %v5597
        %vm5607 = vweird.f32 %v5600
        %vm5608 = vmor %vm5606, %vm5607
        %v5609 = vsel %vm5608, %v5600, %v5605
        %v5610 = vrsqrt.pop %v5598
        %v5611 = vmul.f32 %v5610, %v5598
        %v5612 = vmul.f32 %v5611, %v5610
        %v5613 = vmul.f32 0.5, %v5612
        %v5614 = vsub.f32 1.5, %v5613
        %v5615 = vmul.f32 %v5610, %v5614
        %vm5616 = vweird.f32 %v5598
        %vm5617 = vweird.f32 %v5610
        %vm5618 = vmor %vm5616, %vm5617
        %v5619 = vsel %vm5618, %v5610, %v5615
        %v5620 = vrsqrt.pop %v5599
        %v5621 = vmul.f32 %v5620, %v5599
        %v5622 = vmul.f32 %v5621, %v5620
        %v5623 = vmul.f32 0.5, %v5622
        %v5624 = vsub.f32 1.5, %v5623
        %v5625 = vmul.f32 %v5620, %v5624
        %vm5626 = vweird.f32 %v5599
        %vm5627 = vweird.f32 %v5620
        %vm5628 = vmor %vm5626, %vm5627
        %v5629 = vsel %vm5628, %v5620, %v5625
        %v5630 = vmul.f32 %v5579, %v5609
        %v5631 = vmul.f32 %v5580, %v5619
        %v5632 = vmul.f32 %v5581, %v5629
        %v5634 = vperm.slane %v5531, 0
        %v5636 = vmul.f32 %v5630, %v5634
        %v5637 = vmul.f32 %v5631, %v5634
        %v5638 = vmul.f32 %v5632, %v5634
        %v5640 = vperm.slane %v5532, 0
        %v5642 = vadd.f32 %v5636, %v5640
        %v5643 = vadd.f32 %v5637, %v5640
        %v5644 = vadd.f32 %v5638, %v5640
        %v5646 = vperm.slane %v5537, 0
        %v5649 = vsel %vm1151, %v5642, 0
        %v5652 = vsel %vm1151, %v5643, 0
        %v5655 = vsel %vm1151, %v5644, 0
        %5657 = vmatpush.msra.mxu0 0.0
        %5658 = vmatpush.msra.mxu0 0.0
        %5659 = vmatpush.msra.mxu0 0.0
        %5660 = vmatpush.msra.mxu0 0.0
        %5661 = vmatpush.msra.mxu0 0.0
        %5662 = vmatpush.msra.mxu0 0.0
        %5663 = vmatpush.msra.mxu0 0.0
        %5664 = vmatpush.msra.mxu0 0.0
        %5665 = vmatpush.msra.mxu0 0.0
        %5666 = vmatpush.msra.mxu0 0.0
        %5667 = vmatpush.msra.mxu0 0.0
        %5668 = vmatpush.msra.mxu0 0.0
        %5669 = vmatpush.msra.mxu0 %v5536
        %5670 = vmatpush.msra.mxu0 %v5535
        %5671 = vmatpush.msra.mxu0 %v5534
        %5672 = vmatpush.msra.mxu0 %v5533
        %5673 = vmatmul.f32.gmra.mxu0 %v5649
        %v5674 = vpop.f32.mrf.mxu0
        %v5675 = vadd.f32 %v5646, %v5674
        %5676 = vmatmul.f32.gmra.mxu0 %v5652
        %v5677 = vpop.f32.mrf.mxu0
        %v5678 = vadd.f32 %v5646, %v5677
        %5679 = vmatmul.f32.gmra.mxu0 %v5655
        %v5680 = vpop.f32.mrf.mxu0
        %v5681 = vadd.f32 %v5646, %v5680
        %5682 = vdwg.mxu0
        %5686 = vrot.lane.b32.xlu0 %v5675, 96
        %v5687 = vpop.permute.xlu0 %5686
        %5688 = vrot.lane.b32.xlu0 %v5678, 96
        %v5689 = vpop.permute.xlu0 %5688
        %5690 = vrot.lane.b32.xlu0 %v5681, 96
        %v5691 = vpop.permute.xlu0 %5690
        %v5692 = vsel %vm1285, %v5675, 0
        %v5694 = vsel %vm1285, %v5678, 0
        %v5696 = vsel %vm1285, %v5681, 0
        %v5698 = vsel %vm1285, %v5687, 0
        %v5700 = vsel %vm1285, %v5689, 0
        %v5702 = vsel %vm1285, %v5691, 0
        %5704 = vmatpush.xpose.msra.mxu0 0.0
        %5705 = vmatpush.xpose.msra.mxu0 0.0
        %5706 = vmatpush.xpose.msra.mxu0 0.0
        %5707 = vmatpush.xpose.msra.mxu0 0.0
        %5708 = vmatpush.xpose.msra.mxu0 0.0
        %5709 = vmatpush.xpose.msra.mxu0 0.0
        %5710 = vmatpush.xpose.msra.mxu0 0.0
        %5711 = vmatpush.xpose.msra.mxu0 0.0
        %5712 = vmatpush.xpose.msra.mxu0 0.0
        %5713 = vmatpush.xpose.msra.mxu0 0.0
        %5714 = vmatpush.xpose.msra.mxu0 0.0
        %5715 = vmatpush.xpose.msra.mxu0 0.0
        %5716 = vmatpush.xpose.msra.mxu0 0.0
        %5717 = vmatpush.xpose.msra.mxu0 %v5702
        %5718 = vmatpush.xpose.msra.mxu0 %v5700
        %5719 = vmatpush.xpose.msra.mxu0 %v5698
        %5720 = vmatmul.f32.gmra.mxu0 %v5692
        %v5721 = vpop.f32.mrf.mxu0
        %v5722 = vadd.f32 0.0, %v5721
        %5723 = vmatmul.f32.gmra.mxu0 %v5694
        %v5724 = vpop.f32.mrf.mxu0
        %v5725 = vadd.f32 0.0, %v5724
        %5726 = vmatmul.f32.gmra.mxu0 %v5696
        %v5727 = vpop.f32.mrf.mxu0
        %v5728 = vadd.f32 0.0, %v5727
        %5729 = vdwg.mxu0
        %v5730 = vmul.f32 %v5722, 0.35355338
        %v5731 = vmul.f32 %v5725, 0.35355338
        %v5732 = vmul.f32 %v5728, 0.35355338
        %v5733 = vsel %vm1327, %v5730, -inf
        %5734 = vmax.xlane.f32.xlu0 %v5733
        %v5735 = vpop.xlane.xlu0 %5734
        %v5736 = vsel %vm1327, %v5731, -inf
        %5737 = vmax.xlane.f32.xlu0 %v5736
        %v5738 = vpop.xlane.xlu0 %5737
        %v5739 = vsel %vm1334, %v5732, -inf
        %5740 = vmax.xlane.f32.xlu0 %v5739
        %v5741 = vpop.xlane.xlu0 %5740
        %v5742 = vsub.f32 %v5730, %v5735
        %v5743 = vsub.f32 %v5731, %v5738
        %v5744 = vsub.f32 %v5732, %v5741
        %v5745 = vmul.f32 %v5742, 1.442695
        %v5746 = vpow.pop %v5745
        %v5747 = vmul.f32 %v5743, 1.442695
        %v5748 = vpow.pop %v5747
        %v5749 = vmul.f32 %v5744, 1.442695
        %v5750 = vpow.pop %v5749
        %v5751 = vsel %vm1327, %v5746, 0.0
        %5752 = vadd.xlane.f32.xlu0 %v5751
        %v5753 = vpop.xlane.xlu0 %5752
        %v5754 = vsel %vm1327, %v5748, 0.0
        %5755 = vadd.xlane.f32.xlu0 %v5754
        %v5756 = vpop.xlane.xlu0 %5755
        %v5757 = vsel %vm1334, %v5750, 0.0
        %5758 = vadd.xlane.f32.xlu0 %v5757
        %v5759 = vpop.xlane.xlu0 %5758
        %v5760 = vrcp.pop %v5753
        %v5761 = vmul.f32 %v5753, %v5760
        %v5762 = vsub.f32 1.0, %v5761
        %v5763 = vmul.f32 %v5760, %v5762
        %v5764 = vadd.f32 %v5760, %v5763
        %vm5765 = vweird.f32 %v5753
        %vm5766 = vweird.f32 %v5760
        %vm5767 = vmor %vm5765, %vm5766
        %v5768 = vsel %vm5767, %v5760, %v5764
        %v5769 = vand.u32 2147483647, %v5753
        %vm5770 = vcmp.eq.f32.partialorder %v5769, 8.507059e+37
        %v5771 = vand.u32 %v5753, 2147483648
        %v5772 = vor.u32 1.1754944e-38, %v5771
        %v5773 = vsel %vm5770, %v5772, %v5768
        %v5774 = vmul.f32 %v5746, %v5773
        %v5775 = vrcp.pop %v5756
        %v5776 = vmul.f32 %v5756, %v5775
        %v5777 = vsub.f32 1.0, %v5776
        %v5778 = vmul.f32 %v5775, %v5777
        %v5779 = vadd.f32 %v5775, %v5778
        %vm5780 = vweird.f32 %v5756
        %vm5781 = vweird.f32 %v5775
        %vm5782 = vmor %vm5780, %vm5781
        %v5783 = vsel %vm5782, %v5775, %v5779
        %v5784 = vand.u32 2147483647, %v5756
        %vm5785 = vcmp.eq.f32.partialorder %v5784, 8.507059e+37
        %v5786 = vand.u32 %v5756, 2147483648
        %v5787 = vor.u32 1.1754944e-38, %v5786
        %v5788 = vsel %vm5785, %v5787, %v5783
        %v5789 = vmul.f32 %v5748, %v5788
        %v5790 = vrcp.pop %v5759
        %v5791 = vmul.f32 %v5759, %v5790
        %v5792 = vsub.f32 1.0, %v5791
        %v5793 = vmul.f32 %v5790, %v5792
        %v5794 = vadd.f32 %v5790, %v5793
        %vm5795 = vweird.f32 %v5759
        %vm5796 = vweird.f32 %v5790
        %vm5797 = vmor %vm5795, %vm5796
        %v5798 = vsel %vm5797, %v5790, %v5794
        %v5799 = vand.u32 2147483647, %v5759
        %vm5800 = vcmp.eq.f32.partialorder %v5799, 8.507059e+37
        %v5801 = vand.u32 %v5759, 2147483648
        %v5802 = vor.u32 1.1754944e-38, %v5801
        %v5803 = vsel %vm5800, %v5802, %v5798
        %v5804 = vmul.f32 %v5750, %v5803
        %5805 = vrot.lane.b32.xlu0 %v5675, 64
        %v5806 = vpop.permute.xlu0 %5805
        %5807 = vrot.lane.b32.xlu0 %v5678, 64
        %v5808 = vpop.permute.xlu0 %5807
        %5809 = vrot.lane.b32.xlu0 %v5681, 64
        %v5810 = vpop.permute.xlu0 %5809
        %v5814 = vsel %vm1327, %v5774, 0
        %v5817 = vsel %vm1327, %v5789, 0
        %v5820 = vsel %vm1327, %v5804, 0
        %v5822 = vsel %vm1088, %v5810, 0
        %5824 = vmatpush.msra.mxu0 0.0
        %5825 = vmatpush.msra.mxu0 0.0
        %5826 = vmatpush.msra.mxu0 0.0
        %5827 = vmatpush.msra.mxu0 0.0
        %5828 = vmatpush.msra.mxu0 0.0
        %5829 = vmatpush.msra.mxu0 0.0
        %5830 = vmatpush.msra.mxu0 0.0
        %5831 = vmatpush.msra.mxu0 0.0
        %5832 = vmatpush.msra.mxu0 0.0
        %5833 = vmatpush.msra.mxu0 0.0
        %5834 = vmatpush.msra.mxu0 0.0
        %5835 = vmatpush.msra.mxu0 0.0
        %5836 = vmatpush.msra.mxu0 0.0
        %5837 = vmatpush.msra.mxu0 %v5822
        %5838 = vmatpush.msra.mxu0 %v5808
        %5839 = vmatpush.msra.mxu0 %v5806
        %5840 = vmatmul.f32.gmra.mxu0 %v5814
        %v5841 = vpop.f32.mrf.mxu0
        %v5842 = vadd.f32 0.0, %v5841
        %5843 = vmatmul.f32.gmra.mxu0 %v5817
        %v5844 = vpop.f32.mrf.mxu0
        %v5845 = vadd.f32 0.0, %v5844
        %5846 = vmatmul.f32.gmra.mxu0 %v5820
        %v5847 = vpop.f32.mrf.mxu0
        %v5848 = vadd.f32 0.0, %v5847
        %5849 = vdwg.mxu0
        %5850 = vrot.lane.b32.xlu0 %v5675, 120
        %v5851 = vpop.permute.xlu0 %5850
        %5852 = vrot.lane.b32.xlu0 %v5678, 120
        %v5853 = vpop.permute.xlu0 %5852
        %5854 = vrot.lane.b32.xlu0 %v5681, 120
        %v5855 = vpop.permute.xlu0 %5854
        %5856 = vrot.lane.b32.xlu0 %v5675, 88
        %v5857 = vpop.permute.xlu0 %5856
        %5858 = vrot.lane.b32.xlu0 %v5678, 88
        %v5859 = vpop.permute.xlu0 %5858
        %5860 = vrot.lane.b32.xlu0 %v5681, 88
        %v5861 = vpop.permute.xlu0 %5860
        %v5862 = vsel %vm1285, %v5851, 0
        %v5864 = vsel %vm1285, %v5853, 0
        %v5866 = vsel %vm1285, %v5855, 0
        %v5868 = vsel %vm1285, %v5857, 0
        %v5870 = vsel %vm1285, %v5859, 0
        %v5872 = vsel %vm1285, %v5861, 0
        %5874 = vmatpush.xpose.msra.mxu0 0.0
        %5875 = vmatpush.xpose.msra.mxu0 0.0
        %5876 = vmatpush.xpose.msra.mxu0 0.0
        %5877 = vmatpush.xpose.msra.mxu0 0.0
        %5878 = vmatpush.xpose.msra.mxu0 0.0
        %5879 = vmatpush.xpose.msra.mxu0 0.0
        %5880 = vmatpush.xpose.msra.mxu0 0.0
        %5881 = vmatpush.xpose.msra.mxu0 0.0
        %5882 = vmatpush.xpose.msra.mxu0 0.0
        %5883 = vmatpush.xpose.msra.mxu0 0.0
        %5884 = vmatpush.xpose.msra.mxu0 0.0
        %5885 = vmatpush.xpose.msra.mxu0 0.0
        %5886 = vmatpush.xpose.msra.mxu0 0.0
        %5887 = vmatpush.xpose.msra.mxu0 %v5872
        %5888 = vmatpush.xpose.msra.mxu0 %v5870
        %5889 = vmatpush.xpose.msra.mxu0 %v5868
        %5890 = vmatmul.f32.gmra.mxu0 %v5862
        %v5891 = vpop.f32.mrf.mxu0
        %v5892 = vadd.f32 0.0, %v5891
        %5893 = vmatmul.f32.gmra.mxu0 %v5864
        %v5894 = vpop.f32.mrf.mxu0
        %v5895 = vadd.f32 0.0, %v5894
        %5896 = vmatmul.f32.gmra.mxu0 %v5866
        %v5897 = vpop.f32.mrf.mxu0
        %v5898 = vadd.f32 0.0, %v5897
        %5899 = vdwg.mxu0
        %v5900 = vmul.f32 %v5892, 0.35355338
        %v5901 = vmul.f32 %v5895, 0.35355338
        %v5902 = vmul.f32 %v5898, 0.35355338
        %v5903 = vsel %vm1327, %v5900, -inf
        %5904 = vmax.xlane.f32.xlu0 %v5903
        %v5905 = vpop.xlane.xlu0 %5904
        %v5906 = vsel %vm1327, %v5901, -inf
        %5907 = vmax.xlane.f32.xlu0 %v5906
        %v5908 = vpop.xlane.xlu0 %5907
        %v5909 = vsel %vm1334, %v5902, -inf
        %5910 = vmax.xlane.f32.xlu0 %v5909
        %v5911 = vpop.xlane.xlu0 %5910
        %v5912 = vsub.f32 %v5900, %v5905
        %v5913 = vsub.f32 %v5901, %v5908
        %v5914 = vsub.f32 %v5902, %v5911
        %v5915 = vmul.f32 %v5912, 1.442695
        %v5916 = vpow.pop %v5915
        %v5917 = vmul.f32 %v5913, 1.442695
        %v5918 = vpow.pop %v5917
        %v5919 = vmul.f32 %v5914, 1.442695
        %v5920 = vpow.pop %v5919
        %v5921 = vsel %vm1327, %v5916, 0.0
        %5922 = vadd.xlane.f32.xlu0 %v5921
        %v5923 = vpop.xlane.xlu0 %5922
        %v5924 = vsel %vm1327, %v5918, 0.0
        %5925 = vadd.xlane.f32.xlu0 %v5924
        %v5926 = vpop.xlane.xlu0 %5925
        %v5927 = vsel %vm1334, %v5920, 0.0
        %5928 = vadd.xlane.f32.xlu0 %v5927
        %v5929 = vpop.xlane.xlu0 %5928
        %v5930 = vrcp.pop %v5923
        %v5931 = vmul.f32 %v5923, %v5930
        %v5932 = vsub.f32 1.0, %v5931
        %v5933 = vmul.f32 %v5930, %v5932
        %v5934 = vadd.f32 %v5930, %v5933
        %vm5935 = vweird.f32 %v5923
        %vm5936 = vweird.f32 %v5930
        %vm5937 = vmor %vm5935, %vm5936
        %v5938 = vsel %vm5937, %v5930, %v5934
        %v5939 = vand.u32 2147483647, %v5923
        %vm5940 = vcmp.eq.f32.partialorder %v5939, 8.507059e+37
        %v5941 = vand.u32 %v5923, 2147483648
        %v5942 = vor.u32 1.1754944e-38, %v5941
        %v5943 = vsel %vm5940, %v5942, %v5938
        %v5944 = vmul.f32 %v5916, %v5943
        %v5945 = vrcp.pop %v5926
        %v5946 = vmul.f32 %v5926, %v5945
        %v5947 = vsub.f32 1.0, %v5946
        %v5948 = vmul.f32 %v5945, %v5947
        %v5949 = vadd.f32 %v5945, %v5948
        %vm5950 = vweird.f32 %v5926
        %vm5951 = vweird.f32 %v5945
        %vm5952 = vmor %vm5950, %vm5951
        %v5953 = vsel %vm5952, %v5945, %v5949
        %v5954 = vand.u32 2147483647, %v5926
        %vm5955 = vcmp.eq.f32.partialorder %v5954, 8.507059e+37
        %v5956 = vand.u32 %v5926, 2147483648
        %v5957 = vor.u32 1.1754944e-38, %v5956
        %v5958 = vsel %vm5955, %v5957, %v5953
        %v5959 = vmul.f32 %v5918, %v5958
        %v5960 = vrcp.pop %v5929
        %v5961 = vmul.f32 %v5929, %v5960
        %v5962 = vsub.f32 1.0, %v5961
        %v5963 = vmul.f32 %v5960, %v5962
        %v5964 = vadd.f32 %v5960, %v5963
        %vm5965 = vweird.f32 %v5929
        %vm5966 = vweird.f32 %v5960
        %vm5967 = vmor %vm5965, %vm5966
        %v5968 = vsel %vm5967, %v5960, %v5964
        %v5969 = vand.u32 2147483647, %v5929
        %vm5970 = vcmp.eq.f32.partialorder %v5969, 8.507059e+37
        %v5971 = vand.u32 %v5929, 2147483648
        %v5972 = vor.u32 1.1754944e-38, %v5971
        %v5973 = vsel %vm5970, %v5972, %v5968
        %v5974 = vmul.f32 %v5920, %v5973
        %5975 = vrot.lane.b32.xlu0 %v5675, 56
        %v5976 = vpop.permute.xlu0 %5975
        %5977 = vrot.lane.b32.xlu0 %v5678, 56
        %v5978 = vpop.permute.xlu0 %5977
        %5979 = vrot.lane.b32.xlu0 %v5681, 56
        %v5980 = vpop.permute.xlu0 %5979
        %v5984 = vsel %vm1327, %v5944, 0
        %v5987 = vsel %vm1327, %v5959, 0
        %v5990 = vsel %vm1327, %v5974, 0
        %v5992 = vsel %vm1088, %v5980, 0
        %5994 = vmatpush.msra.mxu0 0.0
        %5995 = vmatpush.msra.mxu0 0.0
        %5996 = vmatpush.msra.mxu0 0.0
        %5997 = vmatpush.msra.mxu0 0.0
        %5998 = vmatpush.msra.mxu0 0.0
        %5999 = vmatpush.msra.mxu0 0.0
        %6000 = vmatpush.msra.mxu0 0.0
        %6001 = vmatpush.msra.mxu0 0.0
        %6002 = vmatpush.msra.mxu0 0.0
        %6003 = vmatpush.msra.mxu0 0.0
        %6004 = vmatpush.msra.mxu0 0.0
        %6005 = vmatpush.msra.mxu0 0.0
        %6006 = vmatpush.msra.mxu0 0.0
        %6007 = vmatpush.msra.mxu0 %v5992
        %6008 = vmatpush.msra.mxu0 %v5978
        %6009 = vmatpush.msra.mxu0 %v5976
        %6010 = vmatmul.f32.gmra.mxu0 %v5984
        %v6011 = vpop.f32.mrf.mxu0
        %v6012 = vadd.f32 0.0, %v6011
        %6013 = vmatmul.f32.gmra.mxu0 %v5987
        %v6014 = vpop.f32.mrf.mxu0
        %v6015 = vadd.f32 0.0, %v6014
        %6016 = vmatmul.f32.gmra.mxu0 %v5990
        %v6017 = vpop.f32.mrf.mxu0
        %v6018 = vadd.f32 0.0, %v6017
        %6019 = vdwg.mxu0
        %6020 = vrot.lane.b32.xlu0 %v5675, 112
        %v6021 = vpop.permute.xlu0 %6020
        %6022 = vrot.lane.b32.xlu0 %v5678, 112
        %v6023 = vpop.permute.xlu0 %6022
        %6024 = vrot.lane.b32.xlu0 %v5681, 112
        %v6025 = vpop.permute.xlu0 %6024
        %6026 = vrot.lane.b32.xlu0 %v5675, 80
        %v6027 = vpop.permute.xlu0 %6026
        %6028 = vrot.lane.b32.xlu0 %v5678, 80
        %v6029 = vpop.permute.xlu0 %6028
        %6030 = vrot.lane.b32.xlu0 %v5681, 80
        %v6031 = vpop.permute.xlu0 %6030
        %v6032 = vsel %vm1285, %v6021, 0
        %v6034 = vsel %vm1285, %v6023, 0
        %v6036 = vsel %vm1285, %v6025, 0
        %v6038 = vsel %vm1285, %v6027, 0
        %v6040 = vsel %vm1285, %v6029, 0
        %v6042 = vsel %vm1285, %v6031, 0
        %6044 = vmatpush.xpose.msra.mxu0 0.0
        %6045 = vmatpush.xpose.msra.mxu0 0.0
        %6046 = vmatpush.xpose.msra.mxu0 0.0
        %6047 = vmatpush.xpose.msra.mxu0 0.0
        %6048 = vmatpush.xpose.msra.mxu0 0.0
        %6049 = vmatpush.xpose.msra.mxu0 0.0
        %6050 = vmatpush.xpose.msra.mxu0 0.0
        %6051 = vmatpush.xpose.msra.mxu0 0.0
        %6052 = vmatpush.xpose.msra.mxu0 0.0
        %6053 = vmatpush.xpose.msra.mxu0 0.0
        %6054 = vmatpush.xpose.msra.mxu0 0.0
        %6055 = vmatpush.xpose.msra.mxu0 0.0
        %6056 = vmatpush.xpose.msra.mxu0 0.0
        %6057 = vmatpush.xpose.msra.mxu0 %v6042
        %6058 = vmatpush.xpose.msra.mxu0 %v6040
        %6059 = vmatpush.xpose.msra.mxu0 %v6038
        %6060 = vmatmul.f32.gmra.mxu0 %v6032
        %v6061 = vpop.f32.mrf.mxu0
        %v6062 = vadd.f32 0.0, %v6061
        %6063 = vmatmul.f32.gmra.mxu0 %v6034
        %v6064 = vpop.f32.mrf.mxu0
        %v6065 = vadd.f32 0.0, %v6064
        %6066 = vmatmul.f32.gmra.mxu0 %v6036
        %v6067 = vpop.f32.mrf.mxu0
        %v6068 = vadd.f32 0.0, %v6067
        %6069 = vdwg.mxu0
        %v6070 = vmul.f32 %v6062, 0.35355338
        %v6071 = vmul.f32 %v6065, 0.35355338
        %v6072 = vmul.f32 %v6068, 0.35355338
        %v6073 = vsel %vm1327, %v6070, -inf
        %6074 = vmax.xlane.f32.xlu0 %v6073
        %v6075 = vpop.xlane.xlu0 %6074
        %v6076 = vsel %vm1327, %v6071, -inf
        %6077 = vmax.xlane.f32.xlu0 %v6076
        %v6078 = vpop.xlane.xlu0 %6077
        %v6079 = vsel %vm1334, %v6072, -inf
        %6080 = vmax.xlane.f32.xlu0 %v6079
        %v6081 = vpop.xlane.xlu0 %6080
        %v6082 = vsub.f32 %v6070, %v6075
        %v6083 = vsub.f32 %v6071, %v6078
        %v6084 = vsub.f32 %v6072, %v6081
        %v6085 = vmul.f32 %v6082, 1.442695
        %v6086 = vpow.pop %v6085
        %v6087 = vmul.f32 %v6083, 1.442695
        %v6088 = vpow.pop %v6087
        %v6089 = vmul.f32 %v6084, 1.442695
        %v6090 = vpow.pop %v6089
        %v6091 = vsel %vm1327, %v6086, 0.0
        %6092 = vadd.xlane.f32.xlu0 %v6091
        %v6093 = vpop.xlane.xlu0 %6092
        %v6094 = vsel %vm1327, %v6088, 0.0
        %6095 = vadd.xlane.f32.xlu0 %v6094
        %v6096 = vpop.xlane.xlu0 %6095
        %v6097 = vsel %vm1334, %v6090, 0.0
        %6098 = vadd.xlane.f32.xlu0 %v6097
        %v6099 = vpop.xlane.xlu0 %6098
        %v6100 = vrcp.pop %v6093
        %v6101 = vmul.f32 %v6093, %v6100
        %v6102 = vsub.f32 1.0, %v6101
        %v6103 = vmul.f32 %v6100, %v6102
        %v6104 = vadd.f32 %v6100, %v6103
        %vm6105 = vweird.f32 %v6093
        %vm6106 = vweird.f32 %v6100
        %vm6107 = vmor %vm6105, %vm6106
        %v6108 = vsel %vm6107, %v6100, %v6104
        %v6109 = vand.u32 2147483647, %v6093
        %vm6110 = vcmp.eq.f32.partialorder %v6109, 8.507059e+37
        %v6111 = vand.u32 %v6093, 2147483648
        %v6112 = vor.u32 1.1754944e-38, %v6111
        %v6113 = vsel %vm6110, %v6112, %v6108
        %v6114 = vmul.f32 %v6086, %v6113
        %v6115 = vrcp.pop %v6096
        %v6116 = vmul.f32 %v6096, %v6115
        %v6117 = vsub.f32 1.0, %v6116
        %v6118 = vmul.f32 %v6115, %v6117
        %v6119 = vadd.f32 %v6115, %v6118
        %vm6120 = vweird.f32 %v6096
        %vm6121 = vweird.f32 %v6115
        %vm6122 = vmor %vm6120, %vm6121
        %v6123 = vsel %vm6122, %v6115, %v6119
        %v6124 = vand.u32 2147483647, %v6096
        %vm6125 = vcmp.eq.f32.partialorder %v6124, 8.507059e+37
        %v6126 = vand.u32 %v6096, 2147483648
        %v6127 = vor.u32 1.1754944e-38, %v6126
        %v6128 = vsel %vm6125, %v6127, %v6123
        %v6129 = vmul.f32 %v6088, %v6128
        %v6130 = vrcp.pop %v6099
        %v6131 = vmul.f32 %v6099, %v6130
        %v6132 = vsub.f32 1.0, %v6131
        %v6133 = vmul.f32 %v6130, %v6132
        %v6134 = vadd.f32 %v6130, %v6133
        %vm6135 = vweird.f32 %v6099
        %vm6136 = vweird.f32 %v6130
        %vm6137 = vmor %vm6135, %vm6136
        %v6138 = vsel %vm6137, %v6130, %v6134
        %v6139 = vand.u32 2147483647, %v6099
        %vm6140 = vcmp.eq.f32.partialorder %v6139, 8.507059e+37
        %v6141 = vand.u32 %v6099, 2147483648
        %v6142 = vor.u32 1.1754944e-38, %v6141
        %v6143 = vsel %vm6140, %v6142, %v6138
        %v6144 = vmul.f32 %v6090, %v6143
        %6145 = vrot.lane.b32.xlu0 %v5675, 48
        %v6146 = vpop.permute.xlu0 %6145
        %6147 = vrot.lane.b32.xlu0 %v5678, 48
        %v6148 = vpop.permute.xlu0 %6147
        %6149 = vrot.lane.b32.xlu0 %v5681, 48
        %v6150 = vpop.permute.xlu0 %6149
        %v6154 = vsel %vm1327, %v6114, 0
        %v6157 = vsel %vm1327, %v6129, 0
        %v6160 = vsel %vm1327, %v6144, 0
        %v6162 = vsel %vm1088, %v6150, 0
        %6164 = vmatpush.msra.mxu0 0.0
        %6165 = vmatpush.msra.mxu0 0.0
        %6166 = vmatpush.msra.mxu0 0.0
        %6167 = vmatpush.msra.mxu0 0.0
        %6168 = vmatpush.msra.mxu0 0.0
        %6169 = vmatpush.msra.mxu0 0.0
        %6170 = vmatpush.msra.mxu0 0.0
        %6171 = vmatpush.msra.mxu0 0.0
        %6172 = vmatpush.msra.mxu0 0.0
        %6173 = vmatpush.msra.mxu0 0.0
        %6174 = vmatpush.msra.mxu0 0.0
        %6175 = vmatpush.msra.mxu0 0.0
        %6176 = vmatpush.msra.mxu0 0.0
        %6177 = vmatpush.msra.mxu0 %v6162
        %6178 = vmatpush.msra.mxu0 %v6148
        %6179 = vmatpush.msra.mxu0 %v6146
        %6180 = vmatmul.f32.gmra.mxu0 %v6154
        %v6181 = vpop.f32.mrf.mxu0
        %v6182 = vadd.f32 0.0, %v6181
        %6183 = vmatmul.f32.gmra.mxu0 %v6157
        %v6184 = vpop.f32.mrf.mxu0
        %v6185 = vadd.f32 0.0, %v6184
        %6186 = vmatmul.f32.gmra.mxu0 %v6160
        %v6187 = vpop.f32.mrf.mxu0
        %v6188 = vadd.f32 0.0, %v6187
        %6189 = vdwg.mxu0
        %6190 = vrot.lane.b32.xlu0 %v5675, 104
        %v6191 = vpop.permute.xlu0 %6190
        %6192 = vrot.lane.b32.xlu0 %v5678, 104
        %v6193 = vpop.permute.xlu0 %6192
        %6194 = vrot.lane.b32.xlu0 %v5681, 104
        %v6195 = vpop.permute.xlu0 %6194
        %6196 = vrot.lane.b32.xlu0 %v5675, 72
        %v6197 = vpop.permute.xlu0 %6196
        %6198 = vrot.lane.b32.xlu0 %v5678, 72
        %v6199 = vpop.permute.xlu0 %6198
        %6200 = vrot.lane.b32.xlu0 %v5681, 72
        %v6201 = vpop.permute.xlu0 %6200
        %v6202 = vsel %vm1285, %v6191, 0
        %v6204 = vsel %vm1285, %v6193, 0
        %v6206 = vsel %vm1285, %v6195, 0
        %v6208 = vsel %vm1285, %v6197, 0
        %v6210 = vsel %vm1285, %v6199, 0
        %v6212 = vsel %vm1285, %v6201, 0
        %6214 = vmatpush.xpose.msra.mxu0 0.0
        %6215 = vmatpush.xpose.msra.mxu0 0.0
        %6216 = vmatpush.xpose.msra.mxu0 0.0
        %6217 = vmatpush.xpose.msra.mxu0 0.0
        %6218 = vmatpush.xpose.msra.mxu0 0.0
        %6219 = vmatpush.xpose.msra.mxu0 0.0
        %6220 = vmatpush.xpose.msra.mxu0 0.0
        %6221 = vmatpush.xpose.msra.mxu0 0.0
        %6222 = vmatpush.xpose.msra.mxu0 0.0
        %6223 = vmatpush.xpose.msra.mxu0 0.0
        %6224 = vmatpush.xpose.msra.mxu0 0.0
        %6225 = vmatpush.xpose.msra.mxu0 0.0
        %6226 = vmatpush.xpose.msra.mxu0 0.0
        %6227 = vmatpush.xpose.msra.mxu0 %v6212
        %6228 = vmatpush.xpose.msra.mxu0 %v6210
        %6229 = vmatpush.xpose.msra.mxu0 %v6208
        %6230 = vmatmul.f32.gmra.mxu0 %v6202
        %v6231 = vpop.f32.mrf.mxu0
        %v6232 = vadd.f32 0.0, %v6231
        %6233 = vmatmul.f32.gmra.mxu0 %v6204
        %v6234 = vpop.f32.mrf.mxu0
        %v6235 = vadd.f32 0.0, %v6234
        %6236 = vmatmul.f32.gmra.mxu0 %v6206
        %v6237 = vpop.f32.mrf.mxu0
        %v6238 = vadd.f32 0.0, %v6237
        %6239 = vdwg.mxu0
        %v6240 = vmul.f32 %v6232, 0.35355338
        %v6241 = vmul.f32 %v6235, 0.35355338
        %v6242 = vmul.f32 %v6238, 0.35355338
        %v6243 = vsel %vm1327, %v6240, -inf
        %6244 = vmax.xlane.f32.xlu0 %v6243
        %v6245 = vpop.xlane.xlu0 %6244
        %v6246 = vsel %vm1327, %v6241, -inf
        %6247 = vmax.xlane.f32.xlu0 %v6246
        %v6248 = vpop.xlane.xlu0 %6247
        %v6249 = vsel %vm1334, %v6242, -inf
        %6250 = vmax.xlane.f32.xlu0 %v6249
        %v6251 = vpop.xlane.xlu0 %6250
        %v6252 = vsub.f32 %v6240, %v6245
        %v6253 = vsub.f32 %v6241, %v6248
        %v6254 = vsub.f32 %v6242, %v6251
        %v6255 = vmul.f32 %v6252, 1.442695
        %v6256 = vpow.pop %v6255
        %v6257 = vmul.f32 %v6253, 1.442695
        %v6258 = vpow.pop %v6257
        %v6259 = vmul.f32 %v6254, 1.442695
        %v6260 = vpow.pop %v6259
        %v6261 = vsel %vm1327, %v6256, 0.0
        %6262 = vadd.xlane.f32.xlu0 %v6261
        %v6263 = vpop.xlane.xlu0 %6262
        %v6264 = vsel %vm1327, %v6258, 0.0
        %6265 = vadd.xlane.f32.xlu0 %v6264
        %v6266 = vpop.xlane.xlu0 %6265
        %v6267 = vsel %vm1334, %v6260, 0.0
        %6268 = vadd.xlane.f32.xlu0 %v6267
        %v6269 = vpop.xlane.xlu0 %6268
        %v6270 = vrcp.pop %v6263
        %v6271 = vmul.f32 %v6263, %v6270
        %v6272 = vsub.f32 1.0, %v6271
        %v6273 = vmul.f32 %v6270, %v6272
        %v6274 = vadd.f32 %v6270, %v6273
        %vm6275 = vweird.f32 %v6263
        %vm6276 = vweird.f32 %v6270
        %vm6277 = vmor %vm6275, %vm6276
        %v6278 = vsel %vm6277, %v6270, %v6274
        %v6279 = vand.u32 2147483647, %v6263
        %vm6280 = vcmp.eq.f32.partialorder %v6279, 8.507059e+37
        %v6281 = vand.u32 %v6263, 2147483648
        %v6282 = vor.u32 1.1754944e-38, %v6281
        %v6283 = vsel %vm6280, %v6282, %v6278
        %v6284 = vmul.f32 %v6256, %v6283
        %v6285 = vrcp.pop %v6266
        %v6286 = vmul.f32 %v6266, %v6285
        %v6287 = vsub.f32 1.0, %v6286
        %v6288 = vmul.f32 %v6285, %v6287
        %v6289 = vadd.f32 %v6285, %v6288
        %vm6290 = vweird.f32 %v6266
        %vm6291 = vweird.f32 %v6285
        %vm6292 = vmor %vm6290, %vm6291
        %v6293 = vsel %vm6292, %v6285, %v6289
        %v6294 = vand.u32 2147483647, %v6266
        %vm6295 = vcmp.eq.f32.partialorder %v6294, 8.507059e+37
        %v6296 = vand.u32 %v6266, 2147483648
        %v6297 = vor.u32 1.1754944e-38, %v6296
        %v6298 = vsel %vm6295, %v6297, %v6293
        %v6299 = vmul.f32 %v6258, %v6298
        %v6300 = vrcp.pop %v6269
        %v6301 = vmul.f32 %v6269, %v6300
        %v6302 = vsub.f32 1.0, %v6301
        %v6303 = vmul.f32 %v6300, %v6302
        %v6304 = vadd.f32 %v6300, %v6303
        %vm6305 = vweird.f32 %v6269
        %vm6306 = vweird.f32 %v6300
        %vm6307 = vmor %vm6305, %vm6306
        %v6308 = vsel %vm6307, %v6300, %v6304
        %v6309 = vand.u32 2147483647, %v6269
        %vm6310 = vcmp.eq.f32.partialorder %v6309, 8.507059e+37
        %v6311 = vand.u32 %v6269, 2147483648
        %v6312 = vor.u32 1.1754944e-38, %v6311
        %v6313 = vsel %vm6310, %v6312, %v6308
        %v6314 = vmul.f32 %v6260, %v6313
        %6315 = vrot.lane.b32.xlu0 %v5675, 40
        %v6316 = vpop.permute.xlu0 %6315
        %6317 = vrot.lane.b32.xlu0 %v5678, 40
        %v6318 = vpop.permute.xlu0 %6317
        %6319 = vrot.lane.b32.xlu0 %v5681, 40
        %v6320 = vpop.permute.xlu0 %6319
        %v6324 = vsel %vm1327, %v6284, 0
        %v6327 = vsel %vm1327, %v6299, 0
        %v6330 = vsel %vm1327, %v6314, 0
        %v6332 = vsel %vm1088, %v6320, 0
        %6334 = vmatpush.msra.mxu0 0.0
        %6335 = vmatpush.msra.mxu0 0.0
        %6336 = vmatpush.msra.mxu0 0.0
        %6337 = vmatpush.msra.mxu0 0.0
        %6338 = vmatpush.msra.mxu0 0.0
        %6339 = vmatpush.msra.mxu0 0.0
        %6340 = vmatpush.msra.mxu0 0.0
        %6341 = vmatpush.msra.mxu0 0.0
        %6342 = vmatpush.msra.mxu0 0.0
        %6343 = vmatpush.msra.mxu0 0.0
        %6344 = vmatpush.msra.mxu0 0.0
        %6345 = vmatpush.msra.mxu0 0.0
        %6346 = vmatpush.msra.mxu0 0.0
        %6347 = vmatpush.msra.mxu0 %v6332
        %6348 = vmatpush.msra.mxu0 %v6318
        %6349 = vmatpush.msra.mxu0 %v6316
        %6350 = vmatmul.f32.gmra.mxu0 %v6324
        %v6351 = vpop.f32.mrf.mxu0
        %v6352 = vadd.f32 0.0, %v6351
        %6353 = vmatmul.f32.gmra.mxu0 %v6327
        %v6354 = vpop.f32.mrf.mxu0
        %v6355 = vadd.f32 0.0, %v6354
        %6356 = vmatmul.f32.gmra.mxu0 %v6330
        %v6357 = vpop.f32.mrf.mxu0
        %v6358 = vadd.f32 0.0, %v6357
        %6359 = vdwg.mxu0
        %6363 = vrot.lane.b32.xlu0 %v6012, 8
        %v6364 = vpop.permute.xlu0 %6363
        %6365 = vrot.lane.b32.xlu0 %v6015, 8
        %v6366 = vpop.permute.xlu0 %6365
        %6367 = vrot.lane.b32.xlu0 %v6018, 8
        %v6368 = vpop.permute.xlu0 %6367
        %6375 = vrot.lane.b32.xlu0 %v6182, 16
        %v6376 = vpop.permute.xlu0 %6375
        %6377 = vrot.lane.b32.xlu0 %v6185, 16
        %v6378 = vpop.permute.xlu0 %6377
        %6379 = vrot.lane.b32.xlu0 %v6188, 16
        %v6380 = vpop.permute.xlu0 %6379
        %6387 = vrot.lane.b32.xlu0 %v6352, 24
        %v6388 = vpop.permute.xlu0 %6387
        %6389 = vrot.lane.b32.xlu0 %v6355, 24
        %v6390 = vpop.permute.xlu0 %6389
        %6391 = vrot.lane.b32.xlu0 %v6358, 24
        %v6392 = vpop.permute.xlu0 %6391
        %v6396 = vsel %vm1285, %v5842, %v6364
        %v6397 = vsel %vm1285, %v5845, %v6366
        %v6398 = vsel %vm1285, %v5848, %v6368
        %v6399 = vsel %vm5209, %v6396, %v6376
        %v6400 = vsel %vm5209, %v6397, %v6378
        %v6401 = vsel %vm5209, %v6398, %v6380
        %v6402 = vsel %vm2016, %v6399, %v6388
        %v6403 = vsel %vm2016, %v6400, %v6390
        %v6404 = vsel %vm2016, %v6401, %v6392
        %v6406 = vsel %vm1151, %v6402, 0
        %v6409 = vsel %vm1151, %v6403, 0
        %v6412 = vsel %vm1151, %v6404, 0
        %6414 = vmatpush.msra.mxu0 0.0
        %6415 = vmatpush.msra.mxu0 0.0
        %6416 = vmatpush.msra.mxu0 0.0
        %6417 = vmatpush.msra.mxu0 0.0
        %6418 = vmatpush.msra.mxu0 0.0
        %6419 = vmatpush.msra.mxu0 0.0
        %6420 = vmatpush.msra.mxu0 0.0
        %6421 = vmatpush.msra.mxu0 0.0
        %6422 = vmatpush.msra.mxu0 0.0
        %6423 = vmatpush.msra.mxu0 0.0
        %6424 = vmatpush.msra.mxu0 0.0
        %6425 = vmatpush.msra.mxu0 0.0
        %6426 = vmatpush.msra.mxu0 %v5541
        %6427 = vmatpush.msra.mxu0 %v5540
        %6428 = vmatpush.msra.mxu0 %v5539
        %6429 = vmatpush.msra.mxu0 %v5538
        %6430 = vmatmul.f32.gmra.mxu0 %v6406
        %v6431 = vpop.f32.mrf.mxu0
        %v6432 = vadd.f32 0.0, %v6431
        %6433 = vmatmul.f32.gmra.mxu0 %v6409
        %v6434 = vpop.f32.mrf.mxu0
        %v6435 = vadd.f32 0.0, %v6434
        %6436 = vmatmul.f32.gmra.mxu0 %v6412
        %v6437 = vpop.f32.mrf.mxu0
        %v6438 = vadd.f32 0.0, %v6437
        %6439 = vdwg.mxu0
        %v6440 = vadd.f32 %v5528, %v6432
        %v6441 = vadd.f32 %v5529, %v6435
        %v6442 = vadd.f32 %v5530, %v6438
        %v6444 = vperm.slane %v5542, 0
        %v6446 = vadd.f32 %v6440, %v6444
        %v6447 = vadd.f32 %v6441, %v6444
        %v6448 = vadd.f32 %v6442, %v6444
        %v6449 = vsel %vm1151, %v6446, 0.0
        %6450 = vadd.xlane.f32.xlu0 %v6449
        %v6451 = vpop.xlane.xlu0 %6450
        %v6452 = vsel %vm1151, %v6447, 0.0
        %6453 = vadd.xlane.f32.xlu0 %v6452
        %v6454 = vpop.xlane.xlu0 %6453
        %v6455 = vsel %vm1158, %v6448, 0.0
        %6456 = vadd.xlane.f32.xlu0 %v6455
        %v6457 = vpop.xlane.xlu0 %6456
        %v6458 = vmul.f32 %v6451, %v1168
        %v6459 = vmul.f32 %v6454, %v1168
        %v6460 = vmul.f32 %v6457, %v1168
        %v6461 = vsub.f32 %v6446, %v6458
        %v6462 = vsub.f32 %v6447, %v6459
        %v6463 = vsub.f32 %v6448, %v6460
        %v6464 = vmul.f32 %v6461, %v6461
        %v6465 = vmul.f32 %v6462, %v6462
        %v6466 = vmul.f32 %v6463, %v6463
        %v6467 = vsel %vm1151, %v6464, 0.0
        %6468 = vadd.xlane.f32.xlu0 %v6467
        %v6469 = vpop.xlane.xlu0 %6468
        %v6470 = vsel %vm1151, %v6465, 0.0
        %6471 = vadd.xlane.f32.xlu0 %v6470
        %v6472 = vpop.xlane.xlu0 %6471
        %v6473 = vsel %vm1158, %v6466, 0.0
        %6474 = vadd.xlane.f32.xlu0 %v6473
        %v6475 = vpop.xlane.xlu0 %6474
        %v6476 = vmul.f32 %v6469, %v1168
        %v6477 = vmul.f32 %v6472, %v1168
        %v6478 = vmul.f32 %v6475, %v1168
        %v6479 = vadd.f32 %v6476, 1e-06
        %v6480 = vadd.f32 %v6477, 1e-06
        %v6481 = vadd.f32 %v6478, 1e-06
        %v6482 = vrsqrt.pop %v6479
        %v6483 = vmul.f32 %v6482, %v6479
        %v6484 = vmul.f32 %v6483, %v6482
        %v6485 = vmul.f32 0.5, %v6484
        %v6486 = vsub.f32 1.5, %v6485
        %v6487 = vmul.f32 %v6482, %v6486
        %vm6488 = vweird.f32 %v6479
        %vm6489 = vweird.f32 %v6482
        %vm6490 = vmor %vm6488, %vm6489
        %v6491 = vsel %vm6490, %v6482, %v6487
        %v6492 = vrsqrt.pop %v6480
        %v6493 = vmul.f32 %v6492, %v6480
        %v6494 = vmul.f32 %v6493, %v6492
        %v6495 = vmul.f32 0.5, %v6494
        %v6496 = vsub.f32 1.5, %v6495
        %v6497 = vmul.f32 %v6492, %v6496
        %vm6498 = vweird.f32 %v6480
        %vm6499 = vweird.f32 %v6492
        %vm6500 = vmor %vm6498, %vm6499
        %v6501 = vsel %vm6500, %v6492, %v6497
        %v6502 = vrsqrt.pop %v6481
        %v6503 = vmul.f32 %v6502, %v6481
        %v6504 = vmul.f32 %v6503, %v6502
        %v6505 = vmul.f32 0.5, %v6504
        %v6506 = vsub.f32 1.5, %v6505
        %v6507 = vmul.f32 %v6502, %v6506
        %vm6508 = vweird.f32 %v6481
        %vm6509 = vweird.f32 %v6502
        %vm6510 = vmor %vm6508, %vm6509
        %v6511 = vsel %vm6510, %v6502, %v6507
        %v6512 = vmul.f32 %v6461, %v6491
        %v6513 = vmul.f32 %v6462, %v6501
        %v6514 = vmul.f32 %v6463, %v6511
        %v6516 = vperm.slane %v5543, 0
        %v6518 = vmul.f32 %v6512, %v6516
        %v6519 = vmul.f32 %v6513, %v6516
        %v6520 = vmul.f32 %v6514, %v6516
        %v6522 = vperm.slane %v5544, 0
        %v6524 = vadd.f32 %v6518, %v6522
        %v6525 = vadd.f32 %v6519, %v6522
        %v6526 = vadd.f32 %v6520, %v6522
        %v6528 = vperm.slane %v5549, 0
        %v6531 = vsel %vm1151, %v6524, 0
        %v6534 = vsel %vm1151, %v6525, 0
        %v6537 = vsel %vm1151, %v6526, 0
        %6539 = vmatpush.msra.mxu0 0.0
        %6540 = vmatpush.msra.mxu0 0.0
        %6541 = vmatpush.msra.mxu0 0.0
        %6542 = vmatpush.msra.mxu0 0.0
        %6543 = vmatpush.msra.mxu0 0.0
        %6544 = vmatpush.msra.mxu0 0.0
        %6545 = vmatpush.msra.mxu0 0.0
        %6546 = vmatpush.msra.mxu0 0.0
        %6547 = vmatpush.msra.mxu0 0.0
        %6548 = vmatpush.msra.mxu0 0.0
        %6549 = vmatpush.msra.mxu0 0.0
        %6550 = vmatpush.msra.mxu0 0.0
        %6551 = vmatpush.msra.mxu0 %v5548
        %6552 = vmatpush.msra.mxu0 %v5547
        %6553 = vmatpush.msra.mxu0 %v5546
        %6554 = vmatpush.msra.mxu0 %v5545
        %6555 = vmatmul.f32.gmra.mxu0 %v6531
        %v6556 = vpop.f32.mrf.mxu0
        %v6557 = vadd.f32 %v6528, %v6556
        %6558 = vmatmul.f32.gmra.mxu0 %v6534
        %v6559 = vpop.f32.mrf.mxu0
        %v6560 = vadd.f32 %v6528, %v6559
        %6561 = vmatmul.f32.gmra.mxu0 %v6537
        %v6562 = vpop.f32.mrf.mxu0
        %v6563 = vadd.f32 %v6528, %v6562
        %6564 = vdwg.mxu0
        %v6565 = vmul.f32 %v6557, 0.5
        %v6566 = vmul.f32 %v6560, 0.5
        %v6567 = vmul.f32 %v6563, 0.5
        %v6568 = vmul.f32 %v6557, 0.70710677
        %v6569 = vmul.f32 %v6560, 0.70710677
        %v6570 = vmul.f32 %v6563, 0.70710677
        %vm6571 = vcmp.ge.f32.partialorder %v6568, 0.0
        %vm6572 = vcmp.ge.f32.partialorder %v6569, 0.0
        %vm6573 = vcmp.ge.f32.partialorder %v6570, 0.0
        %v6574 = vsel %vm6571, 1.0, -1.0
        %v6575 = vsel %vm6572, 1.0, -1.0
        %v6576 = vsel %vm6573, 1.0, -1.0
        %v6577 = vand.u32 2147483647, %v6568
        %v6578 = vand.u32 2147483647, %v6569
        %v6579 = vand.u32 2147483647, %v6570
        %v6580 = vmul.f32 %v6577, 0.3275911
        %v6581 = vmul.f32 %v6578, 0.3275911
        %v6582 = vmul.f32 %v6579, 0.3275911
        %v6583 = vadd.f32 %v6580, 1.0
        %v6584 = vadd.f32 %v6581, 1.0
        %v6585 = vadd.f32 %v6582, 1.0
        %v6586 = vrcp.pop %v6583
        %v6587 = vmul.f32 %v6583, %v6586
        %v6588 = vsub.f32 1.0, %v6587
        %v6589 = vmul.f32 %v6586, %v6588
        %v6590 = vadd.f32 %v6586, %v6589
        %vm6591 = vweird.f32 %v6583
        %vm6592 = vweird.f32 %v6586
        %vm6593 = vmor %vm6591, %vm6592
        %v6594 = vsel %vm6593, %v6586, %v6590
        %v6595 = vand.u32 2147483647, %v6583
        %vm6596 = vcmp.eq.f32.partialorder %v6595, 8.507059e+37
        %v6597 = vand.u32 %v6583, 2147483648
        %v6598 = vor.u32 1.1754944e-38, %v6597
        %v6599 = vsel %vm6596, %v6598, %v6594
        %v6600 = vmul.f32 1.0, %v6599
        %v6601 = vrcp.pop %v6584
        %v6602 = vmul.f32 %v6584, %v6601
        %v6603 = vsub.f32 1.0, %v6602
        %v6604 = vmul.f32 %v6601, %v6603
        %v6605 = vadd.f32 %v6601, %v6604
        %vm6606 = vweird.f32 %v6584
        %vm6607 = vweird.f32 %v6601
        %vm6608 = vmor %vm6606, %vm6607
        %v6609 = vsel %vm6608, %v6601, %v6605
        %v6610 = vand.u32 2147483647, %v6584
        %vm6611 = vcmp.eq.f32.partialorder %v6610, 8.507059e+37
        %v6612 = vand.u32 %v6584, 2147483648
        %v6613 = vor.u32 1.1754944e-38, %v6612
        %v6614 = vsel %vm6611, %v6613, %v6609
        %v6615 = vmul.f32 1.0, %v6614
        %v6616 = vrcp.pop %v6585
        %v6617 = vmul.f32 %v6585, %v6616
        %v6618 = vsub.f32 1.0, %v6617
        %v6619 = vmul.f32 %v6616, %v6618
        %v6620 = vadd.f32 %v6616, %v6619
        %vm6621 = vweird.f32 %v6585
        %vm6622 = vweird.f32 %v6616
        %vm6623 = vmor %vm6621, %vm6622
        %v6624 = vsel %vm6623, %v6616, %v6620
        %v6625 = vand.u32 2147483647, %v6585
        %vm6626 = vcmp.eq.f32.partialorder %v6625, 8.507059e+37
        %v6627 = vand.u32 %v6585, 2147483648
        %v6628 = vor.u32 1.1754944e-38, %v6627
        %v6629 = vsel %vm6626, %v6628, %v6624
        %v6630 = vmul.f32 1.0, %v6629
        %v6631 = vmul.f32 %v6600, 1.0614054
        %v6632 = vmul.f32 %v6615, 1.0614054
        %v6633 = vmul.f32 %v6630, 1.0614054
        %v6634 = vadd.f32 %v6631, -1.4531521
        %v6635 = vadd.f32 %v6632, -1.4531521
        %v6636 = vadd.f32 %v6633, -1.4531521
        %v6637 = vmul.f32 %v6634, %v6600
        %v6638 = vmul.f32 %v6635, %v6615
        %v6639 = vmul.f32 %v6636, %v6630
        %v6640 = vadd.f32 %v6637, 1.4214138
        %v6641 = vadd.f32 %v6638, 1.4214138
        %v6642 = vadd.f32 %v6639, 1.4214138
        %v6643 = vmul.f32 %v6640, %v6600
        %v6644 = vmul.f32 %v6641, %v6615
        %v6645 = vmul.f32 %v6642, %v6630
        %v6646 = vadd.f32 %v6643, -0.28449672
        %v6647 = vadd.f32 %v6644, -0.28449672
        %v6648 = vadd.f32 %v6645, -0.28449672
        %v6649 = vmul.f32 %v6646, %v6600
        %v6650 = vmul.f32 %v6647, %v6615
        %v6651 = vmul.f32 %v6648, %v6630
        %v6652 = vadd.f32 %v6649, 0.2548296
        %v6653 = vadd.f32 %v6650, 0.2548296
        %v6654 = vadd.f32 %v6651, 0.2548296
        %v6655 = vmul.f32 %v6652, %v6600
        %v6656 = vmul.f32 %v6653, %v6615
        %v6657 = vmul.f32 %v6654, %v6630
        %v6658 = vsub.f32 0.0, %v6577
        %v6659 = vsub.f32 0.0, %v6578
        %v6660 = vsub.f32 0.0, %v6579
        %v6661 = vmul.f32 %v6658, %v6577
        %v6662 = vmul.f32 %v6659, %v6578
        %v6663 = vmul.f32 %v6660, %v6579
        %v6664 = vmul.f32 %v6661, 1.442695
        %v6665 = vpow.pop %v6664
        %v6666 = vmul.f32 %v6662, 1.442695
        %v6667 = vpow.pop %v6666
        %v6668 = vmul.f32 %v6663, 1.442695
        %v6669 = vpow.pop %v6668
        %v6670 = vmul.f32 %v6655, %v6665
        %v6671 = vmul.f32 %v6656, %v6667
        %v6672 = vmul.f32 %v6657, %v6669
        %v6673 = vsub.f32 1.0, %v6670
        %v6674 = vsub.f32 1.0, %v6671
        %v6675 = vsub.f32 1.0, %v6672
        %v6676 = vmul.f32 %v6574, %v6673
        %v6677 = vmul.f32 %v6575, %v6674
        %v6678 = vmul.f32 %v6576, %v6675
        %v6679 = vadd.f32 %v6676, 1.0
        %v6680 = vadd.f32 %v6677, 1.0
        %v6681 = vadd.f32 %v6678, 1.0
        %v6682 = vmul.f32 %v6565, %v6679
        %v6683 = vmul.f32 %v6566, %v6680
        %v6684 = vmul.f32 %v6567, %v6681
        %6685 = vmatpush.msra.mxu0 %v5565
        %6686 = vmatpush.msra.mxu0 %v5564
        %6687 = vmatpush.msra.mxu0 %v5563
        %6688 = vmatpush.msra.mxu0 %v5562
        %6689 = vmatpush.msra.mxu0 %v5561
        %6690 = vmatpush.msra.mxu0 %v5560
        %6691 = vmatpush.msra.mxu0 %v5559
        %6692 = vmatpush.msra.mxu0 %v5558
        %6693 = vmatpush.msra.mxu0 %v5557
        %6694 = vmatpush.msra.mxu0 %v5556
        %6695 = vmatpush.msra.mxu0 %v5555
        %6696 = vmatpush.msra.mxu0 %v5554
        %6697 = vmatpush.msra.mxu0 %v5553
        %6698 = vmatpush.msra.mxu0 %v5552
        %6699 = vmatpush.msra.mxu0 %v5551
        %6700 = vmatpush.msra.mxu0 %v5550
        %6701 = vmatmul.f32.gmra.mxu0 %v6682
        %v6702 = vpop.f32.mrf.mxu0
        %v6703 = vadd.f32 0.0, %v6702
        %6704 = vmatmul.f32.gmra.mxu0 %v6683
        %v6705 = vpop.f32.mrf.mxu0
        %6706 = vmatmul.f32.gmra.mxu0 %v6684
        %v6707 = vpop.f32.mrf.mxu0
        %6708 = vdwg.mxu0
        %v6709 = vadd.f32 %v6446, %v6703
        %v6711 = vperm.slane %v5566, 0
        %v6713 = vadd.f32 %v6709, %v6711
        %v6714 = vld [vmem:[%s61] sm:$0x1]
        %v6715 = vld [vmem:[%s63] sm:$0x1]
        %v6716 = vld [vmem:[%s65] sm:$0xff]
        %v6717 = vld [vmem:[%s65 + $0x8] sm:$0xff]
        %v6718 = vld [vmem:[%s65 + $0x10] sm:$0xff]
        %v6719 = vld [vmem:[%s65 + $0x18] sm:$0xff]
        %v6720 = vld [vmem:[%s67] sm:$0x1]
        %v6721 = vsel %vm1158, %v6713, 0.0
        %6722 = vadd.xlane.f32.xlu0 %v6721
        %v6723 = vpop.xlane.xlu0 %6722
        %v6724 = vmul.f32 %v6723, %v1168
        %v6725 = vsub.f32 %v6713, %v6724
        %v6726 = vmul.f32 %v6725, %v6725
        %v6727 = vsel %vm1158, %v6726, 0.0
        %6728 = vadd.xlane.f32.xlu0 %v6727
        %v6729 = vpop.xlane.xlu0 %6728
        %v6730 = vmul.f32 %v6729, %v1168
        %v6731 = vadd.f32 %v6730, 1e-06
        %v6732 = vrsqrt.pop %v6731
        %v6733 = vmul.f32 %v6732, %v6731
        %v6734 = vmul.f32 %v6733, %v6732
        %v6735 = vmul.f32 0.5, %v6734
        %v6736 = vsub.f32 1.5, %v6735
        %v6737 = vmul.f32 %v6732, %v6736
        %vm6738 = vweird.f32 %v6731
        %vm6739 = vweird.f32 %v6732
        %vm6740 = vmor %vm6738, %vm6739
        %v6741 = vsel %vm6740, %v6732, %v6737
        %v6742 = vmul.f32 %v6725, %v6741
        %v6743 = vmul.f32 %v6742, %v6714
        %v6744 = vadd.f32 %v6743, %v6715
        %v6746 = vsel %vm1151, %v6744, 0
        %6748 = vmatpush.msra.mxu0 0.0
        %6749 = vmatpush.msra.mxu0 0.0
        %6750 = vmatpush.msra.mxu0 0.0
        %6751 = vmatpush.msra.mxu0 0.0
        %6752 = vmatpush.msra.mxu0 0.0
        %6753 = vmatpush.msra.mxu0 0.0
        %6754 = vmatpush.msra.mxu0 0.0
        %6755 = vmatpush.msra.mxu0 0.0
        %6756 = vmatpush.msra.mxu0 0.0
        %6757 = vmatpush.msra.mxu0 0.0
        %6758 = vmatpush.msra.mxu0 0.0
        %6759 = vmatpush.msra.mxu0 0.0
        %6760 = vmatpush.msra.mxu0 %v6719
        %6761 = vmatpush.msra.mxu0 %v6718
        %6762 = vmatpush.msra.mxu0 %v6717
        %6763 = vmatpush.msra.mxu0 %v6716
        %6764 = vmatmul.f32.gmra.mxu0 %v6746
        %v6765 = vpop.f32.mrf.mxu0
        %v6766 = vadd.f32 %v6720, %v6765
        %6767 = vdwg.mxu0
        %vm6768 = vcmask 73728
        %6769 = vst.msk [vmem:[%s1034] sm:$0x1] %vm6768, %v6766
        %s6770 = sand.u32 %s810, 1
        %s6771 = scalar_lea.sflag [#allocation3], %s6770
        %s6772 = sand.u32 %s810, 1
        %s6773 = scalar_lea.vmem [#allocation2], %s6772
        // Predicated region
        $region157: #{vit_forward.1} parent=155 // pred_check
          %p6774 = pneg %p820
        $region158: #{vit_forward.1} parent=155 // pred_check_branch
          %6776 = sbr.rel (%p6774) target = $region160
        $region159: #{vit_forward.1} parent=155 // pred_region
          %6778 = vsyncadd %s6771, 0
          %s6779 = scalar_lea.hbm %s69, %s83
          %s6781 = sshll.u32 %s6773, 4
          %s6782 = int_to_ptr.vmem [resolvable:$true] %s6781
          %s6783 = sshll.u32 %s6779, 4
          %s6784 = int_to_ptr.hbm [resolvable:$true] %s6783
          %6786 = dma.vmem_to_hbm [thread:$0]  %s6782, 16, %s6784, %s6771
        $region160: #{vit_forward.1} parent=155 // pred_fallthru
          _
      $region156: #{vit_forward.1} parent=5 // pred_fallthru
        _
      %p6787 = scmp.le.s32.totalorder 2, %s78
      // Predicated region
      $region161: #{vit_forward.1} parent=5 // pred_check
        %p6788 = pneg %p6787
      $region162: #{vit_forward.1} parent=5 // pred_check_branch
        %6790 = sbr.rel (%p6788) target = $region164
      $region163: #{vit_forward.1} parent=5 // pred_region
        %s6791 = ssub.s32 %s78, 2
        // Predicated region
        $region165: #{vit_forward.1} parent=163 // pred_check
          %p6792 = pneg %p826
        $region166: #{vit_forward.1} parent=163 // pred_check_branch
          %6794 = sbr.rel (%p6792) target = $region168
        $region167: #{vit_forward.1} parent=163 // pred_region
          %s6795 = sand.u32 %s811, 1
          %s6796 = scalar_lea.sflag [#allocation3], %s6795
          %s6797 = sand.u32 %s811, 1
          %s6798 = scalar_lea.vmem [#allocation2], %s6797
          %6800 = dma.done %s6796, 16
        $region168: #{vit_forward.1} parent=163 // pred_fallthru
          _
      $region164: #{vit_forward.1} parent=5 // pred_fallthru
        _
    $region6: #{vit_forward.1} parent=1 // loop_footer
      %s82 = sadd.s32 1, %s78
    $region7: #{vit_forward.1} parent=1 // loop_footer_branch
      %77 = sbr.rel target = $region3
    $region8: #{vit_forward.1} parent=1 // loop_exit
      _
    %6801 = vsyncpa [#allocation3], 1
    %s6802 = scalar_lea.sflag [#allocation3], 1
    %6803 = vsyncpa %s6802, 1

</llo_original>
